<compile_context>
chip_gen: v7x
topology: tpu7x:2x2x1
jax: 0.10.0
libtpu: 0.0.40
codegen_flags: <defaults>
</compile_context>

<pallas_src>
import functools

import jax
import jax.numpy as jnp
from jax.experimental import pallas as pl
from jax.experimental.pallas import tpu as pltpu

EPS = 1e-6      # module EPS (leaky-ReLU projection denominator)
BN_EPS = 1e-5   # torch.nn.BatchNorm1d default eps


def _round_up(v, m):
    return (v + m - 1) // m * m


# -----------------------------------------------------------------------------
# weight / constant preprocessing (runs once in the wrapper, outside the kernels)
# -----------------------------------------------------------------------------
def _expand_vn_weight(w, in_major, out_major):
    """Expand a vector-neuron linear weight W[o, c] to a (3*Cout, 3*Cin) matrix.

    Flattened activations carry (channel, vector-component) on one sublane axis;
    `in_major` / `out_major` pick the row ordering on each side:
      'c' : row = c * 3 + k   (what x.reshape(B, 3C, N) gives for the raw input)
      'k' : row = k * C + c   (contiguous k-slices -> cheap in-kernel splits)
    The expanded matmul computes p[row, n] = sum_c W[o, c] * x[col, n] for all n.
    """
    cout, cin = w.shape
    eye3 = jnp.eye(3, dtype=w.dtype)
    t = jnp.einsum('kl,oc->kolc', eye3, w)          # axes: (k_out, o, k_in, c)
    axes = [0, 1, 2, 3]
    if out_major == 'c':
        axes[0], axes[1] = 1, 0
    if in_major == 'c':
        axes[2], axes[3] = 3, 2
    t = jnp.transpose(t, axes)
    return t.reshape(3 * cout, 3 * cin)


def _split_k(w_exp, cin):
    """(R, 3*Cin) k-major-input expanded weight -> (3, R, Cin) per component."""
    r = w_exp.shape[0]
    return jnp.transpose(w_exp.reshape(r, 3, cin), (1, 0, 2))


def _make_final_mats(c, dtype):
    """Per-component constants for the fused layer-2 + standard-frame kernel.

    emats[t] (3C, 3C): (emats[t] @ x_flat)[c*3+a] = x_flat[c*3+t]
    tmats[t] (3C, 16): (tmats[t] @ z9)[c*3+a]     = z9[t*3+a]   (cols 9..15 zero)
    x_std row c*3+a = sum_t (emats[t] x) * (tmats[t] z9); keeping the matrices
    split per t means only one (3C, TN) temporary slab is live at a time.
    """
    eye3 = jnp.eye(3, dtype=dtype)
    eyec = jnp.eye(c, dtype=dtype)
    eye9 = jnp.eye(9, dtype=dtype)
    emats = jnp.stack(
        [jnp.kron(eyec, jnp.tile(eye3[t][None, :], (3, 1))) for t in range(3)])
    tmats = jnp.stack(
        [jnp.pad(jnp.tile(eye9[t * 3:(t + 1) * 3, :], (c, 1)), ((0, 0), (0, 7)))
         for t in range(3)])
    return emats, tmats


# -----------------------------------------------------------------------------
# in-kernel helpers
# -----------------------------------------------------------------------------
def _vector_leaky_relu(p, d, negative_slope):
    # out = p - (1 - slope) * 1[dot < 0] * dot / (|d|^2 + EPS) * d
    dot = p[0] * d[0] + p[1] * d[1] + p[2] * d[2]
    dn2 = d[0] * d[0] + d[1] * d[1] + d[2] * d[2]
    coef = (1.0 - negative_slope) * jnp.where(
        dot < 0.0, dot * pl.reciprocal(dn2 + EPS, approx=False), 0.0)
    return [p[k] - coef * d[k] for k in range(3)]


def _bn_apply(p, scale, shift):
    # VNBatchNorm: p <- p / ||p|| * ((||p|| - mean) * inv_std) = p*(scale + shift/||p||)
    # ||p|| == 0 (zero-padded lanes) is guarded -> 0 instead of NaN; padded lanes
    # are sliced off in the wrapper and valid lanes are never exactly zero.
    norm = jnp.sqrt(p[0] * p[0] + p[1] * p[1] + p[2] * p[2])
    inv_norm = jnp.where(norm > 0.0, pl.reciprocal(norm, approx=False), 0.0)
    factor = scale + shift * inv_norm
    return [pk * factor for pk in p]


def _norm_partial_sums(p, cout):
    # per-tile partial sums of ||p|| and ||p||^2 over the lane (point) axis
    p0, p1, p2 = p[0:cout], p[cout:2 * cout], p[2 * cout:3 * cout]
    nrm = jnp.sqrt(p0 * p0 + p1 * p1 + p2 * p2)
    s1 = jnp.sum(nrm, axis=-1, keepdims=True)          # (cout, 1)
    s2 = jnp.sum(nrm * nrm, axis=-1, keepdims=True)    # (cout, 1)
    return s1, s2


# -----------------------------------------------------------------------------
# kernels
# -----------------------------------------------------------------------------
def _vn_norm_sums_kernel(x_ref, wf_ref, sums_ref):
    # x_ref: (1, 3*Cin, TN)   wf_ref: (3*Cout, 3*Cin) rows k-major
    # sums_ref: (1, 1, 2*Cout, 1) -- rows [0:Cout]=sum ||p||, [Cout:2Cout]=sum ||p||^2
    cout = sums_ref.shape[2] // 2
    p = jnp.dot(wf_ref[...], x_ref[0], preferred_element_type=jnp.float32)
    s1, s2 = _norm_partial_sums(p, cout)
    sums_ref[0, 0, 0:cout, :] = s1
    sums_ref[0, 0, cout:2 * cout, :] = s2


def _vn_layer1_bn_kernel(x_ref, wpd_ref, scale_ref, shift_ref, wf2k_ref,
                         z1_ref, sums2_ref, *, negative_slope):
    # x_ref     : (1, 3*Cin, TN)   rows c*3 + k
    # wpd_ref   : (6*Cout, 3*Cin)  [feat rows ; dir rows], both k-major
    # scale/shift: (Cout, 1) f32   BN affine applied to ||p||
    # wf2k_ref  : (3, 3*C4, Cout)  layer-2 feature weight, split per component k
    # z1_ref    : (1, 3*Cout, TN)  rows k*Cout + c
    # sums2_ref : (1, 1, 2*C4, 1)  layer-2 BN partial sums (fused: z1 never re-read)
    cout = z1_ref.shape[1] // 3
    c4 = sums2_ref.shape[2] // 2
    pd = jnp.dot(wpd_ref[...], x_ref[0], preferred_element_type=jnp.float32)
    p = [pd[k * cout:(k + 1) * cout] for k in range(3)]
    d = [pd[(3 + k) * cout:(4 + k) * cout] for k in range(3)]
    p = _bn_apply(p, scale_ref[...], shift_ref[...])
    out = _vector_leaky_relu(p, d, negative_slope)
    # Direct per-component stores (no sublane-concat temporary), and the layer-2
    # feature matmul for BN stats while the tile is still resident.
    p2 = None
    for k in range(3):
        zk = out[k].astype(z1_ref.dtype)
        z1_ref[0, k * cout:(k + 1) * cout, :] = zk
        part = jnp.dot(wf2k_ref[k], zk, preferred_element_type=jnp.float32)
        p2 = part if p2 is None else p2 + part
    s1, s2 = _norm_partial_sums(p2, c4)
    sums2_ref[0, 0, 0:c4, :] = s1
    sums2_ref[0, 0, c4:2 * c4, :] = s2


def _vn_layer1_nobn_kernel(x_ref, wpd_ref, z1_ref, *, negative_slope):
    cout = z1_ref.shape[1] // 3
    pd = jnp.dot(wpd_ref[...], x_ref[0], preferred_element_type=jnp.float32)
    p = [pd[k * cout:(k + 1) * cout] for k in range(3)]
    d = [pd[(3 + k) * cout:(4 + k) * cout] for k in range(3)]
    out = _vector_leaky_relu(p, d, negative_slope)
    for k in range(3):
        z1_ref[0, k * cout:(k + 1) * cout, :] = out[k].astype(z1_ref.dtype)


def _vn_layer2_final_kernel(x_ref, z1_ref, wpd2_ref, scale_ref, shift_ref,
                            w3k_ref, e_ref, t_ref, xstd_ref, z9_ref, *,
                            negative_slope, use_batchnorm):
    # x_ref   : (1, 3*C,  TN) original features, rows c*3 + j
    # z1_ref  : (1, 3*C2, TN) layer-1 output, rows k*C2 + c
    # wpd2_ref: (6*C4, 3*C2)  [feat ; dir] expanded layer-2 weights (k-major)
    # w3k_ref : (3, 16, C4)   vn_lin weight split per input component k; output
    #                         rows padded 9 -> 16 with zeros (dense z9 store)
    # e_ref   : (3, 3*C, 3*C), t_ref: (3, 3*C, 16)   see _make_final_mats
    # xstd_ref: (1, 3*C, TN)  rows c*3 + a
    # z9_ref  : (1, 16, TN)   rows k*3 + a (== z0.transpose(1,2)); rows 9..15 = 0
    c4 = wpd2_ref.shape[0] // 6
    pd = jnp.dot(wpd2_ref[...], z1_ref[0], preferred_element_type=jnp.float32)
    p = [pd[k * c4:(k + 1) * c4] for k in range(3)]
    d = [pd[(3 + k) * c4:(4 + k) * c4] for k in range(3)]
    if use_batchnorm:
        p = _bn_apply(p, scale_ref[...], shift_ref[...])
    z2 = _vector_leaky_relu(p, d, negative_slope)        # kept in vregs, no HBM
    z9 = None
    for k in range(3):
        part = jnp.dot(w3k_ref[k], z2[k], preferred_element_type=jnp.float32)
        z9 = part if z9 is None else z9 + part           # (16, TN)
    z9_ref[0] = z9.astype(z9_ref.dtype)
    # x_std[c, a, n] = sum_t x[c, t, n] * z9[t*3 + a, n]; accumulate one vector
    # component t at a time so only one (3C, TN) temporary slab is live (VMEM).
    x0 = x_ref[0]
    acc = None
    for t in range(3):
        xg = jnp.dot(e_ref[t], x0, preferred_element_type=jnp.float32)
        zg = jnp.dot(t_ref[t], z9, preferred_element_type=jnp.float32)
        term = xg * zg
        acc = term if acc is None else acc + term
    xstd_ref[0] = acc.astype(xstd_ref.dtype)


# -----------------------------------------------------------------------------
# wrapper
# -----------------------------------------------------------------------------
def vn_std_feature(x, params, *, negative_slope=0.2, use_batchnorm=True,
                   tile_n=1024):
    """VNStdFeature forward.  x: [B, C, 3, N] -> (x_std [B,C,3,N], z0 [B,3,3,N]).

    Implements the module defaults: dim=4, normalize_frame=False,
    share_nonlinearity=False; use_batchnorm selects training-mode VNBatchNorm.
    """
    # TODO(synk): share_nonlinearity=True, normalize_frame=True (Gram-Schmidt
    # frame + cross product), dim=3/5 layouts, and eval-mode (running-stats)
    # BatchNorm are not implemented; only the default module configuration is.
    b, c, three, n = x.shape
    assert three == 3 and c % 4 == 0
    dt = x.dtype
    c2, c4 = c // 2, c // 4

    # N is tiled into lanes; pad it up to a multiple of the lane tile.
    tn = min(_round_up(int(tile_n), 128), _round_up(n, 128))
    n_pad = _round_up(n, tn)
    # v7x megacore: keep >= 2 parallel grid steps so both TensorCores are used.
    if b * (n_pad // tn) < 2 and tn > 128:
        tn = _round_up(max(tn // 2, 128), 128)
        n_pad = _round_up(n, tn)
    n_tiles = n_pad // tn

    x_flat = x.reshape(b, 3 * c, n)        # free reshape: rows c*3 + k (c-major)
    if n_pad != n:
        x_flat = jnp.pad(x_flat, ((0, 0), (0, 0), (0, n_pad - n)))

    # Expanded (W kron I3) weights, built once outside the kernels.
    wf1 = _expand_vn_weight(params['w_feat1'], 'c', 'k').astype(dt)
    wd1 = _expand_vn_weight(params['w_dir1'], 'c', 'k').astype(dt)
    wf2 = _expand_vn_weight(params['w_feat2'], 'k', 'k').astype(dt)
    wd2 = _expand_vn_weight(params['w_dir2'], 'k', 'k').astype(dt)
    w3 = _expand_vn_weight(params['w_lin'], 'k', 'k').astype(dt)
    wpd1 = jnp.concatenate([wf1, wd1], axis=0)              # (6*C2, 3*C)
    wpd2 = jnp.concatenate([wf2, wd2], axis=0)              # (6*C4, 3*C2)
    wf2k = _split_k(wf2, c2)                                 # (3, 3*C4, C2)
    w3k = _split_k(jnp.pad(w3, ((0, 7), (0, 0))), c4)        # (3, 16, C4)
    emats, tmats = _make_final_mats(c, dt)                   # (3,3C,3C),(3,3C,16)

    grid = (n_tiles, b)   # longer axis first; both axes megacore-parallel
    cparams = pltpu.CompilerParams(
        dimension_semantics=("parallel", "parallel"))

    def act_spec(rows):
        return pl.BlockSpec((1, rows, tn), lambda j, i: (i, 0, j))

    def full_spec(arr):
        nd = arr.ndim
        return pl.BlockSpec(arr.shape, lambda j, i: (0,) * nd)

    def sums_spec(cout):
        return pl.BlockSpec((1, 1, 2 * cout, 1), lambda j, i: (i, j, 0, 0))

    def bn_affine(sums, cout):
        # training-mode BatchNorm1d statistics over (batch, valid points);
        # zero-padded lanes contribute exactly 0 to the partial sums.
        tot = jnp.sum(sums, axis=(0, 1))[:, 0]               # (2*cout,) f32
        count = b * n
        mean = tot[:cout] / count
        var = jnp.maximum(tot[cout:] / count - mean * mean, 0.0)
        inv_std = 1.0 / jnp.sqrt(var + BN_EPS)
        scale = inv_std.reshape(cout, 1).astype(jnp.float32)
        shift = (-mean * inv_std).reshape(cout, 1).astype(jnp.float32)
        return scale, shift

    if use_batchnorm:
        # pass A: layer-1 feature-norm partial sums (tiny output, no full-norm writeback)
        sums1 = pl.pallas_call(
            _vn_norm_sums_kernel,
            out_shape=jax.ShapeDtypeStruct((b, n_tiles, 2 * c2, 1), jnp.float32),
            grid=grid,
            in_specs=[act_spec(3 * c), full_spec(wf1)],
            out_specs=sums_spec(c2),
            compiler_params=cparams,
        )(x_flat, wf1)
        scale1, shift1 = bn_affine(sums1, c2)

        # pass B: layer-1 apply fused with layer-2 feature-norm partial sums
        z1, sums2 = pl.pallas_call(
            functools.partial(_vn_layer1_bn_kernel,
                              negative_slope=float(negative_slope)),
            out_shape=(jax.ShapeDtypeStruct((b, 3 * c2, n_pad), dt),
                       jax.ShapeDtypeStruct((b, n_tiles, 2 * c4, 1), jnp.float32)),
            grid=grid,
            in_specs=[act_spec(3 * c), full_spec(wpd1), full_spec(scale1),
                      full_spec(shift1), full_spec(wf2k)],
            out_specs=(act_spec(3 * c2), sums_spec(c4)),
            compiler_params=cparams,
        )(x_flat, wpd1, scale1, shift1, wf2k)
        scale2, shift2 = bn_affine(sums2, c4)
    else:
        z1 = pl.pallas_call(
            functools.partial(_vn_layer1_nobn_kernel,
                              negative_slope=float(negative_slope)),
            out_shape=jax.ShapeDtypeStruct((b, 3 * c2, n_pad), dt),
            grid=grid,
            in_specs=[act_spec(3 * c), full_spec(wpd1)],
            out_specs=act_spec(3 * c2),
            compiler_params=cparams,
        )(x_flat, wpd1)
        scale2 = jnp.ones((c4, 1), jnp.float32)
        shift2 = jnp.zeros((c4, 1), jnp.float32)

    # pass C: layer-2 apply fused with the vn_lin frame + x_std projection
    xstd_flat, z9 = pl.pallas_call(
        functools.partial(_vn_layer2_final_kernel,
                          negative_slope=float(negative_slope),
                          use_batchnorm=use_batchnorm),
        out_shape=(jax.ShapeDtypeStruct((b, 3 * c, n_pad), dt),
                   jax.ShapeDtypeStruct((b, 16, n_pad), dt)),
        grid=grid,
        in_specs=[act_spec(3 * c), act_spec(3 * c2), full_spec(wpd2),
                  full_spec(scale2), full_spec(shift2), full_spec(w3k),
                  full_spec(emats), full_spec(tmats)],
        out_specs=(act_spec(3 * c), act_spec(16)),
        compiler_params=cparams,
    )(x_flat, z1, wpd2, scale2, shift2, w3k, emats, tmats)

    x_std = xstd_flat[:, :, :n].reshape(b, c, 3, n)
    z0 = z9[:, :9, :n].reshape(b, 3, 3, n)
    return x_std, z0


# -----------------------------------------------------------------------------
# pure-JAX reference matching the PyTorch module
# -----------------------------------------------------------------------------
def _vn_linear_leaky_relu_ref(x, w_feat, w_dir, negative_slope, use_batchnorm):
    p = jnp.einsum('oc,bcvn->bovn', w_feat, x)
    if use_batchnorm:
        norm = jnp.sqrt(jnp.sum(p * p, axis=2))                 # [B, Cout, N]
        mean = jnp.mean(norm, axis=(0, 2), keepdims=True)
        var = jnp.mean((norm - mean) ** 2, axis=(0, 2), keepdims=True)
        norm_bn = (norm - mean) / jnp.sqrt(var + BN_EPS)
        p = p / norm[:, :, None, :] * norm_bn[:, :, None, :]
    d = jnp.einsum('oc,bcvn->bovn', w_dir, x)
    dotprod = jnp.sum(p * d, axis=2, keepdims=True)
    mask = (dotprod >= 0).astype(x.dtype)
    d_norm_sq = jnp.sum(d * d, axis=2, keepdims=True)
    return negative_slope * p + (1 - negative_slope) * (
        mask * p + (1 - mask) * (p - dotprod / (d_norm_sq + EPS) * d))


def vn_std_feature_ref(x, params, negative_slope=0.2, use_batchnorm=True):
    z = _vn_linear_leaky_relu_ref(x, params['w_feat1'], params['w_dir1'],
                                  negative_slope, use_batchnorm)
    z = _vn_linear_leaky_relu_ref(z, params['w_feat2'], params['w_dir2'],
                                  negative_slope, use_batchnorm)
    z0 = jnp.einsum('ac,bcvn->bavn', params['w_lin'], z)        # [B, 3(a), 3(k), N]
    z0 = jnp.swapaxes(z0, 1, 2)                                 # [B, 3(k), 3(a), N]
    x_std = jnp.einsum('bijm,bjkm->bikm', x, z0)
    return x_std, z0


if __name__ == "__main__":
    def linear_init(k, cout, cin):
        bound = 1.0 / (cin ** 0.5)   # nn.Linear(bias=False) default init
        return jax.random.uniform(k, (cout, cin), jnp.float32, -bound, bound)

    def make_params(key, c):
        k1, k2, k3, k4, k5 = jax.random.split(key, 5)
        return {
            'w_feat1': linear_init(k1, c // 2, c),
            'w_dir1':  linear_init(k2, c // 2, c),
            'w_feat2': linear_init(k3, c // 4, c // 2),
            'w_dir2':  linear_init(k4, c // 4, c // 2),
            'w_lin':   linear_init(k5, 3, c // 4),
        }

    def check(x, params, use_batchnorm, tile_n):
        run = jax.jit(functools.partial(vn_std_feature, negative_slope=0.2,
                                        use_batchnorm=use_batchnorm,
                                        tile_n=tile_n))
        x_std, z0 = jax.block_until_ready(run(x, params))
        x_std_ref, z0_ref = vn_std_feature_ref(x, params, 0.2, use_batchnorm)
        assert x_std.shape == x_std_ref.shape and z0.shape == z0_ref.shape
        assert jnp.allclose(z0, z0_ref, rtol=1e-3, atol=1e-4), \
            float(jnp.max(jnp.abs(z0 - z0_ref)))
        assert jnp.allclose(x_std, x_std_ref, rtol=1e-3, atol=1e-4), \
            float(jnp.max(jnp.abs(x_std - x_std_ref)))

    key = jax.random.PRNGKey(0)
    kx1, kx2, kx3, kp = jax.random.split(key, 4)
    params32 = make_params(kp, 32)

    # 1) default module config: batchnorm on, N a multiple of the lane tile
    x1 = jax.random.normal(kx1, (2, 32, 3, 1024), dtype=jnp.float32)
    check(x1, params32, use_batchnorm=True, tile_n=1024)

    # 2) batchnorm on + ragged N (exercises zero-padded lanes with BN statistics)
    x2 = jax.random.normal(kx2, (2, 32, 3, 704), dtype=jnp.float32)
    check(x2, params32, use_batchnorm=True, tile_n=512)

    # 3) no batchnorm, batch of 1 (exercises the >=2-grid-step tile split + padding)
    x3 = jax.random.normal(kx3, (1, 32, 3, 640), dtype=jnp.float32)
    check(x3, params32, use_batchnorm=False, tile_n=1024)

    print("KERNEL_OK")
</pallas_src>

<mosaic_0001>
module attributes {stable_mosaic.version = 11 : i64} {
  func.func @_vn_norm_sums_kernel(%arg0: i32, %arg1: i32, %arg2: memref<1x96x1024xf32, #tpu.memory_space<vmem>>, %arg3: memref<48x96xf32, #tpu.memory_space<vmem>>, %arg4: memref<1x1x32x1xf32, #tpu.memory_space<vmem>>) attributes {dimension_semantics = [#tpu.dimension_semantics<parallel>, #tpu.dimension_semantics<parallel>], iteration_bounds = array<i64: 1, 2>, scalar_prefetch = 0 : i64, scratch_operands = 0 : i64, tpu.core_type = #tpu.core_type<tc>, window_params = [{transform_indices = @transform_0, window_bounds = array<i64: 1, 96, 1024>}, {pipeline_mode = #tpu.pipeline_mode<synchronous>, transform_indices = @transform_1, window_bounds = array<i64: 48, 96>}, {transform_indices = @transform_2, window_bounds = array<i64: 1, 1, 32, 1>}]} {
    %c0 = arith.constant 0 : index
    %c0_0 = arith.constant 0 : index
    %0 = vector.load %arg3[%c0, %c0_0] : memref<48x96xf32, #tpu.memory_space<vmem>>, vector<48x96xf32>
    %c0_1 = arith.constant 0 : index
    %c0_2 = arith.constant 0 : index
    %c0_3 = arith.constant 0 : index
    %1 = vector.load %arg2[%c0_1, %c0_2, %c0_3] : memref<1x96x1024xf32, #tpu.memory_space<vmem>>, vector<1x96x1024xf32>
    %2 = vector.shape_cast %1 : vector<1x96x1024xf32> to vector<96x1024xf32>
    %cst = arith.constant dense<0.000000e+00> : vector<48x1024xf32>
    %3 = tpu.matmul %0, %2, %cst {dimension_numbers = #tpu.dot_dimension_numbers<[1], [0], [0], [1], [0, 0, 1, 1], [], []>} : vector<48x96xf32>, vector<96x1024xf32>, vector<48x1024xf32> -> vector<48x1024xf32>
    %4 = vector.extract_strided_slice %3 {offsets = [0, 0], sizes = [16, 1024], strides = [1, 1]} : vector<48x1024xf32> to vector<16x1024xf32>
    %5 = vector.extract_strided_slice %3 {offsets = [16, 0], sizes = [16, 1024], strides = [1, 1]} : vector<48x1024xf32> to vector<16x1024xf32>
    %6 = vector.extract_strided_slice %3 {offsets = [32, 0], sizes = [16, 1024], strides = [1, 1]} : vector<48x1024xf32> to vector<16x1024xf32>
    %7 = arith.mulf %4, %4 : vector<16x1024xf32>
    %8 = arith.mulf %5, %5 : vector<16x1024xf32>
    %9 = arith.addf %7, %8 : vector<16x1024xf32>
    %10 = arith.mulf %6, %6 : vector<16x1024xf32>
    %11 = arith.addf %9, %10 : vector<16x1024xf32>
    %12 = math.sqrt %11 : vector<16x1024xf32>
    %cst_4 = arith.constant dense<0.000000e+00> : vector<16xf32>
    %13 = vector.multi_reduction <add>, %12, %cst_4 [1] : vector<16x1024xf32> to vector<16xf32>
    %14 = vector.shape_cast %13 : vector<16xf32> to vector<16x1xf32>
    %15 = arith.mulf %12, %12 : vector<16x1024xf32>
    %cst_5 = arith.constant dense<0.000000e+00> : vector<16xf32>
    %16 = vector.multi_reduction <add>, %15, %cst_5 [1] : vector<16x1024xf32> to vector<16xf32>
    %17 = vector.shape_cast %16 : vector<16xf32> to vector<16x1xf32>
    %c0_6 = arith.constant 0 : index
    %c0_7 = arith.constant 0 : index
    %c0_8 = arith.constant 0 : index
    %c0_9 = arith.constant 0 : index
    %18 = vector.load %arg4[%c0_6, %c0_7, %c0_8, %c0_9] : memref<1x1x32x1xf32, #tpu.memory_space<vmem>>, vector<1x1x16x1xf32>
    %19 = vector.shape_cast %18 : vector<1x1x16x1xf32> to vector<16x1xf32>
    %20 = vector.shape_cast %14 : vector<16x1xf32> to vector<1x1x16x1xf32>
    tpu.vector_store %arg4[%c0_6, %c0_7, %c0_8, %c0_9], %20 {strides = array<i32>} : memref<1x1x32x1xf32, #tpu.memory_space<vmem>>, vector<1x1x16x1xf32>,
    %c0_10 = arith.constant 0 : index
    %c0_11 = arith.constant 0 : index
    %c16 = arith.constant 16 : index
    %c0_12 = arith.constant 0 : index
    %21 = vector.load %arg4[%c0_10, %c0_11, %c16, %c0_12] : memref<1x1x32x1xf32, #tpu.memory_space<vmem>>, vector<1x1x16x1xf32>
    %22 = vector.shape_cast %21 : vector<1x1x16x1xf32> to vector<16x1xf32>
    %23 = vector.shape_cast %17 : vector<16x1xf32> to vector<1x1x16x1xf32>
    tpu.vector_store %arg4[%c0_10, %c0_11, %c16, %c0_12], %23 {strides = array<i32>} : memref<1x1x32x1xf32, #tpu.memory_space<vmem>>, vector<1x1x16x1xf32>,
    return
  }
  func.func @transform_0(%arg0: i32, %arg1: i32) -> (i32, i32, i32) {
    %c0_i32 = arith.constant 0 : i32
    %c0_i32_0 = arith.constant 0 : i32
    return %arg1, %c0_i32, %arg0 : i32, i32, i32
  }
  func.func @transform_1(%arg0: i32, %arg1: i32) -> (i32, i32) {
    %c0_i32 = arith.constant 0 : i32
    %c0_i32_0 = arith.constant 0 : i32
    %c0_i32_1 = arith.constant 0 : i32
    return %c0_i32, %c0_i32_0 : i32, i32
  }
  func.func @transform_2(%arg0: i32, %arg1: i32) -> (i32, i32, i32, i32) {
    %c0_i32 = arith.constant 0 : i32
    %c0_i32_0 = arith.constant 0 : i32
    %c0_i32_1 = arith.constant 0 : i32
    return %arg1, %arg0, %c0_i32, %c0_i32_0 : i32, i32, i32, i32
  }
}

module attributes {stable_mosaic.version = 11 : i64} {
  func.func @_vn_layer1_bn_kernel(%arg0: i32, %arg1: i32, %arg2: memref<1x96x1024xf32, #tpu.memory_space<vmem>>, %arg3: memref<96x96xf32, #tpu.memory_space<vmem>>, %arg4: memref<16x1xf32, #tpu.memory_space<vmem>>, %arg5: memref<16x1xf32, #tpu.memory_space<vmem>>, %arg6: memref<3x24x16xf32, #tpu.memory_space<vmem>>, %arg7: memref<1x48x1024xf32, #tpu.memory_space<vmem>>, %arg8: memref<1x1x16x1xf32, #tpu.memory_space<vmem>>) attributes {dimension_semantics = [#tpu.dimension_semantics<parallel>, #tpu.dimension_semantics<parallel>], iteration_bounds = array<i64: 1, 2>, scalar_prefetch = 0 : i64, scratch_operands = 0 : i64, tpu.core_type = #tpu.core_type<tc>, window_params = [{transform_indices = @transform_0, window_bounds = array<i64: 1, 96, 1024>}, {pipeline_mode = #tpu.pipeline_mode<synchronous>, transform_indices = @transform_1, window_bounds = array<i64: 96, 96>}, {pipeline_mode = #tpu.pipeline_mode<synchronous>, transform_indices = @transform_2, window_bounds = array<i64: 16, 1>}, {pipeline_mode = #tpu.pipeline_mode<synchronous>, transform_indices = @transform_3, window_bounds = array<i64: 16, 1>}, {pipeline_mode = #tpu.pipeline_mode<synchronous>, transform_indices = @transform_4, window_bounds = array<i64: 3, 24, 16>}, {transform_indices = @transform_5, window_bounds = array<i64: 1, 48, 1024>}, {transform_indices = @transform_6, window_bounds = array<i64: 1, 1, 16, 1>}]} {
    %c0 = arith.constant 0 : index
    %c0_0 = arith.constant 0 : index
    %0 = vector.load %arg3[%c0, %c0_0] : memref<96x96xf32, #tpu.memory_space<vmem>>, vector<96x96xf32>
    %c0_1 = arith.constant 0 : index
    %c0_2 = arith.constant 0 : index
    %c0_3 = arith.constant 0 : index
    %1 = vector.load %arg2[%c0_1, %c0_2, %c0_3] : memref<1x96x1024xf32, #tpu.memory_space<vmem>>, vector<1x96x1024xf32>
    %2 = vector.shape_cast %1 : vector<1x96x1024xf32> to vector<96x1024xf32>
    %cst = arith.constant dense<0.000000e+00> : vector<96x1024xf32>
    %3 = tpu.matmul %0, %2, %cst {dimension_numbers = #tpu.dot_dimension_numbers<[1], [0], [0], [1], [0, 0, 1, 1], [], []>} : vector<96x96xf32>, vector<96x1024xf32>, vector<96x1024xf32> -> vector<96x1024xf32>
    %4 = vector.extract_strided_slice %3 {offsets = [0, 0], sizes = [16, 1024], strides = [1, 1]} : vector<96x1024xf32> to vector<16x1024xf32>
    %5 = vector.extract_strided_slice %3 {offsets = [16, 0], sizes = [16, 1024], strides = [1, 1]} : vector<96x1024xf32> to vector<16x1024xf32>
    %6 = vector.extract_strided_slice %3 {offsets = [32, 0], sizes = [16, 1024], strides = [1, 1]} : vector<96x1024xf32> to vector<16x1024xf32>
    %7 = vector.extract_strided_slice %3 {offsets = [48, 0], sizes = [16, 1024], strides = [1, 1]} : vector<96x1024xf32> to vector<16x1024xf32>
    %8 = vector.extract_strided_slice %3 {offsets = [64, 0], sizes = [16, 1024], strides = [1, 1]} : vector<96x1024xf32> to vector<16x1024xf32>
    %9 = vector.extract_strided_slice %3 {offsets = [80, 0], sizes = [16, 1024], strides = [1, 1]} : vector<96x1024xf32> to vector<16x1024xf32>
    %c0_4 = arith.constant 0 : index
    %c0_5 = arith.constant 0 : index
    %10 = vector.load %arg4[%c0_4, %c0_5] : memref<16x1xf32, #tpu.memory_space<vmem>>, vector<16x1xf32>
    %c0_6 = arith.constant 0 : index
    %c0_7 = arith.constant 0 : index
    %11 = vector.load %arg5[%c0_6, %c0_7] : memref<16x1xf32, #tpu.memory_space<vmem>>, vector<16x1xf32>
    %12 = arith.mulf %4, %4 : vector<16x1024xf32>
    %13 = arith.mulf %5, %5 : vector<16x1024xf32>
    %14 = arith.addf %12, %13 : vector<16x1024xf32>
    %15 = arith.mulf %6, %6 : vector<16x1024xf32>
    %16 = arith.addf %14, %15 : vector<16x1024xf32>
    %17 = math.sqrt %16 : vector<16x1024xf32>
    %cst_8 = arith.constant 0.000000e+00 : f32
    %18 = vector.broadcast %cst_8 : f32 to vector<16x1024xf32>
    %19 = arith.cmpf ogt, %17, %18 : vector<16x1024xf32>
    %20 = tpu.reciprocal %17 : vector<16x1024xf32> -> vector<16x1024xf32>
    %cst_9 = arith.constant 0.000000e+00 : f32
    %21 = vector.broadcast %cst_9 : f32 to vector<16x1024xf32>
    %22 = arith.select %19, %20, %21 : vector<16x1024xi1>, vector<16x1024xf32>
    %23 = vector.broadcast %11 : vector<16x1xf32> to vector<16x1024xf32>
    %24 = arith.mulf %23, %22 : vector<16x1024xf32>
    %25 = vector.broadcast %10 : vector<16x1xf32> to vector<16x1024xf32>
    %26 = arith.addf %25, %24 : vector<16x1024xf32>
    %27 = arith.mulf %4, %26 : vector<16x1024xf32>
    %28 = arith.mulf %5, %26 : vector<16x1024xf32>
    %29 = arith.mulf %6, %26 : vector<16x1024xf32>
    %30 = arith.mulf %27, %7 : vector<16x1024xf32>
    %31 = arith.mulf %28, %8 : vector<16x1024xf32>
    %32 = arith.addf %30, %31 : vector<16x1024xf32>
    %33 = arith.mulf %29, %9 : vector<16x1024xf32>
    %34 = arith.addf %32, %33 : vector<16x1024xf32>
    %35 = arith.mulf %7, %7 : vector<16x1024xf32>
    %36 = arith.mulf %8, %8 : vector<16x1024xf32>
    %37 = arith.addf %35, %36 : vector<16x1024xf32>
    %38 = arith.mulf %9, %9 : vector<16x1024xf32>
    %39 = arith.addf %37, %38 : vector<16x1024xf32>
    %cst_10 = arith.constant 0.000000e+00 : f32
    %40 = vector.broadcast %cst_10 : f32 to vector<16x1024xf32>
    %41 = arith.cmpf olt, %34, %40 : vector<16x1024xf32>
    %cst_11 = arith.constant 9.99999997E-7 : f32
    %42 = vector.broadcast %cst_11 : f32 to vector<16x1024xf32>
    %43 = arith.addf %39, %42 : vector<16x1024xf32>
    %44 = tpu.reciprocal %43 : vector<16x1024xf32> -> vector<16x1024xf32>
    %45 = arith.mulf %34, %44 : vector<16x1024xf32>
    %cst_12 = arith.constant 0.000000e+00 : f32
    %46 = vector.broadcast %cst_12 : f32 to vector<16x1024xf32>
    %47 = arith.select %41, %45, %46 : vector<16x1024xi1>, vector<16x1024xf32>
    %cst_13 = arith.constant 8.000000e-01 : f32
    %48 = vector.broadcast %cst_13 : f32 to vector<16x1024xf32>
    %49 = arith.mulf %48, %47 : vector<16x1024xf32>
    %50 = arith.mulf %49, %7 : vector<16x1024xf32>
    %51 = arith.subf %27, %50 : vector<16x1024xf32>
    %52 = arith.mulf %49, %8 : vector<16x1024xf32>
    %53 = arith.subf %28, %52 : vector<16x1024xf32>
    %54 = arith.mulf %49, %9 : vector<16x1024xf32>
    %55 = arith.subf %29, %54 : vector<16x1024xf32>
    %c0_14 = arith.constant 0 : index
    %c0_15 = arith.constant 0 : index
    %c0_16 = arith.constant 0 : index
    %56 = vector.load %arg7[%c0_14, %c0_15, %c0_16] : memref<1x48x1024xf32, #tpu.memory_space<vmem>>, vector<1x16x1024xf32>
    %57 = vector.shape_cast %56 : vector<1x16x1024xf32> to vector<16x1024xf32>
    %58 = vector.shape_cast %51 : vector<16x1024xf32> to vector<1x16x1024xf32>
    tpu.vector_store %arg7[%c0_14, %c0_15, %c0_16], %58 {strides = array<i32>} : memref<1x48x1024xf32, #tpu.memory_space<vmem>>, vector<1x16x1024xf32>,
    %c0_17 = arith.constant 0 : index
    %c0_18 = arith.constant 0 : index
    %c0_19 = arith.constant 0 : index
    %59 = vector.load %arg6[%c0_17, %c0_18, %c0_19] : memref<3x24x16xf32, #tpu.memory_space<vmem>>, vector<1x24x16xf32>
    %60 = vector.shape_cast %59 : vector<1x24x16xf32> to vector<24x16xf32>
    %cst_20 = arith.constant dense<0.000000e+00> : vector<24x1024xf32>
    %61 = tpu.matmul %60, %51, %cst_20 {dimension_numbers = #tpu.dot_dimension_numbers<[1], [0], [0], [1], [0, 0, 1, 1], [], []>} : vector<24x16xf32>, vector<16x1024xf32>, vector<24x1024xf32> -> vector<24x1024xf32>
    %c0_21 = arith.constant 0 : index
    %c16 = arith.constant 16 : index
    %c0_22 = arith.constant 0 : index
    %62 = vector.load %arg7[%c0_21, %c16, %c0_22] : memref<1x48x1024xf32, #tpu.memory_space<vmem>>, vector<1x16x1024xf32>
    %63 = vector.shape_cast %62 : vector<1x16x1024xf32> to vector<16x1024xf32>
    %64 = vector.shape_cast %53 : vector<16x1024xf32> to vector<1x16x1024xf32>
    tpu.vector_store %arg7[%c0_21, %c16, %c0_22], %64 {strides = array<i32>} : memref<1x48x1024xf32, #tpu.memory_space<vmem>>, vector<1x16x1024xf32>,
    %c1 = arith.constant 1 : index
    %c0_23 = arith.constant 0 : index
    %c0_24 = arith.constant 0 : index
    %65 = vector.load %arg6[%c1, %c0_23, %c0_24] : memref<3x24x16xf32, #tpu.memory_space<vmem>>, vector<1x24x16xf32>
    %66 = vector.shape_cast %65 : vector<1x24x16xf32> to vector<24x16xf32>
    %cst_25 = arith.constant dense<0.000000e+00> : vector<24x1024xf32>
    %67 = tpu.matmul %66, %53, %cst_25 {dimension_numbers = #tpu.dot_dimension_numbers<[1], [0], [0], [1], [0, 0, 1, 1], [], []>} : vector<24x16xf32>, vector<16x1024xf32>, vector<24x1024xf32> -> vector<24x1024xf32>
    %68 = arith.addf %61, %67 : vector<24x1024xf32>
    %c0_26 = arith.constant 0 : index
    %c32 = arith.constant 32 : index
    %c0_27 = arith.constant 0 : index
    %69 = vector.load %arg7[%c0_26, %c32, %c0_27] : memref<1x48x1024xf32, #tpu.memory_space<vmem>>, vector<1x16x1024xf32>
    %70 = vector.shape_cast %69 : vector<1x16x1024xf32> to vector<16x1024xf32>
    %71 = vector.shape_cast %55 : vector<16x1024xf32> to vector<1x16x1024xf32>
    tpu.vector_store %arg7[%c0_26, %c32, %c0_27], %71 {strides = array<i32>} : memref<1x48x1024xf32, #tpu.memory_space<vmem>>, vector<1x16x1024xf32>,
    %c2 = arith.constant 2 : index
    %c0_28 = arith.constant 0 : index
    %c0_29 = arith.constant 0 : index
    %72 = vector.load %arg6[%c2, %c0_28, %c0_29] : memref<3x24x16xf32, #tpu.memory_space<vmem>>, vector<1x24x16xf32>
    %73 = vector.shape_cast %72 : vector<1x24x16xf32> to vector<24x16xf32>
    %cst_30 = arith.constant dense<0.000000e+00> : vector<24x1024xf32>
    %74 = tpu.matmul %73, %55, %cst_30 {dimension_numbers = #tpu.dot_dimension_numbers<[1], [0], [0], [1], [0, 0, 1, 1], [], []>} : vector<24x16xf32>, vector<16x1024xf32>, vector<24x1024xf32> -> vector<24x1024xf32>
    %75 = arith.addf %68, %74 : vector<24x1024xf32>
    %76 = vector.extract_strided_slice %75 {offsets = [0, 0], sizes = [8, 1024], strides = [1, 1]} : vector<24x1024xf32> to vector<8x1024xf32>
    %77 = vector.extract_strided_slice %75 {offsets = [8, 0], sizes = [8, 1024], strides = [1, 1]} : vector<24x1024xf32> to vector<8x1024xf32>
    %78 = vector.extract_strided_slice %75 {offsets = [16, 0], sizes = [8, 1024], strides = [1, 1]} : vector<24x1024xf32> to vector<8x1024xf32>
    %79 = arith.mulf %76, %76 : vector<8x1024xf32>
    %80 = arith.mulf %77, %77 : vector<8x1024xf32>
    %81 = arith.addf %79, %80 : vector<8x1024xf32>
    %82 = arith.mulf %78, %78 : vector<8x1024xf32>
    %83 = arith.addf %81, %82 : vector<8x1024xf32>
    %84 = math.sqrt %83 : vector<8x1024xf32>
    %cst_31 = arith.constant dense<0.000000e+00> : vector<8xf32>
    %85 = vector.multi_reduction <add>, %84, %cst_31 [1] : vector<8x1024xf32> to vector<8xf32>
    %86 = vector.shape_cast %85 : vector<8xf32> to vector<8x1xf32>
    %87 = arith.mulf %84, %84 : vector<8x1024xf32>
    %cst_32 = arith.constant dense<0.000000e+00> : vector<8xf32>
    %88 = vector.multi_reduction <add>, %87, %cst_32 [1] : vector<8x1024xf32> to vector<8xf32>
    %89 = vector.shape_cast %88 : vector<8xf32> to vector<8x1xf32>
    %c0_33 = arith.constant 0 : index
    %c0_34 = arith.constant 0 : index
    %c0_35 = arith.constant 0 : index
    %c0_36 = arith.constant 0 : index
    %90 = vector.load %arg8[%c0_33, %c0_34, %c0_35, %c0_36] : memref<1x1x16x1xf32, #tpu.memory_space<vmem>>, vector<1x1x8x1xf32>
    %91 = vector.shape_cast %90 : vector<1x1x8x1xf32> to vector<8x1xf32>
    %92 = vector.shape_cast %86 : vector<8x1xf32> to vector<1x1x8x1xf32>
    tpu.vector_store %arg8[%c0_33, %c0_34, %c0_35, %c0_36], %92 {strides = array<i32>} : memref<1x1x16x1xf32, #tpu.memory_space<vmem>>, vector<1x1x8x1xf32>,
    %c0_37 = arith.constant 0 : index
    %c0_38 = arith.constant 0 : index
    %c8 = arith.constant 8 : index
    %c0_39 = arith.constant 0 : index
    %93 = vector.load %arg8[%c0_37, %c0_38, %c8, %c0_39] : memref<1x1x16x1xf32, #tpu.memory_space<vmem>>, vector<1x1x8x1xf32>
    %94 = vector.shape_cast %93 : vector<1x1x8x1xf32> to vector<8x1xf32>
    %95 = vector.shape_cast %89 : vector<8x1xf32> to vector<1x1x8x1xf32>
    tpu.vector_store %arg8[%c0_37, %c0_38, %c8, %c0_39], %95 {strides = array<i32>} : memref<1x1x16x1xf32, #tpu.memory_space<vmem>>, vector<1x1x8x1xf32>,
    return
  }
  func.func @transform_0(%arg0: i32, %arg1: i32) -> (i32, i32, i32) {
    %c0_i32 = arith.constant 0 : i32
    %c0_i32_0 = arith.constant 0 : i32
    return %arg1, %c0_i32, %arg0 : i32, i32, i32
  }
  func.func @transform_1(%arg0: i32, %arg1: i32) -> (i32, i32) {
    %c0_i32 = arith.constant 0 : i32
    %c0_i32_0 = arith.constant 0 : i32
    %c0_i32_1 = arith.constant 0 : i32
    return %c0_i32, %c0_i32_0 : i32, i32
  }
  func.func @transform_2(%arg0: i32, %arg1: i32) -> (i32, i32) {
    %c0_i32 = arith.constant 0 : i32
    %c0_i32_0 = arith.constant 0 : i32
    %c0_i32_1 = arith.constant 0 : i32
    return %c0_i32, %c0_i32_0 : i32, i32
  }
  func.func @transform_3(%arg0: i32, %arg1: i32) -> (i32, i32) {
    %c0_i32 = arith.constant 0 : i32
    %c0_i32_0 = arith.constant 0 : i32
    %c0_i32_1 = arith.constant 0 : i32
    return %c0_i32, %c0_i32_0 : i32, i32
  }
  func.func @transform_4(%arg0: i32, %arg1: i32) -> (i32, i32, i32) {
    %c0_i32 = arith.constant 0 : i32
    %c0_i32_0 = arith.constant 0 : i32
    %c0_i32_1 = arith.constant 0 : i32
    %c0_i32_2 = arith.constant 0 : i32
    return %c0_i32, %c0_i32_0, %c0_i32_1 : i32, i32, i32
  }
  func.func @transform_5(%arg0: i32, %arg1: i32) -> (i32, i32, i32) {
    %c0_i32 = arith.constant 0 : i32
    %c0_i32_0 = arith.constant 0 : i32
    return %arg1, %c0_i32, %arg0 : i32, i32, i32
  }
  func.func @transform_6(%arg0: i32, %arg1: i32) -> (i32, i32, i32, i32) {
    %c0_i32 = arith.constant 0 : i32
    %c0_i32_0 = arith.constant 0 : i32
    %c0_i32_1 = arith.constant 0 : i32
    return %arg1, %arg0, %c0_i32, %c0_i32_0 : i32, i32, i32, i32
  }
}

module attributes {stable_mosaic.version = 11 : i64} {
  func.func @_vn_layer2_final_kernel(%arg0: i32, %arg1: i32, %arg2: memref<1x96x1024xf32, #tpu.memory_space<vmem>>, %arg3: memref<1x48x1024xf32, #tpu.memory_space<vmem>>, %arg4: memref<48x48xf32, #tpu.memory_space<vmem>>, %arg5: memref<8x1xf32, #tpu.memory_space<vmem>>, %arg6: memref<8x1xf32, #tpu.memory_space<vmem>>, %arg7: memref<3x16x8xf32, #tpu.memory_space<vmem>>, %arg8: memref<3x96x96xf32, #tpu.memory_space<vmem>>, %arg9: memref<3x96x16xf32, #tpu.memory_space<vmem>>, %arg10: memref<1x96x1024xf32, #tpu.memory_space<vmem>>, %arg11: memref<1x16x1024xf32, #tpu.memory_space<vmem>>) attributes {dimension_semantics = [#tpu.dimension_semantics<parallel>, #tpu.dimension_semantics<parallel>], iteration_bounds = array<i64: 1, 2>, scalar_prefetch = 0 : i64, scratch_operands = 0 : i64, tpu.core_type = #tpu.core_type<tc>, window_params = [{transform_indices = @transform_0, window_bounds = array<i64: 1, 96, 1024>}, {transform_indices = @transform_1, window_bounds = array<i64: 1, 48, 1024>}, {pipeline_mode = #tpu.pipeline_mode<synchronous>, transform_indices = @transform_2, window_bounds = array<i64: 48, 48>}, {pipeline_mode = #tpu.pipeline_mode<synchronous>, transform_indices = @transform_3, window_bounds = array<i64: 8, 1>}, {pipeline_mode = #tpu.pipeline_mode<synchronous>, transform_indices = @transform_4, window_bounds = array<i64: 8, 1>}, {pipeline_mode = #tpu.pipeline_mode<synchronous>, transform_indices = @transform_5, window_bounds = array<i64: 3, 16, 8>}, {pipeline_mode = #tpu.pipeline_mode<synchronous>, transform_indices = @transform_6, window_bounds = array<i64: 3, 96, 96>}, {pipeline_mode = #tpu.pipeline_mode<synchronous>, transform_indices = @transform_7, window_bounds = array<i64: 3, 96, 16>}, {transform_indices = @transform_8, window_bounds = array<i64: 1, 96, 1024>}, {transform_indices = @transform_9, window_bounds = array<i64: 1, 16, 1024>}]} {
    %c0 = arith.constant 0 : index
    %c0_0 = arith.constant 0 : index
    %0 = vector.load %arg4[%c0, %c0_0] : memref<48x48xf32, #tpu.memory_space<vmem>>, vector<48x48xf32>
    %c0_1 = arith.constant 0 : index
    %c0_2 = arith.constant 0 : index
    %c0_3 = arith.constant 0 : index
    %1 = vector.load %arg3[%c0_1, %c0_2, %c0_3] : memref<1x48x1024xf32, #tpu.memory_space<vmem>>, vector<1x48x1024xf32>
    %2 = vector.shape_cast %1 : vector<1x48x1024xf32> to vector<48x1024xf32>
    %cst = arith.constant dense<0.000000e+00> : vector<48x1024xf32>
    %3 = tpu.matmul %0, %2, %cst {dimension_numbers = #tpu.dot_dimension_numbers<[1], [0], [0], [1], [0, 0, 1, 1], [], []>} : vector<48x48xf32>, vector<48x1024xf32>, vector<48x1024xf32> -> vector<48x1024xf32>
    %4 = vector.extract_strided_slice %3 {offsets = [0, 0], sizes = [8, 1024], strides = [1, 1]} : vector<48x1024xf32> to vector<8x1024xf32>
    %5 = vector.extract_strided_slice %3 {offsets = [8, 0], sizes = [8, 1024], strides = [1, 1]} : vector<48x1024xf32> to vector<8x1024xf32>
    %6 = vector.extract_strided_slice %3 {offsets = [16, 0], sizes = [8, 1024], strides = [1, 1]} : vector<48x1024xf32> to vector<8x1024xf32>
    %7 = vector.extract_strided_slice %3 {offsets = [24, 0], sizes = [8, 1024], strides = [1, 1]} : vector<48x1024xf32> to vector<8x1024xf32>
    %8 = vector.extract_strided_slice %3 {offsets = [32, 0], sizes = [8, 1024], strides = [1, 1]} : vector<48x1024xf32> to vector<8x1024xf32>
    %9 = vector.extract_strided_slice %3 {offsets = [40, 0], sizes = [8, 1024], strides = [1, 1]} : vector<48x1024xf32> to vector<8x1024xf32>
    %c0_4 = arith.constant 0 : index
    %c0_5 = arith.constant 0 : index
    %10 = vector.load %arg5[%c0_4, %c0_5] : memref<8x1xf32, #tpu.memory_space<vmem>>, vector<8x1xf32>
    %c0_6 = arith.constant 0 : index
    %c0_7 = arith.constant 0 : index
    %11 = vector.load %arg6[%c0_6, %c0_7] : memref<8x1xf32, #tpu.memory_space<vmem>>, vector<8x1xf32>
    %12 = arith.mulf %4, %4 : vector<8x1024xf32>
    %13 = arith.mulf %5, %5 : vector<8x1024xf32>
    %14 = arith.addf %12, %13 : vector<8x1024xf32>
    %15 = arith.mulf %6, %6 : vector<8x1024xf32>
    %16 = arith.addf %14, %15 : vector<8x1024xf32>
    %17 = math.sqrt %16 : vector<8x1024xf32>
    %cst_8 = arith.constant 0.000000e+00 : f32
    %18 = vector.broadcast %cst_8 : f32 to vector<8x1024xf32>
    %19 = arith.cmpf ogt, %17, %18 : vector<8x1024xf32>
    %20 = tpu.reciprocal %17 : vector<8x1024xf32> -> vector<8x1024xf32>
    %cst_9 = arith.constant 0.000000e+00 : f32
    %21 = vector.broadcast %cst_9 : f32 to vector<8x1024xf32>
    %22 = arith.select %19, %20, %21 : vector<8x1024xi1>, vector<8x1024xf32>
    %23 = vector.broadcast %11 : vector<8x1xf32> to vector<8x1024xf32>
    %24 = arith.mulf %23, %22 : vector<8x1024xf32>
    %25 = vector.broadcast %10 : vector<8x1xf32> to vector<8x1024xf32>
    %26 = arith.addf %25, %24 : vector<8x1024xf32>
    %27 = arith.mulf %4, %26 : vector<8x1024xf32>
    %28 = arith.mulf %5, %26 : vector<8x1024xf32>
    %29 = arith.mulf %6, %26 : vector<8x1024xf32>
    %30 = arith.mulf %27, %7 : vector<8x1024xf32>
    %31 = arith.mulf %28, %8 : vector<8x1024xf32>
    %32 = arith.addf %30, %31 : vector<8x1024xf32>
    %33 = arith.mulf %29, %9 : vector<8x1024xf32>
    %34 = arith.addf %32, %33 : vector<8x1024xf32>
    %35 = arith.mulf %7, %7 : vector<8x1024xf32>
    %36 = arith.mulf %8, %8 : vector<8x1024xf32>
    %37 = arith.addf %35, %36 : vector<8x1024xf32>
    %38 = arith.mulf %9, %9 : vector<8x1024xf32>
    %39 = arith.addf %37, %38 : vector<8x1024xf32>
    %cst_10 = arith.constant 0.000000e+00 : f32
    %40 = vector.broadcast %cst_10 : f32 to vector<8x1024xf32>
    %41 = arith.cmpf olt, %34, %40 : vector<8x1024xf32>
    %cst_11 = arith.constant 9.99999997E-7 : f32
    %42 = vector.broadcast %cst_11 : f32 to vector<8x1024xf32>
    %43 = arith.addf %39, %42 : vector<8x1024xf32>
    %44 = tpu.reciprocal %43 : vector<8x1024xf32> -> vector<8x1024xf32>
    %45 = arith.mulf %34, %44 : vector<8x1024xf32>
    %cst_12 = arith.constant 0.000000e+00 : f32
    %46 = vector.broadcast %cst_12 : f32 to vector<8x1024xf32>
    %47 = arith.select %41, %45, %46 : vector<8x1024xi1>, vector<8x1024xf32>
    %cst_13 = arith.constant 8.000000e-01 : f32
    %48 = vector.broadcast %cst_13 : f32 to vector<8x1024xf32>
    %49 = arith.mulf %48, %47 : vector<8x1024xf32>
    %50 = arith.mulf %49, %7 : vector<8x1024xf32>
    %51 = arith.subf %27, %50 : vector<8x1024xf32>
    %52 = arith.mulf %49, %8 : vector<8x1024xf32>
    %53 = arith.subf %28, %52 : vector<8x1024xf32>
    %54 = arith.mulf %49, %9 : vector<8x1024xf32>
    %55 = arith.subf %29, %54 : vector<8x1024xf32>
    %c0_14 = arith.constant 0 : index
    %c0_15 = arith.constant 0 : index
    %c0_16 = arith.constant 0 : index
    %56 = vector.load %arg7[%c0_14, %c0_15, %c0_16] : memref<3x16x8xf32, #tpu.memory_space<vmem>>, vector<1x16x8xf32>
    %57 = vector.shape_cast %56 : vector<1x16x8xf32> to vector<16x8xf32>
    %cst_17 = arith.constant dense<0.000000e+00> : vector<16x1024xf32>
    %58 = tpu.matmul %57, %51, %cst_17 {dimension_numbers = #tpu.dot_dimension_numbers<[1], [0], [0], [1], [0, 0, 1, 1], [], []>} : vector<16x8xf32>, vector<8x1024xf32>, vector<16x1024xf32> -> vector<16x1024xf32>
    %c1 = arith.constant 1 : index
    %c0_18 = arith.constant 0 : index
    %c0_19 = arith.constant 0 : index
    %59 = vector.load %arg7[%c1, %c0_18, %c0_19] : memref<3x16x8xf32, #tpu.memory_space<vmem>>, vector<1x16x8xf32>
    %60 = vector.shape_cast %59 : vector<1x16x8xf32> to vector<16x8xf32>
    %cst_20 = arith.constant dense<0.000000e+00> : vector<16x1024xf32>
    %61 = tpu.matmul %60, %53, %cst_20 {dimension_numbers = #tpu.dot_dimension_numbers<[1], [0], [0], [1], [0, 0, 1, 1], [], []>} : vector<16x8xf32>, vector<8x1024xf32>, vector<16x1024xf32> -> vector<16x1024xf32>
    %62 = arith.addf %58, %61 : vector<16x1024xf32>
    %c2 = arith.constant 2 : index
    %c0_21 = arith.constant 0 : index
    %c0_22 = arith.constant 0 : index
    %63 = vector.load %arg7[%c2, %c0_21, %c0_22] : memref<3x16x8xf32, #tpu.memory_space<vmem>>, vector<1x16x8xf32>
    %64 = vector.shape_cast %63 : vector<1x16x8xf32> to vector<16x8xf32>
    %cst_23 = arith.constant dense<0.000000e+00> : vector<16x1024xf32>
    %65 = tpu.matmul %64, %55, %cst_23 {dimension_numbers = #tpu.dot_dimension_numbers<[1], [0], [0], [1], [0, 0, 1, 1], [], []>} : vector<16x8xf32>, vector<8x1024xf32>, vector<16x1024xf32> -> vector<16x1024xf32>
    %66 = arith.addf %62, %65 : vector<16x1024xf32>
    %c0_24 = arith.constant 0 : index
    %c0_25 = arith.constant 0 : index
    %c0_26 = arith.constant 0 : index
    %67 = vector.load %arg11[%c0_24, %c0_25, %c0_26] : memref<1x16x1024xf32, #tpu.memory_space<vmem>>, vector<1x16x1024xf32>
    %68 = vector.shape_cast %67 : vector<1x16x1024xf32> to vector<16x1024xf32>
    %69 = vector.shape_cast %66 : vector<16x1024xf32> to vector<1x16x1024xf32>
    tpu.vector_store %arg11[%c0_24, %c0_25, %c0_26], %69 {strides = array<i32>} : memref<1x16x1024xf32, #tpu.memory_space<vmem>>, vector<1x16x1024xf32>,
    %c0_27 = arith.constant 0 : index
    %c0_28 = arith.constant 0 : index
    %c0_29 = arith.constant 0 : index
    %70 = vector.load %arg2[%c0_27, %c0_28, %c0_29] : memref<1x96x1024xf32, #tpu.memory_space<vmem>>, vector<1x96x1024xf32>
    %71 = vector.shape_cast %70 : vector<1x96x1024xf32> to vector<96x1024xf32>
    %c0_30 = arith.constant 0 : index
    %c0_31 = arith.constant 0 : index
    %c0_32 = arith.constant 0 : index
    %72 = vector.load %arg8[%c0_30, %c0_31, %c0_32] : memref<3x96x96xf32, #tpu.memory_space<vmem>>, vector<1x96x96xf32>
    %73 = vector.shape_cast %72 : vector<1x96x96xf32> to vector<96x96xf32>
    %cst_33 = arith.constant dense<0.000000e+00> : vector<96x1024xf32>
    %74 = tpu.matmul %73, %71, %cst_33 {dimension_numbers = #tpu.dot_dimension_numbers<[1], [0], [0], [1], [0, 0, 1, 1], [], []>} : vector<96x96xf32>, vector<96x1024xf32>, vector<96x1024xf32> -> vector<96x1024xf32>
    %c0_34 = arith.constant 0 : index
    %c0_35 = arith.constant 0 : index
    %c0_36 = arith.constant 0 : index
    %75 = vector.load %arg9[%c0_34, %c0_35, %c0_36] : memref<3x96x16xf32, #tpu.memory_space<vmem>>, vector<1x96x16xf32>
    %76 = vector.shape_cast %75 : vector<1x96x16xf32> to vector<96x16xf32>
    %cst_37 = arith.constant dense<0.000000e+00> : vector<96x1024xf32>
    %77 = tpu.matmul %76, %66, %cst_37 {dimension_numbers = #tpu.dot_dimension_numbers<[1], [0], [0], [1], [0, 0, 1, 1], [], []>} : vector<96x16xf32>, vector<16x1024xf32>, vector<96x1024xf32> -> vector<96x1024xf32>
    %78 = arith.mulf %74, %77 : vector<96x1024xf32>
    %c1_38 = arith.constant 1 : index
    %c0_39 = arith.constant 0 : index
    %c0_40 = arith.constant 0 : index
    %79 = vector.load %arg8[%c1_38, %c0_39, %c0_40] : memref<3x96x96xf32, #tpu.memory_space<vmem>>, vector<1x96x96xf32>
    %80 = vector.shape_cast %79 : vector<1x96x96xf32> to vector<96x96xf32>
    %cst_41 = arith.constant dense<0.000000e+00> : vector<96x1024xf32>
    %81 = tpu.matmul %80, %71, %cst_41 {dimension_numbers = #tpu.dot_dimension_numbers<[1], [0], [0], [1], [0, 0, 1, 1], [], []>} : vector<96x96xf32>, vector<96x1024xf32>, vector<96x1024xf32> -> vector<96x1024xf32>
    %c1_42 = arith.constant 1 : index
    %c0_43 = arith.constant 0 : index
    %c0_44 = arith.constant 0 : index
    %82 = vector.load %arg9[%c1_42, %c0_43, %c0_44] : memref<3x96x16xf32, #tpu.memory_space<vmem>>, vector<1x96x16xf32>
    %83 = vector.shape_cast %82 : vector<1x96x16xf32> to vector<96x16xf32>
    %cst_45 = arith.constant dense<0.000000e+00> : vector<96x1024xf32>
    %84 = tpu.matmul %83, %66, %cst_45 {dimension_numbers = #tpu.dot_dimension_numbers<[1], [0], [0], [1], [0, 0, 1, 1], [], []>} : vector<96x16xf32>, vector<16x1024xf32>, vector<96x1024xf32> -> vector<96x1024xf32>
    %85 = arith.mulf %81, %84 : vector<96x1024xf32>
    %86 = arith.addf %78, %85 : vector<96x1024xf32>
    %c2_46 = arith.constant 2 : index
    %c0_47 = arith.constant 0 : index
    %c0_48 = arith.constant 0 : index
    %87 = vector.load %arg8[%c2_46, %c0_47, %c0_48] : memref<3x96x96xf32, #tpu.memory_space<vmem>>, vector<1x96x96xf32>
    %88 = vector.shape_cast %87 : vector<1x96x96xf32> to vector<96x96xf32>
    %cst_49 = arith.constant dense<0.000000e+00> : vector<96x1024xf32>
    %89 = tpu.matmul %88, %71, %cst_49 {dimension_numbers = #tpu.dot_dimension_numbers<[1], [0], [0], [1], [0, 0, 1, 1], [], []>} : vector<96x96xf32>, vector<96x1024xf32>, vector<96x1024xf32> -> vector<96x1024xf32>
    %c2_50 = arith.constant 2 : index
    %c0_51 = arith.constant 0 : index
    %c0_52 = arith.constant 0 : index
    %90 = vector.load %arg9[%c2_50, %c0_51, %c0_52] : memref<3x96x16xf32, #tpu.memory_space<vmem>>, vector<1x96x16xf32>
    %91 = vector.shape_cast %90 : vector<1x96x16xf32> to vector<96x16xf32>
    %cst_53 = arith.constant dense<0.000000e+00> : vector<96x1024xf32>
    %92 = tpu.matmul %91, %66, %cst_53 {dimension_numbers = #tpu.dot_dimension_numbers<[1], [0], [0], [1], [0, 0, 1, 1], [], []>} : vector<96x16xf32>, vector<16x1024xf32>, vector<96x1024xf32> -> vector<96x1024xf32>
    %93 = arith.mulf %89, %92 : vector<96x1024xf32>
    %94 = arith.addf %86, %93 : vector<96x1024xf32>
    %c0_54 = arith.constant 0 : index
    %c0_55 = arith.constant 0 : index
    %c0_56 = arith.constant 0 : index
    %95 = vector.load %arg10[%c0_54, %c0_55, %c0_56] : memref<1x96x1024xf32, #tpu.memory_space<vmem>>, vector<1x96x1024xf32>
    %96 = vector.shape_cast %95 : vector<1x96x1024xf32> to vector<96x1024xf32>
    %97 = vector.shape_cast %94 : vector<96x1024xf32> to vector<1x96x1024xf32>
    tpu.vector_store %arg10[%c0_54, %c0_55, %c0_56], %97 {strides = array<i32>} : memref<1x96x1024xf32, #tpu.memory_space<vmem>>, vector<1x96x1024xf32>,
    return
  }
  func.func @transform_0(%arg0: i32, %arg1: i32) -> (i32, i32, i32) {
    %c0_i32 = arith.constant 0 : i32
    %c0_i32_0 = arith.constant 0 : i32
    return %arg1, %c0_i32, %arg0 : i32, i32, i32
  }
  func.func @transform_1(%arg0: i32, %arg1: i32) -> (i32, i32, i32) {
    %c0_i32 = arith.constant 0 : i32
    %c0_i32_0 = arith.constant 0 : i32
    return %arg1, %c0_i32, %arg0 : i32, i32, i32
  }
  func.func @transform_2(%arg0: i32, %arg1: i32) -> (i32, i32) {
    %c0_i32 = arith.constant 0 : i32
    %c0_i32_0 = arith.constant 0 : i32
    %c0_i32_1 = arith.constant 0 : i32
    return %c0_i32, %c0_i32_0 : i32, i32
  }
  func.func @transform_3(%arg0: i32, %arg1: i32) -> (i32, i32) {
    %c0_i32 = arith.constant 0 : i32
    %c0_i32_0 = arith.constant 0 : i32
    %c0_i32_1 = arith.constant 0 : i32
    return %c0_i32, %c0_i32_0 : i32, i32
  }
  func.func @transform_4(%arg0: i32, %arg1: i32) -> (i32, i32) {
    %c0_i32 = arith.constant 0 : i32
    %c0_i32_0 = arith.constant 0 : i32
    %c0_i32_1 = arith.constant 0 : i32
    return %c0_i32, %c0_i32_0 : i32, i32
  }
  func.func @transform_5(%arg0: i32, %arg1: i32) -> (i32, i32, i32) {
    %c0_i32 = arith.constant 0 : i32
    %c0_i32_0 = arith.constant 0 : i32
    %c0_i32_1 = arith.constant 0 : i32
    %c0_i32_2 = arith.constant 0 : i32
    return %c0_i32, %c0_i32_0, %c0_i32_1 : i32, i32, i32
  }
  func.func @transform_6(%arg0: i32, %arg1: i32) -> (i32, i32, i32) {
    %c0_i32 = arith.constant 0 : i32
    %c0_i32_0 = arith.constant 0 : i32
    %c0_i32_1 = arith.constant 0 : i32
    %c0_i32_2 = arith.constant 0 : i32
    return %c0_i32, %c0_i32_0, %c0_i32_1 : i32, i32, i32
  }
  func.func @transform_7(%arg0: i32, %arg1: i32) -> (i32, i32, i32) {
    %c0_i32 = arith.constant 0 : i32
    %c0_i32_0 = arith.constant 0 : i32
    %c0_i32_1 = arith.constant 0 : i32
    %c0_i32_2 = arith.constant 0 : i32
    return %c0_i32, %c0_i32_0, %c0_i32_1 : i32, i32, i32
  }
  func.func @transform_8(%arg0: i32, %arg1: i32) -> (i32, i32, i32) {
    %c0_i32 = arith.constant 0 : i32
    %c0_i32_0 = arith.constant 0 : i32
    return %arg1, %c0_i32, %arg0 : i32, i32, i32
  }
  func.func @transform_9(%arg0: i32, %arg1: i32) -> (i32, i32, i32) {
    %c0_i32 = arith.constant 0 : i32
    %c0_i32_0 = arith.constant 0 : i32
    return %arg1, %c0_i32, %arg0 : i32, i32, i32
  }
}

</mosaic_0001>

<llo_original>
// kernel: vn_std_feature.3
$region0: #{vn_std_feature.3}
  #allocation0 [shape = 'u32[]', space=smem, size = 0x4, offset = 0x4, fixed_abs, tag = 'smem constant byte address 0x4 - core index']
  #allocation1 [shape = 'u32[144,128]{1,0:T(1,128)}', space=vmem, size = 0x12000, scoped, tag = 'internal scratch']
  %s0 = inlined_call_operand.vmem [shape: f32[2,96,1024], index: 0, kind: input, shape index: {}]
  %s1 = inlined_call_operand.vmem [shape: f32[48,96], index: 1, kind: input, shape index: {}]
  %s2 = inlined_call_operand.vmem [shape: f32[2,1,32,1], index: 2, kind: output, shape index: {}]
  %s3 = sld [smem:[#allocation0]]
  $region41: #{vn_std_feature.3} parent=0
    _
  %s5 = ssub.s32 1, %s3
  %s6 = scalar_select 0, %s5, %s3
  loop: start=0, step=1, limit=4
  $region2: #{vn_std_feature.3} parent=0 // loop_pre_header
    _
  $region3: #{vn_std_feature.3} parent=0 // loop_header
    %s8 = sphi 0, %s12
    %p9 = scmp.ge.s32.totalorder %s8, 4
    %s15 = sphi 0, %s27
    %s16 = sphi 0, %s23
    %s17 = sphi 0, %s15
    %s18 = sphi 0, %s16
    %s19 = sphi 0, %s17
    %s20 = sphi 0, %s18
    %s32 = sphi 0, %s34
    %s35 = sphi 0, %s32
    %s36 = sphi 0, %s35
    %s52 = sphi 0, %s36
    %s56 = sphi 0, %s56
    %s58 = sphi 0, %s56
    %s59 = sphi 0, %s58
    %s73 = sphi 0, %s59
    %s81 = sphi 0, %s83
    %s84 = sphi 0, %s81
    %s85 = sphi 0, %s84
    %s101 = sphi 0, %s85
  $region4: #{vn_std_feature.3} parent=0 // loop_header_branch
    %11 = sbr.rel (%p9) target = $region8
  $region5: #{vn_std_feature.3} parent=0 // loop_body
    %s13 = ssub.s32 %s8, 1
    %s14 = ssub.s32 %s8, 2
    %s21 = sadd.s32 1, %s16
    %p22 = scmp.ge.s32.totalorder %s21, 2
    %s23 = scalar_select %p22, 0, %s21
    %s24 = sadd.s32 1, %s15
    %s25 = scalar_select %p22, %s24, %s15
    %p26 = scmp.ge.s32.totalorder %s25, 1
    %s27 = scalar_select %p26, 0, %s25
    %s28 = ssub.s32 %s16, %s23
    %s29 = ssub.s32 %s15, %s27
    %s30 = sor.u32 %s28, %s29
    %p31 = scmp.eq.s32.totalorder %s30, 0
    %s33 = sadd.s32 %s32, 1
    %s34 = scalar_select %p31, %s32, %s33
    %p37 = pneg %p31
    %p38 = scmp.eq.s32.totalorder %s8, 1
    %p39 = por %p37, %p38
    %p40 = scmp.ne.s32.totalorder %s32, %s35
    %p41 = scmp.eq.s32.totalorder %s8, 0
    %p42 = por %p40, %p41
    %p43 = scmp.ne.s32.totalorder %s32, %s35
    %p44 = scmp.eq.s32.totalorder %s13, 1
    %p45 = por %p43, %p44
    %p46 = scmp.ne.s32.totalorder %s35, %s36
    %p47 = scmp.eq.s32.totalorder %s13, 0
    %p48 = por %p46, %p47
    %p49 = scmp.ne.s32.totalorder %s35, %s36
    %p50 = scmp.eq.s32.totalorder %s14, 1
    %p51 = por %p49, %p50
    %p53 = scmp.ne.s32.totalorder %s36, %s52
    %p54 = scmp.eq.s32.totalorder %s14, 0
    %p55 = por %p53, %p54
    %s57 = sadd.s32 %s56, 1
    %p60 = scmp.eq.s32.totalorder %s8, 1
    %p61 = scmp.ne.s32.totalorder %s56, %s58
    %p62 = scmp.eq.s32.totalorder %s8, 0
    %p63 = por %p61, %p62
    %p64 = scmp.ne.s32.totalorder %s56, %s58
    %p65 = scmp.eq.s32.totalorder %s13, 1
    %p66 = por %p64, %p65
    %p67 = scmp.ne.s32.totalorder %s58, %s59
    %p68 = scmp.eq.s32.totalorder %s13, 0
    %p69 = por %p67, %p68
    %p70 = scmp.ne.s32.totalorder %s58, %s59
    %p71 = scmp.eq.s32.totalorder %s14, 1
    %p72 = por %p70, %p71
    %p74 = scmp.ne.s32.totalorder %s59, %s73
    %p75 = scmp.eq.s32.totalorder %s14, 0
    %p76 = por %p74, %p75
    %s77 = ssub.s32 %s16, %s23
    %s78 = ssub.s32 %s15, %s27
    %s79 = sor.u32 %s77, %s78
    %p80 = scmp.eq.s32.totalorder %s79, 0
    %s82 = sadd.s32 %s81, 1
    %s83 = scalar_select %p80, %s81, %s82
    %p86 = pneg %p80
    %p87 = scmp.eq.s32.totalorder %s8, 1
    %p88 = por %p86, %p87
    %p89 = scmp.ne.s32.totalorder %s81, %s84
    %p90 = scmp.eq.s32.totalorder %s8, 0
    %p91 = por %p89, %p90
    %p92 = scmp.ne.s32.totalorder %s81, %s84
    %p93 = scmp.eq.s32.totalorder %s13, 1
    %p94 = por %p92, %p93
    %p95 = scmp.ne.s32.totalorder %s84, %s85
    %p96 = scmp.eq.s32.totalorder %s13, 0
    %p97 = por %p95, %p96
    %p98 = scmp.ne.s32.totalorder %s84, %s85
    %p99 = scmp.eq.s32.totalorder %s14, 1
    %p100 = por %p98, %p99
    %p102 = scmp.ne.s32.totalorder %s85, %s101
    %p103 = scmp.eq.s32.totalorder %s14, 0
    %p104 = por %p102, %p103
    %p105 = scmp.le.s32.totalorder 1, %s8
    %p106 = scmp.lt.s32.totalorder %s8, 3
    %p107 = pnand %p105, %p106
    %p108 = pneg %p107
    // Predicated region
    $region9: #{vn_std_feature.3} parent=5 // pred_check
      _
    $region10: #{vn_std_feature.3} parent=5 // pred_check_branch
      %110 = sbr.rel (%p107) target = $region12
    $region11: #{vn_std_feature.3} parent=5 // pred_region
      %s111 = ssub.s32 %s8, 1
      // Predicated region
      $region13: #{vn_std_feature.3} parent=11 // pred_check
        %p112 = pneg %p69
      $region14: #{vn_std_feature.3} parent=11 // pred_check_branch
        %114 = sbr.rel (%p112) target = $region16
      $region15: #{vn_std_feature.3} parent=11 // pred_region
        _
      $region16: #{vn_std_feature.3} parent=11 // pred_fallthru
        _
    $region12: #{vn_std_feature.3} parent=5 // pred_fallthru
      _
    %p115 = scmp.lt.s32.totalorder %s8, 2
    // Predicated region
    $region17: #{vn_std_feature.3} parent=5 // pred_check
      %p116 = pneg %p115
    $region18: #{vn_std_feature.3} parent=5 // pred_check_branch
      %118 = sbr.rel (%p116) target = $region20
    $region19: #{vn_std_feature.3} parent=5 // pred_region
      // Predicated region
      $region21: #{vn_std_feature.3} parent=19 // pred_check
        %p119 = pneg %p42
      $region22: #{vn_std_feature.3} parent=19 // pred_check_branch
        %121 = sbr.rel (%p119) target = $region24
      $region23: #{vn_std_feature.3} parent=19 // pred_region
        %s122 = smul.u32 8, %s15
        %p123 = scmp.lt.s32.totalorder %s16, 1
        %s124 = scalar_select %p123, %s16, 1
        %p125 = scmp.lt.s32.totalorder %s122, 7
        %s126 = scalar_select %p125, %s122, 7
        %s127 = smul.addr %s124, 96
        %s128 = sadd.s32 %s126, %s127
        %s129 = smul.addr %s128, 8
        %s130 = scalar_lea.vmem %s0, %s129
        %s131 = smul.u32 8, %s15
      $region24: #{vn_std_feature.3} parent=19 // pred_fallthru
        _
    $region20: #{vn_std_feature.3} parent=5 // pred_fallthru
      _
    %p132 = scmp.le.s32.totalorder 1, %s8
    %p133 = scmp.lt.s32.totalorder %s8, 3
    %p134 = pnand %p132, %p133
    %p135 = pneg %p134
    // Predicated region
    $region25: #{vn_std_feature.3} parent=5 // pred_check
      _
    $region26: #{vn_std_feature.3} parent=5 // pred_check_branch
      %137 = sbr.rel (%p134) target = $region28
    $region27: #{vn_std_feature.3} parent=5 // pred_region
      %s138 = ssub.s32 %s8, 1
      %s139 = smul.u32 8, %s17
      %p140 = scmp.lt.s32.totalorder %s18, 1
      %s141 = scalar_select %p140, %s18, 1
      %p142 = scmp.lt.s32.totalorder %s139, 7
      %s143 = scalar_select %p142, %s139, 7
      %s144 = smul.addr %s141, 96
      %s145 = sadd.s32 %s143, %s144
      %s146 = smul.addr %s145, 8
      %s147 = scalar_lea.vmem %s0, %s146
      %p148 = pneg %p48
      %p149 = pneg %p45
      %p150 = pneg %p69
      %p151 = pneg %p66
      %p152 = pneg %p97
      %p153 = pneg %p94
      %p154 = scmp.lt.s32.totalorder %s18, 1
      %s155 = scalar_select %p154, %s18, 1
      %p156 = scmp.lt.s32.totalorder %s17, 0
      %s157 = scalar_select %p156, %s17, 0
      %s158 = smul.addr %s157, 4
      %s159 = smul.addr %s155, 4
      %s160 = sadd.s32 %s158, %s159
      %s161 = smul.addr %s160, 8
      %s162 = scalar_lea.vmem %s2, %s161
      %s163 = smul.u32 8, %s17
      %p164 = scmp.lt.s32.totalorder %s18, 1
      %s165 = scalar_select %p164, %s18, 1
      %p166 = scmp.lt.s32.totalorder %s163, 7
      %s167 = scalar_select %p166, %s163, 7
      %s168 = smul.addr %s165, 96
      %s169 = sadd.s32 %s167, %s168
      %s170 = smul.addr %s169, 8
      %s171 = scalar_lea.vmem %s0, %s170
      %s172 = smul.u32 8, %s17
      %p173 = scmp.lt.s32.totalorder %s18, 1
      %s174 = scalar_select %p173, %s18, 1
      %p175 = scmp.lt.s32.totalorder %s17, 0
      %s176 = scalar_select %p175, %s17, 0
      %s177 = smul.addr %s176, 4
      %s178 = smul.addr %s174, 4
      %s179 = sadd.s32 %s177, %s178
      %s180 = smul.addr %s179, 8
      %s181 = scalar_lea.vmem %s2, %s180
      %v182 = vld [vmem:[%s1] sm:$0xff]
      %v183 = vld [vmem:[%s1 + $0x8] sm:$0xff]
      %v184 = vld [vmem:[%s1 + $0x10] sm:$0xff]
      %v185 = vld [vmem:[%s1 + $0x18] sm:$0xff]
      %v186 = vld [vmem:[%s1 + $0x20] sm:$0xff]
      %v187 = vld [vmem:[%s1 + $0x28] sm:$0xff]
      %v188 = vld [vmem:[%s171] sm:$0xff]
      %v189 = vld [vmem:[%s171 + $0x8] sm:$0xff]
      %v190 = vld [vmem:[%s171 + $0x10] sm:$0xff]
      %v191 = vld [vmem:[%s171 + $0x18] sm:$0xff]
      %v192 = vld [vmem:[%s171 + $0x20] sm:$0xff]
      %v193 = vld [vmem:[%s171 + $0x28] sm:$0xff]
      %v194 = vld [vmem:[%s171 + $0x30] sm:$0xff]
      %v195 = vld [vmem:[%s171 + $0x38] sm:$0xff]
      %v196 = vld [vmem:[%s171 + $0x40] sm:$0xff]
      %v197 = vld [vmem:[%s171 + $0x48] sm:$0xff]
      %v198 = vld [vmem:[%s171 + $0x50] sm:$0xff]
      %v199 = vld [vmem:[%s171 + $0x58] sm:$0xff]
      %v200 = vld [vmem:[%s171 + $0x60] sm:$0xff]
      %v201 = vld [vmem:[%s171 + $0x68] sm:$0xff]
      %v202 = vld [vmem:[%s171 + $0x70] sm:$0xff]
      %v203 = vld [vmem:[%s171 + $0x78] sm:$0xff]
      %v204 = vld [vmem:[%s171 + $0x80] sm:$0xff]
      %v205 = vld [vmem:[%s171 + $0x88] sm:$0xff]
      %v206 = vld [vmem:[%s171 + $0x90] sm:$0xff]
      %v207 = vld [vmem:[%s171 + $0x98] sm:$0xff]
      %v208 = vld [vmem:[%s171 + $0xa0] sm:$0xff]
      %v209 = vld [vmem:[%s171 + $0xa8] sm:$0xff]
      %v210 = vld [vmem:[%s171 + $0xb0] sm:$0xff]
      %v211 = vld [vmem:[%s171 + $0xb8] sm:$0xff]
      %v212 = vld [vmem:[%s171 + $0xc0] sm:$0xff]
      %v213 = vld [vmem:[%s171 + $0xc8] sm:$0xff]
      %v214 = vld [vmem:[%s171 + $0xd0] sm:$0xff]
      %v215 = vld [vmem:[%s171 + $0xd8] sm:$0xff]
      %v216 = vld [vmem:[%s171 + $0xe0] sm:$0xff]
      %v217 = vld [vmem:[%s171 + $0xe8] sm:$0xff]
      %v218 = vld [vmem:[%s171 + $0xf0] sm:$0xff]
      %v219 = vld [vmem:[%s171 + $0xf8] sm:$0xff]
      %v220 = vld [vmem:[%s171 + $0x100] sm:$0xff]
      %v221 = vld [vmem:[%s171 + $0x108] sm:$0xff]
      %v222 = vld [vmem:[%s171 + $0x110] sm:$0xff]
      %v223 = vld [vmem:[%s171 + $0x118] sm:$0xff]
      %v224 = vld [vmem:[%s171 + $0x120] sm:$0xff]
      %v225 = vld [vmem:[%s171 + $0x128] sm:$0xff]
      %v226 = vld [vmem:[%s171 + $0x130] sm:$0xff]
      %v227 = vld [vmem:[%s171 + $0x138] sm:$0xff]
      %v228 = vld [vmem:[%s171 + $0x140] sm:$0xff]
      %v229 = vld [vmem:[%s171 + $0x148] sm:$0xff]
      %v230 = vld [vmem:[%s171 + $0x150] sm:$0xff]
      %v231 = vld [vmem:[%s171 + $0x158] sm:$0xff]
      %v232 = vld [vmem:[%s171 + $0x160] sm:$0xff]
      %v233 = vld [vmem:[%s171 + $0x168] sm:$0xff]
      %v234 = vld [vmem:[%s171 + $0x170] sm:$0xff]
      %v235 = vld [vmem:[%s171 + $0x178] sm:$0xff]
      %v236 = vld [vmem:[%s171 + $0x180] sm:$0xff]
      %v237 = vld [vmem:[%s171 + $0x188] sm:$0xff]
      %v238 = vld [vmem:[%s171 + $0x190] sm:$0xff]
      %v239 = vld [vmem:[%s171 + $0x198] sm:$0xff]
      %v240 = vld [vmem:[%s171 + $0x1a0] sm:$0xff]
      %v241 = vld [vmem:[%s171 + $0x1a8] sm:$0xff]
      %v242 = vld [vmem:[%s171 + $0x1b0] sm:$0xff]
      %v243 = vld [vmem:[%s171 + $0x1b8] sm:$0xff]
      %v244 = vld [vmem:[%s171 + $0x1c0] sm:$0xff]
      %v245 = vld [vmem:[%s171 + $0x1c8] sm:$0xff]
      %v246 = vld [vmem:[%s171 + $0x1d0] sm:$0xff]
      %v247 = vld [vmem:[%s171 + $0x1d8] sm:$0xff]
      %v248 = vld [vmem:[%s171 + $0x1e0] sm:$0xff]
      %v249 = vld [vmem:[%s171 + $0x1e8] sm:$0xff]
      %v250 = vld [vmem:[%s171 + $0x1f0] sm:$0xff]
      %v251 = vld [vmem:[%s171 + $0x1f8] sm:$0xff]
      %v252 = vld [vmem:[%s171 + $0x200] sm:$0xff]
      %v253 = vld [vmem:[%s171 + $0x208] sm:$0xff]
      %v254 = vld [vmem:[%s171 + $0x210] sm:$0xff]
      %v255 = vld [vmem:[%s171 + $0x218] sm:$0xff]
      %v256 = vld [vmem:[%s171 + $0x220] sm:$0xff]
      %v257 = vld [vmem:[%s171 + $0x228] sm:$0xff]
      %v258 = vld [vmem:[%s171 + $0x230] sm:$0xff]
      %v259 = vld [vmem:[%s171 + $0x238] sm:$0xff]
      %v260 = vld [vmem:[%s171 + $0x240] sm:$0xff]
      %v261 = vld [vmem:[%s171 + $0x248] sm:$0xff]
      %v262 = vld [vmem:[%s171 + $0x250] sm:$0xff]
      %v263 = vld [vmem:[%s171 + $0x258] sm:$0xff]
      %v264 = vld [vmem:[%s171 + $0x260] sm:$0xff]
      %v265 = vld [vmem:[%s171 + $0x268] sm:$0xff]
      %v266 = vld [vmem:[%s171 + $0x270] sm:$0xff]
      %v267 = vld [vmem:[%s171 + $0x278] sm:$0xff]
      %v268 = vld [vmem:[%s171 + $0x280] sm:$0xff]
      %v269 = vld [vmem:[%s171 + $0x288] sm:$0xff]
      %v270 = vld [vmem:[%s171 + $0x290] sm:$0xff]
      %v271 = vld [vmem:[%s171 + $0x298] sm:$0xff]
      %v272 = vld [vmem:[%s171 + $0x2a0] sm:$0xff]
      %v273 = vld [vmem:[%s171 + $0x2a8] sm:$0xff]
      %v274 = vld [vmem:[%s171 + $0x2b0] sm:$0xff]
      %v275 = vld [vmem:[%s171 + $0x2b8] sm:$0xff]
      %v276 = vld [vmem:[%s171 + $0x2c0] sm:$0xff]
      %v277 = vld [vmem:[%s171 + $0x2c8] sm:$0xff]
      %v278 = vld [vmem:[%s171 + $0x2d0] sm:$0xff]
      %v279 = vld [vmem:[%s171 + $0x2d8] sm:$0xff]
      %v280 = vld [vmem:[%s171 + $0x2e0] sm:$0xff]
      %v281 = vld [vmem:[%s171 + $0x2e8] sm:$0xff]
      %v282 = vld [vmem:[%s171 + $0x2f0] sm:$0xff]
      %v283 = vld [vmem:[%s171 + $0x2f8] sm:$0xff]
      %vm284 = vcmask 785408
      %v286 = vsel %vm284, %v182, 0
      %v289 = vsel %vm284, %v183, 0
      %v292 = vsel %vm284, %v184, 0
      %v295 = vsel %vm284, %v185, 0
      %v298 = vsel %vm284, %v186, 0
      %v301 = vsel %vm284, %v187, 0
      %303 = vmatprep.subr.mxu0 %v189
      %304 = vmatpush1.msra.mxu0 %v188
      %305 = vmatprep.subr.mxu0 %v197
      %306 = vmatpush1.msra.mxu0 %v196
      %307 = vmatprep.subr.mxu0 %v205
      %308 = vmatpush1.msra.mxu0 %v204
      %309 = vmatprep.subr.mxu0 %v213
      %310 = vmatpush1.msra.mxu0 %v212
      %311 = vmatprep.subr.mxu0 %v221
      %312 = vmatpush1.msra.mxu0 %v220
      %313 = vmatprep.subr.mxu0 %v229
      %314 = vmatpush1.msra.mxu0 %v228
      %315 = vmatprep.subr.mxu0 %v237
      %316 = vmatpush1.msra.mxu0 %v236
      %317 = vmatprep.subr.mxu0 %v245
      %318 = vmatpush1.msra.mxu0 %v244
      %319 = vmatprep.subr.mxu0 %v253
      %320 = vmatpush1.msra.mxu0 %v252
      %321 = vmatprep.subr.mxu0 %v261
      %322 = vmatpush1.msra.mxu0 %v260
      %323 = vmatprep.subr.mxu0 %v269
      %324 = vmatpush1.msra.mxu0 %v268
      %325 = vmatprep.subr.mxu0 %v277
      %326 = vmatpush1.msra.mxu0 %v276
      %327 = vmatprep.subr.mxu0 0.0
      %328 = vmatpush1.msra.mxu0 0.0
      %329 = vmatprep.subr.mxu0 0.0
      %330 = vmatpush1.msra.mxu0 0.0
      %331 = vmatprep.subr.mxu0 0.0
      %332 = vmatpush1.msra.mxu0 0.0
      %333 = vmatprep.subr.mxu0 0.0
      %334 = vmatpush1.msra.mxu0 0.0
      %335 = vmatprep.subr.mxu0 0.0
      %336 = vmatpush1.msra.mxu0 0.0
      %337 = vmatprep.subr.mxu0 0.0
      %338 = vmatpush1.msra.mxu0 0.0
      %339 = vmatprep.subr.mxu0 0.0
      %340 = vmatpush1.msra.mxu0 0.0
      %341 = vmatprep.subr.mxu0 0.0
      %342 = vmatpush1.msra.mxu0 0.0
      %343 = vmatprep.subr.mxu0 0.0
      %344 = vmatpush1.msra.mxu0 0.0
      %345 = vmatprep.subr.mxu0 0.0
      %346 = vmatpush1.msra.mxu0 0.0
      %347 = vmatprep.subr.mxu0 0.0
      %348 = vmatpush1.msra.mxu0 0.0
      %349 = vmatprep.subr.mxu0 0.0
      %350 = vmatpush1.msra.mxu0 0.0
      %351 = vmatprep.subr.mxu0 0.0
      %352 = vmatpush1.msra.mxu0 0.0
      %353 = vmatprep.subr.mxu0 0.0
      %354 = vmatpush1.msra.mxu0 0.0
      %355 = vmatprep.subr.mxu0 0.0
      %356 = vmatpush1.msra.mxu0 0.0
      %357 = vmatprep.subr.mxu0 0.0
      %358 = vmatpush1.msra.mxu0 0.0
      %359 = vmatprep.subr.mxu0 0.0
      %360 = vmatpush1.msra.mxu0 0.0
      %361 = vmatprep.subr.mxu0 0.0
      %362 = vmatpush1.msra.mxu0 0.0
      %363 = vmatprep.subr.mxu0 0.0
      %364 = vmatpush1.msra.mxu0 0.0
      %365 = vmatprep.subr.mxu0 0.0
      %366 = vmatpush1.msra.mxu0 0.0
      %367 = vmatprep.mubr.f32.mxu0 0.0
      %368 = vmatmul.mubr.f32.gmra.mrb[0].mxu0 %v286
      %v369 = vpop.f32.mrb[0].mxu0
      %v370 = vadd.f32 0.0, %v369
      %v371 = vpop.f32.mrb[0].mxu0
      %v372 = vadd.f32 0.0, %v371
      %373 = vmatprep.mubr.f32.mxu0 0.0
      %374 = vmatmul.mubr.f32.gmra.mrb[0].mxu0 %v289
      %v375 = vpop.f32.mrb[0].mxu0
      %v376 = vadd.f32 0.0, %v375
      %v377 = vpop.f32.mrb[0].mxu0
      %v378 = vadd.f32 0.0, %v377
      %379 = vmatprep.mubr.f32.mxu0 0.0
      %380 = vmatmul.mubr.f32.gmra.mrb[0].mxu0 %v292
      %v381 = vpop.f32.mrb[0].mxu0
      %v382 = vadd.f32 0.0, %v381
      %v383 = vpop.f32.mrb[0].mxu0
      %v384 = vadd.f32 0.0, %v383
      %385 = vmatprep.mubr.f32.mxu0 0.0
      %386 = vmatmul.mubr.f32.gmra.mrb[0].mxu0 %v295
      %v387 = vpop.f32.mrb[0].mxu0
      %v388 = vadd.f32 0.0, %v387
      %v389 = vpop.f32.mrb[0].mxu0
      %v390 = vadd.f32 0.0, %v389
      %391 = vmatprep.mubr.f32.mxu0 0.0
      %392 = vmatmul.mubr.f32.gmra.mrb[0].mxu0 %v298
      %v393 = vpop.f32.mrb[0].mxu0
      %v394 = vadd.f32 0.0, %v393
      %v395 = vpop.f32.mrb[0].mxu0
      %v396 = vadd.f32 0.0, %v395
      %397 = vmatprep.mubr.f32.mxu0 0.0
      %398 = vmatmul.mubr.f32.gmra.mrb[0].mxu0 %v301
      %v399 = vpop.f32.mrb[0].mxu0
      %v400 = vadd.f32 0.0, %v399
      %v401 = vpop.f32.mrb[0].mxu0
      %v402 = vadd.f32 0.0, %v401
      %403 = vdwg.mxu0
      %404 = vmatprep.subr.mxu0 %v191
      %405 = vmatpush1.msra.mxu0 %v190
      %406 = vmatprep.subr.mxu0 %v199
      %407 = vmatpush1.msra.mxu0 %v198
      %408 = vmatprep.subr.mxu0 %v207
      %409 = vmatpush1.msra.mxu0 %v206
      %410 = vmatprep.subr.mxu0 %v215
      %411 = vmatpush1.msra.mxu0 %v214
      %412 = vmatprep.subr.mxu0 %v223
      %413 = vmatpush1.msra.mxu0 %v222
      %414 = vmatprep.subr.mxu0 %v231
      %415 = vmatpush1.msra.mxu0 %v230
      %416 = vmatprep.subr.mxu0 %v239
      %417 = vmatpush1.msra.mxu0 %v238
      %418 = vmatprep.subr.mxu0 %v247
      %419 = vmatpush1.msra.mxu0 %v246
      %420 = vmatprep.subr.mxu0 %v255
      %421 = vmatpush1.msra.mxu0 %v254
      %422 = vmatprep.subr.mxu0 %v263
      %423 = vmatpush1.msra.mxu0 %v262
      %424 = vmatprep.subr.mxu0 %v271
      %425 = vmatpush1.msra.mxu0 %v270
      %426 = vmatprep.subr.mxu0 %v279
      %427 = vmatpush1.msra.mxu0 %v278
      %428 = vmatprep.subr.mxu0 0.0
      %429 = vmatpush1.msra.mxu0 0.0
      %430 = vmatprep.subr.mxu0 0.0
      %431 = vmatpush1.msra.mxu0 0.0
      %432 = vmatprep.subr.mxu0 0.0
      %433 = vmatpush1.msra.mxu0 0.0
      %434 = vmatprep.subr.mxu0 0.0
      %435 = vmatpush1.msra.mxu0 0.0
      %436 = vmatprep.subr.mxu0 0.0
      %437 = vmatpush1.msra.mxu0 0.0
      %438 = vmatprep.subr.mxu0 0.0
      %439 = vmatpush1.msra.mxu0 0.0
      %440 = vmatprep.subr.mxu0 0.0
      %441 = vmatpush1.msra.mxu0 0.0
      %442 = vmatprep.subr.mxu0 0.0
      %443 = vmatpush1.msra.mxu0 0.0
      %444 = vmatprep.subr.mxu0 0.0
      %445 = vmatpush1.msra.mxu0 0.0
      %446 = vmatprep.subr.mxu0 0.0
      %447 = vmatpush1.msra.mxu0 0.0
      %448 = vmatprep.subr.mxu0 0.0
      %449 = vmatpush1.msra.mxu0 0.0
      %450 = vmatprep.subr.mxu0 0.0
      %451 = vmatpush1.msra.mxu0 0.0
      %452 = vmatprep.subr.mxu0 0.0
      %453 = vmatpush1.msra.mxu0 0.0
      %454 = vmatprep.subr.mxu0 0.0
      %455 = vmatpush1.msra.mxu0 0.0
      %456 = vmatprep.subr.mxu0 0.0
      %457 = vmatpush1.msra.mxu0 0.0
      %458 = vmatprep.subr.mxu0 0.0
      %459 = vmatpush1.msra.mxu0 0.0
      %460 = vmatprep.subr.mxu0 0.0
      %461 = vmatpush1.msra.mxu0 0.0
      %462 = vmatprep.subr.mxu0 0.0
      %463 = vmatpush1.msra.mxu0 0.0
      %464 = vmatprep.subr.mxu0 0.0
      %465 = vmatpush1.msra.mxu0 0.0
      %466 = vmatprep.subr.mxu0 0.0
      %467 = vmatpush1.msra.mxu0 0.0
      %468 = vmatprep.mubr.f32.mxu0 0.0
      %469 = vmatmul.mubr.f32.gmra.mrb[0].mxu0 %v286
      %v470 = vpop.f32.mrb[0].mxu0
      %v471 = vadd.f32 0.0, %v470
      %v472 = vpop.f32.mrb[0].mxu0
      %v473 = vadd.f32 0.0, %v472
      %474 = vmatprep.mubr.f32.mxu0 0.0
      %475 = vmatmul.mubr.f32.gmra.mrb[0].mxu0 %v289
      %v476 = vpop.f32.mrb[0].mxu0
      %v477 = vadd.f32 0.0, %v476
      %v478 = vpop.f32.mrb[0].mxu0
      %v479 = vadd.f32 0.0, %v478
      %480 = vmatprep.mubr.f32.mxu0 0.0
      %481 = vmatmul.mubr.f32.gmra.mrb[0].mxu0 %v292
      %v482 = vpop.f32.mrb[0].mxu0
      %v483 = vadd.f32 0.0, %v482
      %v484 = vpop.f32.mrb[0].mxu0
      %v485 = vadd.f32 0.0, %v484
      %486 = vmatprep.mubr.f32.mxu0 0.0
      %487 = vmatmul.mubr.f32.gmra.mrb[0].mxu0 %v295
      %v488 = vpop.f32.mrb[0].mxu0
      %v489 = vadd.f32 0.0, %v488
      %v490 = vpop.f32.mrb[0].mxu0
      %v491 = vadd.f32 0.0, %v490
      %492 = vmatprep.mubr.f32.mxu0 0.0
      %493 = vmatmul.mubr.f32.gmra.mrb[0].mxu0 %v298
      %v494 = vpop.f32.mrb[0].mxu0
      %v495 = vadd.f32 0.0, %v494
      %v496 = vpop.f32.mrb[0].mxu0
      %v497 = vadd.f32 0.0, %v496
      %498 = vmatprep.mubr.f32.mxu0 0.0
      %499 = vmatmul.mubr.f32.gmra.mrb[0].mxu0 %v301
      %v500 = vpop.f32.mrb[0].mxu0
      %v501 = vadd.f32 0.0, %v500
      %v502 = vpop.f32.mrb[0].mxu0
      %v503 = vadd.f32 0.0, %v502
      %504 = vdwg.mxu0
      %505 = vmatprep.subr.mxu0 %v193
      %506 = vmatpush1.msra.mxu0 %v192
      %507 = vmatprep.subr.mxu0 %v201
      %508 = vmatpush1.msra.mxu0 %v200
      %509 = vmatprep.subr.mxu0 %v209
      %510 = vmatpush1.msra.mxu0 %v208
      %511 = vmatprep.subr.mxu0 %v217
      %512 = vmatpush1.msra.mxu0 %v216
      %513 = vmatprep.subr.mxu0 %v225
      %514 = vmatpush1.msra.mxu0 %v224
      %515 = vmatprep.subr.mxu0 %v233
      %516 = vmatpush1.msra.mxu0 %v232
      %517 = vmatprep.subr.mxu0 %v241
      %518 = vmatpush1.msra.mxu0 %v240
      %519 = vmatprep.subr.mxu0 %v249
      %520 = vmatpush1.msra.mxu0 %v248
      %521 = vmatprep.subr.mxu0 %v257
      %522 = vmatpush1.msra.mxu0 %v256
      %523 = vmatprep.subr.mxu0 %v265
      %524 = vmatpush1.msra.mxu0 %v264
      %525 = vmatprep.subr.mxu0 %v273
      %526 = vmatpush1.msra.mxu0 %v272
      %527 = vmatprep.subr.mxu0 %v281
      %528 = vmatpush1.msra.mxu0 %v280
      %529 = vmatprep.subr.mxu0 0.0
      %530 = vmatpush1.msra.mxu0 0.0
      %531 = vmatprep.subr.mxu0 0.0
      %532 = vmatpush1.msra.mxu0 0.0
      %533 = vmatprep.subr.mxu0 0.0
      %534 = vmatpush1.msra.mxu0 0.0
      %535 = vmatprep.subr.mxu0 0.0
      %536 = vmatpush1.msra.mxu0 0.0
      %537 = vmatprep.subr.mxu0 0.0
      %538 = vmatpush1.msra.mxu0 0.0
      %539 = vmatprep.subr.mxu0 0.0
      %540 = vmatpush1.msra.mxu0 0.0
      %541 = vmatprep.subr.mxu0 0.0
      %542 = vmatpush1.msra.mxu0 0.0
      %543 = vmatprep.subr.mxu0 0.0
      %544 = vmatpush1.msra.mxu0 0.0
      %545 = vmatprep.subr.mxu0 0.0
      %546 = vmatpush1.msra.mxu0 0.0
      %547 = vmatprep.subr.mxu0 0.0
      %548 = vmatpush1.msra.mxu0 0.0
      %549 = vmatprep.subr.mxu0 0.0
      %550 = vmatpush1.msra.mxu0 0.0
      %551 = vmatprep.subr.mxu0 0.0
      %552 = vmatpush1.msra.mxu0 0.0
      %553 = vmatprep.subr.mxu0 0.0
      %554 = vmatpush1.msra.mxu0 0.0
      %555 = vmatprep.subr.mxu0 0.0
      %556 = vmatpush1.msra.mxu0 0.0
      %557 = vmatprep.subr.mxu0 0.0
      %558 = vmatpush1.msra.mxu0 0.0
      %559 = vmatprep.subr.mxu0 0.0
      %560 = vmatpush1.msra.mxu0 0.0
      %561 = vmatprep.subr.mxu0 0.0
      %562 = vmatpush1.msra.mxu0 0.0
      %563 = vmatprep.subr.mxu0 0.0
      %564 = vmatpush1.msra.mxu0 0.0
      %565 = vmatprep.subr.mxu0 0.0
      %566 = vmatpush1.msra.mxu0 0.0
      %567 = vmatprep.subr.mxu0 0.0
      %568 = vmatpush1.msra.mxu0 0.0
      %569 = vmatprep.mubr.f32.mxu0 0.0
      %570 = vmatmul.mubr.f32.gmra.mrb[0].mxu0 %v286
      %v571 = vpop.f32.mrb[0].mxu0
      %v572 = vadd.f32 0.0, %v571
      %v573 = vpop.f32.mrb[0].mxu0
      %v574 = vadd.f32 0.0, %v573
      %575 = vmatprep.mubr.f32.mxu0 0.0
      %576 = vmatmul.mubr.f32.gmra.mrb[0].mxu0 %v289
      %v577 = vpop.f32.mrb[0].mxu0
      %v578 = vadd.f32 0.0, %v577
      %v579 = vpop.f32.mrb[0].mxu0
      %v580 = vadd.f32 0.0, %v579
      %581 = vmatprep.mubr.f32.mxu0 0.0
      %582 = vmatmul.mubr.f32.gmra.mrb[0].mxu0 %v292
      %v583 = vpop.f32.mrb[0].mxu0
      %v584 = vadd.f32 0.0, %v583
      %v585 = vpop.f32.mrb[0].mxu0
      %v586 = vadd.f32 0.0, %v585
      %587 = vmatprep.mubr.f32.mxu0 0.0
      %588 = vmatmul.mubr.f32.gmra.mrb[0].mxu0 %v295
      %v589 = vpop.f32.mrb[0].mxu0
      %v590 = vadd.f32 0.0, %v589
      %v591 = vpop.f32.mrb[0].mxu0
      %v592 = vadd.f32 0.0, %v591
      %593 = vmatprep.mubr.f32.mxu0 0.0
      %594 = vmatmul.mubr.f32.gmra.mrb[0].mxu0 %v298
      %v595 = vpop.f32.mrb[0].mxu0
      %v596 = vadd.f32 0.0, %v595
      %v597 = vpop.f32.mrb[0].mxu0
      %v598 = vadd.f32 0.0, %v597
      %599 = vmatprep.mubr.f32.mxu0 0.0
      %600 = vmatmul.mubr.f32.gmra.mrb[0].mxu0 %v301
      %v601 = vpop.f32.mrb[0].mxu0
      %v602 = vadd.f32 0.0, %v601
      %v603 = vpop.f32.mrb[0].mxu0
      %v604 = vadd.f32 0.0, %v603
      %605 = vdwg.mxu0
      %606 = vmatprep.subr.mxu0 %v195
      %607 = vmatpush1.msra.mxu0 %v194
      %608 = vmatprep.subr.mxu0 %v203
      %609 = vmatpush1.msra.mxu0 %v202
      %610 = vmatprep.subr.mxu0 %v211
      %611 = vmatpush1.msra.mxu0 %v210
      %612 = vmatprep.subr.mxu0 %v219
      %613 = vmatpush1.msra.mxu0 %v218
      %614 = vmatprep.subr.mxu0 %v227
      %615 = vmatpush1.msra.mxu0 %v226
      %616 = vmatprep.subr.mxu0 %v235
      %617 = vmatpush1.msra.mxu0 %v234
      %618 = vmatprep.subr.mxu0 %v243
      %619 = vmatpush1.msra.mxu0 %v242
      %620 = vmatprep.subr.mxu0 %v251
      %621 = vmatpush1.msra.mxu0 %v250
      %622 = vmatprep.subr.mxu0 %v259
      %623 = vmatpush1.msra.mxu0 %v258
      %624 = vmatprep.subr.mxu0 %v267
      %625 = vmatpush1.msra.mxu0 %v266
      %626 = vmatprep.subr.mxu0 %v275
      %627 = vmatpush1.msra.mxu0 %v274
      %628 = vmatprep.subr.mxu0 %v283
      %629 = vmatpush1.msra.mxu0 %v282
      %630 = vmatprep.subr.mxu0 0.0
      %631 = vmatpush1.msra.mxu0 0.0
      %632 = vmatprep.subr.mxu0 0.0
      %633 = vmatpush1.msra.mxu0 0.0
      %634 = vmatprep.subr.mxu0 0.0
      %635 = vmatpush1.msra.mxu0 0.0
      %636 = vmatprep.subr.mxu0 0.0
      %637 = vmatpush1.msra.mxu0 0.0
      %638 = vmatprep.subr.mxu0 0.0
      %639 = vmatpush1.msra.mxu0 0.0
      %640 = vmatprep.subr.mxu0 0.0
      %641 = vmatpush1.msra.mxu0 0.0
      %642 = vmatprep.subr.mxu0 0.0
      %643 = vmatpush1.msra.mxu0 0.0
      %644 = vmatprep.subr.mxu0 0.0
      %645 = vmatpush1.msra.mxu0 0.0
      %646 = vmatprep.subr.mxu0 0.0
      %647 = vmatpush1.msra.mxu0 0.0
      %648 = vmatprep.subr.mxu0 0.0
      %649 = vmatpush1.msra.mxu0 0.0
      %650 = vmatprep.subr.mxu0 0.0
      %651 = vmatpush1.msra.mxu0 0.0
      %652 = vmatprep.subr.mxu0 0.0
      %653 = vmatpush1.msra.mxu0 0.0
      %654 = vmatprep.subr.mxu0 0.0
      %655 = vmatpush1.msra.mxu0 0.0
      %656 = vmatprep.subr.mxu0 0.0
      %657 = vmatpush1.msra.mxu0 0.0
      %658 = vmatprep.subr.mxu0 0.0
      %659 = vmatpush1.msra.mxu0 0.0
      %660 = vmatprep.subr.mxu0 0.0
      %661 = vmatpush1.msra.mxu0 0.0
      %662 = vmatprep.subr.mxu0 0.0
      %663 = vmatpush1.msra.mxu0 0.0
      %664 = vmatprep.subr.mxu0 0.0
      %665 = vmatpush1.msra.mxu0 0.0
      %666 = vmatprep.subr.mxu0 0.0
      %667 = vmatpush1.msra.mxu0 0.0
      %668 = vmatprep.subr.mxu0 0.0
      %669 = vmatpush1.msra.mxu0 0.0
      %670 = vmatprep.mubr.f32.mxu0 0.0
      %671 = vmatmul.mubr.f32.gmra.mrb[0].mxu0 %v286
      %v672 = vpop.f32.mrb[0].mxu0
      %v673 = vadd.f32 0.0, %v672
      %v674 = vpop.f32.mrb[0].mxu0
      %v675 = vadd.f32 0.0, %v674
      %676 = vmatprep.mubr.f32.mxu0 0.0
      %677 = vmatmul.mubr.f32.gmra.mrb[0].mxu0 %v289
      %v678 = vpop.f32.mrb[0].mxu0
      %v679 = vadd.f32 0.0, %v678
      %v680 = vpop.f32.mrb[0].mxu0
      %v681 = vadd.f32 0.0, %v680
      %682 = vmatprep.mubr.f32.mxu0 0.0
      %683 = vmatmul.mubr.f32.gmra.mrb[0].mxu0 %v292
      %v684 = vpop.f32.mrb[0].mxu0
      %v685 = vadd.f32 0.0, %v684
      %v686 = vpop.f32.mrb[0].mxu0
      %v687 = vadd.f32 0.0, %v686
      %688 = vmatprep.mubr.f32.mxu0 0.0
      %689 = vmatmul.mubr.f32.gmra.mrb[0].mxu0 %v295
      %v690 = vpop.f32.mrb[0].mxu0
      %v691 = vadd.f32 0.0, %v690
      %v692 = vpop.f32.mrb[0].mxu0
      %v693 = vadd.f32 0.0, %v692
      %694 = vmatprep.mubr.f32.mxu0 0.0
      %695 = vmatmul.mubr.f32.gmra.mrb[0].mxu0 %v298
      %v696 = vpop.f32.mrb[0].mxu0
      %v697 = vadd.f32 0.0, %v696
      %v698 = vpop.f32.mrb[0].mxu0
      %v699 = vadd.f32 0.0, %v698
      %700 = vmatprep.mubr.f32.mxu0 0.0
      %701 = vmatmul.mubr.f32.gmra.mrb[0].mxu0 %v301
      %v702 = vpop.f32.mrb[0].mxu0
      %v703 = vadd.f32 0.0, %v702
      %v704 = vpop.f32.mrb[0].mxu0
      %v705 = vadd.f32 0.0, %v704
      %706 = vdwg.mxu0
      %v707 = vmul.f32 %v370, %v370
      %v708 = vmul.f32 %v372, %v372
      %v709 = vmul.f32 %v471, %v471
      %v710 = vmul.f32 %v473, %v473
      %v711 = vmul.f32 %v572, %v572
      %v712 = vmul.f32 %v574, %v574
      %v713 = vmul.f32 %v673, %v673
      %v714 = vmul.f32 %v675, %v675
      %v715 = vmul.f32 %v376, %v376
      %v716 = vmul.f32 %v378, %v378
      %v717 = vmul.f32 %v477, %v477
      %v718 = vmul.f32 %v479, %v479
      %v719 = vmul.f32 %v578, %v578
      %v720 = vmul.f32 %v580, %v580
      %v721 = vmul.f32 %v679, %v679
      %v722 = vmul.f32 %v681, %v681
      %v723 = vmul.f32 %v382, %v382
      %v724 = vmul.f32 %v384, %v384
      %v725 = vmul.f32 %v483, %v483
      %v726 = vmul.f32 %v485, %v485
      %v727 = vmul.f32 %v584, %v584
      %v728 = vmul.f32 %v586, %v586
      %v729 = vmul.f32 %v685, %v685
      %v730 = vmul.f32 %v687, %v687
      %v731 = vmul.f32 %v388, %v388
      %v732 = vmul.f32 %v390, %v390
      %v733 = vmul.f32 %v489, %v489
      %v734 = vmul.f32 %v491, %v491
      %v735 = vmul.f32 %v590, %v590
      %v736 = vmul.f32 %v592, %v592
      %v737 = vmul.f32 %v691, %v691
      %v738 = vmul.f32 %v693, %v693
      %v739 = vadd.f32 %v707, %v723
      %v740 = vadd.f32 %v708, %v724
      %v741 = vadd.f32 %v709, %v725
      %v742 = vadd.f32 %v710, %v726
      %v743 = vadd.f32 %v711, %v727
      %v744 = vadd.f32 %v712, %v728
      %v745 = vadd.f32 %v713, %v729
      %v746 = vadd.f32 %v714, %v730
      %v747 = vadd.f32 %v715, %v731
      %v748 = vadd.f32 %v716, %v732
      %v749 = vadd.f32 %v717, %v733
      %v750 = vadd.f32 %v718, %v734
      %v751 = vadd.f32 %v719, %v735
      %v752 = vadd.f32 %v720, %v736
      %v753 = vadd.f32 %v721, %v737
      %v754 = vadd.f32 %v722, %v738
      %v755 = vmul.f32 %v394, %v394
      %v756 = vmul.f32 %v396, %v396
      %v757 = vmul.f32 %v495, %v495
      %v758 = vmul.f32 %v497, %v497
      %v759 = vmul.f32 %v596, %v596
      %v760 = vmul.f32 %v598, %v598
      %v761 = vmul.f32 %v697, %v697
      %v762 = vmul.f32 %v699, %v699
      %v763 = vmul.f32 %v400, %v400
      %v764 = vmul.f32 %v402, %v402
      %v765 = vmul.f32 %v501, %v501
      %v766 = vmul.f32 %v503, %v503
      %v767 = vmul.f32 %v602, %v602
      %v768 = vmul.f32 %v604, %v604
      %v769 = vmul.f32 %v703, %v703
      %v770 = vmul.f32 %v705, %v705
      %v771 = vadd.f32 %v739, %v755
      %v772 = vadd.f32 %v740, %v756
      %v773 = vadd.f32 %v741, %v757
      %v774 = vadd.f32 %v742, %v758
      %v775 = vadd.f32 %v743, %v759
      %v776 = vadd.f32 %v744, %v760
      %v777 = vadd.f32 %v745, %v761
      %v778 = vadd.f32 %v746, %v762
      %v779 = vadd.f32 %v747, %v763
      %v780 = vadd.f32 %v748, %v764
      %v781 = vadd.f32 %v749, %v765
      %v782 = vadd.f32 %v750, %v766
      %v783 = vadd.f32 %v751, %v767
      %v784 = vadd.f32 %v752, %v768
      %v785 = vadd.f32 %v753, %v769
      %v786 = vadd.f32 %v754, %v770
      %v787 = vrsqrt.pop %v771
      %v788 = vmul.f32 %v771, %v787
      %vm789 = vcmp.eq.f32.partialorder %v771, inf
      %v790 = vsel %vm789, %v771, %v788
      %vm791 = vcmp.eq.f32.partialorder %v771, 0.0
      %v792 = vand.u32 %v771, 2147483648
      %v793 = vsel %vm791, %v792, %v790
      %v794 = vrsqrt.pop %v772
      %v795 = vmul.f32 %v772, %v794
      %vm796 = vcmp.eq.f32.partialorder %v772, inf
      %v797 = vsel %vm796, %v772, %v795
      %vm798 = vcmp.eq.f32.partialorder %v772, 0.0
      %v799 = vand.u32 %v772, 2147483648
      %v800 = vsel %vm798, %v799, %v797
      %v801 = vrsqrt.pop %v773
      %v802 = vmul.f32 %v773, %v801
      %vm803 = vcmp.eq.f32.partialorder %v773, inf
      %v804 = vsel %vm803, %v773, %v802
      %vm805 = vcmp.eq.f32.partialorder %v773, 0.0
      %v806 = vand.u32 %v773, 2147483648
      %v807 = vsel %vm805, %v806, %v804
      %v808 = vrsqrt.pop %v774
      %v809 = vmul.f32 %v774, %v808
      %vm810 = vcmp.eq.f32.partialorder %v774, inf
      %v811 = vsel %vm810, %v774, %v809
      %vm812 = vcmp.eq.f32.partialorder %v774, 0.0
      %v813 = vand.u32 %v774, 2147483648
      %v814 = vsel %vm812, %v813, %v811
      %v815 = vrsqrt.pop %v775
      %v816 = vmul.f32 %v775, %v815
      %vm817 = vcmp.eq.f32.partialorder %v775, inf
      %v818 = vsel %vm817, %v775, %v816
      %vm819 = vcmp.eq.f32.partialorder %v775, 0.0
      %v820 = vand.u32 %v775, 2147483648
      %v821 = vsel %vm819, %v820, %v818
      %v822 = vrsqrt.pop %v776
      %v823 = vmul.f32 %v776, %v822
      %vm824 = vcmp.eq.f32.partialorder %v776, inf
      %v825 = vsel %vm824, %v776, %v823
      %vm826 = vcmp.eq.f32.partialorder %v776, 0.0
      %v827 = vand.u32 %v776, 2147483648
      %v828 = vsel %vm826, %v827, %v825
      %v829 = vrsqrt.pop %v777
      %v830 = vmul.f32 %v777, %v829
      %vm831 = vcmp.eq.f32.partialorder %v777, inf
      %v832 = vsel %vm831, %v777, %v830
      %vm833 = vcmp.eq.f32.partialorder %v777, 0.0
      %v834 = vand.u32 %v777, 2147483648
      %v835 = vsel %vm833, %v834, %v832
      %v836 = vrsqrt.pop %v778
      %v837 = vmul.f32 %v778, %v836
      %vm838 = vcmp.eq.f32.partialorder %v778, inf
      %v839 = vsel %vm838, %v778, %v837
      %vm840 = vcmp.eq.f32.partialorder %v778, 0.0
      %v841 = vand.u32 %v778, 2147483648
      %v842 = vsel %vm840, %v841, %v839
      %v843 = vrsqrt.pop %v779
      %v844 = vmul.f32 %v779, %v843
      %vm845 = vcmp.eq.f32.partialorder %v779, inf
      %v846 = vsel %vm845, %v779, %v844
      %vm847 = vcmp.eq.f32.partialorder %v779, 0.0
      %v848 = vand.u32 %v779, 2147483648
      %v849 = vsel %vm847, %v848, %v846
      %v850 = vrsqrt.pop %v780
      %v851 = vmul.f32 %v780, %v850
      %vm852 = vcmp.eq.f32.partialorder %v780, inf
      %v853 = vsel %vm852, %v780, %v851
      %vm854 = vcmp.eq.f32.partialorder %v780, 0.0
      %v855 = vand.u32 %v780, 2147483648
      %v856 = vsel %vm854, %v855, %v853
      %v857 = vrsqrt.pop %v781
      %v858 = vmul.f32 %v781, %v857
      %vm859 = vcmp.eq.f32.partialorder %v781, inf
      %v860 = vsel %vm859, %v781, %v858
      %vm861 = vcmp.eq.f32.partialorder %v781, 0.0
      %v862 = vand.u32 %v781, 2147483648
      %v863 = vsel %vm861, %v862, %v860
      %v864 = vrsqrt.pop %v782
      %v865 = vmul.f32 %v782, %v864
      %vm866 = vcmp.eq.f32.partialorder %v782, inf
      %v867 = vsel %vm866, %v782, %v865
      %vm868 = vcmp.eq.f32.partialorder %v782, 0.0
      %v869 = vand.u32 %v782, 2147483648
      %v870 = vsel %vm868, %v869, %v867
      %v871 = vrsqrt.pop %v783
      %v872 = vmul.f32 %v783, %v871
      %vm873 = vcmp.eq.f32.partialorder %v783, inf
      %v874 = vsel %vm873, %v783, %v872
      %vm875 = vcmp.eq.f32.partialorder %v783, 0.0
      %v876 = vand.u32 %v783, 2147483648
      %v877 = vsel %vm875, %v876, %v874
      %v878 = vrsqrt.pop %v784
      %v879 = vmul.f32 %v784, %v878
      %vm880 = vcmp.eq.f32.partialorder %v784, inf
      %v881 = vsel %vm880, %v784, %v879
      %vm882 = vcmp.eq.f32.partialorder %v784, 0.0
      %v883 = vand.u32 %v784, 2147483648
      %v884 = vsel %vm882, %v883, %v881
      %v885 = vrsqrt.pop %v785
      %v886 = vmul.f32 %v785, %v885
      %vm887 = vcmp.eq.f32.partialorder %v785, inf
      %v888 = vsel %vm887, %v785, %v886
      %vm889 = vcmp.eq.f32.partialorder %v785, 0.0
      %v890 = vand.u32 %v785, 2147483648
      %v891 = vsel %vm889, %v890, %v888
      %v892 = vrsqrt.pop %v786
      %v893 = vmul.f32 %v786, %v892
      %vm894 = vcmp.eq.f32.partialorder %v786, inf
      %v895 = vsel %vm894, %v786, %v893
      %vm896 = vcmp.eq.f32.partialorder %v786, 0.0
      %v897 = vand.u32 %v786, 2147483648
      %v898 = vsel %vm896, %v897, %v895
      %v899 = vadd.f32 %v793, %v800
      %v900 = vadd.f32 %v899, %v807
      %v901 = vadd.f32 %v900, %v814
      %v902 = vadd.f32 %v901, %v821
      %v903 = vadd.f32 %v902, %v828
      %v904 = vadd.f32 %v903, %v835
      %v905 = vadd.f32 %v904, %v842
      %906 = vadd.xlane.f32.xlu0 %v905
      %v907 = vpop.xlane.xlu0 %906
      %v908 = vadd.f32 %v849, %v856
      %v909 = vadd.f32 %v908, %v863
      %v910 = vadd.f32 %v909, %v870
      %v911 = vadd.f32 %v910, %v877
      %v912 = vadd.f32 %v911, %v884
      %v913 = vadd.f32 %v912, %v891
      %v914 = vadd.f32 %v913, %v898
      %915 = vadd.xlane.f32.xlu0 %v914
      %v916 = vpop.xlane.xlu0 %915
      %v917 = vmul.f32 %v793, %v793
      %v918 = vmul.f32 %v800, %v800
      %v919 = vmul.f32 %v807, %v807
      %v920 = vmul.f32 %v814, %v814
      %v921 = vmul.f32 %v821, %v821
      %v922 = vmul.f32 %v828, %v828
      %v923 = vmul.f32 %v835, %v835
      %v924 = vmul.f32 %v842, %v842
      %v925 = vmul.f32 %v849, %v849
      %v926 = vmul.f32 %v856, %v856
      %v927 = vmul.f32 %v863, %v863
      %v928 = vmul.f32 %v870, %v870
      %v929 = vmul.f32 %v877, %v877
      %v930 = vmul.f32 %v884, %v884
      %v931 = vmul.f32 %v891, %v891
      %v932 = vmul.f32 %v898, %v898
      %v933 = vadd.f32 %v917, %v918
      %v934 = vadd.f32 %v933, %v919
      %v935 = vadd.f32 %v934, %v920
      %v936 = vadd.f32 %v935, %v921
      %v937 = vadd.f32 %v936, %v922
      %v938 = vadd.f32 %v937, %v923
      %v939 = vadd.f32 %v938, %v924
      %940 = vadd.xlane.f32.xlu0 %v939
      %v941 = vpop.xlane.xlu0 %940
      %v942 = vadd.f32 %v925, %v926
      %v943 = vadd.f32 %v942, %v927
      %v944 = vadd.f32 %v943, %v928
      %v945 = vadd.f32 %v944, %v929
      %v946 = vadd.f32 %v945, %v930
      %v947 = vadd.f32 %v946, %v931
      %v948 = vadd.f32 %v947, %v932
      %949 = vadd.xlane.f32.xlu0 %v948
      %v950 = vpop.xlane.xlu0 %949
      %vm951 = vcmask 7168
      %952 = vst.msk [vmem:[%s181] sm:$0xff] %vm951, %v907
      %953 = vst.msk [vmem:[%s181 + $0x8] sm:$0xff] %vm951, %v916
      %954 = vst.msk [vmem:[%s181 + $0x10] sm:$0xff] %vm951, %v941
      %955 = vst.msk [vmem:[%s181 + $0x18] sm:$0xff] %vm951, %v950
      %p956 = scmp.lt.s32.totalorder %s18, 1
      %s957 = scalar_select %p956, %s18, 1
      %p958 = scmp.lt.s32.totalorder %s17, 0
      %s959 = scalar_select %p958, %s17, 0
      %s960 = smul.addr %s959, 4
      %s961 = smul.addr %s957, 4
      %s962 = sadd.s32 %s960, %s961
      %s963 = smul.addr %s962, 8
      %s964 = scalar_lea.vmem %s2, %s963
      // Predicated region
      $region29: #{vn_std_feature.3} parent=27 // pred_check
        %p965 = pneg %p94
      $region30: #{vn_std_feature.3} parent=27 // pred_check_branch
        %967 = sbr.rel (%p965) target = $region32
      $region31: #{vn_std_feature.3} parent=27 // pred_region
        _
      $region32: #{vn_std_feature.3} parent=27 // pred_fallthru
        _
    $region28: #{vn_std_feature.3} parent=5 // pred_fallthru
      _
    %p968 = scmp.le.s32.totalorder 2, %s8
    // Predicated region
    $region33: #{vn_std_feature.3} parent=5 // pred_check
      %p969 = pneg %p968
    $region34: #{vn_std_feature.3} parent=5 // pred_check_branch
      %971 = sbr.rel (%p969) target = $region36
    $region35: #{vn_std_feature.3} parent=5 // pred_region
      %s972 = ssub.s32 %s8, 2
      // Predicated region
      $region37: #{vn_std_feature.3} parent=35 // pred_check
        %p973 = pneg %p100
      $region38: #{vn_std_feature.3} parent=35 // pred_check_branch
        %975 = sbr.rel (%p973) target = $region40
      $region39: #{vn_std_feature.3} parent=35 // pred_region
        %p976 = scmp.lt.s32.totalorder %s20, 1
        %s977 = scalar_select %p976, %s20, 1
        %p978 = scmp.lt.s32.totalorder %s19, 0
        %s979 = scalar_select %p978, %s19, 0
        %s980 = smul.addr %s979, 4
        %s981 = smul.addr %s977, 4
        %s982 = sadd.s32 %s980, %s981
        %s983 = smul.addr %s982, 8
        %s984 = scalar_lea.vmem %s2, %s983
      $region40: #{vn_std_feature.3} parent=35 // pred_fallthru
        _
    $region36: #{vn_std_feature.3} parent=5 // pred_fallthru
      _
  $region6: #{vn_std_feature.3} parent=0 // loop_footer
    %s12 = sadd.s32 1, %s8
  $region7: #{vn_std_feature.3} parent=0 // loop_footer_branch
    %7 = sbr.rel target = $region3
  $region8: #{vn_std_feature.3} parent=0 // loop_exit
    _

// kernel: tile.48
$region0: #{tile.48}
  %s0 = inlined_call_operand.vmem [shape: f32[32,3,9], index: 0, kind: input, shape index: {}]
  %s1 = inlined_call_operand.vmem [shape: f32[96,9], index: 1, kind: output, shape index: {}]
  $region1: #{tile.48} parent=0
    #allocation0 [shape = 'u8[131072]{0}', space=vmem, size = 0x20000, scoped, tag = 'scoped mem for input reshape']
    %s3 = sshllo.u32 0, 4
    %s4 = smul.addr 4, 31
    %s5 = scalar_lea.vmem %s0, %s4
    %v6 = vld [vmem:[%s5] sm:%s3]
    %s7 = scalar_lea.vmem [#allocation0], 248
    %8 = vst [vmem:[%s7] sm:%s3] %v6
    %s9 = smul.addr 4, 30
    %s10 = scalar_lea.vmem %s0, %s9
    %v11 = vld [vmem:[%s10] sm:%s3]
    %s12 = scalar_lea.vmem [#allocation0], 240
    %13 = vst [vmem:[%s12] sm:%s3] %v11
    %s14 = smul.addr 4, 29
    %s15 = scalar_lea.vmem %s0, %s14
    %v16 = vld [vmem:[%s15] sm:%s3]
    %s17 = scalar_lea.vmem [#allocation0], 232
    %18 = vst [vmem:[%s17] sm:%s3] %v16
    %s19 = smul.addr 4, 28
    %s20 = scalar_lea.vmem %s0, %s19
    %v21 = vld [vmem:[%s20] sm:%s3]
    %s22 = scalar_lea.vmem [#allocation0], 224
    %23 = vst [vmem:[%s22] sm:%s3] %v21
    %s24 = smul.addr 4, 27
    %s25 = scalar_lea.vmem %s0, %s24
    %v26 = vld [vmem:[%s25] sm:%s3]
    %s27 = scalar_lea.vmem [#allocation0], 216
    %28 = vst [vmem:[%s27] sm:%s3] %v26
    %s29 = smul.addr 4, 26
    %s30 = scalar_lea.vmem %s0, %s29
    %v31 = vld [vmem:[%s30] sm:%s3]
    %s32 = scalar_lea.vmem [#allocation0], 208
    %33 = vst [vmem:[%s32] sm:%s3] %v31
    %s34 = smul.addr 4, 25
    %s35 = scalar_lea.vmem %s0, %s34
    %v36 = vld [vmem:[%s35] sm:%s3]
    %s37 = scalar_lea.vmem [#allocation0], 200
    %38 = vst [vmem:[%s37] sm:%s3] %v36
    %s39 = smul.addr 4, 24
    %s40 = scalar_lea.vmem %s0, %s39
    %v41 = vld [vmem:[%s40] sm:%s3]
    %s42 = scalar_lea.vmem [#allocation0], 192
    %43 = vst [vmem:[%s42] sm:%s3] %v41
    %s44 = smul.addr 4, 23
    %s45 = scalar_lea.vmem %s0, %s44
    %v46 = vld [vmem:[%s45] sm:%s3]
    %s47 = scalar_lea.vmem [#allocation0], 184
    %48 = vst [vmem:[%s47] sm:%s3] %v46
    %s49 = smul.addr 4, 22
    %s50 = scalar_lea.vmem %s0, %s49
    %v51 = vld [vmem:[%s50] sm:%s3]
    %s52 = scalar_lea.vmem [#allocation0], 176
    %53 = vst [vmem:[%s52] sm:%s3] %v51
    %s54 = smul.addr 4, 21
    %s55 = scalar_lea.vmem %s0, %s54
    %v56 = vld [vmem:[%s55] sm:%s3]
    %s57 = scalar_lea.vmem [#allocation0], 168
    %58 = vst [vmem:[%s57] sm:%s3] %v56
    %s59 = smul.addr 4, 20
    %s60 = scalar_lea.vmem %s0, %s59
    %v61 = vld [vmem:[%s60] sm:%s3]
    %s62 = scalar_lea.vmem [#allocation0], 160
    %63 = vst [vmem:[%s62] sm:%s3] %v61
    %s64 = smul.addr 4, 19
    %s65 = scalar_lea.vmem %s0, %s64
    %v66 = vld [vmem:[%s65] sm:%s3]
    %s67 = scalar_lea.vmem [#allocation0], 152
    %68 = vst [vmem:[%s67] sm:%s3] %v66
    %s69 = smul.addr 4, 18
    %s70 = scalar_lea.vmem %s0, %s69
    %v71 = vld [vmem:[%s70] sm:%s3]
    %s72 = scalar_lea.vmem [#allocation0], 144
    %73 = vst [vmem:[%s72] sm:%s3] %v71
    %s74 = smul.addr 4, 17
    %s75 = scalar_lea.vmem %s0, %s74
    %v76 = vld [vmem:[%s75] sm:%s3]
    %s77 = scalar_lea.vmem [#allocation0], 136
    %78 = vst [vmem:[%s77] sm:%s3] %v76
    %s79 = smul.addr 4, 16
    %s80 = scalar_lea.vmem %s0, %s79
    %v81 = vld [vmem:[%s80] sm:%s3]
    %s82 = scalar_lea.vmem [#allocation0], 128
    %83 = vst [vmem:[%s82] sm:%s3] %v81
    %s84 = smul.addr 4, 15
    %s85 = scalar_lea.vmem %s0, %s84
    %v86 = vld [vmem:[%s85] sm:%s3]
    %s87 = scalar_lea.vmem [#allocation0], 120
    %88 = vst [vmem:[%s87] sm:%s3] %v86
    %s89 = smul.addr 4, 14
    %s90 = scalar_lea.vmem %s0, %s89
    %v91 = vld [vmem:[%s90] sm:%s3]
    %s92 = scalar_lea.vmem [#allocation0], 112
    %93 = vst [vmem:[%s92] sm:%s3] %v91
    %s94 = smul.addr 4, 13
    %s95 = scalar_lea.vmem %s0, %s94
    %v96 = vld [vmem:[%s95] sm:%s3]
    %s97 = scalar_lea.vmem [#allocation0], 104
    %98 = vst [vmem:[%s97] sm:%s3] %v96
    %s99 = smul.addr 4, 12
    %s100 = scalar_lea.vmem %s0, %s99
    %v101 = vld [vmem:[%s100] sm:%s3]
    %s102 = scalar_lea.vmem [#allocation0], 96
    %103 = vst [vmem:[%s102] sm:%s3] %v101
    %s104 = smul.addr 4, 11
    %s105 = scalar_lea.vmem %s0, %s104
    %v106 = vld [vmem:[%s105] sm:%s3]
    %s107 = scalar_lea.vmem [#allocation0], 88
    %108 = vst [vmem:[%s107] sm:%s3] %v106
    %s109 = smul.addr 4, 10
    %s110 = scalar_lea.vmem %s0, %s109
    %v111 = vld [vmem:[%s110] sm:%s3]
    %s112 = scalar_lea.vmem [#allocation0], 80
    %113 = vst [vmem:[%s112] sm:%s3] %v111
    %s114 = smul.addr 4, 9
    %s115 = scalar_lea.vmem %s0, %s114
    %v116 = vld [vmem:[%s115] sm:%s3]
    %s117 = scalar_lea.vmem [#allocation0], 72
    %118 = vst [vmem:[%s117] sm:%s3] %v116
    %s119 = smul.addr 4, 8
    %s120 = scalar_lea.vmem %s0, %s119
    %v121 = vld [vmem:[%s120] sm:%s3]
    %s122 = scalar_lea.vmem [#allocation0], 64
    %123 = vst [vmem:[%s122] sm:%s3] %v121
    %s124 = smul.addr 4, 7
    %s125 = scalar_lea.vmem %s0, %s124
    %v126 = vld [vmem:[%s125] sm:%s3]
    %s127 = scalar_lea.vmem [#allocation0], 56
    %128 = vst [vmem:[%s127] sm:%s3] %v126
    %s129 = smul.addr 4, 6
    %s130 = scalar_lea.vmem %s0, %s129
    %v131 = vld [vmem:[%s130] sm:%s3]
    %s132 = scalar_lea.vmem [#allocation0], 48
    %133 = vst [vmem:[%s132] sm:%s3] %v131
    %s134 = smul.addr 4, 5
    %s135 = scalar_lea.vmem %s0, %s134
    %v136 = vld [vmem:[%s135] sm:%s3]
    %s137 = scalar_lea.vmem [#allocation0], 40
    %138 = vst [vmem:[%s137] sm:%s3] %v136
    %s139 = smul.addr 4, 4
    %s140 = scalar_lea.vmem %s0, %s139
    %v141 = vld [vmem:[%s140] sm:%s3]
    %s142 = scalar_lea.vmem [#allocation0], 32
    %143 = vst [vmem:[%s142] sm:%s3] %v141
    %s144 = smul.addr 4, 3
    %s145 = scalar_lea.vmem %s0, %s144
    %v146 = vld [vmem:[%s145] sm:%s3]
    %s147 = scalar_lea.vmem [#allocation0], 24
    %148 = vst [vmem:[%s147] sm:%s3] %v146
    %s149 = smul.addr 4, 2
    %s150 = scalar_lea.vmem %s0, %s149
    %v151 = vld [vmem:[%s150] sm:%s3]
    %s152 = scalar_lea.vmem [#allocation0], 16
    %153 = vst [vmem:[%s152] sm:%s3] %v151
    %s154 = scalar_lea.vmem %s0, 4
    %v155 = vld [vmem:[%s154] sm:%s3]
    %s156 = scalar_lea.vmem [#allocation0], 8
    %157 = vst [vmem:[%s156] sm:%s3] %v155
    %v158 = vld [vmem:[%s0] sm:%s3]
    %159 = vst [vmem:[#allocation0] sm:%s3] %v158
    %v160 = vld [vmem:[#allocation0] sm:$0x7]
    %vm161 = vcmask 72704
    %162 = vst.msk [vmem:[%s1] sm:$0x7] %vm161, %v160
    %s163 = scalar_lea.vmem [#allocation0], 8
    %v164 = vld [vmem:[%s163] sm:$0x7]
    %vm165 = vcmask 72704
    %s166 = scalar_lea.vmem %s1, 3
    %167 = vst.msk [vmem:[%s166] sm:$0x7] %vm165, %v164
    %s168 = scalar_lea.vmem [#allocation0], 16
    %v169 = vld [vmem:[%s168] sm:$0x7]
    %vm170 = vcmask 72704
    %s171 = scalar_lea.vmem %s1, 6
    %172 = vst.msk [vmem:[%s171] sm:$0x7] %vm170, %v169
    %s173 = scalar_lea.vmem [#allocation0], 24
    %v174 = vld [vmem:[%s173] sm:$0x7]
    %vm175 = vcmask 72704
    %s176 = scalar_lea.vmem %s1, 9
    %177 = vst.msk [vmem:[%s176] sm:$0x7] %vm175, %v174
    %s178 = scalar_lea.vmem [#allocation0], 32
    %v179 = vld [vmem:[%s178] sm:$0x7]
    %vm180 = vcmask 72704
    %s181 = scalar_lea.vmem %s1, 12
    %182 = vst.msk [vmem:[%s181] sm:$0x7] %vm180, %v179
    %s183 = scalar_lea.vmem [#allocation0], 40
    %v184 = vld [vmem:[%s183] sm:$0x7]
    %vm185 = vcmask 72704
    %s186 = scalar_lea.vmem %s1, 15
    %187 = vst.msk [vmem:[%s186] sm:$0x7] %vm185, %v184
    %s188 = scalar_lea.vmem [#allocation0], 48
    %v189 = vld [vmem:[%s188] sm:$0x7]
    %vm190 = vcmask 72704
    %s191 = scalar_lea.vmem %s1, 18
    %192 = vst.msk [vmem:[%s191] sm:$0x7] %vm190, %v189
    %s193 = scalar_lea.vmem [#allocation0], 56
    %v194 = vld [vmem:[%s193] sm:$0x7]
    %vm195 = vcmask 72704
    %s196 = scalar_lea.vmem %s1, 21
    %197 = vst.msk [vmem:[%s196] sm:$0x7] %vm195, %v194
    %s198 = scalar_lea.vmem [#allocation0], 64
    %v199 = vld [vmem:[%s198] sm:$0x7]
    %vm200 = vcmask 72704
    %s201 = scalar_lea.vmem %s1, 24
    %202 = vst.msk [vmem:[%s201] sm:$0x7] %vm200, %v199
    %s203 = scalar_lea.vmem [#allocation0], 72
    %v204 = vld [vmem:[%s203] sm:$0x7]
    %vm205 = vcmask 72704
    %s206 = scalar_lea.vmem %s1, 27
    %207 = vst.msk [vmem:[%s206] sm:$0x7] %vm205, %v204
    %s208 = scalar_lea.vmem [#allocation0], 80
    %v209 = vld [vmem:[%s208] sm:$0x7]
    %vm210 = vcmask 72704
    %s211 = scalar_lea.vmem %s1, 30
    %212 = vst.msk [vmem:[%s211] sm:$0x7] %vm210, %v209
    %s213 = scalar_lea.vmem [#allocation0], 88
    %v214 = vld [vmem:[%s213] sm:$0x7]
    %vm215 = vcmask 72704
    %s216 = scalar_lea.vmem %s1, 33
    %217 = vst.msk [vmem:[%s216] sm:$0x7] %vm215, %v214
    %s218 = scalar_lea.vmem [#allocation0], 96
    %v219 = vld [vmem:[%s218] sm:$0x7]
    %vm220 = vcmask 72704
    %s221 = scalar_lea.vmem %s1, 36
    %222 = vst.msk [vmem:[%s221] sm:$0x7] %vm220, %v219
    %s223 = scalar_lea.vmem [#allocation0], 104
    %v224 = vld [vmem:[%s223] sm:$0x7]
    %vm225 = vcmask 72704
    %s226 = scalar_lea.vmem %s1, 39
    %227 = vst.msk [vmem:[%s226] sm:$0x7] %vm225, %v224
    %s228 = scalar_lea.vmem [#allocation0], 112
    %v229 = vld [vmem:[%s228] sm:$0x7]
    %vm230 = vcmask 72704
    %s231 = scalar_lea.vmem %s1, 42
    %232 = vst.msk [vmem:[%s231] sm:$0x7] %vm230, %v229
    %s233 = scalar_lea.vmem [#allocation0], 120
    %v234 = vld [vmem:[%s233] sm:$0x7]
    %vm235 = vcmask 72704
    %s236 = scalar_lea.vmem %s1, 45
    %237 = vst.msk [vmem:[%s236] sm:$0x7] %vm235, %v234
    %s238 = scalar_lea.vmem [#allocation0], 128
    %v239 = vld [vmem:[%s238] sm:$0x7]
    %vm240 = vcmask 72704
    %s241 = scalar_lea.vmem %s1, 48
    %242 = vst.msk [vmem:[%s241] sm:$0x7] %vm240, %v239
    %s243 = scalar_lea.vmem [#allocation0], 136
    %v244 = vld [vmem:[%s243] sm:$0x7]
    %vm245 = vcmask 72704
    %s246 = scalar_lea.vmem %s1, 51
    %247 = vst.msk [vmem:[%s246] sm:$0x7] %vm245, %v244
    %s248 = scalar_lea.vmem [#allocation0], 144
    %v249 = vld [vmem:[%s248] sm:$0x7]
    %vm250 = vcmask 72704
    %s251 = scalar_lea.vmem %s1, 54
    %252 = vst.msk [vmem:[%s251] sm:$0x7] %vm250, %v249
    %s253 = scalar_lea.vmem [#allocation0], 152
    %v254 = vld [vmem:[%s253] sm:$0x7]
    %vm255 = vcmask 72704
    %s256 = scalar_lea.vmem %s1, 57
    %257 = vst.msk [vmem:[%s256] sm:$0x7] %vm255, %v254
    %s258 = scalar_lea.vmem [#allocation0], 160
    %v259 = vld [vmem:[%s258] sm:$0x7]
    %vm260 = vcmask 72704
    %s261 = scalar_lea.vmem %s1, 60
    %262 = vst.msk [vmem:[%s261] sm:$0x7] %vm260, %v259
    %s263 = scalar_lea.vmem [#allocation0], 168
    %v264 = vld [vmem:[%s263] sm:$0x7]
    %vm265 = vcmask 72704
    %s266 = scalar_lea.vmem %s1, 63
    %267 = vst.msk [vmem:[%s266] sm:$0x7] %vm265, %v264
    %s268 = scalar_lea.vmem [#allocation0], 176
    %v269 = vld [vmem:[%s268] sm:$0x7]
    %vm270 = vcmask 72704
    %s271 = scalar_lea.vmem %s1, 66
    %272 = vst.msk [vmem:[%s271] sm:$0x7] %vm270, %v269
    %s273 = scalar_lea.vmem [#allocation0], 184
    %v274 = vld [vmem:[%s273] sm:$0x7]
    %vm275 = vcmask 72704
    %s276 = scalar_lea.vmem %s1, 69
    %277 = vst.msk [vmem:[%s276] sm:$0x7] %vm275, %v274
    %s278 = scalar_lea.vmem [#allocation0], 192
    %v279 = vld [vmem:[%s278] sm:$0x7]
    %vm280 = vcmask 72704
    %s281 = scalar_lea.vmem %s1, 72
    %282 = vst.msk [vmem:[%s281] sm:$0x7] %vm280, %v279
    %s283 = scalar_lea.vmem [#allocation0], 200
    %v284 = vld [vmem:[%s283] sm:$0x7]
    %vm285 = vcmask 72704
    %s286 = scalar_lea.vmem %s1, 75
    %287 = vst.msk [vmem:[%s286] sm:$0x7] %vm285, %v284
    %s288 = scalar_lea.vmem [#allocation0], 208
    %v289 = vld [vmem:[%s288] sm:$0x7]
    %vm290 = vcmask 72704
    %s291 = scalar_lea.vmem %s1, 78
    %292 = vst.msk [vmem:[%s291] sm:$0x7] %vm290, %v289
    %s293 = scalar_lea.vmem [#allocation0], 216
    %v294 = vld [vmem:[%s293] sm:$0x7]
    %vm295 = vcmask 72704
    %s296 = scalar_lea.vmem %s1, 81
    %297 = vst.msk [vmem:[%s296] sm:$0x7] %vm295, %v294
    %s298 = scalar_lea.vmem [#allocation0], 224
    %v299 = vld [vmem:[%s298] sm:$0x7]
    %vm300 = vcmask 72704
    %s301 = scalar_lea.vmem %s1, 84
    %302 = vst.msk [vmem:[%s301] sm:$0x7] %vm300, %v299
    %s303 = scalar_lea.vmem [#allocation0], 232
    %v304 = vld [vmem:[%s303] sm:$0x7]
    %vm305 = vcmask 72704
    %s306 = scalar_lea.vmem %s1, 87
    %307 = vst.msk [vmem:[%s306] sm:$0x7] %vm305, %v304
    %s308 = scalar_lea.vmem [#allocation0], 240
    %v309 = vld [vmem:[%s308] sm:$0x7]
    %vm310 = vcmask 72704
    %s311 = scalar_lea.vmem %s1, 90
    %312 = vst.msk [vmem:[%s311] sm:$0x7] %vm310, %v309
    %s313 = scalar_lea.vmem [#allocation0], 248
    %v314 = vld [vmem:[%s313] sm:$0x7]
    %vm315 = vcmask 72704
    %s316 = scalar_lea.vmem %s1, 93
    %317 = vst.msk [vmem:[%s316] sm:$0x7] %vm315, %v314

// kernel: vn_std_feature.4
$region0: #{vn_std_feature.4}
  #allocation0 [shape = 'u32[]', space=smem, size = 0x4, offset = 0x4, fixed_abs, tag = 'smem constant byte address 0x4 - core index']
  #allocation1 [shape = 'u32[144,128]{1,0:T(1,128)}', space=vmem, size = 0x12000, scoped, tag = 'internal scratch']
  %s0 = inlined_call_operand.vmem [shape: f32[2,96,1024], index: 0, kind: input, shape index: {}]
  %s1 = inlined_call_operand.vmem [shape: f32[96,96], index: 1, kind: input, shape index: {}]
  %s2 = inlined_call_operand.vmem [shape: f32[16,1], index: 2, kind: input, shape index: {}]
  %s3 = inlined_call_operand.vmem [shape: f32[16,1], index: 3, kind: input, shape index: {}]
  %s4 = inlined_call_operand.vmem [shape: f32[3,24,16], index: 4, kind: input, shape index: {}]
  %s5 = inlined_call_operand.vmem [shape: f32[2,48,1024], index: 5, kind: output, shape index: {0}]
  %s6 = inlined_call_operand.vmem [shape: f32[2,1,16,1], index: 6, kind: output, shape index: {1}]
  %7 = xla_tuple %s5, %s6
  %s8 = sld [smem:[#allocation0]]
  $region61: #{vn_std_feature.4} parent=0
    _
  %s10 = ssub.s32 1, %s8
  %s11 = scalar_select 0, %s10, %s8
  loop: start=0, step=1, limit=4
  $region2: #{vn_std_feature.4} parent=0 // loop_pre_header
    _
  $region3: #{vn_std_feature.4} parent=0 // loop_header
    %s13 = sphi 0, %s17
    %p14 = scmp.ge.s32.totalorder %s13, 4
    %s20 = sphi 0, %s32
    %s21 = sphi 0, %s28
    %s22 = sphi 0, %s20
    %s23 = sphi 0, %s21
    %s24 = sphi 0, %s22
    %s25 = sphi 0, %s23
    %s37 = sphi 0, %s39
    %s40 = sphi 0, %s37
    %s41 = sphi 0, %s40
    %s57 = sphi 0, %s41
    %s61 = sphi 0, %s61
    %s63 = sphi 0, %s61
    %s64 = sphi 0, %s63
    %s78 = sphi 0, %s64
    %s82 = sphi 0, %s82
    %s84 = sphi 0, %s82
    %s85 = sphi 0, %s84
    %s99 = sphi 0, %s85
    %s103 = sphi 0, %s103
    %s105 = sphi 0, %s103
    %s106 = sphi 0, %s105
    %s120 = sphi 0, %s106
    %s124 = sphi 0, %s124
    %s126 = sphi 0, %s124
    %s127 = sphi 0, %s126
    %s141 = sphi 0, %s127
    %s149 = sphi 0, %s151
    %s152 = sphi 0, %s149
    %s153 = sphi 0, %s152
    %s169 = sphi 0, %s153
    %s177 = sphi 0, %s179
    %s180 = sphi 0, %s177
    %s181 = sphi 0, %s180
    %s197 = sphi 0, %s181
  $region4: #{vn_std_feature.4} parent=0 // loop_header_branch
    %16 = sbr.rel (%p14) target = $region8
  $region5: #{vn_std_feature.4} parent=0 // loop_body
    %s18 = ssub.s32 %s13, 1
    %s19 = ssub.s32 %s13, 2
    %s26 = sadd.s32 1, %s21
    %p27 = scmp.ge.s32.totalorder %s26, 2
    %s28 = scalar_select %p27, 0, %s26
    %s29 = sadd.s32 1, %s20
    %s30 = scalar_select %p27, %s29, %s20
    %p31 = scmp.ge.s32.totalorder %s30, 1
    %s32 = scalar_select %p31, 0, %s30
    %s33 = ssub.s32 %s21, %s28
    %s34 = ssub.s32 %s20, %s32
    %s35 = sor.u32 %s33, %s34
    %p36 = scmp.eq.s32.totalorder %s35, 0
    %s38 = sadd.s32 %s37, 1
    %s39 = scalar_select %p36, %s37, %s38
    %p42 = pneg %p36
    %p43 = scmp.eq.s32.totalorder %s13, 1
    %p44 = por %p42, %p43
    %p45 = scmp.ne.s32.totalorder %s37, %s40
    %p46 = scmp.eq.s32.totalorder %s13, 0
    %p47 = por %p45, %p46
    %p48 = scmp.ne.s32.totalorder %s37, %s40
    %p49 = scmp.eq.s32.totalorder %s18, 1
    %p50 = por %p48, %p49
    %p51 = scmp.ne.s32.totalorder %s40, %s41
    %p52 = scmp.eq.s32.totalorder %s18, 0
    %p53 = por %p51, %p52
    %p54 = scmp.ne.s32.totalorder %s40, %s41
    %p55 = scmp.eq.s32.totalorder %s19, 1
    %p56 = por %p54, %p55
    %p58 = scmp.ne.s32.totalorder %s41, %s57
    %p59 = scmp.eq.s32.totalorder %s19, 0
    %p60 = por %p58, %p59
    %s62 = sadd.s32 %s61, 1
    %p65 = scmp.eq.s32.totalorder %s13, 1
    %p66 = scmp.ne.s32.totalorder %s61, %s63
    %p67 = scmp.eq.s32.totalorder %s13, 0
    %p68 = por %p66, %p67
    %p69 = scmp.ne.s32.totalorder %s61, %s63
    %p70 = scmp.eq.s32.totalorder %s18, 1
    %p71 = por %p69, %p70
    %p72 = scmp.ne.s32.totalorder %s63, %s64
    %p73 = scmp.eq.s32.totalorder %s18, 0
    %p74 = por %p72, %p73
    %p75 = scmp.ne.s32.totalorder %s63, %s64
    %p76 = scmp.eq.s32.totalorder %s19, 1
    %p77 = por %p75, %p76
    %p79 = scmp.ne.s32.totalorder %s64, %s78
    %p80 = scmp.eq.s32.totalorder %s19, 0
    %p81 = por %p79, %p80
    %s83 = sadd.s32 %s82, 1
    %p86 = scmp.eq.s32.totalorder %s13, 1
    %p87 = scmp.ne.s32.totalorder %s82, %s84
    %p88 = scmp.eq.s32.totalorder %s13, 0
    %p89 = por %p87, %p88
    %p90 = scmp.ne.s32.totalorder %s82, %s84
    %p91 = scmp.eq.s32.totalorder %s18, 1
    %p92 = por %p90, %p91
    %p93 = scmp.ne.s32.totalorder %s84, %s85
    %p94 = scmp.eq.s32.totalorder %s18, 0
    %p95 = por %p93, %p94
    %p96 = scmp.ne.s32.totalorder %s84, %s85
    %p97 = scmp.eq.s32.totalorder %s19, 1
    %p98 = por %p96, %p97
    %p100 = scmp.ne.s32.totalorder %s85, %s99
    %p101 = scmp.eq.s32.totalorder %s19, 0
    %p102 = por %p100, %p101
    %s104 = sadd.s32 %s103, 1
    %p107 = scmp.eq.s32.totalorder %s13, 1
    %p108 = scmp.ne.s32.totalorder %s103, %s105
    %p109 = scmp.eq.s32.totalorder %s13, 0
    %p110 = por %p108, %p109
    %p111 = scmp.ne.s32.totalorder %s103, %s105
    %p112 = scmp.eq.s32.totalorder %s18, 1
    %p113 = por %p111, %p112
    %p114 = scmp.ne.s32.totalorder %s105, %s106
    %p115 = scmp.eq.s32.totalorder %s18, 0
    %p116 = por %p114, %p115
    %p117 = scmp.ne.s32.totalorder %s105, %s106
    %p118 = scmp.eq.s32.totalorder %s19, 1
    %p119 = por %p117, %p118
    %p121 = scmp.ne.s32.totalorder %s106, %s120
    %p122 = scmp.eq.s32.totalorder %s19, 0
    %p123 = por %p121, %p122
    %s125 = sadd.s32 %s124, 1
    %p128 = scmp.eq.s32.totalorder %s13, 1
    %p129 = scmp.ne.s32.totalorder %s124, %s126
    %p130 = scmp.eq.s32.totalorder %s13, 0
    %p131 = por %p129, %p130
    %p132 = scmp.ne.s32.totalorder %s124, %s126
    %p133 = scmp.eq.s32.totalorder %s18, 1
    %p134 = por %p132, %p133
    %p135 = scmp.ne.s32.totalorder %s126, %s127
    %p136 = scmp.eq.s32.totalorder %s18, 0
    %p137 = por %p135, %p136
    %p138 = scmp.ne.s32.totalorder %s126, %s127
    %p139 = scmp.eq.s32.totalorder %s19, 1
    %p140 = por %p138, %p139
    %p142 = scmp.ne.s32.totalorder %s127, %s141
    %p143 = scmp.eq.s32.totalorder %s19, 0
    %p144 = por %p142, %p143
    %s145 = ssub.s32 %s21, %s28
    %s146 = ssub.s32 %s20, %s32
    %s147 = sor.u32 %s145, %s146
    %p148 = scmp.eq.s32.totalorder %s147, 0
    %s150 = sadd.s32 %s149, 1
    %s151 = scalar_select %p148, %s149, %s150
    %p154 = pneg %p148
    %p155 = scmp.eq.s32.totalorder %s13, 1
    %p156 = por %p154, %p155
    %p157 = scmp.ne.s32.totalorder %s149, %s152
    %p158 = scmp.eq.s32.totalorder %s13, 0
    %p159 = por %p157, %p158
    %p160 = scmp.ne.s32.totalorder %s149, %s152
    %p161 = scmp.eq.s32.totalorder %s18, 1
    %p162 = por %p160, %p161
    %p163 = scmp.ne.s32.totalorder %s152, %s153
    %p164 = scmp.eq.s32.totalorder %s18, 0
    %p165 = por %p163, %p164
    %p166 = scmp.ne.s32.totalorder %s152, %s153
    %p167 = scmp.eq.s32.totalorder %s19, 1
    %p168 = por %p166, %p167
    %p170 = scmp.ne.s32.totalorder %s153, %s169
    %p171 = scmp.eq.s32.totalorder %s19, 0
    %p172 = por %p170, %p171
    %s173 = ssub.s32 %s21, %s28
    %s174 = ssub.s32 %s20, %s32
    %s175 = sor.u32 %s173, %s174
    %p176 = scmp.eq.s32.totalorder %s175, 0
    %s178 = sadd.s32 %s177, 1
    %s179 = scalar_select %p176, %s177, %s178
    %p182 = pneg %p176
    %p183 = scmp.eq.s32.totalorder %s13, 1
    %p184 = por %p182, %p183
    %p185 = scmp.ne.s32.totalorder %s177, %s180
    %p186 = scmp.eq.s32.totalorder %s13, 0
    %p187 = por %p185, %p186
    %p188 = scmp.ne.s32.totalorder %s177, %s180
    %p189 = scmp.eq.s32.totalorder %s18, 1
    %p190 = por %p188, %p189
    %p191 = scmp.ne.s32.totalorder %s180, %s181
    %p192 = scmp.eq.s32.totalorder %s18, 0
    %p193 = por %p191, %p192
    %p194 = scmp.ne.s32.totalorder %s180, %s181
    %p195 = scmp.eq.s32.totalorder %s19, 1
    %p196 = por %p194, %p195
    %p198 = scmp.ne.s32.totalorder %s181, %s197
    %p199 = scmp.eq.s32.totalorder %s19, 0
    %p200 = por %p198, %p199
    %p201 = scmp.le.s32.totalorder 1, %s13
    %p202 = scmp.lt.s32.totalorder %s13, 3
    %p203 = pnand %p201, %p202
    %p204 = pneg %p203
    // Predicated region
    $region9: #{vn_std_feature.4} parent=5 // pred_check
      _
    $region10: #{vn_std_feature.4} parent=5 // pred_check_branch
      %206 = sbr.rel (%p203) target = $region12
    $region11: #{vn_std_feature.4} parent=5 // pred_region
      %s207 = ssub.s32 %s13, 1
      // Predicated region
      $region13: #{vn_std_feature.4} parent=11 // pred_check
        %p208 = pneg %p74
      $region14: #{vn_std_feature.4} parent=11 // pred_check_branch
        %210 = sbr.rel (%p208) target = $region16
      $region15: #{vn_std_feature.4} parent=11 // pred_region
        _
      $region16: #{vn_std_feature.4} parent=11 // pred_fallthru
        _
      // Predicated region
      $region17: #{vn_std_feature.4} parent=11 // pred_check
        %p211 = pneg %p95
      $region18: #{vn_std_feature.4} parent=11 // pred_check_branch
        %213 = sbr.rel (%p211) target = $region20
      $region19: #{vn_std_feature.4} parent=11 // pred_region
        _
      $region20: #{vn_std_feature.4} parent=11 // pred_fallthru
        _
      // Predicated region
      $region21: #{vn_std_feature.4} parent=11 // pred_check
        %p214 = pneg %p116
      $region22: #{vn_std_feature.4} parent=11 // pred_check_branch
        %216 = sbr.rel (%p214) target = $region24
      $region23: #{vn_std_feature.4} parent=11 // pred_region
        _
      $region24: #{vn_std_feature.4} parent=11 // pred_fallthru
        _
      // Predicated region
      $region25: #{vn_std_feature.4} parent=11 // pred_check
        %p217 = pneg %p137
      $region26: #{vn_std_feature.4} parent=11 // pred_check_branch
        %219 = sbr.rel (%p217) target = $region28
      $region27: #{vn_std_feature.4} parent=11 // pred_region
        _
      $region28: #{vn_std_feature.4} parent=11 // pred_fallthru
        _
    $region12: #{vn_std_feature.4} parent=5 // pred_fallthru
      _
    %p220 = scmp.lt.s32.totalorder %s13, 2
    // Predicated region
    $region29: #{vn_std_feature.4} parent=5 // pred_check
      %p221 = pneg %p220
    $region30: #{vn_std_feature.4} parent=5 // pred_check_branch
      %223 = sbr.rel (%p221) target = $region32
    $region31: #{vn_std_feature.4} parent=5 // pred_region
      // Predicated region
      $region33: #{vn_std_feature.4} parent=31 // pred_check
        %p224 = pneg %p47
      $region34: #{vn_std_feature.4} parent=31 // pred_check_branch
        %226 = sbr.rel (%p224) target = $region36
      $region35: #{vn_std_feature.4} parent=31 // pred_region
        %s227 = smul.u32 8, %s20
        %p228 = scmp.lt.s32.totalorder %s21, 1
        %s229 = scalar_select %p228, %s21, 1
        %p230 = scmp.lt.s32.totalorder %s227, 7
        %s231 = scalar_select %p230, %s227, 7
        %s232 = smul.addr %s229, 96
        %s233 = sadd.s32 %s231, %s232
        %s234 = smul.addr %s233, 8
        %s235 = scalar_lea.vmem %s0, %s234
        %s236 = smul.u32 8, %s20
      $region36: #{vn_std_feature.4} parent=31 // pred_fallthru
        _
    $region32: #{vn_std_feature.4} parent=5 // pred_fallthru
      _
    %p237 = scmp.le.s32.totalorder 1, %s13
    %p238 = scmp.lt.s32.totalorder %s13, 3
    %p239 = pnand %p237, %p238
    %p240 = pneg %p239
    // Predicated region
    $region37: #{vn_std_feature.4} parent=5 // pred_check
      _
    $region38: #{vn_std_feature.4} parent=5 // pred_check_branch
      %242 = sbr.rel (%p239) target = $region40
    $region39: #{vn_std_feature.4} parent=5 // pred_region
      %s243 = ssub.s32 %s13, 1
      %s244 = smul.u32 8, %s22
      %p245 = scmp.lt.s32.totalorder %s23, 1
      %s246 = scalar_select %p245, %s23, 1
      %p247 = scmp.lt.s32.totalorder %s244, 7
      %s248 = scalar_select %p247, %s244, 7
      %s249 = smul.addr %s246, 96
      %s250 = sadd.s32 %s248, %s249
      %s251 = smul.addr %s250, 8
      %s252 = scalar_lea.vmem %s0, %s251
      %p253 = pneg %p53
      %p254 = pneg %p50
      %p255 = pneg %p74
      %p256 = pneg %p71
      %p257 = pneg %p95
      %p258 = pneg %p92
      %p259 = pneg %p116
      %p260 = pneg %p113
      %p261 = pneg %p137
      %p262 = pneg %p134
      %p263 = pneg %p165
      %p264 = pneg %p162
      %s265 = smul.u32 8, %s22
      %p266 = scmp.lt.s32.totalorder %s23, 1
      %s267 = scalar_select %p266, %s23, 1
      %p268 = scmp.lt.s32.totalorder %s265, 7
      %s269 = scalar_select %p268, %s265, 7
      %s270 = smul.addr %s267, 48
      %s271 = sadd.s32 %s269, %s270
      %s272 = smul.addr %s271, 8
      %s273 = scalar_lea.vmem %s5, %s272
      %p274 = pneg %p193
      %p275 = pneg %p190
      %p276 = scmp.lt.s32.totalorder %s23, 1
      %s277 = scalar_select %p276, %s23, 1
      %p278 = scmp.lt.s32.totalorder %s22, 0
      %s279 = scalar_select %p278, %s22, 0
      %s280 = smul.addr %s279, 2
      %s281 = smul.addr %s277, 2
      %s282 = sadd.s32 %s280, %s281
      %s283 = smul.addr %s282, 8
      %s284 = scalar_lea.vmem %s6, %s283
      %s285 = smul.u32 8, %s22
      %p286 = scmp.lt.s32.totalorder %s23, 1
      %s287 = scalar_select %p286, %s23, 1
      %p288 = scmp.lt.s32.totalorder %s285, 7
      %s289 = scalar_select %p288, %s285, 7
      %s290 = smul.addr %s287, 96
      %s291 = sadd.s32 %s289, %s290
      %s292 = smul.addr %s291, 8
      %s293 = scalar_lea.vmem %s0, %s292
      %s294 = smul.u32 8, %s22
      %s295 = smul.u32 8, %s22
      %p296 = scmp.lt.s32.totalorder %s23, 1
      %s297 = scalar_select %p296, %s23, 1
      %p298 = scmp.lt.s32.totalorder %s295, 7
      %s299 = scalar_select %p298, %s295, 7
      %s300 = smul.addr %s297, 48
      %s301 = sadd.s32 %s299, %s300
      %s302 = smul.addr %s301, 8
      %s303 = scalar_lea.vmem %s5, %s302
      %s304 = smul.u32 8, %s22
      %p305 = scmp.lt.s32.totalorder %s23, 1
      %s306 = scalar_select %p305, %s23, 1
      %p307 = scmp.lt.s32.totalorder %s22, 0
      %s308 = scalar_select %p307, %s22, 0
      %s309 = smul.addr %s308, 2
      %s310 = smul.addr %s306, 2
      %s311 = sadd.s32 %s309, %s310
      %s312 = smul.addr %s311, 8
      %s313 = scalar_lea.vmem %s6, %s312
      %v314 = vld [vmem:[%s1] sm:$0xff]
      %v315 = vld [vmem:[%s1 + $0x8] sm:$0xff]
      %v316 = vld [vmem:[%s1 + $0x10] sm:$0xff]
      %v317 = vld [vmem:[%s1 + $0x18] sm:$0xff]
      %v318 = vld [vmem:[%s1 + $0x20] sm:$0xff]
      %v319 = vld [vmem:[%s1 + $0x28] sm:$0xff]
      %v320 = vld [vmem:[%s1 + $0x30] sm:$0xff]
      %v321 = vld [vmem:[%s1 + $0x38] sm:$0xff]
      %v322 = vld [vmem:[%s1 + $0x40] sm:$0xff]
      %v323 = vld [vmem:[%s1 + $0x48] sm:$0xff]
      %v324 = vld [vmem:[%s1 + $0x50] sm:$0xff]
      %v325 = vld [vmem:[%s1 + $0x58] sm:$0xff]
      %v326 = vld [vmem:[%s293] sm:$0xff]
      %v327 = vld [vmem:[%s293 + $0x8] sm:$0xff]
      %v328 = vld [vmem:[%s293 + $0x10] sm:$0xff]
      %v329 = vld [vmem:[%s293 + $0x18] sm:$0xff]
      %v330 = vld [vmem:[%s293 + $0x20] sm:$0xff]
      %v331 = vld [vmem:[%s293 + $0x28] sm:$0xff]
      %v332 = vld [vmem:[%s293 + $0x30] sm:$0xff]
      %v333 = vld [vmem:[%s293 + $0x38] sm:$0xff]
      %v334 = vld [vmem:[%s293 + $0x40] sm:$0xff]
      %v335 = vld [vmem:[%s293 + $0x48] sm:$0xff]
      %v336 = vld [vmem:[%s293 + $0x50] sm:$0xff]
      %v337 = vld [vmem:[%s293 + $0x58] sm:$0xff]
      %v338 = vld [vmem:[%s293 + $0x60] sm:$0xff]
      %v339 = vld [vmem:[%s293 + $0x68] sm:$0xff]
      %v340 = vld [vmem:[%s293 + $0x70] sm:$0xff]
      %v341 = vld [vmem:[%s293 + $0x78] sm:$0xff]
      %v342 = vld [vmem:[%s293 + $0x80] sm:$0xff]
      %v343 = vld [vmem:[%s293 + $0x88] sm:$0xff]
      %v344 = vld [vmem:[%s293 + $0x90] sm:$0xff]
      %v345 = vld [vmem:[%s293 + $0x98] sm:$0xff]
      %v346 = vld [vmem:[%s293 + $0xa0] sm:$0xff]
      %v347 = vld [vmem:[%s293 + $0xa8] sm:$0xff]
      %v348 = vld [vmem:[%s293 + $0xb0] sm:$0xff]
      %v349 = vld [vmem:[%s293 + $0xb8] sm:$0xff]
      %v350 = vld [vmem:[%s293 + $0xc0] sm:$0xff]
      %v351 = vld [vmem:[%s293 + $0xc8] sm:$0xff]
      %v352 = vld [vmem:[%s293 + $0xd0] sm:$0xff]
      %v353 = vld [vmem:[%s293 + $0xd8] sm:$0xff]
      %v354 = vld [vmem:[%s293 + $0xe0] sm:$0xff]
      %v355 = vld [vmem:[%s293 + $0xe8] sm:$0xff]
      %v356 = vld [vmem:[%s293 + $0xf0] sm:$0xff]
      %v357 = vld [vmem:[%s293 + $0xf8] sm:$0xff]
      %v358 = vld [vmem:[%s293 + $0x100] sm:$0xff]
      %v359 = vld [vmem:[%s293 + $0x108] sm:$0xff]
      %v360 = vld [vmem:[%s293 + $0x110] sm:$0xff]
      %v361 = vld [vmem:[%s293 + $0x118] sm:$0xff]
      %v362 = vld [vmem:[%s293 + $0x120] sm:$0xff]
      %v363 = vld [vmem:[%s293 + $0x128] sm:$0xff]
      %v364 = vld [vmem:[%s293 + $0x130] sm:$0xff]
      %v365 = vld [vmem:[%s293 + $0x138] sm:$0xff]
      %v366 = vld [vmem:[%s293 + $0x140] sm:$0xff]
      %v367 = vld [vmem:[%s293 + $0x148] sm:$0xff]
      %v368 = vld [vmem:[%s293 + $0x150] sm:$0xff]
      %v369 = vld [vmem:[%s293 + $0x158] sm:$0xff]
      %v370 = vld [vmem:[%s293 + $0x160] sm:$0xff]
      %v371 = vld [vmem:[%s293 + $0x168] sm:$0xff]
      %v372 = vld [vmem:[%s293 + $0x170] sm:$0xff]
      %v373 = vld [vmem:[%s293 + $0x178] sm:$0xff]
      %v374 = vld [vmem:[%s293 + $0x180] sm:$0xff]
      %v375 = vld [vmem:[%s293 + $0x188] sm:$0xff]
      %v376 = vld [vmem:[%s293 + $0x190] sm:$0xff]
      %v377 = vld [vmem:[%s293 + $0x198] sm:$0xff]
      %v378 = vld [vmem:[%s293 + $0x1a0] sm:$0xff]
      %v379 = vld [vmem:[%s293 + $0x1a8] sm:$0xff]
      %v380 = vld [vmem:[%s293 + $0x1b0] sm:$0xff]
      %v381 = vld [vmem:[%s293 + $0x1b8] sm:$0xff]
      %v382 = vld [vmem:[%s293 + $0x1c0] sm:$0xff]
      %v383 = vld [vmem:[%s293 + $0x1c8] sm:$0xff]
      %v384 = vld [vmem:[%s293 + $0x1d0] sm:$0xff]
      %v385 = vld [vmem:[%s293 + $0x1d8] sm:$0xff]
      %v386 = vld [vmem:[%s293 + $0x1e0] sm:$0xff]
      %v387 = vld [vmem:[%s293 + $0x1e8] sm:$0xff]
      %v388 = vld [vmem:[%s293 + $0x1f0] sm:$0xff]
      %v389 = vld [vmem:[%s293 + $0x1f8] sm:$0xff]
      %v390 = vld [vmem:[%s293 + $0x200] sm:$0xff]
      %v391 = vld [vmem:[%s293 + $0x208] sm:$0xff]
      %v392 = vld [vmem:[%s293 + $0x210] sm:$0xff]
      %v393 = vld [vmem:[%s293 + $0x218] sm:$0xff]
      %v394 = vld [vmem:[%s293 + $0x220] sm:$0xff]
      %v395 = vld [vmem:[%s293 + $0x228] sm:$0xff]
      %v396 = vld [vmem:[%s293 + $0x230] sm:$0xff]
      %v397 = vld [vmem:[%s293 + $0x238] sm:$0xff]
      %v398 = vld [vmem:[%s293 + $0x240] sm:$0xff]
      %v399 = vld [vmem:[%s293 + $0x248] sm:$0xff]
      %v400 = vld [vmem:[%s293 + $0x250] sm:$0xff]
      %v401 = vld [vmem:[%s293 + $0x258] sm:$0xff]
      %v402 = vld [vmem:[%s293 + $0x260] sm:$0xff]
      %v403 = vld [vmem:[%s293 + $0x268] sm:$0xff]
      %v404 = vld [vmem:[%s293 + $0x270] sm:$0xff]
      %v405 = vld [vmem:[%s293 + $0x278] sm:$0xff]
      %v406 = vld [vmem:[%s293 + $0x280] sm:$0xff]
      %v407 = vld [vmem:[%s293 + $0x288] sm:$0xff]
      %v408 = vld [vmem:[%s293 + $0x290] sm:$0xff]
      %v409 = vld [vmem:[%s293 + $0x298] sm:$0xff]
      %v410 = vld [vmem:[%s293 + $0x2a0] sm:$0xff]
      %v411 = vld [vmem:[%s293 + $0x2a8] sm:$0xff]
      %v412 = vld [vmem:[%s293 + $0x2b0] sm:$0xff]
      %v413 = vld [vmem:[%s293 + $0x2b8] sm:$0xff]
      %v414 = vld [vmem:[%s293 + $0x2c0] sm:$0xff]
      %v415 = vld [vmem:[%s293 + $0x2c8] sm:$0xff]
      %v416 = vld [vmem:[%s293 + $0x2d0] sm:$0xff]
      %v417 = vld [vmem:[%s293 + $0x2d8] sm:$0xff]
      %v418 = vld [vmem:[%s293 + $0x2e0] sm:$0xff]
      %v419 = vld [vmem:[%s293 + $0x2e8] sm:$0xff]
      %v420 = vld [vmem:[%s293 + $0x2f0] sm:$0xff]
      %v421 = vld [vmem:[%s293 + $0x2f8] sm:$0xff]
      %vm422 = vcmask 785408
      %v424 = vsel %vm422, %v314, 0
      %v427 = vsel %vm422, %v315, 0
      %v430 = vsel %vm422, %v316, 0
      %v433 = vsel %vm422, %v317, 0
      %v436 = vsel %vm422, %v318, 0
      %v439 = vsel %vm422, %v319, 0
      %v442 = vsel %vm422, %v320, 0
      %v445 = vsel %vm422, %v321, 0
      %v448 = vsel %vm422, %v322, 0
      %v451 = vsel %vm422, %v323, 0
      %v454 = vsel %vm422, %v324, 0
      %v457 = vsel %vm422, %v325, 0
      %459 = vmatprep.subr.mxu0 %v327
      %460 = vmatpush1.msra.mxu0 %v326
      %461 = vmatprep.subr.mxu0 %v335
      %462 = vmatpush1.msra.mxu0 %v334
      %463 = vmatprep.subr.mxu0 %v343
      %464 = vmatpush1.msra.mxu0 %v342
      %465 = vmatprep.subr.mxu0 %v351
      %466 = vmatpush1.msra.mxu0 %v350
      %467 = vmatprep.subr.mxu0 %v359
      %468 = vmatpush1.msra.mxu0 %v358
      %469 = vmatprep.subr.mxu0 %v367
      %470 = vmatpush1.msra.mxu0 %v366
      %471 = vmatprep.subr.mxu0 %v375
      %472 = vmatpush1.msra.mxu0 %v374
      %473 = vmatprep.subr.mxu0 %v383
      %474 = vmatpush1.msra.mxu0 %v382
      %475 = vmatprep.subr.mxu0 %v391
      %476 = vmatpush1.msra.mxu0 %v390
      %477 = vmatprep.subr.mxu0 %v399
      %478 = vmatpush1.msra.mxu0 %v398
      %479 = vmatprep.subr.mxu0 %v407
      %480 = vmatpush1.msra.mxu0 %v406
      %481 = vmatprep.subr.mxu0 %v415
      %482 = vmatpush1.msra.mxu0 %v414
      %483 = vmatprep.subr.mxu0 0.0
      %484 = vmatpush1.msra.mxu0 0.0
      %485 = vmatprep.subr.mxu0 0.0
      %486 = vmatpush1.msra.mxu0 0.0
      %487 = vmatprep.subr.mxu0 0.0
      %488 = vmatpush1.msra.mxu0 0.0
      %489 = vmatprep.subr.mxu0 0.0
      %490 = vmatpush1.msra.mxu0 0.0
      %491 = vmatprep.subr.mxu0 0.0
      %492 = vmatpush1.msra.mxu0 0.0
      %493 = vmatprep.subr.mxu0 0.0
      %494 = vmatpush1.msra.mxu0 0.0
      %495 = vmatprep.subr.mxu0 0.0
      %496 = vmatpush1.msra.mxu0 0.0
      %497 = vmatprep.subr.mxu0 0.0
      %498 = vmatpush1.msra.mxu0 0.0
      %499 = vmatprep.subr.mxu0 0.0
      %500 = vmatpush1.msra.mxu0 0.0
      %501 = vmatprep.subr.mxu0 0.0
      %502 = vmatpush1.msra.mxu0 0.0
      %503 = vmatprep.subr.mxu0 0.0
      %504 = vmatpush1.msra.mxu0 0.0
      %505 = vmatprep.subr.mxu0 0.0
      %506 = vmatpush1.msra.mxu0 0.0
      %507 = vmatprep.subr.mxu0 0.0
      %508 = vmatpush1.msra.mxu0 0.0
      %509 = vmatprep.subr.mxu0 0.0
      %510 = vmatpush1.msra.mxu0 0.0
      %511 = vmatprep.subr.mxu0 0.0
      %512 = vmatpush1.msra.mxu0 0.0
      %513 = vmatprep.subr.mxu0 0.0
      %514 = vmatpush1.msra.mxu0 0.0
      %515 = vmatprep.subr.mxu0 0.0
      %516 = vmatpush1.msra.mxu0 0.0
      %517 = vmatprep.subr.mxu0 0.0
      %518 = vmatpush1.msra.mxu0 0.0
      %519 = vmatprep.subr.mxu0 0.0
      %520 = vmatpush1.msra.mxu0 0.0
      %521 = vmatprep.subr.mxu0 0.0
      %522 = vmatpush1.msra.mxu0 0.0
      %523 = vmatprep.mubr.f32.mxu0 0.0
      %524 = vmatmul.mubr.f32.gmra.mrb[0].mxu0 %v424
      %v525 = vpop.f32.mrb[0].mxu0
      %v526 = vadd.f32 0.0, %v525
      %v527 = vpop.f32.mrb[0].mxu0
      %v528 = vadd.f32 0.0, %v527
      %529 = vmatprep.mubr.f32.mxu0 0.0
      %530 = vmatmul.mubr.f32.gmra.mrb[0].mxu0 %v427
      %v531 = vpop.f32.mrb[0].mxu0
      %v532 = vadd.f32 0.0, %v531
      %v533 = vpop.f32.mrb[0].mxu0
      %v534 = vadd.f32 0.0, %v533
      %535 = vmatprep.mubr.f32.mxu0 0.0
      %536 = vmatmul.mubr.f32.gmra.mrb[0].mxu0 %v430
      %v537 = vpop.f32.mrb[0].mxu0
      %v538 = vadd.f32 0.0, %v537
      %v539 = vpop.f32.mrb[0].mxu0
      %v540 = vadd.f32 0.0, %v539
      %541 = vmatprep.mubr.f32.mxu0 0.0
      %542 = vmatmul.mubr.f32.gmra.mrb[0].mxu0 %v433
      %v543 = vpop.f32.mrb[0].mxu0
      %v544 = vadd.f32 0.0, %v543
      %v545 = vpop.f32.mrb[0].mxu0
      %v546 = vadd.f32 0.0, %v545
      %547 = vmatprep.mubr.f32.mxu0 0.0
      %548 = vmatmul.mubr.f32.gmra.mrb[0].mxu0 %v436
      %v549 = vpop.f32.mrb[0].mxu0
      %v550 = vadd.f32 0.0, %v549
      %v551 = vpop.f32.mrb[0].mxu0
      %v552 = vadd.f32 0.0, %v551
      %553 = vmatprep.mubr.f32.mxu0 0.0
      %554 = vmatmul.mubr.f32.gmra.mrb[0].mxu0 %v439
      %v555 = vpop.f32.mrb[0].mxu0
      %v556 = vadd.f32 0.0, %v555
      %v557 = vpop.f32.mrb[0].mxu0
      %v558 = vadd.f32 0.0, %v557
      %559 = vmatprep.mubr.f32.mxu0 0.0
      %560 = vmatmul.mubr.f32.gmra.mrb[0].mxu0 %v442
      %v561 = vpop.f32.mrb[0].mxu0
      %v562 = vadd.f32 0.0, %v561
      %v563 = vpop.f32.mrb[0].mxu0
      %v564 = vadd.f32 0.0, %v563
      %565 = vmatprep.mubr.f32.mxu0 0.0
      %566 = vmatmul.mubr.f32.gmra.mrb[0].mxu0 %v445
      %v567 = vpop.f32.mrb[0].mxu0
      %v568 = vadd.f32 0.0, %v567
      %v569 = vpop.f32.mrb[0].mxu0
      %v570 = vadd.f32 0.0, %v569
      %571 = vmatprep.mubr.f32.mxu0 0.0
      %572 = vmatmul.mubr.f32.gmra.mrb[0].mxu0 %v448
      %v573 = vpop.f32.mrb[0].mxu0
      %v574 = vadd.f32 0.0, %v573
      %v575 = vpop.f32.mrb[0].mxu0
      %v576 = vadd.f32 0.0, %v575
      %577 = vmatprep.mubr.f32.mxu0 0.0
      %578 = vmatmul.mubr.f32.gmra.mrb[0].mxu0 %v451
      %v579 = vpop.f32.mrb[0].mxu0
      %v580 = vadd.f32 0.0, %v579
      %v581 = vpop.f32.mrb[0].mxu0
      %v582 = vadd.f32 0.0, %v581
      %583 = vmatprep.mubr.f32.mxu0 0.0
      %584 = vmatmul.mubr.f32.gmra.mrb[0].mxu0 %v454
      %v585 = vpop.f32.mrb[0].mxu0
      %v586 = vadd.f32 0.0, %v585
      %v587 = vpop.f32.mrb[0].mxu0
      %v588 = vadd.f32 0.0, %v587
      %589 = vmatprep.mubr.f32.mxu0 0.0
      %590 = vmatmul.mubr.f32.gmra.mrb[0].mxu0 %v457
      %v591 = vpop.f32.mrb[0].mxu0
      %v592 = vadd.f32 0.0, %v591
      %v593 = vpop.f32.mrb[0].mxu0
      %v594 = vadd.f32 0.0, %v593
      %595 = vdwg.mxu0
      %596 = vmatprep.subr.mxu0 %v329
      %597 = vmatpush1.msra.mxu0 %v328
      %598 = vmatprep.subr.mxu0 %v337
      %599 = vmatpush1.msra.mxu0 %v336
      %600 = vmatprep.subr.mxu0 %v345
      %601 = vmatpush1.msra.mxu0 %v344
      %602 = vmatprep.subr.mxu0 %v353
      %603 = vmatpush1.msra.mxu0 %v352
      %604 = vmatprep.subr.mxu0 %v361
      %605 = vmatpush1.msra.mxu0 %v360
      %606 = vmatprep.subr.mxu0 %v369
      %607 = vmatpush1.msra.mxu0 %v368
      %608 = vmatprep.subr.mxu0 %v377
      %609 = vmatpush1.msra.mxu0 %v376
      %610 = vmatprep.subr.mxu0 %v385
      %611 = vmatpush1.msra.mxu0 %v384
      %612 = vmatprep.subr.mxu0 %v393
      %613 = vmatpush1.msra.mxu0 %v392
      %614 = vmatprep.subr.mxu0 %v401
      %615 = vmatpush1.msra.mxu0 %v400
      %616 = vmatprep.subr.mxu0 %v409
      %617 = vmatpush1.msra.mxu0 %v408
      %618 = vmatprep.subr.mxu0 %v417
      %619 = vmatpush1.msra.mxu0 %v416
      %620 = vmatprep.subr.mxu0 0.0
      %621 = vmatpush1.msra.mxu0 0.0
      %622 = vmatprep.subr.mxu0 0.0
      %623 = vmatpush1.msra.mxu0 0.0
      %624 = vmatprep.subr.mxu0 0.0
      %625 = vmatpush1.msra.mxu0 0.0
      %626 = vmatprep.subr.mxu0 0.0
      %627 = vmatpush1.msra.mxu0 0.0
      %628 = vmatprep.subr.mxu0 0.0
      %629 = vmatpush1.msra.mxu0 0.0
      %630 = vmatprep.subr.mxu0 0.0
      %631 = vmatpush1.msra.mxu0 0.0
      %632 = vmatprep.subr.mxu0 0.0
      %633 = vmatpush1.msra.mxu0 0.0
      %634 = vmatprep.subr.mxu0 0.0
      %635 = vmatpush1.msra.mxu0 0.0
      %636 = vmatprep.subr.mxu0 0.0
      %637 = vmatpush1.msra.mxu0 0.0
      %638 = vmatprep.subr.mxu0 0.0
      %639 = vmatpush1.msra.mxu0 0.0
      %640 = vmatprep.subr.mxu0 0.0
      %641 = vmatpush1.msra.mxu0 0.0
      %642 = vmatprep.subr.mxu0 0.0
      %643 = vmatpush1.msra.mxu0 0.0
      %644 = vmatprep.subr.mxu0 0.0
      %645 = vmatpush1.msra.mxu0 0.0
      %646 = vmatprep.subr.mxu0 0.0
      %647 = vmatpush1.msra.mxu0 0.0
      %648 = vmatprep.subr.mxu0 0.0
      %649 = vmatpush1.msra.mxu0 0.0
      %650 = vmatprep.subr.mxu0 0.0
      %651 = vmatpush1.msra.mxu0 0.0
      %652 = vmatprep.subr.mxu0 0.0
      %653 = vmatpush1.msra.mxu0 0.0
      %654 = vmatprep.subr.mxu0 0.0
      %655 = vmatpush1.msra.mxu0 0.0
      %656 = vmatprep.subr.mxu0 0.0
      %657 = vmatpush1.msra.mxu0 0.0
      %658 = vmatprep.subr.mxu0 0.0
      %659 = vmatpush1.msra.mxu0 0.0
      %660 = vmatprep.mubr.f32.mxu0 0.0
      %661 = vmatmul.mubr.f32.gmra.mrb[0].mxu0 %v424
      %v662 = vpop.f32.mrb[0].mxu0
      %v663 = vadd.f32 0.0, %v662
      %v664 = vpop.f32.mrb[0].mxu0
      %v665 = vadd.f32 0.0, %v664
      %666 = vmatprep.mubr.f32.mxu0 0.0
      %667 = vmatmul.mubr.f32.gmra.mrb[0].mxu0 %v427
      %v668 = vpop.f32.mrb[0].mxu0
      %v669 = vadd.f32 0.0, %v668
      %v670 = vpop.f32.mrb[0].mxu0
      %v671 = vadd.f32 0.0, %v670
      %672 = vmatprep.mubr.f32.mxu0 0.0
      %673 = vmatmul.mubr.f32.gmra.mrb[0].mxu0 %v430
      %v674 = vpop.f32.mrb[0].mxu0
      %v675 = vadd.f32 0.0, %v674
      %v676 = vpop.f32.mrb[0].mxu0
      %v677 = vadd.f32 0.0, %v676
      %678 = vmatprep.mubr.f32.mxu0 0.0
      %679 = vmatmul.mubr.f32.gmra.mrb[0].mxu0 %v433
      %v680 = vpop.f32.mrb[0].mxu0
      %v681 = vadd.f32 0.0, %v680
      %v682 = vpop.f32.mrb[0].mxu0
      %v683 = vadd.f32 0.0, %v682
      %684 = vmatprep.mubr.f32.mxu0 0.0
      %685 = vmatmul.mubr.f32.gmra.mrb[0].mxu0 %v436
      %v686 = vpop.f32.mrb[0].mxu0
      %v687 = vadd.f32 0.0, %v686
      %v688 = vpop.f32.mrb[0].mxu0
      %v689 = vadd.f32 0.0, %v688
      %690 = vmatprep.mubr.f32.mxu0 0.0
      %691 = vmatmul.mubr.f32.gmra.mrb[0].mxu0 %v439
      %v692 = vpop.f32.mrb[0].mxu0
      %v693 = vadd.f32 0.0, %v692
      %v694 = vpop.f32.mrb[0].mxu0
      %v695 = vadd.f32 0.0, %v694
      %696 = vmatprep.mubr.f32.mxu0 0.0
      %697 = vmatmul.mubr.f32.gmra.mrb[0].mxu0 %v442
      %v698 = vpop.f32.mrb[0].mxu0
      %v699 = vadd.f32 0.0, %v698
      %v700 = vpop.f32.mrb[0].mxu0
      %v701 = vadd.f32 0.0, %v700
      %702 = vmatprep.mubr.f32.mxu0 0.0
      %703 = vmatmul.mubr.f32.gmra.mrb[0].mxu0 %v445
      %v704 = vpop.f32.mrb[0].mxu0
      %v705 = vadd.f32 0.0, %v704
      %v706 = vpop.f32.mrb[0].mxu0
      %v707 = vadd.f32 0.0, %v706
      %708 = vmatprep.mubr.f32.mxu0 0.0
      %709 = vmatmul.mubr.f32.gmra.mrb[0].mxu0 %v448
      %v710 = vpop.f32.mrb[0].mxu0
      %v711 = vadd.f32 0.0, %v710
      %v712 = vpop.f32.mrb[0].mxu0
      %v713 = vadd.f32 0.0, %v712
      %714 = vmatprep.mubr.f32.mxu0 0.0
      %715 = vmatmul.mubr.f32.gmra.mrb[0].mxu0 %v451
      %v716 = vpop.f32.mrb[0].mxu0
      %v717 = vadd.f32 0.0, %v716
      %v718 = vpop.f32.mrb[0].mxu0
      %v719 = vadd.f32 0.0, %v718
      %720 = vmatprep.mubr.f32.mxu0 0.0
      %721 = vmatmul.mubr.f32.gmra.mrb[0].mxu0 %v454
      %v722 = vpop.f32.mrb[0].mxu0
      %v723 = vadd.f32 0.0, %v722
      %v724 = vpop.f32.mrb[0].mxu0
      %v725 = vadd.f32 0.0, %v724
      %726 = vmatprep.mubr.f32.mxu0 0.0
      %727 = vmatmul.mubr.f32.gmra.mrb[0].mxu0 %v457
      %v728 = vpop.f32.mrb[0].mxu0
      %v729 = vadd.f32 0.0, %v728
      %v730 = vpop.f32.mrb[0].mxu0
      %v731 = vadd.f32 0.0, %v730
      %732 = vdwg.mxu0
      %733 = vmatprep.subr.mxu0 %v331
      %734 = vmatpush1.msra.mxu0 %v330
      %735 = vmatprep.subr.mxu0 %v339
      %736 = vmatpush1.msra.mxu0 %v338
      %737 = vmatprep.subr.mxu0 %v347
      %738 = vmatpush1.msra.mxu0 %v346
      %739 = vmatprep.subr.mxu0 %v355
      %740 = vmatpush1.msra.mxu0 %v354
      %741 = vmatprep.subr.mxu0 %v363
      %742 = vmatpush1.msra.mxu0 %v362
      %743 = vmatprep.subr.mxu0 %v371
      %744 = vmatpush1.msra.mxu0 %v370
      %745 = vmatprep.subr.mxu0 %v379
      %746 = vmatpush1.msra.mxu0 %v378
      %747 = vmatprep.subr.mxu0 %v387
      %748 = vmatpush1.msra.mxu0 %v386
      %749 = vmatprep.subr.mxu0 %v395
      %750 = vmatpush1.msra.mxu0 %v394
      %751 = vmatprep.subr.mxu0 %v403
      %752 = vmatpush1.msra.mxu0 %v402
      %753 = vmatprep.subr.mxu0 %v411
      %754 = vmatpush1.msra.mxu0 %v410
      %755 = vmatprep.subr.mxu0 %v419
      %756 = vmatpush1.msra.mxu0 %v418
      %757 = vmatprep.subr.mxu0 0.0
      %758 = vmatpush1.msra.mxu0 0.0
      %759 = vmatprep.subr.mxu0 0.0
      %760 = vmatpush1.msra.mxu0 0.0
      %761 = vmatprep.subr.mxu0 0.0
      %762 = vmatpush1.msra.mxu0 0.0
      %763 = vmatprep.subr.mxu0 0.0
      %764 = vmatpush1.msra.mxu0 0.0
      %765 = vmatprep.subr.mxu0 0.0
      %766 = vmatpush1.msra.mxu0 0.0
      %767 = vmatprep.subr.mxu0 0.0
      %768 = vmatpush1.msra.mxu0 0.0
      %769 = vmatprep.subr.mxu0 0.0
      %770 = vmatpush1.msra.mxu0 0.0
      %771 = vmatprep.subr.mxu0 0.0
      %772 = vmatpush1.msra.mxu0 0.0
      %773 = vmatprep.subr.mxu0 0.0
      %774 = vmatpush1.msra.mxu0 0.0
      %775 = vmatprep.subr.mxu0 0.0
      %776 = vmatpush1.msra.mxu0 0.0
      %777 = vmatprep.subr.mxu0 0.0
      %778 = vmatpush1.msra.mxu0 0.0
      %779 = vmatprep.subr.mxu0 0.0
      %780 = vmatpush1.msra.mxu0 0.0
      %781 = vmatprep.subr.mxu0 0.0
      %782 = vmatpush1.msra.mxu0 0.0
      %783 = vmatprep.subr.mxu0 0.0
      %784 = vmatpush1.msra.mxu0 0.0
      %785 = vmatprep.subr.mxu0 0.0
      %786 = vmatpush1.msra.mxu0 0.0
      %787 = vmatprep.subr.mxu0 0.0
      %788 = vmatpush1.msra.mxu0 0.0
      %789 = vmatprep.subr.mxu0 0.0
      %790 = vmatpush1.msra.mxu0 0.0
      %791 = vmatprep.subr.mxu0 0.0
      %792 = vmatpush1.msra.mxu0 0.0
      %793 = vmatprep.subr.mxu0 0.0
      %794 = vmatpush1.msra.mxu0 0.0
      %795 = vmatprep.subr.mxu0 0.0
      %796 = vmatpush1.msra.mxu0 0.0
      %797 = vmatprep.mubr.f32.mxu0 0.0
      %798 = vmatmul.mubr.f32.gmra.mrb[0].mxu0 %v424
      %v799 = vpop.f32.mrb[0].mxu0
      %v800 = vadd.f32 0.0, %v799
      %v801 = vpop.f32.mrb[0].mxu0
      %v802 = vadd.f32 0.0, %v801
      %803 = vmatprep.mubr.f32.mxu0 0.0
      %804 = vmatmul.mubr.f32.gmra.mrb[0].mxu0 %v427
      %v805 = vpop.f32.mrb[0].mxu0
      %v806 = vadd.f32 0.0, %v805
      %v807 = vpop.f32.mrb[0].mxu0
      %v808 = vadd.f32 0.0, %v807
      %809 = vmatprep.mubr.f32.mxu0 0.0
      %810 = vmatmul.mubr.f32.gmra.mrb[0].mxu0 %v430
      %v811 = vpop.f32.mrb[0].mxu0
      %v812 = vadd.f32 0.0, %v811
      %v813 = vpop.f32.mrb[0].mxu0
      %v814 = vadd.f32 0.0, %v813
      %815 = vmatprep.mubr.f32.mxu0 0.0
      %816 = vmatmul.mubr.f32.gmra.mrb[0].mxu0 %v433
      %v817 = vpop.f32.mrb[0].mxu0
      %v818 = vadd.f32 0.0, %v817
      %v819 = vpop.f32.mrb[0].mxu0
      %v820 = vadd.f32 0.0, %v819
      %821 = vmatprep.mubr.f32.mxu0 0.0
      %822 = vmatmul.mubr.f32.gmra.mrb[0].mxu0 %v436
      %v823 = vpop.f32.mrb[0].mxu0
      %v824 = vadd.f32 0.0, %v823
      %v825 = vpop.f32.mrb[0].mxu0
      %v826 = vadd.f32 0.0, %v825
      %827 = vmatprep.mubr.f32.mxu0 0.0
      %828 = vmatmul.mubr.f32.gmra.mrb[0].mxu0 %v439
      %v829 = vpop.f32.mrb[0].mxu0
      %v830 = vadd.f32 0.0, %v829
      %v831 = vpop.f32.mrb[0].mxu0
      %v832 = vadd.f32 0.0, %v831
      %833 = vmatprep.mubr.f32.mxu0 0.0
      %834 = vmatmul.mubr.f32.gmra.mrb[0].mxu0 %v442
      %v835 = vpop.f32.mrb[0].mxu0
      %v836 = vadd.f32 0.0, %v835
      %v837 = vpop.f32.mrb[0].mxu0
      %v838 = vadd.f32 0.0, %v837
      %839 = vmatprep.mubr.f32.mxu0 0.0
      %840 = vmatmul.mubr.f32.gmra.mrb[0].mxu0 %v445
      %v841 = vpop.f32.mrb[0].mxu0
      %v842 = vadd.f32 0.0, %v841
      %v843 = vpop.f32.mrb[0].mxu0
      %v844 = vadd.f32 0.0, %v843
      %845 = vmatprep.mubr.f32.mxu0 0.0
      %846 = vmatmul.mubr.f32.gmra.mrb[0].mxu0 %v448
      %v847 = vpop.f32.mrb[0].mxu0
      %v848 = vadd.f32 0.0, %v847
      %v849 = vpop.f32.mrb[0].mxu0
      %v850 = vadd.f32 0.0, %v849
      %851 = vmatprep.mubr.f32.mxu0 0.0
      %852 = vmatmul.mubr.f32.gmra.mrb[0].mxu0 %v451
      %v853 = vpop.f32.mrb[0].mxu0
      %v854 = vadd.f32 0.0, %v853
      %v855 = vpop.f32.mrb[0].mxu0
      %v856 = vadd.f32 0.0, %v855
      %857 = vmatprep.mubr.f32.mxu0 0.0
      %858 = vmatmul.mubr.f32.gmra.mrb[0].mxu0 %v454
      %v859 = vpop.f32.mrb[0].mxu0
      %v860 = vadd.f32 0.0, %v859
      %v861 = vpop.f32.mrb[0].mxu0
      %v862 = vadd.f32 0.0, %v861
      %863 = vmatprep.mubr.f32.mxu0 0.0
      %864 = vmatmul.mubr.f32.gmra.mrb[0].mxu0 %v457
      %v865 = vpop.f32.mrb[0].mxu0
      %v866 = vadd.f32 0.0, %v865
      %v867 = vpop.f32.mrb[0].mxu0
      %v868 = vadd.f32 0.0, %v867
      %869 = vdwg.mxu0
      %870 = vmatprep.subr.mxu0 %v333
      %871 = vmatpush1.msra.mxu0 %v332
      %872 = vmatprep.subr.mxu0 %v341
      %873 = vmatpush1.msra.mxu0 %v340
      %874 = vmatprep.subr.mxu0 %v349
      %875 = vmatpush1.msra.mxu0 %v348
      %876 = vmatprep.subr.mxu0 %v357
      %877 = vmatpush1.msra.mxu0 %v356
      %878 = vmatprep.subr.mxu0 %v365
      %879 = vmatpush1.msra.mxu0 %v364
      %880 = vmatprep.subr.mxu0 %v373
      %881 = vmatpush1.msra.mxu0 %v372
      %882 = vmatprep.subr.mxu0 %v381
      %883 = vmatpush1.msra.mxu0 %v380
      %884 = vmatprep.subr.mxu0 %v389
      %885 = vmatpush1.msra.mxu0 %v388
      %886 = vmatprep.subr.mxu0 %v397
      %887 = vmatpush1.msra.mxu0 %v396
      %888 = vmatprep.subr.mxu0 %v405
      %889 = vmatpush1.msra.mxu0 %v404
      %890 = vmatprep.subr.mxu0 %v413
      %891 = vmatpush1.msra.mxu0 %v412
      %892 = vmatprep.subr.mxu0 %v421
      %893 = vmatpush1.msra.mxu0 %v420
      %894 = vmatprep.subr.mxu0 0.0
      %895 = vmatpush1.msra.mxu0 0.0
      %896 = vmatprep.subr.mxu0 0.0
      %897 = vmatpush1.msra.mxu0 0.0
      %898 = vmatprep.subr.mxu0 0.0
      %899 = vmatpush1.msra.mxu0 0.0
      %900 = vmatprep.subr.mxu0 0.0
      %901 = vmatpush1.msra.mxu0 0.0
      %902 = vmatprep.subr.mxu0 0.0
      %903 = vmatpush1.msra.mxu0 0.0
      %904 = vmatprep.subr.mxu0 0.0
      %905 = vmatpush1.msra.mxu0 0.0
      %906 = vmatprep.subr.mxu0 0.0
      %907 = vmatpush1.msra.mxu0 0.0
      %908 = vmatprep.subr.mxu0 0.0
      %909 = vmatpush1.msra.mxu0 0.0
      %910 = vmatprep.subr.mxu0 0.0
      %911 = vmatpush1.msra.mxu0 0.0
      %912 = vmatprep.subr.mxu0 0.0
      %913 = vmatpush1.msra.mxu0 0.0
      %914 = vmatprep.subr.mxu0 0.0
      %915 = vmatpush1.msra.mxu0 0.0
      %916 = vmatprep.subr.mxu0 0.0
      %917 = vmatpush1.msra.mxu0 0.0
      %918 = vmatprep.subr.mxu0 0.0
      %919 = vmatpush1.msra.mxu0 0.0
      %920 = vmatprep.subr.mxu0 0.0
      %921 = vmatpush1.msra.mxu0 0.0
      %922 = vmatprep.subr.mxu0 0.0
      %923 = vmatpush1.msra.mxu0 0.0
      %924 = vmatprep.subr.mxu0 0.0
      %925 = vmatpush1.msra.mxu0 0.0
      %926 = vmatprep.subr.mxu0 0.0
      %927 = vmatpush1.msra.mxu0 0.0
      %928 = vmatprep.subr.mxu0 0.0
      %929 = vmatpush1.msra.mxu0 0.0
      %930 = vmatprep.subr.mxu0 0.0
      %931 = vmatpush1.msra.mxu0 0.0
      %932 = vmatprep.subr.mxu0 0.0
      %933 = vmatpush1.msra.mxu0 0.0
      %934 = vmatprep.mubr.f32.mxu0 0.0
      %935 = vmatmul.mubr.f32.gmra.mrb[0].mxu0 %v424
      %v936 = vpop.f32.mrb[0].mxu0
      %v937 = vadd.f32 0.0, %v936
      %v938 = vpop.f32.mrb[0].mxu0
      %v939 = vadd.f32 0.0, %v938
      %940 = vmatprep.mubr.f32.mxu0 0.0
      %941 = vmatmul.mubr.f32.gmra.mrb[0].mxu0 %v427
      %v942 = vpop.f32.mrb[0].mxu0
      %v943 = vadd.f32 0.0, %v942
      %v944 = vpop.f32.mrb[0].mxu0
      %v945 = vadd.f32 0.0, %v944
      %946 = vmatprep.mubr.f32.mxu0 0.0
      %947 = vmatmul.mubr.f32.gmra.mrb[0].mxu0 %v430
      %v948 = vpop.f32.mrb[0].mxu0
      %v949 = vadd.f32 0.0, %v948
      %v950 = vpop.f32.mrb[0].mxu0
      %v951 = vadd.f32 0.0, %v950
      %952 = vmatprep.mubr.f32.mxu0 0.0
      %953 = vmatmul.mubr.f32.gmra.mrb[0].mxu0 %v433
      %v954 = vpop.f32.mrb[0].mxu0
      %v955 = vadd.f32 0.0, %v954
      %v956 = vpop.f32.mrb[0].mxu0
      %v957 = vadd.f32 0.0, %v956
      %958 = vmatprep.mubr.f32.mxu0 0.0
      %959 = vmatmul.mubr.f32.gmra.mrb[0].mxu0 %v436
      %v960 = vpop.f32.mrb[0].mxu0
      %v961 = vadd.f32 0.0, %v960
      %v962 = vpop.f32.mrb[0].mxu0
      %v963 = vadd.f32 0.0, %v962
      %964 = vmatprep.mubr.f32.mxu0 0.0
      %965 = vmatmul.mubr.f32.gmra.mrb[0].mxu0 %v439
      %v966 = vpop.f32.mrb[0].mxu0
      %v967 = vadd.f32 0.0, %v966
      %v968 = vpop.f32.mrb[0].mxu0
      %v969 = vadd.f32 0.0, %v968
      %970 = vmatprep.mubr.f32.mxu0 0.0
      %971 = vmatmul.mubr.f32.gmra.mrb[0].mxu0 %v442
      %v972 = vpop.f32.mrb[0].mxu0
      %v973 = vadd.f32 0.0, %v972
      %v974 = vpop.f32.mrb[0].mxu0
      %v975 = vadd.f32 0.0, %v974
      %976 = vmatprep.mubr.f32.mxu0 0.0
      %977 = vmatmul.mubr.f32.gmra.mrb[0].mxu0 %v445
      %v978 = vpop.f32.mrb[0].mxu0
      %v979 = vadd.f32 0.0, %v978
      %v980 = vpop.f32.mrb[0].mxu0
      %v981 = vadd.f32 0.0, %v980
      %982 = vmatprep.mubr.f32.mxu0 0.0
      %983 = vmatmul.mubr.f32.gmra.mrb[0].mxu0 %v448
      %v984 = vpop.f32.mrb[0].mxu0
      %v985 = vadd.f32 0.0, %v984
      %v986 = vpop.f32.mrb[0].mxu0
      %v987 = vadd.f32 0.0, %v986
      %988 = vmatprep.mubr.f32.mxu0 0.0
      %989 = vmatmul.mubr.f32.gmra.mrb[0].mxu0 %v451
      %v990 = vpop.f32.mrb[0].mxu0
      %v991 = vadd.f32 0.0, %v990
      %v992 = vpop.f32.mrb[0].mxu0
      %v993 = vadd.f32 0.0, %v992
      %994 = vmatprep.mubr.f32.mxu0 0.0
      %995 = vmatmul.mubr.f32.gmra.mrb[0].mxu0 %v454
      %v996 = vpop.f32.mrb[0].mxu0
      %v997 = vadd.f32 0.0, %v996
      %v998 = vpop.f32.mrb[0].mxu0
      %v999 = vadd.f32 0.0, %v998
      %1000 = vmatprep.mubr.f32.mxu0 0.0
      %1001 = vmatmul.mubr.f32.gmra.mrb[0].mxu0 %v457
      %v1002 = vpop.f32.mrb[0].mxu0
      %v1003 = vadd.f32 0.0, %v1002
      %v1004 = vpop.f32.mrb[0].mxu0
      %v1005 = vadd.f32 0.0, %v1004
      %1006 = vdwg.mxu0
      %v1007 = vld [vmem:[%s2] sm:$0xff]
      %v1008 = vld [vmem:[%s2 + $0x8] sm:$0xff]
      %v1009 = vld [vmem:[%s3] sm:$0xff]
      %v1010 = vld [vmem:[%s3 + $0x8] sm:$0xff]
      %v1011 = vmul.f32 %v526, %v526
      %v1012 = vmul.f32 %v528, %v528
      %v1013 = vmul.f32 %v663, %v663
      %v1014 = vmul.f32 %v665, %v665
      %v1015 = vmul.f32 %v800, %v800
      %v1016 = vmul.f32 %v802, %v802
      %v1017 = vmul.f32 %v937, %v937
      %v1018 = vmul.f32 %v939, %v939
      %v1019 = vmul.f32 %v532, %v532
      %v1020 = vmul.f32 %v534, %v534
      %v1021 = vmul.f32 %v669, %v669
      %v1022 = vmul.f32 %v671, %v671
      %v1023 = vmul.f32 %v806, %v806
      %v1024 = vmul.f32 %v808, %v808
      %v1025 = vmul.f32 %v943, %v943
      %v1026 = vmul.f32 %v945, %v945
      %v1027 = vmul.f32 %v538, %v538
      %v1028 = vmul.f32 %v540, %v540
      %v1029 = vmul.f32 %v675, %v675
      %v1030 = vmul.f32 %v677, %v677
      %v1031 = vmul.f32 %v812, %v812
      %v1032 = vmul.f32 %v814, %v814
      %v1033 = vmul.f32 %v949, %v949
      %v1034 = vmul.f32 %v951, %v951
      %v1035 = vmul.f32 %v544, %v544
      %v1036 = vmul.f32 %v546, %v546
      %v1037 = vmul.f32 %v681, %v681
      %v1038 = vmul.f32 %v683, %v683
      %v1039 = vmul.f32 %v818, %v818
      %v1040 = vmul.f32 %v820, %v820
      %v1041 = vmul.f32 %v955, %v955
      %v1042 = vmul.f32 %v957, %v957
      %v1043 = vadd.f32 %v1011, %v1027
      %v1044 = vadd.f32 %v1012, %v1028
      %v1045 = vadd.f32 %v1013, %v1029
      %v1046 = vadd.f32 %v1014, %v1030
      %v1047 = vadd.f32 %v1015, %v1031
      %v1048 = vadd.f32 %v1016, %v1032
      %v1049 = vadd.f32 %v1017, %v1033
      %v1050 = vadd.f32 %v1018, %v1034
      %v1051 = vadd.f32 %v1019, %v1035
      %v1052 = vadd.f32 %v1020, %v1036
      %v1053 = vadd.f32 %v1021, %v1037
      %v1054 = vadd.f32 %v1022, %v1038
      %v1055 = vadd.f32 %v1023, %v1039
      %v1056 = vadd.f32 %v1024, %v1040
      %v1057 = vadd.f32 %v1025, %v1041
      %v1058 = vadd.f32 %v1026, %v1042
      %v1059 = vmul.f32 %v550, %v550
      %v1060 = vmul.f32 %v552, %v552
      %v1061 = vmul.f32 %v687, %v687
      %v1062 = vmul.f32 %v689, %v689
      %v1063 = vmul.f32 %v824, %v824
      %v1064 = vmul.f32 %v826, %v826
      %v1065 = vmul.f32 %v961, %v961
      %v1066 = vmul.f32 %v963, %v963
      %v1067 = vmul.f32 %v556, %v556
      %v1068 = vmul.f32 %v558, %v558
      %v1069 = vmul.f32 %v693, %v693
      %v1070 = vmul.f32 %v695, %v695
      %v1071 = vmul.f32 %v830, %v830
      %v1072 = vmul.f32 %v832, %v832
      %v1073 = vmul.f32 %v967, %v967
      %v1074 = vmul.f32 %v969, %v969
      %v1075 = vadd.f32 %v1043, %v1059
      %v1076 = vadd.f32 %v1044, %v1060
      %v1077 = vadd.f32 %v1045, %v1061
      %v1078 = vadd.f32 %v1046, %v1062
      %v1079 = vadd.f32 %v1047, %v1063
      %v1080 = vadd.f32 %v1048, %v1064
      %v1081 = vadd.f32 %v1049, %v1065
      %v1082 = vadd.f32 %v1050, %v1066
      %v1083 = vadd.f32 %v1051, %v1067
      %v1084 = vadd.f32 %v1052, %v1068
      %v1085 = vadd.f32 %v1053, %v1069
      %v1086 = vadd.f32 %v1054, %v1070
      %v1087 = vadd.f32 %v1055, %v1071
      %v1088 = vadd.f32 %v1056, %v1072
      %v1089 = vadd.f32 %v1057, %v1073
      %v1090 = vadd.f32 %v1058, %v1074
      %v1091 = vrsqrt.pop %v1075
      %v1092 = vmul.f32 %v1075, %v1091
      %vm1093 = vcmp.eq.f32.partialorder %v1075, inf
      %v1094 = vsel %vm1093, %v1075, %v1092
      %vm1095 = vcmp.eq.f32.partialorder %v1075, 0.0
      %v1096 = vand.u32 %v1075, 2147483648
      %v1097 = vsel %vm1095, %v1096, %v1094
      %v1098 = vrsqrt.pop %v1076
      %v1099 = vmul.f32 %v1076, %v1098
      %vm1100 = vcmp.eq.f32.partialorder %v1076, inf
      %v1101 = vsel %vm1100, %v1076, %v1099
      %vm1102 = vcmp.eq.f32.partialorder %v1076, 0.0
      %v1103 = vand.u32 %v1076, 2147483648
      %v1104 = vsel %vm1102, %v1103, %v1101
      %v1105 = vrsqrt.pop %v1077
      %v1106 = vmul.f32 %v1077, %v1105
      %vm1107 = vcmp.eq.f32.partialorder %v1077, inf
      %v1108 = vsel %vm1107, %v1077, %v1106
      %vm1109 = vcmp.eq.f32.partialorder %v1077, 0.0
      %v1110 = vand.u32 %v1077, 2147483648
      %v1111 = vsel %vm1109, %v1110, %v1108
      %v1112 = vrsqrt.pop %v1078
      %v1113 = vmul.f32 %v1078, %v1112
      %vm1114 = vcmp.eq.f32.partialorder %v1078, inf
      %v1115 = vsel %vm1114, %v1078, %v1113
      %vm1116 = vcmp.eq.f32.partialorder %v1078, 0.0
      %v1117 = vand.u32 %v1078, 2147483648
      %v1118 = vsel %vm1116, %v1117, %v1115
      %v1119 = vrsqrt.pop %v1079
      %v1120 = vmul.f32 %v1079, %v1119
      %vm1121 = vcmp.eq.f32.partialorder %v1079, inf
      %v1122 = vsel %vm1121, %v1079, %v1120
      %vm1123 = vcmp.eq.f32.partialorder %v1079, 0.0
      %v1124 = vand.u32 %v1079, 2147483648
      %v1125 = vsel %vm1123, %v1124, %v1122
      %v1126 = vrsqrt.pop %v1080
      %v1127 = vmul.f32 %v1080, %v1126
      %vm1128 = vcmp.eq.f32.partialorder %v1080, inf
      %v1129 = vsel %vm1128, %v1080, %v1127
      %vm1130 = vcmp.eq.f32.partialorder %v1080, 0.0
      %v1131 = vand.u32 %v1080, 2147483648
      %v1132 = vsel %vm1130, %v1131, %v1129
      %v1133 = vrsqrt.pop %v1081
      %v1134 = vmul.f32 %v1081, %v1133
      %vm1135 = vcmp.eq.f32.partialorder %v1081, inf
      %v1136 = vsel %vm1135, %v1081, %v1134
      %vm1137 = vcmp.eq.f32.partialorder %v1081, 0.0
      %v1138 = vand.u32 %v1081, 2147483648
      %v1139 = vsel %vm1137, %v1138, %v1136
      %v1140 = vrsqrt.pop %v1082
      %v1141 = vmul.f32 %v1082, %v1140
      %vm1142 = vcmp.eq.f32.partialorder %v1082, inf
      %v1143 = vsel %vm1142, %v1082, %v1141
      %vm1144 = vcmp.eq.f32.partialorder %v1082, 0.0
      %v1145 = vand.u32 %v1082, 2147483648
      %v1146 = vsel %vm1144, %v1145, %v1143
      %v1147 = vrsqrt.pop %v1083
      %v1148 = vmul.f32 %v1083, %v1147
      %vm1149 = vcmp.eq.f32.partialorder %v1083, inf
      %v1150 = vsel %vm1149, %v1083, %v1148
      %vm1151 = vcmp.eq.f32.partialorder %v1083, 0.0
      %v1152 = vand.u32 %v1083, 2147483648
      %v1153 = vsel %vm1151, %v1152, %v1150
      %v1154 = vrsqrt.pop %v1084
      %v1155 = vmul.f32 %v1084, %v1154
      %vm1156 = vcmp.eq.f32.partialorder %v1084, inf
      %v1157 = vsel %vm1156, %v1084, %v1155
      %vm1158 = vcmp.eq.f32.partialorder %v1084, 0.0
      %v1159 = vand.u32 %v1084, 2147483648
      %v1160 = vsel %vm1158, %v1159, %v1157
      %v1161 = vrsqrt.pop %v1085
      %v1162 = vmul.f32 %v1085, %v1161
      %vm1163 = vcmp.eq.f32.partialorder %v1085, inf
      %v1164 = vsel %vm1163, %v1085, %v1162
      %vm1165 = vcmp.eq.f32.partialorder %v1085, 0.0
      %v1166 = vand.u32 %v1085, 2147483648
      %v1167 = vsel %vm1165, %v1166, %v1164
      %v1168 = vrsqrt.pop %v1086
      %v1169 = vmul.f32 %v1086, %v1168
      %vm1170 = vcmp.eq.f32.partialorder %v1086, inf
      %v1171 = vsel %vm1170, %v1086, %v1169
      %vm1172 = vcmp.eq.f32.partialorder %v1086, 0.0
      %v1173 = vand.u32 %v1086, 2147483648
      %v1174 = vsel %vm1172, %v1173, %v1171
      %v1175 = vrsqrt.pop %v1087
      %v1176 = vmul.f32 %v1087, %v1175
      %vm1177 = vcmp.eq.f32.partialorder %v1087, inf
      %v1178 = vsel %vm1177, %v1087, %v1176
      %vm1179 = vcmp.eq.f32.partialorder %v1087, 0.0
      %v1180 = vand.u32 %v1087, 2147483648
      %v1181 = vsel %vm1179, %v1180, %v1178
      %v1182 = vrsqrt.pop %v1088
      %v1183 = vmul.f32 %v1088, %v1182
      %vm1184 = vcmp.eq.f32.partialorder %v1088, inf
      %v1185 = vsel %vm1184, %v1088, %v1183
      %vm1186 = vcmp.eq.f32.partialorder %v1088, 0.0
      %v1187 = vand.u32 %v1088, 2147483648
      %v1188 = vsel %vm1186, %v1187, %v1185
      %v1189 = vrsqrt.pop %v1089
      %v1190 = vmul.f32 %v1089, %v1189
      %vm1191 = vcmp.eq.f32.partialorder %v1089, inf
      %v1192 = vsel %vm1191, %v1089, %v1190
      %vm1193 = vcmp.eq.f32.partialorder %v1089, 0.0
      %v1194 = vand.u32 %v1089, 2147483648
      %v1195 = vsel %vm1193, %v1194, %v1192
      %v1196 = vrsqrt.pop %v1090
      %v1197 = vmul.f32 %v1090, %v1196
      %vm1198 = vcmp.eq.f32.partialorder %v1090, inf
      %v1199 = vsel %vm1198, %v1090, %v1197
      %vm1200 = vcmp.eq.f32.partialorder %v1090, 0.0
      %v1201 = vand.u32 %v1090, 2147483648
      %v1202 = vsel %vm1200, %v1201, %v1199
      %vm1203 = vcmp.gt.f32.partialorder %v1097, 0.0
      %vm1204 = vcmp.gt.f32.partialorder %v1104, 0.0
      %vm1205 = vcmp.gt.f32.partialorder %v1111, 0.0
      %vm1206 = vcmp.gt.f32.partialorder %v1118, 0.0
      %vm1207 = vcmp.gt.f32.partialorder %v1125, 0.0
      %vm1208 = vcmp.gt.f32.partialorder %v1132, 0.0
      %vm1209 = vcmp.gt.f32.partialorder %v1139, 0.0
      %vm1210 = vcmp.gt.f32.partialorder %v1146, 0.0
      %vm1211 = vcmp.gt.f32.partialorder %v1153, 0.0
      %vm1212 = vcmp.gt.f32.partialorder %v1160, 0.0
      %vm1213 = vcmp.gt.f32.partialorder %v1167, 0.0
      %vm1214 = vcmp.gt.f32.partialorder %v1174, 0.0
      %vm1215 = vcmp.gt.f32.partialorder %v1181, 0.0
      %vm1216 = vcmp.gt.f32.partialorder %v1188, 0.0
      %vm1217 = vcmp.gt.f32.partialorder %v1195, 0.0
      %vm1218 = vcmp.gt.f32.partialorder %v1202, 0.0
      %v1219 = vrcp.pop %v1097
      %v1220 = vrcp.pop %v1104
      %v1221 = vrcp.pop %v1111
      %v1222 = vrcp.pop %v1118
      %v1223 = vrcp.pop %v1125
      %v1224 = vrcp.pop %v1132
      %v1225 = vrcp.pop %v1139
      %v1226 = vrcp.pop %v1146
      %v1227 = vrcp.pop %v1153
      %v1228 = vrcp.pop %v1160
      %v1229 = vrcp.pop %v1167
      %v1230 = vrcp.pop %v1174
      %v1231 = vrcp.pop %v1181
      %v1232 = vrcp.pop %v1188
      %v1233 = vrcp.pop %v1195
      %v1234 = vrcp.pop %v1202
      %v1235 = vsel %vm1203, %v1219, 0.0
      %v1236 = vsel %vm1204, %v1220, 0.0
      %v1237 = vsel %vm1205, %v1221, 0.0
      %v1238 = vsel %vm1206, %v1222, 0.0
      %v1239 = vsel %vm1207, %v1223, 0.0
      %v1240 = vsel %vm1208, %v1224, 0.0
      %v1241 = vsel %vm1209, %v1225, 0.0
      %v1242 = vsel %vm1210, %v1226, 0.0
      %v1243 = vsel %vm1211, %v1227, 0.0
      %v1244 = vsel %vm1212, %v1228, 0.0
      %v1245 = vsel %vm1213, %v1229, 0.0
      %v1246 = vsel %vm1214, %v1230, 0.0
      %v1247 = vsel %vm1215, %v1231, 0.0
      %v1248 = vsel %vm1216, %v1232, 0.0
      %v1249 = vsel %vm1217, %v1233, 0.0
      %v1250 = vsel %vm1218, %v1234, 0.0
      %1252 = vset.pattern.permute.xlu0 0
      %1253 = vperm.xlu0 %1252, %v1009
      %v1254 = vpop.permute.xlu0 %1253
      %1257 = vset.pattern.permute.xlu0 0
      %1258 = vperm.xlu0 %1257, %v1010
      %v1259 = vpop.permute.xlu0 %1258
      %v1261 = vmul.f32 %v1254, %v1235
      %v1262 = vmul.f32 %v1254, %v1236
      %v1263 = vmul.f32 %v1254, %v1237
      %v1264 = vmul.f32 %v1254, %v1238
      %v1265 = vmul.f32 %v1254, %v1239
      %v1266 = vmul.f32 %v1254, %v1240
      %v1267 = vmul.f32 %v1254, %v1241
      %v1268 = vmul.f32 %v1254, %v1242
      %v1269 = vmul.f32 %v1259, %v1243
      %v1270 = vmul.f32 %v1259, %v1244
      %v1271 = vmul.f32 %v1259, %v1245
      %v1272 = vmul.f32 %v1259, %v1246
      %v1273 = vmul.f32 %v1259, %v1247
      %v1274 = vmul.f32 %v1259, %v1248
      %v1275 = vmul.f32 %v1259, %v1249
      %v1276 = vmul.f32 %v1259, %v1250
      %1278 = vset.pattern.permute.xlu0 0
      %1279 = vperm.xlu0 %1278, %v1007
      %v1280 = vpop.permute.xlu0 %1279
      %1283 = vset.pattern.permute.xlu0 0
      %1284 = vperm.xlu0 %1283, %v1008
      %v1285 = vpop.permute.xlu0 %1284
      %v1287 = vadd.f32 %v1280, %v1261
      %v1288 = vadd.f32 %v1280, %v1262
      %v1289 = vadd.f32 %v1280, %v1263
      %v1290 = vadd.f32 %v1280, %v1264
      %v1291 = vadd.f32 %v1280, %v1265
      %v1292 = vadd.f32 %v1280, %v1266
      %v1293 = vadd.f32 %v1280, %v1267
      %v1294 = vadd.f32 %v1280, %v1268
      %v1295 = vadd.f32 %v1285, %v1269
      %v1296 = vadd.f32 %v1285, %v1270
      %v1297 = vadd.f32 %v1285, %v1271
      %v1298 = vadd.f32 %v1285, %v1272
      %v1299 = vadd.f32 %v1285, %v1273
      %v1300 = vadd.f32 %v1285, %v1274
      %v1301 = vadd.f32 %v1285, %v1275
      %v1302 = vadd.f32 %v1285, %v1276
      %v1303 = vmul.f32 %v526, %v1287
      %v1304 = vmul.f32 %v528, %v1288
      %v1305 = vmul.f32 %v663, %v1289
      %v1306 = vmul.f32 %v665, %v1290
      %v1307 = vmul.f32 %v800, %v1291
      %v1308 = vmul.f32 %v802, %v1292
      %v1309 = vmul.f32 %v937, %v1293
      %v1310 = vmul.f32 %v939, %v1294
      %v1311 = vmul.f32 %v532, %v1295
      %v1312 = vmul.f32 %v534, %v1296
      %v1313 = vmul.f32 %v669, %v1297
      %v1314 = vmul.f32 %v671, %v1298
      %v1315 = vmul.f32 %v806, %v1299
      %v1316 = vmul.f32 %v808, %v1300
      %v1317 = vmul.f32 %v943, %v1301
      %v1318 = vmul.f32 %v945, %v1302
      %v1319 = vmul.f32 %v538, %v1287
      %v1320 = vmul.f32 %v540, %v1288
      %v1321 = vmul.f32 %v675, %v1289
      %v1322 = vmul.f32 %v677, %v1290
      %v1323 = vmul.f32 %v812, %v1291
      %v1324 = vmul.f32 %v814, %v1292
      %v1325 = vmul.f32 %v949, %v1293
      %v1326 = vmul.f32 %v951, %v1294
      %v1327 = vmul.f32 %v544, %v1295
      %v1328 = vmul.f32 %v546, %v1296
      %v1329 = vmul.f32 %v681, %v1297
      %v1330 = vmul.f32 %v683, %v1298
      %v1331 = vmul.f32 %v818, %v1299
      %v1332 = vmul.f32 %v820, %v1300
      %v1333 = vmul.f32 %v955, %v1301
      %v1334 = vmul.f32 %v957, %v1302
      %v1335 = vmul.f32 %v550, %v1287
      %v1336 = vmul.f32 %v552, %v1288
      %v1337 = vmul.f32 %v687, %v1289
      %v1338 = vmul.f32 %v689, %v1290
      %v1339 = vmul.f32 %v824, %v1291
      %v1340 = vmul.f32 %v826, %v1292
      %v1341 = vmul.f32 %v961, %v1293
      %v1342 = vmul.f32 %v963, %v1294
      %v1343 = vmul.f32 %v556, %v1295
      %v1344 = vmul.f32 %v558, %v1296
      %v1345 = vmul.f32 %v693, %v1297
      %v1346 = vmul.f32 %v695, %v1298
      %v1347 = vmul.f32 %v830, %v1299
      %v1348 = vmul.f32 %v832, %v1300
      %v1349 = vmul.f32 %v967, %v1301
      %v1350 = vmul.f32 %v969, %v1302
      %v1351 = vmul.f32 %v1303, %v562
      %v1352 = vmul.f32 %v1304, %v564
      %v1353 = vmul.f32 %v1305, %v699
      %v1354 = vmul.f32 %v1306, %v701
      %v1355 = vmul.f32 %v1307, %v836
      %v1356 = vmul.f32 %v1308, %v838
      %v1357 = vmul.f32 %v1309, %v973
      %v1358 = vmul.f32 %v1310, %v975
      %v1359 = vmul.f32 %v1311, %v568
      %v1360 = vmul.f32 %v1312, %v570
      %v1361 = vmul.f32 %v1313, %v705
      %v1362 = vmul.f32 %v1314, %v707
      %v1363 = vmul.f32 %v1315, %v842
      %v1364 = vmul.f32 %v1316, %v844
      %v1365 = vmul.f32 %v1317, %v979
      %v1366 = vmul.f32 %v1318, %v981
      %v1367 = vmul.f32 %v1319, %v574
      %v1368 = vmul.f32 %v1320, %v576
      %v1369 = vmul.f32 %v1321, %v711
      %v1370 = vmul.f32 %v1322, %v713
      %v1371 = vmul.f32 %v1323, %v848
      %v1372 = vmul.f32 %v1324, %v850
      %v1373 = vmul.f32 %v1325, %v985
      %v1374 = vmul.f32 %v1326, %v987
      %v1375 = vmul.f32 %v1327, %v580
      %v1376 = vmul.f32 %v1328, %v582
      %v1377 = vmul.f32 %v1329, %v717
      %v1378 = vmul.f32 %v1330, %v719
      %v1379 = vmul.f32 %v1331, %v854
      %v1380 = vmul.f32 %v1332, %v856
      %v1381 = vmul.f32 %v1333, %v991
      %v1382 = vmul.f32 %v1334, %v993
      %v1383 = vadd.f32 %v1351, %v1367
      %v1384 = vadd.f32 %v1352, %v1368
      %v1385 = vadd.f32 %v1353, %v1369
      %v1386 = vadd.f32 %v1354, %v1370
      %v1387 = vadd.f32 %v1355, %v1371
      %v1388 = vadd.f32 %v1356, %v1372
      %v1389 = vadd.f32 %v1357, %v1373
      %v1390 = vadd.f32 %v1358, %v1374
      %v1391 = vadd.f32 %v1359, %v1375
      %v1392 = vadd.f32 %v1360, %v1376
      %v1393 = vadd.f32 %v1361, %v1377
      %v1394 = vadd.f32 %v1362, %v1378
      %v1395 = vadd.f32 %v1363, %v1379
      %v1396 = vadd.f32 %v1364, %v1380
      %v1397 = vadd.f32 %v1365, %v1381
      %v1398 = vadd.f32 %v1366, %v1382
      %v1399 = vmul.f32 %v1335, %v586
      %v1400 = vmul.f32 %v1336, %v588
      %v1401 = vmul.f32 %v1337, %v723
      %v1402 = vmul.f32 %v1338, %v725
      %v1403 = vmul.f32 %v1339, %v860
      %v1404 = vmul.f32 %v1340, %v862
      %v1405 = vmul.f32 %v1341, %v997
      %v1406 = vmul.f32 %v1342, %v999
      %v1407 = vmul.f32 %v1343, %v592
      %v1408 = vmul.f32 %v1344, %v594
      %v1409 = vmul.f32 %v1345, %v729
      %v1410 = vmul.f32 %v1346, %v731
      %v1411 = vmul.f32 %v1347, %v866
      %v1412 = vmul.f32 %v1348, %v868
      %v1413 = vmul.f32 %v1349, %v1003
      %v1414 = vmul.f32 %v1350, %v1005
      %v1415 = vadd.f32 %v1383, %v1399
      %v1416 = vadd.f32 %v1384, %v1400
      %v1417 = vadd.f32 %v1385, %v1401
      %v1418 = vadd.f32 %v1386, %v1402
      %v1419 = vadd.f32 %v1387, %v1403
      %v1420 = vadd.f32 %v1388, %v1404
      %v1421 = vadd.f32 %v1389, %v1405
      %v1422 = vadd.f32 %v1390, %v1406
      %v1423 = vadd.f32 %v1391, %v1407
      %v1424 = vadd.f32 %v1392, %v1408
      %v1425 = vadd.f32 %v1393, %v1409
      %v1426 = vadd.f32 %v1394, %v1410
      %v1427 = vadd.f32 %v1395, %v1411
      %v1428 = vadd.f32 %v1396, %v1412
      %v1429 = vadd.f32 %v1397, %v1413
      %v1430 = vadd.f32 %v1398, %v1414
      %v1431 = vmul.f32 %v562, %v562
      %v1432 = vmul.f32 %v564, %v564
      %v1433 = vmul.f32 %v699, %v699
      %v1434 = vmul.f32 %v701, %v701
      %v1435 = vmul.f32 %v836, %v836
      %v1436 = vmul.f32 %v838, %v838
      %v1437 = vmul.f32 %v973, %v973
      %v1438 = vmul.f32 %v975, %v975
      %v1439 = vmul.f32 %v568, %v568
      %v1440 = vmul.f32 %v570, %v570
      %v1441 = vmul.f32 %v705, %v705
      %v1442 = vmul.f32 %v707, %v707
      %v1443 = vmul.f32 %v842, %v842
      %v1444 = vmul.f32 %v844, %v844
      %v1445 = vmul.f32 %v979, %v979
      %v1446 = vmul.f32 %v981, %v981
      %v1447 = vmul.f32 %v574, %v574
      %v1448 = vmul.f32 %v576, %v576
      %v1449 = vmul.f32 %v711, %v711
      %v1450 = vmul.f32 %v713, %v713
      %v1451 = vmul.f32 %v848, %v848
      %v1452 = vmul.f32 %v850, %v850
      %v1453 = vmul.f32 %v985, %v985
      %v1454 = vmul.f32 %v987, %v987
      %v1455 = vmul.f32 %v580, %v580
      %v1456 = vmul.f32 %v582, %v582
      %v1457 = vmul.f32 %v717, %v717
      %v1458 = vmul.f32 %v719, %v719
      %v1459 = vmul.f32 %v854, %v854
      %v1460 = vmul.f32 %v856, %v856
      %v1461 = vmul.f32 %v991, %v991
      %v1462 = vmul.f32 %v993, %v993
      %v1463 = vadd.f32 %v1431, %v1447
      %v1464 = vadd.f32 %v1432, %v1448
      %v1465 = vadd.f32 %v1433, %v1449
      %v1466 = vadd.f32 %v1434, %v1450
      %v1467 = vadd.f32 %v1435, %v1451
      %v1468 = vadd.f32 %v1436, %v1452
      %v1469 = vadd.f32 %v1437, %v1453
      %v1470 = vadd.f32 %v1438, %v1454
      %v1471 = vadd.f32 %v1439, %v1455
      %v1472 = vadd.f32 %v1440, %v1456
      %v1473 = vadd.f32 %v1441, %v1457
      %v1474 = vadd.f32 %v1442, %v1458
      %v1475 = vadd.f32 %v1443, %v1459
      %v1476 = vadd.f32 %v1444, %v1460
      %v1477 = vadd.f32 %v1445, %v1461
      %v1478 = vadd.f32 %v1446, %v1462
      %v1479 = vmul.f32 %v586, %v586
      %v1480 = vmul.f32 %v588, %v588
      %v1481 = vmul.f32 %v723, %v723
      %v1482 = vmul.f32 %v725, %v725
      %v1483 = vmul.f32 %v860, %v860
      %v1484 = vmul.f32 %v862, %v862
      %v1485 = vmul.f32 %v997, %v997
      %v1486 = vmul.f32 %v999, %v999
      %v1487 = vmul.f32 %v592, %v592
      %v1488 = vmul.f32 %v594, %v594
      %v1489 = vmul.f32 %v729, %v729
      %v1490 = vmul.f32 %v731, %v731
      %v1491 = vmul.f32 %v866, %v866
      %v1492 = vmul.f32 %v868, %v868
      %v1493 = vmul.f32 %v1003, %v1003
      %v1494 = vmul.f32 %v1005, %v1005
      %v1495 = vadd.f32 %v1463, %v1479
      %v1496 = vadd.f32 %v1464, %v1480
      %v1497 = vadd.f32 %v1465, %v1481
      %v1498 = vadd.f32 %v1466, %v1482
      %v1499 = vadd.f32 %v1467, %v1483
      %v1500 = vadd.f32 %v1468, %v1484
      %v1501 = vadd.f32 %v1469, %v1485
      %v1502 = vadd.f32 %v1470, %v1486
      %v1503 = vadd.f32 %v1471, %v1487
      %v1504 = vadd.f32 %v1472, %v1488
      %v1505 = vadd.f32 %v1473, %v1489
      %v1506 = vadd.f32 %v1474, %v1490
      %v1507 = vadd.f32 %v1475, %v1491
      %v1508 = vadd.f32 %v1476, %v1492
      %v1509 = vadd.f32 %v1477, %v1493
      %v1510 = vadd.f32 %v1478, %v1494
      %vm1511 = vcmp.lt.f32.partialorder %v1415, 0.0
      %vm1512 = vcmp.lt.f32.partialorder %v1416, 0.0
      %vm1513 = vcmp.lt.f32.partialorder %v1417, 0.0
      %vm1514 = vcmp.lt.f32.partialorder %v1418, 0.0
      %vm1515 = vcmp.lt.f32.partialorder %v1419, 0.0
      %vm1516 = vcmp.lt.f32.partialorder %v1420, 0.0
      %vm1517 = vcmp.lt.f32.partialorder %v1421, 0.0
      %vm1518 = vcmp.lt.f32.partialorder %v1422, 0.0
      %vm1519 = vcmp.lt.f32.partialorder %v1423, 0.0
      %vm1520 = vcmp.lt.f32.partialorder %v1424, 0.0
      %vm1521 = vcmp.lt.f32.partialorder %v1425, 0.0
      %vm1522 = vcmp.lt.f32.partialorder %v1426, 0.0
      %vm1523 = vcmp.lt.f32.partialorder %v1427, 0.0
      %vm1524 = vcmp.lt.f32.partialorder %v1428, 0.0
      %vm1525 = vcmp.lt.f32.partialorder %v1429, 0.0
      %vm1526 = vcmp.lt.f32.partialorder %v1430, 0.0
      %v1527 = vadd.f32 %v1495, 1e-06
      %v1528 = vadd.f32 %v1496, 1e-06
      %v1529 = vadd.f32 %v1497, 1e-06
      %v1530 = vadd.f32 %v1498, 1e-06
      %v1531 = vadd.f32 %v1499, 1e-06
      %v1532 = vadd.f32 %v1500, 1e-06
      %v1533 = vadd.f32 %v1501, 1e-06
      %v1534 = vadd.f32 %v1502, 1e-06
      %v1535 = vadd.f32 %v1503, 1e-06
      %v1536 = vadd.f32 %v1504, 1e-06
      %v1537 = vadd.f32 %v1505, 1e-06
      %v1538 = vadd.f32 %v1506, 1e-06
      %v1539 = vadd.f32 %v1507, 1e-06
      %v1540 = vadd.f32 %v1508, 1e-06
      %v1541 = vadd.f32 %v1509, 1e-06
      %v1542 = vadd.f32 %v1510, 1e-06
      %v1543 = vrcp.pop %v1527
      %v1544 = vrcp.pop %v1528
      %v1545 = vrcp.pop %v1529
      %v1546 = vrcp.pop %v1530
      %v1547 = vrcp.pop %v1531
      %v1548 = vrcp.pop %v1532
      %v1549 = vrcp.pop %v1533
      %v1550 = vrcp.pop %v1534
      %v1551 = vrcp.pop %v1535
      %v1552 = vrcp.pop %v1536
      %v1553 = vrcp.pop %v1537
      %v1554 = vrcp.pop %v1538
      %v1555 = vrcp.pop %v1539
      %v1556 = vrcp.pop %v1540
      %v1557 = vrcp.pop %v1541
      %v1558 = vrcp.pop %v1542
      %v1559 = vmul.f32 %v1415, %v1543
      %v1560 = vmul.f32 %v1416, %v1544
      %v1561 = vmul.f32 %v1417, %v1545
      %v1562 = vmul.f32 %v1418, %v1546
      %v1563 = vmul.f32 %v1419, %v1547
      %v1564 = vmul.f32 %v1420, %v1548
      %v1565 = vmul.f32 %v1421, %v1549
      %v1566 = vmul.f32 %v1422, %v1550
      %v1567 = vmul.f32 %v1423, %v1551
      %v1568 = vmul.f32 %v1424, %v1552
      %v1569 = vmul.f32 %v1425, %v1553
      %v1570 = vmul.f32 %v1426, %v1554
      %v1571 = vmul.f32 %v1427, %v1555
      %v1572 = vmul.f32 %v1428, %v1556
      %v1573 = vmul.f32 %v1429, %v1557
      %v1574 = vmul.f32 %v1430, %v1558
      %v1575 = vsel %vm1511, %v1559, 0.0
      %v1576 = vsel %vm1512, %v1560, 0.0
      %v1577 = vsel %vm1513, %v1561, 0.0
      %v1578 = vsel %vm1514, %v1562, 0.0
      %v1579 = vsel %vm1515, %v1563, 0.0
      %v1580 = vsel %vm1516, %v1564, 0.0
      %v1581 = vsel %vm1517, %v1565, 0.0
      %v1582 = vsel %vm1518, %v1566, 0.0
      %v1583 = vsel %vm1519, %v1567, 0.0
      %v1584 = vsel %vm1520, %v1568, 0.0
      %v1585 = vsel %vm1521, %v1569, 0.0
      %v1586 = vsel %vm1522, %v1570, 0.0
      %v1587 = vsel %vm1523, %v1571, 0.0
      %v1588 = vsel %vm1524, %v1572, 0.0
      %v1589 = vsel %vm1525, %v1573, 0.0
      %v1590 = vsel %vm1526, %v1574, 0.0
      %v1591 = vmul.f32 %v1575, 0.8
      %v1592 = vmul.f32 %v1576, 0.8
      %v1593 = vmul.f32 %v1577, 0.8
      %v1594 = vmul.f32 %v1578, 0.8
      %v1595 = vmul.f32 %v1579, 0.8
      %v1596 = vmul.f32 %v1580, 0.8
      %v1597 = vmul.f32 %v1581, 0.8
      %v1598 = vmul.f32 %v1582, 0.8
      %v1599 = vmul.f32 %v1583, 0.8
      %v1600 = vmul.f32 %v1584, 0.8
      %v1601 = vmul.f32 %v1585, 0.8
      %v1602 = vmul.f32 %v1586, 0.8
      %v1603 = vmul.f32 %v1587, 0.8
      %v1604 = vmul.f32 %v1588, 0.8
      %v1605 = vmul.f32 %v1589, 0.8
      %v1606 = vmul.f32 %v1590, 0.8
      %v1607 = vmul.f32 %v1591, %v562
      %v1608 = vmul.f32 %v1592, %v564
      %v1609 = vmul.f32 %v1593, %v699
      %v1610 = vmul.f32 %v1594, %v701
      %v1611 = vmul.f32 %v1595, %v836
      %v1612 = vmul.f32 %v1596, %v838
      %v1613 = vmul.f32 %v1597, %v973
      %v1614 = vmul.f32 %v1598, %v975
      %v1615 = vmul.f32 %v1599, %v568
      %v1616 = vmul.f32 %v1600, %v570
      %v1617 = vmul.f32 %v1601, %v705
      %v1618 = vmul.f32 %v1602, %v707
      %v1619 = vmul.f32 %v1603, %v842
      %v1620 = vmul.f32 %v1604, %v844
      %v1621 = vmul.f32 %v1605, %v979
      %v1622 = vmul.f32 %v1606, %v981
      %v1623 = vsub.f32 %v1303, %v1607
      %v1624 = vsub.f32 %v1304, %v1608
      %v1625 = vsub.f32 %v1305, %v1609
      %v1626 = vsub.f32 %v1306, %v1610
      %v1627 = vsub.f32 %v1307, %v1611
      %v1628 = vsub.f32 %v1308, %v1612
      %v1629 = vsub.f32 %v1309, %v1613
      %v1630 = vsub.f32 %v1310, %v1614
      %v1631 = vsub.f32 %v1311, %v1615
      %v1632 = vsub.f32 %v1312, %v1616
      %v1633 = vsub.f32 %v1313, %v1617
      %v1634 = vsub.f32 %v1314, %v1618
      %v1635 = vsub.f32 %v1315, %v1619
      %v1636 = vsub.f32 %v1316, %v1620
      %v1637 = vsub.f32 %v1317, %v1621
      %v1638 = vsub.f32 %v1318, %v1622
      %v1639 = vmul.f32 %v1591, %v574
      %v1640 = vmul.f32 %v1592, %v576
      %v1641 = vmul.f32 %v1593, %v711
      %v1642 = vmul.f32 %v1594, %v713
      %v1643 = vmul.f32 %v1595, %v848
      %v1644 = vmul.f32 %v1596, %v850
      %v1645 = vmul.f32 %v1597, %v985
      %v1646 = vmul.f32 %v1598, %v987
      %v1647 = vmul.f32 %v1599, %v580
      %v1648 = vmul.f32 %v1600, %v582
      %v1649 = vmul.f32 %v1601, %v717
      %v1650 = vmul.f32 %v1602, %v719
      %v1651 = vmul.f32 %v1603, %v854
      %v1652 = vmul.f32 %v1604, %v856
      %v1653 = vmul.f32 %v1605, %v991
      %v1654 = vmul.f32 %v1606, %v993
      %v1655 = vsub.f32 %v1319, %v1639
      %v1656 = vsub.f32 %v1320, %v1640
      %v1657 = vsub.f32 %v1321, %v1641
      %v1658 = vsub.f32 %v1322, %v1642
      %v1659 = vsub.f32 %v1323, %v1643
      %v1660 = vsub.f32 %v1324, %v1644
      %v1661 = vsub.f32 %v1325, %v1645
      %v1662 = vsub.f32 %v1326, %v1646
      %v1663 = vsub.f32 %v1327, %v1647
      %v1664 = vsub.f32 %v1328, %v1648
      %v1665 = vsub.f32 %v1329, %v1649
      %v1666 = vsub.f32 %v1330, %v1650
      %v1667 = vsub.f32 %v1331, %v1651
      %v1668 = vsub.f32 %v1332, %v1652
      %v1669 = vsub.f32 %v1333, %v1653
      %v1670 = vsub.f32 %v1334, %v1654
      %v1671 = vmul.f32 %v1591, %v586
      %v1672 = vmul.f32 %v1592, %v588
      %v1673 = vmul.f32 %v1593, %v723
      %v1674 = vmul.f32 %v1594, %v725
      %v1675 = vmul.f32 %v1595, %v860
      %v1676 = vmul.f32 %v1596, %v862
      %v1677 = vmul.f32 %v1597, %v997
      %v1678 = vmul.f32 %v1598, %v999
      %v1679 = vmul.f32 %v1599, %v592
      %v1680 = vmul.f32 %v1600, %v594
      %v1681 = vmul.f32 %v1601, %v729
      %v1682 = vmul.f32 %v1602, %v731
      %v1683 = vmul.f32 %v1603, %v866
      %v1684 = vmul.f32 %v1604, %v868
      %v1685 = vmul.f32 %v1605, %v1003
      %v1686 = vmul.f32 %v1606, %v1005
      %v1687 = vsub.f32 %v1335, %v1671
      %v1688 = vsub.f32 %v1336, %v1672
      %v1689 = vsub.f32 %v1337, %v1673
      %v1690 = vsub.f32 %v1338, %v1674
      %v1691 = vsub.f32 %v1339, %v1675
      %v1692 = vsub.f32 %v1340, %v1676
      %v1693 = vsub.f32 %v1341, %v1677
      %v1694 = vsub.f32 %v1342, %v1678
      %v1695 = vsub.f32 %v1343, %v1679
      %v1696 = vsub.f32 %v1344, %v1680
      %v1697 = vsub.f32 %v1345, %v1681
      %v1698 = vsub.f32 %v1346, %v1682
      %v1699 = vsub.f32 %v1347, %v1683
      %v1700 = vsub.f32 %v1348, %v1684
      %v1701 = vsub.f32 %v1349, %v1685
      %v1702 = vsub.f32 %v1350, %v1686
      %1703 = vst [vmem:[%s303] sm:$0xff] %v1623
      %1704 = vst [vmem:[%s303 + $0x8] sm:$0xff] %v1624
      %1705 = vst [vmem:[%s303 + $0x10] sm:$0xff] %v1625
      %1706 = vst [vmem:[%s303 + $0x18] sm:$0xff] %v1626
      %1707 = vst [vmem:[%s303 + $0x20] sm:$0xff] %v1627
      %1708 = vst [vmem:[%s303 + $0x28] sm:$0xff] %v1628
      %1709 = vst [vmem:[%s303 + $0x30] sm:$0xff] %v1629
      %1710 = vst [vmem:[%s303 + $0x38] sm:$0xff] %v1630
      %1711 = vst [vmem:[%s303 + $0x40] sm:$0xff] %v1631
      %1712 = vst [vmem:[%s303 + $0x48] sm:$0xff] %v1632
      %1713 = vst [vmem:[%s303 + $0x50] sm:$0xff] %v1633
      %1714 = vst [vmem:[%s303 + $0x58] sm:$0xff] %v1634
      %1715 = vst [vmem:[%s303 + $0x60] sm:$0xff] %v1635
      %1716 = vst [vmem:[%s303 + $0x68] sm:$0xff] %v1636
      %1717 = vst [vmem:[%s303 + $0x70] sm:$0xff] %v1637
      %1718 = vst [vmem:[%s303 + $0x78] sm:$0xff] %v1638
      %v1719 = vld [vmem:[%s4] sm:$0xff]
      %v1720 = vld [vmem:[%s4 + $0x8] sm:$0xff]
      %v1721 = vld [vmem:[%s4 + $0x10] sm:$0xff]
      %1722 = vst [vmem:[%s303 + $0x80] sm:$0xff] %v1655
      %1723 = vst [vmem:[%s303 + $0x88] sm:$0xff] %v1656
      %1724 = vst [vmem:[%s303 + $0x90] sm:$0xff] %v1657
      %1725 = vst [vmem:[%s303 + $0x98] sm:$0xff] %v1658
      %1726 = vst [vmem:[%s303 + $0xa0] sm:$0xff] %v1659
      %1727 = vst [vmem:[%s303 + $0xa8] sm:$0xff] %v1660
      %1728 = vst [vmem:[%s303 + $0xb0] sm:$0xff] %v1661
      %1729 = vst [vmem:[%s303 + $0xb8] sm:$0xff] %v1662
      %1730 = vst [vmem:[%s303 + $0xc0] sm:$0xff] %v1663
      %1731 = vst [vmem:[%s303 + $0xc8] sm:$0xff] %v1664
      %1732 = vst [vmem:[%s303 + $0xd0] sm:$0xff] %v1665
      %1733 = vst [vmem:[%s303 + $0xd8] sm:$0xff] %v1666
      %1734 = vst [vmem:[%s303 + $0xe0] sm:$0xff] %v1667
      %1735 = vst [vmem:[%s303 + $0xe8] sm:$0xff] %v1668
      %1736 = vst [vmem:[%s303 + $0xf0] sm:$0xff] %v1669
      %1737 = vst [vmem:[%s303 + $0xf8] sm:$0xff] %v1670
      %s1738 = scalar_lea.vmem %s4, 24
      %v1739 = vld [vmem:[%s1738] sm:$0xff]
      %v1740 = vld [vmem:[%s1738 + $0x8] sm:$0xff]
      %v1741 = vld [vmem:[%s1738 + $0x10] sm:$0xff]
      %vm1742 = vcmask 130048
      %v1744 = vsel %vm1742, %v1739, 0
      %v1747 = vsel %vm1742, %v1740, 0
      %v1750 = vsel %vm1742, %v1741, 0
      %1752 = vmatprep.subr.mxu0 %v1656
      %1753 = vmatpush1.msra.mxu0 %v1655
      %1754 = vmatprep.subr.mxu0 %v1664
      %1755 = vmatpush1.msra.mxu0 %v1663
      %1756 = vmatprep.subr.mxu0 0.0
      %1757 = vmatpush1.msra.mxu0 0.0
      %1758 = vmatprep.subr.mxu0 0.0
      %1759 = vmatpush1.msra.mxu0 0.0
      %1760 = vmatprep.subr.mxu0 0.0
      %1761 = vmatpush1.msra.mxu0 0.0
      %1762 = vmatprep.subr.mxu0 0.0
      %1763 = vmatpush1.msra.mxu0 0.0
      %1764 = vmatprep.subr.mxu0 0.0
      %1765 = vmatpush1.msra.mxu0 0.0
      %1766 = vmatprep.subr.mxu0 0.0
      %1767 = vmatpush1.msra.mxu0 0.0
      %1768 = vmatprep.subr.mxu0 0.0
      %1769 = vmatpush1.msra.mxu0 0.0
      %1770 = vmatprep.subr.mxu0 0.0
      %1771 = vmatpush1.msra.mxu0 0.0
      %1772 = vmatprep.subr.mxu0 0.0
      %1773 = vmatpush1.msra.mxu0 0.0
      %1774 = vmatprep.subr.mxu0 0.0
      %1775 = vmatpush1.msra.mxu0 0.0
      %1776 = vmatprep.subr.mxu0 0.0
      %1777 = vmatpush1.msra.mxu0 0.0
      %1778 = vmatprep.subr.mxu0 0.0
      %1779 = vmatpush1.msra.mxu0 0.0
      %1780 = vmatprep.subr.mxu0 0.0
      %1781 = vmatpush1.msra.mxu0 0.0
      %1782 = vmatprep.subr.mxu0 0.0
      %1783 = vmatpush1.msra.mxu0 0.0
      %1784 = vmatprep.subr.mxu0 0.0
      %1785 = vmatpush1.msra.mxu0 0.0
      %1786 = vmatprep.subr.mxu0 0.0
      %1787 = vmatpush1.msra.mxu0 0.0
      %1788 = vmatprep.subr.mxu0 0.0
      %1789 = vmatpush1.msra.mxu0 0.0
      %1790 = vmatprep.subr.mxu0 0.0
      %1791 = vmatpush1.msra.mxu0 0.0
      %1792 = vmatprep.subr.mxu0 0.0
      %1793 = vmatpush1.msra.mxu0 0.0
      %1794 = vmatprep.subr.mxu0 0.0
      %1795 = vmatpush1.msra.mxu0 0.0
      %1796 = vmatprep.subr.mxu0 0.0
      %1797 = vmatpush1.msra.mxu0 0.0
      %1798 = vmatprep.subr.mxu0 0.0
      %1799 = vmatpush1.msra.mxu0 0.0
      %1800 = vmatprep.subr.mxu0 0.0
      %1801 = vmatpush1.msra.mxu0 0.0
      %1802 = vmatprep.subr.mxu0 0.0
      %1803 = vmatpush1.msra.mxu0 0.0
      %1804 = vmatprep.subr.mxu0 0.0
      %1805 = vmatpush1.msra.mxu0 0.0
      %1806 = vmatprep.subr.mxu0 0.0
      %1807 = vmatpush1.msra.mxu0 0.0
      %1808 = vmatprep.subr.mxu0 0.0
      %1809 = vmatpush1.msra.mxu0 0.0
      %1810 = vmatprep.subr.mxu0 0.0
      %1811 = vmatpush1.msra.mxu0 0.0
      %1812 = vmatprep.subr.mxu0 0.0
      %1813 = vmatpush1.msra.mxu0 0.0
      %1814 = vmatprep.subr.mxu0 0.0
      %1815 = vmatpush1.msra.mxu0 0.0
      %1816 = vmatprep.mubr.f32.mxu0 0.0
      %1817 = vmatmul.mubr.f32.gmra.mrb[0].mxu0 %v1744
      %v1818 = vpop.f32.mrb[0].mxu0
      %v1819 = vadd.f32 0.0, %v1818
      %v1820 = vpop.f32.mrb[0].mxu0
      %v1821 = vadd.f32 0.0, %v1820
      %1822 = vmatprep.mubr.f32.mxu0 0.0
      %1823 = vmatmul.mubr.f32.gmra.mrb[0].mxu0 %v1747
      %v1824 = vpop.f32.mrb[0].mxu0
      %v1825 = vadd.f32 0.0, %v1824
      %v1826 = vpop.f32.mrb[0].mxu0
      %v1827 = vadd.f32 0.0, %v1826
      %1828 = vmatprep.mubr.f32.mxu0 0.0
      %1829 = vmatmul.mubr.f32.gmra.mrb[0].mxu0 %v1750
      %v1830 = vpop.f32.mrb[0].mxu0
      %v1831 = vadd.f32 0.0, %v1830
      %v1832 = vpop.f32.mrb[0].mxu0
      %v1833 = vadd.f32 0.0, %v1832
      %1834 = vdwg.mxu0
      %1835 = vmatprep.subr.mxu0 %v1658
      %1836 = vmatpush1.msra.mxu0 %v1657
      %1837 = vmatprep.subr.mxu0 %v1666
      %1838 = vmatpush1.msra.mxu0 %v1665
      %1839 = vmatprep.subr.mxu0 0.0
      %1840 = vmatpush1.msra.mxu0 0.0
      %1841 = vmatprep.subr.mxu0 0.0
      %1842 = vmatpush1.msra.mxu0 0.0
      %1843 = vmatprep.subr.mxu0 0.0
      %1844 = vmatpush1.msra.mxu0 0.0
      %1845 = vmatprep.subr.mxu0 0.0
      %1846 = vmatpush1.msra.mxu0 0.0
      %1847 = vmatprep.subr.mxu0 0.0
      %1848 = vmatpush1.msra.mxu0 0.0
      %1849 = vmatprep.subr.mxu0 0.0
      %1850 = vmatpush1.msra.mxu0 0.0
      %1851 = vmatprep.subr.mxu0 0.0
      %1852 = vmatpush1.msra.mxu0 0.0
      %1853 = vmatprep.subr.mxu0 0.0
      %1854 = vmatpush1.msra.mxu0 0.0
      %1855 = vmatprep.subr.mxu0 0.0
      %1856 = vmatpush1.msra.mxu0 0.0
      %1857 = vmatprep.subr.mxu0 0.0
      %1858 = vmatpush1.msra.mxu0 0.0
      %1859 = vmatprep.subr.mxu0 0.0
      %1860 = vmatpush1.msra.mxu0 0.0
      %1861 = vmatprep.subr.mxu0 0.0
      %1862 = vmatpush1.msra.mxu0 0.0
      %1863 = vmatprep.subr.mxu0 0.0
      %1864 = vmatpush1.msra.mxu0 0.0
      %1865 = vmatprep.subr.mxu0 0.0
      %1866 = vmatpush1.msra.mxu0 0.0
      %1867 = vmatprep.subr.mxu0 0.0
      %1868 = vmatpush1.msra.mxu0 0.0
      %1869 = vmatprep.subr.mxu0 0.0
      %1870 = vmatpush1.msra.mxu0 0.0
      %1871 = vmatprep.subr.mxu0 0.0
      %1872 = vmatpush1.msra.mxu0 0.0
      %1873 = vmatprep.subr.mxu0 0.0
      %1874 = vmatpush1.msra.mxu0 0.0
      %1875 = vmatprep.subr.mxu0 0.0
      %1876 = vmatpush1.msra.mxu0 0.0
      %1877 = vmatprep.subr.mxu0 0.0
      %1878 = vmatpush1.msra.mxu0 0.0
      %1879 = vmatprep.subr.mxu0 0.0
      %1880 = vmatpush1.msra.mxu0 0.0
      %1881 = vmatprep.subr.mxu0 0.0
      %1882 = vmatpush1.msra.mxu0 0.0
      %1883 = vmatprep.subr.mxu0 0.0
      %1884 = vmatpush1.msra.mxu0 0.0
      %1885 = vmatprep.subr.mxu0 0.0
      %1886 = vmatpush1.msra.mxu0 0.0
      %1887 = vmatprep.subr.mxu0 0.0
      %1888 = vmatpush1.msra.mxu0 0.0
      %1889 = vmatprep.subr.mxu0 0.0
      %1890 = vmatpush1.msra.mxu0 0.0
      %1891 = vmatprep.subr.mxu0 0.0
      %1892 = vmatpush1.msra.mxu0 0.0
      %1893 = vmatprep.subr.mxu0 0.0
      %1894 = vmatpush1.msra.mxu0 0.0
      %1895 = vmatprep.subr.mxu0 0.0
      %1896 = vmatpush1.msra.mxu0 0.0
      %1897 = vmatprep.subr.mxu0 0.0
      %1898 = vmatpush1.msra.mxu0 0.0
      %1899 = vmatprep.mubr.f32.mxu0 0.0
      %1900 = vmatmul.mubr.f32.gmra.mrb[0].mxu0 %v1744
      %v1901 = vpop.f32.mrb[0].mxu0
      %v1902 = vadd.f32 0.0, %v1901
      %v1903 = vpop.f32.mrb[0].mxu0
      %v1904 = vadd.f32 0.0, %v1903
      %1905 = vmatprep.mubr.f32.mxu0 0.0
      %1906 = vmatmul.mubr.f32.gmra.mrb[0].mxu0 %v1747
      %v1907 = vpop.f32.mrb[0].mxu0
      %v1908 = vadd.f32 0.0, %v1907
      %v1909 = vpop.f32.mrb[0].mxu0
      %v1910 = vadd.f32 0.0, %v1909
      %1911 = vmatprep.mubr.f32.mxu0 0.0
      %1912 = vmatmul.mubr.f32.gmra.mrb[0].mxu0 %v1750
      %v1913 = vpop.f32.mrb[0].mxu0
      %v1914 = vadd.f32 0.0, %v1913
      %v1915 = vpop.f32.mrb[0].mxu0
      %v1916 = vadd.f32 0.0, %v1915
      %1917 = vdwg.mxu0
      %1918 = vmatprep.subr.mxu0 %v1660
      %1919 = vmatpush1.msra.mxu0 %v1659
      %1920 = vmatprep.subr.mxu0 %v1668
      %1921 = vmatpush1.msra.mxu0 %v1667
      %1922 = vmatprep.subr.mxu0 0.0
      %1923 = vmatpush1.msra.mxu0 0.0
      %1924 = vmatprep.subr.mxu0 0.0
      %1925 = vmatpush1.msra.mxu0 0.0
      %1926 = vmatprep.subr.mxu0 0.0
      %1927 = vmatpush1.msra.mxu0 0.0
      %1928 = vmatprep.subr.mxu0 0.0
      %1929 = vmatpush1.msra.mxu0 0.0
      %1930 = vmatprep.subr.mxu0 0.0
      %1931 = vmatpush1.msra.mxu0 0.0
      %1932 = vmatprep.subr.mxu0 0.0
      %1933 = vmatpush1.msra.mxu0 0.0
      %1934 = vmatprep.subr.mxu0 0.0
      %1935 = vmatpush1.msra.mxu0 0.0
      %1936 = vmatprep.subr.mxu0 0.0
      %1937 = vmatpush1.msra.mxu0 0.0
      %1938 = vmatprep.subr.mxu0 0.0
      %1939 = vmatpush1.msra.mxu0 0.0
      %1940 = vmatprep.subr.mxu0 0.0
      %1941 = vmatpush1.msra.mxu0 0.0
      %1942 = vmatprep.subr.mxu0 0.0
      %1943 = vmatpush1.msra.mxu0 0.0
      %1944 = vmatprep.subr.mxu0 0.0
      %1945 = vmatpush1.msra.mxu0 0.0
      %1946 = vmatprep.subr.mxu0 0.0
      %1947 = vmatpush1.msra.mxu0 0.0
      %1948 = vmatprep.subr.mxu0 0.0
      %1949 = vmatpush1.msra.mxu0 0.0
      %1950 = vmatprep.subr.mxu0 0.0
      %1951 = vmatpush1.msra.mxu0 0.0
      %1952 = vmatprep.subr.mxu0 0.0
      %1953 = vmatpush1.msra.mxu0 0.0
      %1954 = vmatprep.subr.mxu0 0.0
      %1955 = vmatpush1.msra.mxu0 0.0
      %1956 = vmatprep.subr.mxu0 0.0
      %1957 = vmatpush1.msra.mxu0 0.0
      %1958 = vmatprep.subr.mxu0 0.0
      %1959 = vmatpush1.msra.mxu0 0.0
      %1960 = vmatprep.subr.mxu0 0.0
      %1961 = vmatpush1.msra.mxu0 0.0
      %1962 = vmatprep.subr.mxu0 0.0
      %1963 = vmatpush1.msra.mxu0 0.0
      %1964 = vmatprep.subr.mxu0 0.0
      %1965 = vmatpush1.msra.mxu0 0.0
      %1966 = vmatprep.subr.mxu0 0.0
      %1967 = vmatpush1.msra.mxu0 0.0
      %1968 = vmatprep.subr.mxu0 0.0
      %1969 = vmatpush1.msra.mxu0 0.0
      %1970 = vmatprep.subr.mxu0 0.0
      %1971 = vmatpush1.msra.mxu0 0.0
      %1972 = vmatprep.subr.mxu0 0.0
      %1973 = vmatpush1.msra.mxu0 0.0
      %1974 = vmatprep.subr.mxu0 0.0
      %1975 = vmatpush1.msra.mxu0 0.0
      %1976 = vmatprep.subr.mxu0 0.0
      %1977 = vmatpush1.msra.mxu0 0.0
      %1978 = vmatprep.subr.mxu0 0.0
      %1979 = vmatpush1.msra.mxu0 0.0
      %1980 = vmatprep.subr.mxu0 0.0
      %1981 = vmatpush1.msra.mxu0 0.0
      %1982 = vmatprep.mubr.f32.mxu0 0.0
      %1983 = vmatmul.mubr.f32.gmra.mrb[0].mxu0 %v1744
      %v1984 = vpop.f32.mrb[0].mxu0
      %v1985 = vadd.f32 0.0, %v1984
      %v1986 = vpop.f32.mrb[0].mxu0
      %v1987 = vadd.f32 0.0, %v1986
      %1988 = vmatprep.mubr.f32.mxu0 0.0
      %1989 = vmatmul.mubr.f32.gmra.mrb[0].mxu0 %v1747
      %v1990 = vpop.f32.mrb[0].mxu0
      %v1991 = vadd.f32 0.0, %v1990
      %v1992 = vpop.f32.mrb[0].mxu0
      %v1993 = vadd.f32 0.0, %v1992
      %1994 = vmatprep.mubr.f32.mxu0 0.0
      %1995 = vmatmul.mubr.f32.gmra.mrb[0].mxu0 %v1750
      %v1996 = vpop.f32.mrb[0].mxu0
      %v1997 = vadd.f32 0.0, %v1996
      %v1998 = vpop.f32.mrb[0].mxu0
      %v1999 = vadd.f32 0.0, %v1998
      %2000 = vdwg.mxu0
      %2001 = vmatprep.subr.mxu0 %v1662
      %2002 = vmatpush1.msra.mxu0 %v1661
      %2003 = vmatprep.subr.mxu0 %v1670
      %2004 = vmatpush1.msra.mxu0 %v1669
      %2005 = vmatprep.subr.mxu0 0.0
      %2006 = vmatpush1.msra.mxu0 0.0
      %2007 = vmatprep.subr.mxu0 0.0
      %2008 = vmatpush1.msra.mxu0 0.0
      %2009 = vmatprep.subr.mxu0 0.0
      %2010 = vmatpush1.msra.mxu0 0.0
      %2011 = vmatprep.subr.mxu0 0.0
      %2012 = vmatpush1.msra.mxu0 0.0
      %2013 = vmatprep.subr.mxu0 0.0
      %2014 = vmatpush1.msra.mxu0 0.0
      %2015 = vmatprep.subr.mxu0 0.0
      %2016 = vmatpush1.msra.mxu0 0.0
      %2017 = vmatprep.subr.mxu0 0.0
      %2018 = vmatpush1.msra.mxu0 0.0
      %2019 = vmatprep.subr.mxu0 0.0
      %2020 = vmatpush1.msra.mxu0 0.0
      %2021 = vmatprep.subr.mxu0 0.0
      %2022 = vmatpush1.msra.mxu0 0.0
      %2023 = vmatprep.subr.mxu0 0.0
      %2024 = vmatpush1.msra.mxu0 0.0
      %2025 = vmatprep.subr.mxu0 0.0
      %2026 = vmatpush1.msra.mxu0 0.0
      %2027 = vmatprep.subr.mxu0 0.0
      %2028 = vmatpush1.msra.mxu0 0.0
      %2029 = vmatprep.subr.mxu0 0.0
      %2030 = vmatpush1.msra.mxu0 0.0
      %2031 = vmatprep.subr.mxu0 0.0
      %2032 = vmatpush1.msra.mxu0 0.0
      %2033 = vmatprep.subr.mxu0 0.0
      %2034 = vmatpush1.msra.mxu0 0.0
      %2035 = vmatprep.subr.mxu0 0.0
      %2036 = vmatpush1.msra.mxu0 0.0
      %2037 = vmatprep.subr.mxu0 0.0
      %2038 = vmatpush1.msra.mxu0 0.0
      %2039 = vmatprep.subr.mxu0 0.0
      %2040 = vmatpush1.msra.mxu0 0.0
      %2041 = vmatprep.subr.mxu0 0.0
      %2042 = vmatpush1.msra.mxu0 0.0
      %2043 = vmatprep.subr.mxu0 0.0
      %2044 = vmatpush1.msra.mxu0 0.0
      %2045 = vmatprep.subr.mxu0 0.0
      %2046 = vmatpush1.msra.mxu0 0.0
      %2047 = vmatprep.subr.mxu0 0.0
      %2048 = vmatpush1.msra.mxu0 0.0
      %2049 = vmatprep.subr.mxu0 0.0
      %2050 = vmatpush1.msra.mxu0 0.0
      %2051 = vmatprep.subr.mxu0 0.0
      %2052 = vmatpush1.msra.mxu0 0.0
      %2053 = vmatprep.subr.mxu0 0.0
      %2054 = vmatpush1.msra.mxu0 0.0
      %2055 = vmatprep.subr.mxu0 0.0
      %2056 = vmatpush1.msra.mxu0 0.0
      %2057 = vmatprep.subr.mxu0 0.0
      %2058 = vmatpush1.msra.mxu0 0.0
      %2059 = vmatprep.subr.mxu0 0.0
      %2060 = vmatpush1.msra.mxu0 0.0
      %2061 = vmatprep.subr.mxu0 0.0
      %2062 = vmatpush1.msra.mxu0 0.0
      %2063 = vmatprep.subr.mxu0 0.0
      %2064 = vmatpush1.msra.mxu0 0.0
      %2065 = vmatprep.mubr.f32.mxu0 0.0
      %2066 = vmatmul.mubr.f32.gmra.mrb[0].mxu0 %v1744
      %v2067 = vpop.f32.mrb[0].mxu0
      %v2068 = vadd.f32 0.0, %v2067
      %v2069 = vpop.f32.mrb[0].mxu0
      %v2070 = vadd.f32 0.0, %v2069
      %2071 = vmatprep.mubr.f32.mxu0 0.0
      %2072 = vmatmul.mubr.f32.gmra.mrb[0].mxu0 %v1747
      %v2073 = vpop.f32.mrb[0].mxu0
      %v2074 = vadd.f32 0.0, %v2073
      %v2075 = vpop.f32.mrb[0].mxu0
      %v2076 = vadd.f32 0.0, %v2075
      %2077 = vmatprep.mubr.f32.mxu0 0.0
      %2078 = vmatmul.mubr.f32.gmra.mrb[0].mxu0 %v1750
      %v2079 = vpop.f32.mrb[0].mxu0
      %v2080 = vadd.f32 0.0, %v2079
      %v2081 = vpop.f32.mrb[0].mxu0
      %v2082 = vadd.f32 0.0, %v2081
      %2083 = vdwg.mxu0
      %v2085 = vsel %vm1742, %v1719, 0
      %v2088 = vsel %vm1742, %v1720, 0
      %v2091 = vsel %vm1742, %v1721, 0
      %2093 = vmatprep.subr.mxu0 %v1624
      %2094 = vmatpush1.msra.mxu0 %v1623
      %2095 = vmatprep.subr.mxu0 %v1632
      %2096 = vmatpush1.msra.mxu0 %v1631
      %2097 = vmatprep.subr.mxu0 0.0
      %2098 = vmatpush1.msra.mxu0 0.0
      %2099 = vmatprep.subr.mxu0 0.0
      %2100 = vmatpush1.msra.mxu0 0.0
      %2101 = vmatprep.subr.mxu0 0.0
      %2102 = vmatpush1.msra.mxu0 0.0
      %2103 = vmatprep.subr.mxu0 0.0
      %2104 = vmatpush1.msra.mxu0 0.0
      %2105 = vmatprep.subr.mxu0 0.0
      %2106 = vmatpush1.msra.mxu0 0.0
      %2107 = vmatprep.subr.mxu0 0.0
      %2108 = vmatpush1.msra.mxu0 0.0
      %2109 = vmatprep.subr.mxu0 0.0
      %2110 = vmatpush1.msra.mxu0 0.0
      %2111 = vmatprep.subr.mxu0 0.0
      %2112 = vmatpush1.msra.mxu0 0.0
      %2113 = vmatprep.subr.mxu0 0.0
      %2114 = vmatpush1.msra.mxu0 0.0
      %2115 = vmatprep.subr.mxu0 0.0
      %2116 = vmatpush1.msra.mxu0 0.0
      %2117 = vmatprep.subr.mxu0 0.0
      %2118 = vmatpush1.msra.mxu0 0.0
      %2119 = vmatprep.subr.mxu0 0.0
      %2120 = vmatpush1.msra.mxu0 0.0
      %2121 = vmatprep.subr.mxu0 0.0
      %2122 = vmatpush1.msra.mxu0 0.0
      %2123 = vmatprep.subr.mxu0 0.0
      %2124 = vmatpush1.msra.mxu0 0.0
      %2125 = vmatprep.subr.mxu0 0.0
      %2126 = vmatpush1.msra.mxu0 0.0
      %2127 = vmatprep.subr.mxu0 0.0
      %2128 = vmatpush1.msra.mxu0 0.0
      %2129 = vmatprep.subr.mxu0 0.0
      %2130 = vmatpush1.msra.mxu0 0.0
      %2131 = vmatprep.subr.mxu0 0.0
      %2132 = vmatpush1.msra.mxu0 0.0
      %2133 = vmatprep.subr.mxu0 0.0
      %2134 = vmatpush1.msra.mxu0 0.0
      %2135 = vmatprep.subr.mxu0 0.0
      %2136 = vmatpush1.msra.mxu0 0.0
      %2137 = vmatprep.subr.mxu0 0.0
      %2138 = vmatpush1.msra.mxu0 0.0
      %2139 = vmatprep.subr.mxu0 0.0
      %2140 = vmatpush1.msra.mxu0 0.0
      %2141 = vmatprep.subr.mxu0 0.0
      %2142 = vmatpush1.msra.mxu0 0.0
      %2143 = vmatprep.subr.mxu0 0.0
      %2144 = vmatpush1.msra.mxu0 0.0
      %2145 = vmatprep.subr.mxu0 0.0
      %2146 = vmatpush1.msra.mxu0 0.0
      %2147 = vmatprep.subr.mxu0 0.0
      %2148 = vmatpush1.msra.mxu0 0.0
      %2149 = vmatprep.subr.mxu0 0.0
      %2150 = vmatpush1.msra.mxu0 0.0
      %2151 = vmatprep.subr.mxu0 0.0
      %2152 = vmatpush1.msra.mxu0 0.0
      %2153 = vmatprep.subr.mxu0 0.0
      %2154 = vmatpush1.msra.mxu0 0.0
      %2155 = vmatprep.subr.mxu0 0.0
      %2156 = vmatpush1.msra.mxu0 0.0
      %2157 = vmatprep.mubr.f32.mxu0 0.0
      %2158 = vmatmul.mubr.f32.gmra.mrb[0].mxu0 %v2085
      %v2159 = vpop.f32.mrb[0].mxu0
      %v2160 = vadd.f32 %v1819, %v2159
      %v2161 = vpop.f32.mrb[0].mxu0
      %v2162 = vadd.f32 %v1821, %v2161
      %2163 = vmatprep.mubr.f32.mxu0 0.0
      %2164 = vmatmul.mubr.f32.gmra.mrb[0].mxu0 %v2088
      %v2165 = vpop.f32.mrb[0].mxu0
      %v2166 = vadd.f32 %v1825, %v2165
      %v2167 = vpop.f32.mrb[0].mxu0
      %v2168 = vadd.f32 %v1827, %v2167
      %2169 = vmatprep.mubr.f32.mxu0 0.0
      %2170 = vmatmul.mubr.f32.gmra.mrb[0].mxu0 %v2091
      %v2171 = vpop.f32.mrb[0].mxu0
      %v2172 = vadd.f32 %v1831, %v2171
      %v2173 = vpop.f32.mrb[0].mxu0
      %v2174 = vadd.f32 %v1833, %v2173
      %2175 = vdwg.mxu0
      %2176 = vmatprep.subr.mxu0 %v1626
      %2177 = vmatpush1.msra.mxu0 %v1625
      %2178 = vmatprep.subr.mxu0 %v1634
      %2179 = vmatpush1.msra.mxu0 %v1633
      %2180 = vmatprep.subr.mxu0 0.0
      %2181 = vmatpush1.msra.mxu0 0.0
      %2182 = vmatprep.subr.mxu0 0.0
      %2183 = vmatpush1.msra.mxu0 0.0
      %2184 = vmatprep.subr.mxu0 0.0
      %2185 = vmatpush1.msra.mxu0 0.0
      %2186 = vmatprep.subr.mxu0 0.0
      %2187 = vmatpush1.msra.mxu0 0.0
      %2188 = vmatprep.subr.mxu0 0.0
      %2189 = vmatpush1.msra.mxu0 0.0
      %2190 = vmatprep.subr.mxu0 0.0
      %2191 = vmatpush1.msra.mxu0 0.0
      %2192 = vmatprep.subr.mxu0 0.0
      %2193 = vmatpush1.msra.mxu0 0.0
      %2194 = vmatprep.subr.mxu0 0.0
      %2195 = vmatpush1.msra.mxu0 0.0
      %2196 = vmatprep.subr.mxu0 0.0
      %2197 = vmatpush1.msra.mxu0 0.0
      %2198 = vmatprep.subr.mxu0 0.0
      %2199 = vmatpush1.msra.mxu0 0.0
      %2200 = vmatprep.subr.mxu0 0.0
      %2201 = vmatpush1.msra.mxu0 0.0
      %2202 = vmatprep.subr.mxu0 0.0
      %2203 = vmatpush1.msra.mxu0 0.0
      %2204 = vmatprep.subr.mxu0 0.0
      %2205 = vmatpush1.msra.mxu0 0.0
      %2206 = vmatprep.subr.mxu0 0.0
      %2207 = vmatpush1.msra.mxu0 0.0
      %2208 = vmatprep.subr.mxu0 0.0
      %2209 = vmatpush1.msra.mxu0 0.0
      %2210 = vmatprep.subr.mxu0 0.0
      %2211 = vmatpush1.msra.mxu0 0.0
      %2212 = vmatprep.subr.mxu0 0.0
      %2213 = vmatpush1.msra.mxu0 0.0
      %2214 = vmatprep.subr.mxu0 0.0
      %2215 = vmatpush1.msra.mxu0 0.0
      %2216 = vmatprep.subr.mxu0 0.0
      %2217 = vmatpush1.msra.mxu0 0.0
      %2218 = vmatprep.subr.mxu0 0.0
      %2219 = vmatpush1.msra.mxu0 0.0
      %2220 = vmatprep.subr.mxu0 0.0
      %2221 = vmatpush1.msra.mxu0 0.0
      %2222 = vmatprep.subr.mxu0 0.0
      %2223 = vmatpush1.msra.mxu0 0.0
      %2224 = vmatprep.subr.mxu0 0.0
      %2225 = vmatpush1.msra.mxu0 0.0
      %2226 = vmatprep.subr.mxu0 0.0
      %2227 = vmatpush1.msra.mxu0 0.0
      %2228 = vmatprep.subr.mxu0 0.0
      %2229 = vmatpush1.msra.mxu0 0.0
      %2230 = vmatprep.subr.mxu0 0.0
      %2231 = vmatpush1.msra.mxu0 0.0
      %2232 = vmatprep.subr.mxu0 0.0
      %2233 = vmatpush1.msra.mxu0 0.0
      %2234 = vmatprep.subr.mxu0 0.0
      %2235 = vmatpush1.msra.mxu0 0.0
      %2236 = vmatprep.subr.mxu0 0.0
      %2237 = vmatpush1.msra.mxu0 0.0
      %2238 = vmatprep.subr.mxu0 0.0
      %2239 = vmatpush1.msra.mxu0 0.0
      %2240 = vmatprep.mubr.f32.mxu0 0.0
      %2241 = vmatmul.mubr.f32.gmra.mrb[0].mxu0 %v2085
      %v2242 = vpop.f32.mrb[0].mxu0
      %v2243 = vadd.f32 %v1902, %v2242
      %v2244 = vpop.f32.mrb[0].mxu0
      %v2245 = vadd.f32 %v1904, %v2244
      %2246 = vmatprep.mubr.f32.mxu0 0.0
      %2247 = vmatmul.mubr.f32.gmra.mrb[0].mxu0 %v2088
      %v2248 = vpop.f32.mrb[0].mxu0
      %v2249 = vadd.f32 %v1908, %v2248
      %v2250 = vpop.f32.mrb[0].mxu0
      %v2251 = vadd.f32 %v1910, %v2250
      %2252 = vmatprep.mubr.f32.mxu0 0.0
      %2253 = vmatmul.mubr.f32.gmra.mrb[0].mxu0 %v2091
      %v2254 = vpop.f32.mrb[0].mxu0
      %v2255 = vadd.f32 %v1914, %v2254
      %v2256 = vpop.f32.mrb[0].mxu0
      %v2257 = vadd.f32 %v1916, %v2256
      %2258 = vdwg.mxu0
      %2259 = vmatprep.subr.mxu0 %v1628
      %2260 = vmatpush1.msra.mxu0 %v1627
      %2261 = vmatprep.subr.mxu0 %v1636
      %2262 = vmatpush1.msra.mxu0 %v1635
      %2263 = vmatprep.subr.mxu0 0.0
      %2264 = vmatpush1.msra.mxu0 0.0
      %2265 = vmatprep.subr.mxu0 0.0
      %2266 = vmatpush1.msra.mxu0 0.0
      %2267 = vmatprep.subr.mxu0 0.0
      %2268 = vmatpush1.msra.mxu0 0.0
      %2269 = vmatprep.subr.mxu0 0.0
      %2270 = vmatpush1.msra.mxu0 0.0
      %2271 = vmatprep.subr.mxu0 0.0
      %2272 = vmatpush1.msra.mxu0 0.0
      %2273 = vmatprep.subr.mxu0 0.0
      %2274 = vmatpush1.msra.mxu0 0.0
      %2275 = vmatprep.subr.mxu0 0.0
      %2276 = vmatpush1.msra.mxu0 0.0
      %2277 = vmatprep.subr.mxu0 0.0
      %2278 = vmatpush1.msra.mxu0 0.0
      %2279 = vmatprep.subr.mxu0 0.0
      %2280 = vmatpush1.msra.mxu0 0.0
      %2281 = vmatprep.subr.mxu0 0.0
      %2282 = vmatpush1.msra.mxu0 0.0
      %2283 = vmatprep.subr.mxu0 0.0
      %2284 = vmatpush1.msra.mxu0 0.0
      %2285 = vmatprep.subr.mxu0 0.0
      %2286 = vmatpush1.msra.mxu0 0.0
      %2287 = vmatprep.subr.mxu0 0.0
      %2288 = vmatpush1.msra.mxu0 0.0
      %2289 = vmatprep.subr.mxu0 0.0
      %2290 = vmatpush1.msra.mxu0 0.0
      %2291 = vmatprep.subr.mxu0 0.0
      %2292 = vmatpush1.msra.mxu0 0.0
      %2293 = vmatprep.subr.mxu0 0.0
      %2294 = vmatpush1.msra.mxu0 0.0
      %2295 = vmatprep.subr.mxu0 0.0
      %2296 = vmatpush1.msra.mxu0 0.0
      %2297 = vmatprep.subr.mxu0 0.0
      %2298 = vmatpush1.msra.mxu0 0.0
      %2299 = vmatprep.subr.mxu0 0.0
      %2300 = vmatpush1.msra.mxu0 0.0
      %2301 = vmatprep.subr.mxu0 0.0
      %2302 = vmatpush1.msra.mxu0 0.0
      %2303 = vmatprep.subr.mxu0 0.0
      %2304 = vmatpush1.msra.mxu0 0.0
      %2305 = vmatprep.subr.mxu0 0.0
      %2306 = vmatpush1.msra.mxu0 0.0
      %2307 = vmatprep.subr.mxu0 0.0
      %2308 = vmatpush1.msra.mxu0 0.0
      %2309 = vmatprep.subr.mxu0 0.0
      %2310 = vmatpush1.msra.mxu0 0.0
      %2311 = vmatprep.subr.mxu0 0.0
      %2312 = vmatpush1.msra.mxu0 0.0
      %2313 = vmatprep.subr.mxu0 0.0
      %2314 = vmatpush1.msra.mxu0 0.0
      %2315 = vmatprep.subr.mxu0 0.0
      %2316 = vmatpush1.msra.mxu0 0.0
      %2317 = vmatprep.subr.mxu0 0.0
      %2318 = vmatpush1.msra.mxu0 0.0
      %2319 = vmatprep.subr.mxu0 0.0
      %2320 = vmatpush1.msra.mxu0 0.0
      %2321 = vmatprep.subr.mxu0 0.0
      %2322 = vmatpush1.msra.mxu0 0.0
      %2323 = vmatprep.mubr.f32.mxu0 0.0
      %2324 = vmatmul.mubr.f32.gmra.mrb[0].mxu0 %v2085
      %v2325 = vpop.f32.mrb[0].mxu0
      %v2326 = vadd.f32 %v1985, %v2325
      %v2327 = vpop.f32.mrb[0].mxu0
      %v2328 = vadd.f32 %v1987, %v2327
      %2329 = vmatprep.mubr.f32.mxu0 0.0
      %2330 = vmatmul.mubr.f32.gmra.mrb[0].mxu0 %v2088
      %v2331 = vpop.f32.mrb[0].mxu0
      %v2332 = vadd.f32 %v1991, %v2331
      %v2333 = vpop.f32.mrb[0].mxu0
      %v2334 = vadd.f32 %v1993, %v2333
      %2335 = vmatprep.mubr.f32.mxu0 0.0
      %2336 = vmatmul.mubr.f32.gmra.mrb[0].mxu0 %v2091
      %v2337 = vpop.f32.mrb[0].mxu0
      %v2338 = vadd.f32 %v1997, %v2337
      %v2339 = vpop.f32.mrb[0].mxu0
      %v2340 = vadd.f32 %v1999, %v2339
      %2341 = vdwg.mxu0
      %2342 = vmatprep.subr.mxu0 %v1630
      %2343 = vmatpush1.msra.mxu0 %v1629
      %2344 = vmatprep.subr.mxu0 %v1638
      %2345 = vmatpush1.msra.mxu0 %v1637
      %2346 = vmatprep.subr.mxu0 0.0
      %2347 = vmatpush1.msra.mxu0 0.0
      %2348 = vmatprep.subr.mxu0 0.0
      %2349 = vmatpush1.msra.mxu0 0.0
      %2350 = vmatprep.subr.mxu0 0.0
      %2351 = vmatpush1.msra.mxu0 0.0
      %2352 = vmatprep.subr.mxu0 0.0
      %2353 = vmatpush1.msra.mxu0 0.0
      %2354 = vmatprep.subr.mxu0 0.0
      %2355 = vmatpush1.msra.mxu0 0.0
      %2356 = vmatprep.subr.mxu0 0.0
      %2357 = vmatpush1.msra.mxu0 0.0
      %2358 = vmatprep.subr.mxu0 0.0
      %2359 = vmatpush1.msra.mxu0 0.0
      %2360 = vmatprep.subr.mxu0 0.0
      %2361 = vmatpush1.msra.mxu0 0.0
      %2362 = vmatprep.subr.mxu0 0.0
      %2363 = vmatpush1.msra.mxu0 0.0
      %2364 = vmatprep.subr.mxu0 0.0
      %2365 = vmatpush1.msra.mxu0 0.0
      %2366 = vmatprep.subr.mxu0 0.0
      %2367 = vmatpush1.msra.mxu0 0.0
      %2368 = vmatprep.subr.mxu0 0.0
      %2369 = vmatpush1.msra.mxu0 0.0
      %2370 = vmatprep.subr.mxu0 0.0
      %2371 = vmatpush1.msra.mxu0 0.0
      %2372 = vmatprep.subr.mxu0 0.0
      %2373 = vmatpush1.msra.mxu0 0.0
      %2374 = vmatprep.subr.mxu0 0.0
      %2375 = vmatpush1.msra.mxu0 0.0
      %2376 = vmatprep.subr.mxu0 0.0
      %2377 = vmatpush1.msra.mxu0 0.0
      %2378 = vmatprep.subr.mxu0 0.0
      %2379 = vmatpush1.msra.mxu0 0.0
      %2380 = vmatprep.subr.mxu0 0.0
      %2381 = vmatpush1.msra.mxu0 0.0
      %2382 = vmatprep.subr.mxu0 0.0
      %2383 = vmatpush1.msra.mxu0 0.0
      %2384 = vmatprep.subr.mxu0 0.0
      %2385 = vmatpush1.msra.mxu0 0.0
      %2386 = vmatprep.subr.mxu0 0.0
      %2387 = vmatpush1.msra.mxu0 0.0
      %2388 = vmatprep.subr.mxu0 0.0
      %2389 = vmatpush1.msra.mxu0 0.0
      %2390 = vmatprep.subr.mxu0 0.0
      %2391 = vmatpush1.msra.mxu0 0.0
      %2392 = vmatprep.subr.mxu0 0.0
      %2393 = vmatpush1.msra.mxu0 0.0
      %2394 = vmatprep.subr.mxu0 0.0
      %2395 = vmatpush1.msra.mxu0 0.0
      %2396 = vmatprep.subr.mxu0 0.0
      %2397 = vmatpush1.msra.mxu0 0.0
      %2398 = vmatprep.subr.mxu0 0.0
      %2399 = vmatpush1.msra.mxu0 0.0
      %2400 = vmatprep.subr.mxu0 0.0
      %2401 = vmatpush1.msra.mxu0 0.0
      %2402 = vmatprep.subr.mxu0 0.0
      %2403 = vmatpush1.msra.mxu0 0.0
      %2404 = vmatprep.subr.mxu0 0.0
      %2405 = vmatpush1.msra.mxu0 0.0
      %2406 = vmatprep.mubr.f32.mxu0 0.0
      %2407 = vmatmul.mubr.f32.gmra.mrb[0].mxu0 %v2085
      %v2408 = vpop.f32.mrb[0].mxu0
      %v2409 = vadd.f32 %v2068, %v2408
      %v2410 = vpop.f32.mrb[0].mxu0
      %v2411 = vadd.f32 %v2070, %v2410
      %2412 = vmatprep.mubr.f32.mxu0 0.0
      %2413 = vmatmul.mubr.f32.gmra.mrb[0].mxu0 %v2088
      %v2414 = vpop.f32.mrb[0].mxu0
      %v2415 = vadd.f32 %v2074, %v2414
      %v2416 = vpop.f32.mrb[0].mxu0
      %v2417 = vadd.f32 %v2076, %v2416
      %2418 = vmatprep.mubr.f32.mxu0 0.0
      %2419 = vmatmul.mubr.f32.gmra.mrb[0].mxu0 %v2091
      %v2420 = vpop.f32.mrb[0].mxu0
      %v2421 = vadd.f32 %v2080, %v2420
      %v2422 = vpop.f32.mrb[0].mxu0
      %v2423 = vadd.f32 %v2082, %v2422
      %2424 = vdwg.mxu0
      %2425 = vst [vmem:[%s303 + $0x100] sm:$0xff] %v1687
      %2426 = vst [vmem:[%s303 + $0x108] sm:$0xff] %v1688
      %2427 = vst [vmem:[%s303 + $0x110] sm:$0xff] %v1689
      %2428 = vst [vmem:[%s303 + $0x118] sm:$0xff] %v1690
      %2429 = vst [vmem:[%s303 + $0x120] sm:$0xff] %v1691
      %2430 = vst [vmem:[%s303 + $0x128] sm:$0xff] %v1692
      %2431 = vst [vmem:[%s303 + $0x130] sm:$0xff] %v1693
      %2432 = vst [vmem:[%s303 + $0x138] sm:$0xff] %v1694
      %2433 = vst [vmem:[%s303 + $0x140] sm:$0xff] %v1695
      %2434 = vst [vmem:[%s303 + $0x148] sm:$0xff] %v1696
      %2435 = vst [vmem:[%s303 + $0x150] sm:$0xff] %v1697
      %2436 = vst [vmem:[%s303 + $0x158] sm:$0xff] %v1698
      %2437 = vst [vmem:[%s303 + $0x160] sm:$0xff] %v1699
      %2438 = vst [vmem:[%s303 + $0x168] sm:$0xff] %v1700
      %2439 = vst [vmem:[%s303 + $0x170] sm:$0xff] %v1701
      %2440 = vst [vmem:[%s303 + $0x178] sm:$0xff] %v1702
      %s2441 = scalar_lea.vmem %s4, 48
      %v2442 = vld [vmem:[%s2441] sm:$0xff]
      %v2443 = vld [vmem:[%s2441 + $0x8] sm:$0xff]
      %v2444 = vld [vmem:[%s2441 + $0x10] sm:$0xff]
      %v2446 = vsel %vm1742, %v2442, 0
      %v2449 = vsel %vm1742, %v2443, 0
      %v2452 = vsel %vm1742, %v2444, 0
      %2454 = vmatprep.subr.mxu0 %v1688
      %2455 = vmatpush1.msra.mxu0 %v1687
      %2456 = vmatprep.subr.mxu0 %v1696
      %2457 = vmatpush1.msra.mxu0 %v1695
      %2458 = vmatprep.subr.mxu0 0.0
      %2459 = vmatpush1.msra.mxu0 0.0
      %2460 = vmatprep.subr.mxu0 0.0
      %2461 = vmatpush1.msra.mxu0 0.0
      %2462 = vmatprep.subr.mxu0 0.0
      %2463 = vmatpush1.msra.mxu0 0.0
      %2464 = vmatprep.subr.mxu0 0.0
      %2465 = vmatpush1.msra.mxu0 0.0
      %2466 = vmatprep.subr.mxu0 0.0
      %2467 = vmatpush1.msra.mxu0 0.0
      %2468 = vmatprep.subr.mxu0 0.0
      %2469 = vmatpush1.msra.mxu0 0.0
      %2470 = vmatprep.subr.mxu0 0.0
      %2471 = vmatpush1.msra.mxu0 0.0
      %2472 = vmatprep.subr.mxu0 0.0
      %2473 = vmatpush1.msra.mxu0 0.0
      %2474 = vmatprep.subr.mxu0 0.0
      %2475 = vmatpush1.msra.mxu0 0.0
      %2476 = vmatprep.subr.mxu0 0.0
      %2477 = vmatpush1.msra.mxu0 0.0
      %2478 = vmatprep.subr.mxu0 0.0
      %2479 = vmatpush1.msra.mxu0 0.0
      %2480 = vmatprep.subr.mxu0 0.0
      %2481 = vmatpush1.msra.mxu0 0.0
      %2482 = vmatprep.subr.mxu0 0.0
      %2483 = vmatpush1.msra.mxu0 0.0
      %2484 = vmatprep.subr.mxu0 0.0
      %2485 = vmatpush1.msra.mxu0 0.0
      %2486 = vmatprep.subr.mxu0 0.0
      %2487 = vmatpush1.msra.mxu0 0.0
      %2488 = vmatprep.subr.mxu0 0.0
      %2489 = vmatpush1.msra.mxu0 0.0
      %2490 = vmatprep.subr.mxu0 0.0
      %2491 = vmatpush1.msra.mxu0 0.0
      %2492 = vmatprep.subr.mxu0 0.0
      %2493 = vmatpush1.msra.mxu0 0.0
      %2494 = vmatprep.subr.mxu0 0.0
      %2495 = vmatpush1.msra.mxu0 0.0
      %2496 = vmatprep.subr.mxu0 0.0
      %2497 = vmatpush1.msra.mxu0 0.0
      %2498 = vmatprep.subr.mxu0 0.0
      %2499 = vmatpush1.msra.mxu0 0.0
      %2500 = vmatprep.subr.mxu0 0.0
      %2501 = vmatpush1.msra.mxu0 0.0
      %2502 = vmatprep.subr.mxu0 0.0
      %2503 = vmatpush1.msra.mxu0 0.0
      %2504 = vmatprep.subr.mxu0 0.0
      %2505 = vmatpush1.msra.mxu0 0.0
      %2506 = vmatprep.subr.mxu0 0.0
      %2507 = vmatpush1.msra.mxu0 0.0
      %2508 = vmatprep.subr.mxu0 0.0
      %2509 = vmatpush1.msra.mxu0 0.0
      %2510 = vmatprep.subr.mxu0 0.0
      %2511 = vmatpush1.msra.mxu0 0.0
      %2512 = vmatprep.subr.mxu0 0.0
      %2513 = vmatpush1.msra.mxu0 0.0
      %2514 = vmatprep.subr.mxu0 0.0
      %2515 = vmatpush1.msra.mxu0 0.0
      %2516 = vmatprep.subr.mxu0 0.0
      %2517 = vmatpush1.msra.mxu0 0.0
      %2518 = vmatprep.mubr.f32.mxu0 0.0
      %2519 = vmatmul.mubr.f32.gmra.mrb[0].mxu0 %v2446
      %v2520 = vpop.f32.mrb[0].mxu0
      %v2521 = vadd.f32 0.0, %v2520
      %v2522 = vpop.f32.mrb[0].mxu0
      %v2523 = vadd.f32 0.0, %v2522
      %2524 = vmatprep.mubr.f32.mxu0 0.0
      %2525 = vmatmul.mubr.f32.gmra.mrb[0].mxu0 %v2449
      %v2526 = vpop.f32.mrb[0].mxu0
      %v2527 = vadd.f32 0.0, %v2526
      %v2528 = vpop.f32.mrb[0].mxu0
      %v2529 = vadd.f32 0.0, %v2528
      %2530 = vmatprep.mubr.f32.mxu0 0.0
      %2531 = vmatmul.mubr.f32.gmra.mrb[0].mxu0 %v2452
      %v2532 = vpop.f32.mrb[0].mxu0
      %v2533 = vadd.f32 0.0, %v2532
      %v2534 = vpop.f32.mrb[0].mxu0
      %v2535 = vadd.f32 0.0, %v2534
      %2536 = vdwg.mxu0
      %2537 = vmatprep.subr.mxu0 %v1690
      %2538 = vmatpush1.msra.mxu0 %v1689
      %2539 = vmatprep.subr.mxu0 %v1698
      %2540 = vmatpush1.msra.mxu0 %v1697
      %2541 = vmatprep.subr.mxu0 0.0
      %2542 = vmatpush1.msra.mxu0 0.0
      %2543 = vmatprep.subr.mxu0 0.0
      %2544 = vmatpush1.msra.mxu0 0.0
      %2545 = vmatprep.subr.mxu0 0.0
      %2546 = vmatpush1.msra.mxu0 0.0
      %2547 = vmatprep.subr.mxu0 0.0
      %2548 = vmatpush1.msra.mxu0 0.0
      %2549 = vmatprep.subr.mxu0 0.0
      %2550 = vmatpush1.msra.mxu0 0.0
      %2551 = vmatprep.subr.mxu0 0.0
      %2552 = vmatpush1.msra.mxu0 0.0
      %2553 = vmatprep.subr.mxu0 0.0
      %2554 = vmatpush1.msra.mxu0 0.0
      %2555 = vmatprep.subr.mxu0 0.0
      %2556 = vmatpush1.msra.mxu0 0.0
      %2557 = vmatprep.subr.mxu0 0.0
      %2558 = vmatpush1.msra.mxu0 0.0
      %2559 = vmatprep.subr.mxu0 0.0
      %2560 = vmatpush1.msra.mxu0 0.0
      %2561 = vmatprep.subr.mxu0 0.0
      %2562 = vmatpush1.msra.mxu0 0.0
      %2563 = vmatprep.subr.mxu0 0.0
      %2564 = vmatpush1.msra.mxu0 0.0
      %2565 = vmatprep.subr.mxu0 0.0
      %2566 = vmatpush1.msra.mxu0 0.0
      %2567 = vmatprep.subr.mxu0 0.0
      %2568 = vmatpush1.msra.mxu0 0.0
      %2569 = vmatprep.subr.mxu0 0.0
      %2570 = vmatpush1.msra.mxu0 0.0
      %2571 = vmatprep.subr.mxu0 0.0
      %2572 = vmatpush1.msra.mxu0 0.0
      %2573 = vmatprep.subr.mxu0 0.0
      %2574 = vmatpush1.msra.mxu0 0.0
      %2575 = vmatprep.subr.mxu0 0.0
      %2576 = vmatpush1.msra.mxu0 0.0
      %2577 = vmatprep.subr.mxu0 0.0
      %2578 = vmatpush1.msra.mxu0 0.0
      %2579 = vmatprep.subr.mxu0 0.0
      %2580 = vmatpush1.msra.mxu0 0.0
      %2581 = vmatprep.subr.mxu0 0.0
      %2582 = vmatpush1.msra.mxu0 0.0
      %2583 = vmatprep.subr.mxu0 0.0
      %2584 = vmatpush1.msra.mxu0 0.0
      %2585 = vmatprep.subr.mxu0 0.0
      %2586 = vmatpush1.msra.mxu0 0.0
      %2587 = vmatprep.subr.mxu0 0.0
      %2588 = vmatpush1.msra.mxu0 0.0
      %2589 = vmatprep.subr.mxu0 0.0
      %2590 = vmatpush1.msra.mxu0 0.0
      %2591 = vmatprep.subr.mxu0 0.0
      %2592 = vmatpush1.msra.mxu0 0.0
      %2593 = vmatprep.subr.mxu0 0.0
      %2594 = vmatpush1.msra.mxu0 0.0
      %2595 = vmatprep.subr.mxu0 0.0
      %2596 = vmatpush1.msra.mxu0 0.0
      %2597 = vmatprep.subr.mxu0 0.0
      %2598 = vmatpush1.msra.mxu0 0.0
      %2599 = vmatprep.subr.mxu0 0.0
      %2600 = vmatpush1.msra.mxu0 0.0
      %2601 = vmatprep.mubr.f32.mxu0 0.0
      %2602 = vmatmul.mubr.f32.gmra.mrb[0].mxu0 %v2446
      %v2603 = vpop.f32.mrb[0].mxu0
      %v2604 = vadd.f32 0.0, %v2603
      %v2605 = vpop.f32.mrb[0].mxu0
      %v2606 = vadd.f32 0.0, %v2605
      %2607 = vmatprep.mubr.f32.mxu0 0.0
      %2608 = vmatmul.mubr.f32.gmra.mrb[0].mxu0 %v2449
      %v2609 = vpop.f32.mrb[0].mxu0
      %v2610 = vadd.f32 0.0, %v2609
      %v2611 = vpop.f32.mrb[0].mxu0
      %v2612 = vadd.f32 0.0, %v2611
      %2613 = vmatprep.mubr.f32.mxu0 0.0
      %2614 = vmatmul.mubr.f32.gmra.mrb[0].mxu0 %v2452
      %v2615 = vpop.f32.mrb[0].mxu0
      %v2616 = vadd.f32 0.0, %v2615
      %v2617 = vpop.f32.mrb[0].mxu0
      %v2618 = vadd.f32 0.0, %v2617
      %2619 = vdwg.mxu0
      %2620 = vmatprep.subr.mxu0 %v1692
      %2621 = vmatpush1.msra.mxu0 %v1691
      %2622 = vmatprep.subr.mxu0 %v1700
      %2623 = vmatpush1.msra.mxu0 %v1699
      %2624 = vmatprep.subr.mxu0 0.0
      %2625 = vmatpush1.msra.mxu0 0.0
      %2626 = vmatprep.subr.mxu0 0.0
      %2627 = vmatpush1.msra.mxu0 0.0
      %2628 = vmatprep.subr.mxu0 0.0
      %2629 = vmatpush1.msra.mxu0 0.0
      %2630 = vmatprep.subr.mxu0 0.0
      %2631 = vmatpush1.msra.mxu0 0.0
      %2632 = vmatprep.subr.mxu0 0.0
      %2633 = vmatpush1.msra.mxu0 0.0
      %2634 = vmatprep.subr.mxu0 0.0
      %2635 = vmatpush1.msra.mxu0 0.0
      %2636 = vmatprep.subr.mxu0 0.0
      %2637 = vmatpush1.msra.mxu0 0.0
      %2638 = vmatprep.subr.mxu0 0.0
      %2639 = vmatpush1.msra.mxu0 0.0
      %2640 = vmatprep.subr.mxu0 0.0
      %2641 = vmatpush1.msra.mxu0 0.0
      %2642 = vmatprep.subr.mxu0 0.0
      %2643 = vmatpush1.msra.mxu0 0.0
      %2644 = vmatprep.subr.mxu0 0.0
      %2645 = vmatpush1.msra.mxu0 0.0
      %2646 = vmatprep.subr.mxu0 0.0
      %2647 = vmatpush1.msra.mxu0 0.0
      %2648 = vmatprep.subr.mxu0 0.0
      %2649 = vmatpush1.msra.mxu0 0.0
      %2650 = vmatprep.subr.mxu0 0.0
      %2651 = vmatpush1.msra.mxu0 0.0
      %2652 = vmatprep.subr.mxu0 0.0
      %2653 = vmatpush1.msra.mxu0 0.0
      %2654 = vmatprep.subr.mxu0 0.0
      %2655 = vmatpush1.msra.mxu0 0.0
      %2656 = vmatprep.subr.mxu0 0.0
      %2657 = vmatpush1.msra.mxu0 0.0
      %2658 = vmatprep.subr.mxu0 0.0
      %2659 = vmatpush1.msra.mxu0 0.0
      %2660 = vmatprep.subr.mxu0 0.0
      %2661 = vmatpush1.msra.mxu0 0.0
      %2662 = vmatprep.subr.mxu0 0.0
      %2663 = vmatpush1.msra.mxu0 0.0
      %2664 = vmatprep.subr.mxu0 0.0
      %2665 = vmatpush1.msra.mxu0 0.0
      %2666 = vmatprep.subr.mxu0 0.0
      %2667 = vmatpush1.msra.mxu0 0.0
      %2668 = vmatprep.subr.mxu0 0.0
      %2669 = vmatpush1.msra.mxu0 0.0
      %2670 = vmatprep.subr.mxu0 0.0
      %2671 = vmatpush1.msra.mxu0 0.0
      %2672 = vmatprep.subr.mxu0 0.0
      %2673 = vmatpush1.msra.mxu0 0.0
      %2674 = vmatprep.subr.mxu0 0.0
      %2675 = vmatpush1.msra.mxu0 0.0
      %2676 = vmatprep.subr.mxu0 0.0
      %2677 = vmatpush1.msra.mxu0 0.0
      %2678 = vmatprep.subr.mxu0 0.0
      %2679 = vmatpush1.msra.mxu0 0.0
      %2680 = vmatprep.subr.mxu0 0.0
      %2681 = vmatpush1.msra.mxu0 0.0
      %2682 = vmatprep.subr.mxu0 0.0
      %2683 = vmatpush1.msra.mxu0 0.0
      %2684 = vmatprep.mubr.f32.mxu0 0.0
      %2685 = vmatmul.mubr.f32.gmra.mrb[0].mxu0 %v2446
      %v2686 = vpop.f32.mrb[0].mxu0
      %v2687 = vadd.f32 0.0, %v2686
      %v2688 = vpop.f32.mrb[0].mxu0
      %v2689 = vadd.f32 0.0, %v2688
      %2690 = vmatprep.mubr.f32.mxu0 0.0
      %2691 = vmatmul.mubr.f32.gmra.mrb[0].mxu0 %v2449
      %v2692 = vpop.f32.mrb[0].mxu0
      %v2693 = vadd.f32 0.0, %v2692
      %v2694 = vpop.f32.mrb[0].mxu0
      %v2695 = vadd.f32 0.0, %v2694
      %2696 = vmatprep.mubr.f32.mxu0 0.0
      %2697 = vmatmul.mubr.f32.gmra.mrb[0].mxu0 %v2452
      %v2698 = vpop.f32.mrb[0].mxu0
      %v2699 = vadd.f32 0.0, %v2698
      %v2700 = vpop.f32.mrb[0].mxu0
      %v2701 = vadd.f32 0.0, %v2700
      %2702 = vdwg.mxu0
      %2703 = vmatprep.subr.mxu0 %v1694
      %2704 = vmatpush1.msra.mxu0 %v1693
      %2705 = vmatprep.subr.mxu0 %v1702
      %2706 = vmatpush1.msra.mxu0 %v1701
      %2707 = vmatprep.subr.mxu0 0.0
      %2708 = vmatpush1.msra.mxu0 0.0
      %2709 = vmatprep.subr.mxu0 0.0
      %2710 = vmatpush1.msra.mxu0 0.0
      %2711 = vmatprep.subr.mxu0 0.0
      %2712 = vmatpush1.msra.mxu0 0.0
      %2713 = vmatprep.subr.mxu0 0.0
      %2714 = vmatpush1.msra.mxu0 0.0
      %2715 = vmatprep.subr.mxu0 0.0
      %2716 = vmatpush1.msra.mxu0 0.0
      %2717 = vmatprep.subr.mxu0 0.0
      %2718 = vmatpush1.msra.mxu0 0.0
      %2719 = vmatprep.subr.mxu0 0.0
      %2720 = vmatpush1.msra.mxu0 0.0
      %2721 = vmatprep.subr.mxu0 0.0
      %2722 = vmatpush1.msra.mxu0 0.0
      %2723 = vmatprep.subr.mxu0 0.0
      %2724 = vmatpush1.msra.mxu0 0.0
      %2725 = vmatprep.subr.mxu0 0.0
      %2726 = vmatpush1.msra.mxu0 0.0
      %2727 = vmatprep.subr.mxu0 0.0
      %2728 = vmatpush1.msra.mxu0 0.0
      %2729 = vmatprep.subr.mxu0 0.0
      %2730 = vmatpush1.msra.mxu0 0.0
      %2731 = vmatprep.subr.mxu0 0.0
      %2732 = vmatpush1.msra.mxu0 0.0
      %2733 = vmatprep.subr.mxu0 0.0
      %2734 = vmatpush1.msra.mxu0 0.0
      %2735 = vmatprep.subr.mxu0 0.0
      %2736 = vmatpush1.msra.mxu0 0.0
      %2737 = vmatprep.subr.mxu0 0.0
      %2738 = vmatpush1.msra.mxu0 0.0
      %2739 = vmatprep.subr.mxu0 0.0
      %2740 = vmatpush1.msra.mxu0 0.0
      %2741 = vmatprep.subr.mxu0 0.0
      %2742 = vmatpush1.msra.mxu0 0.0
      %2743 = vmatprep.subr.mxu0 0.0
      %2744 = vmatpush1.msra.mxu0 0.0
      %2745 = vmatprep.subr.mxu0 0.0
      %2746 = vmatpush1.msra.mxu0 0.0
      %2747 = vmatprep.subr.mxu0 0.0
      %2748 = vmatpush1.msra.mxu0 0.0
      %2749 = vmatprep.subr.mxu0 0.0
      %2750 = vmatpush1.msra.mxu0 0.0
      %2751 = vmatprep.subr.mxu0 0.0
      %2752 = vmatpush1.msra.mxu0 0.0
      %2753 = vmatprep.subr.mxu0 0.0
      %2754 = vmatpush1.msra.mxu0 0.0
      %2755 = vmatprep.subr.mxu0 0.0
      %2756 = vmatpush1.msra.mxu0 0.0
      %2757 = vmatprep.subr.mxu0 0.0
      %2758 = vmatpush1.msra.mxu0 0.0
      %2759 = vmatprep.subr.mxu0 0.0
      %2760 = vmatpush1.msra.mxu0 0.0
      %2761 = vmatprep.subr.mxu0 0.0
      %2762 = vmatpush1.msra.mxu0 0.0
      %2763 = vmatprep.subr.mxu0 0.0
      %2764 = vmatpush1.msra.mxu0 0.0
      %2765 = vmatprep.subr.mxu0 0.0
      %2766 = vmatpush1.msra.mxu0 0.0
      %2767 = vmatprep.mubr.f32.mxu0 0.0
      %2768 = vmatmul.mubr.f32.gmra.mrb[0].mxu0 %v2446
      %v2769 = vpop.f32.mrb[0].mxu0
      %v2770 = vadd.f32 0.0, %v2769
      %v2771 = vpop.f32.mrb[0].mxu0
      %v2772 = vadd.f32 0.0, %v2771
      %2773 = vmatprep.mubr.f32.mxu0 0.0
      %2774 = vmatmul.mubr.f32.gmra.mrb[0].mxu0 %v2449
      %v2775 = vpop.f32.mrb[0].mxu0
      %v2776 = vadd.f32 0.0, %v2775
      %v2777 = vpop.f32.mrb[0].mxu0
      %v2778 = vadd.f32 0.0, %v2777
      %2779 = vmatprep.mubr.f32.mxu0 0.0
      %2780 = vmatmul.mubr.f32.gmra.mrb[0].mxu0 %v2452
      %v2781 = vpop.f32.mrb[0].mxu0
      %v2782 = vadd.f32 0.0, %v2781
      %v2783 = vpop.f32.mrb[0].mxu0
      %v2784 = vadd.f32 0.0, %v2783
      %2785 = vdwg.mxu0
      %v2786 = vadd.f32 %v2160, %v2521
      %v2787 = vadd.f32 %v2162, %v2523
      %v2788 = vadd.f32 %v2243, %v2604
      %v2789 = vadd.f32 %v2245, %v2606
      %v2790 = vadd.f32 %v2326, %v2687
      %v2791 = vadd.f32 %v2328, %v2689
      %v2792 = vadd.f32 %v2409, %v2770
      %v2793 = vadd.f32 %v2411, %v2772
      %v2794 = vadd.f32 %v2166, %v2527
      %v2795 = vadd.f32 %v2168, %v2529
      %v2796 = vadd.f32 %v2249, %v2610
      %v2797 = vadd.f32 %v2251, %v2612
      %v2798 = vadd.f32 %v2332, %v2693
      %v2799 = vadd.f32 %v2334, %v2695
      %v2800 = vadd.f32 %v2415, %v2776
      %v2801 = vadd.f32 %v2417, %v2778
      %v2802 = vadd.f32 %v2172, %v2533
      %v2803 = vadd.f32 %v2174, %v2535
      %v2804 = vadd.f32 %v2255, %v2616
      %v2805 = vadd.f32 %v2257, %v2618
      %v2806 = vadd.f32 %v2338, %v2699
      %v2807 = vadd.f32 %v2340, %v2701
      %v2808 = vadd.f32 %v2421, %v2782
      %v2809 = vadd.f32 %v2423, %v2784
      %v2810 = vmul.f32 %v2786, %v2786
      %v2811 = vmul.f32 %v2787, %v2787
      %v2812 = vmul.f32 %v2788, %v2788
      %v2813 = vmul.f32 %v2789, %v2789
      %v2814 = vmul.f32 %v2790, %v2790
      %v2815 = vmul.f32 %v2791, %v2791
      %v2816 = vmul.f32 %v2792, %v2792
      %v2817 = vmul.f32 %v2793, %v2793
      %v2818 = vmul.f32 %v2794, %v2794
      %v2819 = vmul.f32 %v2795, %v2795
      %v2820 = vmul.f32 %v2796, %v2796
      %v2821 = vmul.f32 %v2797, %v2797
      %v2822 = vmul.f32 %v2798, %v2798
      %v2823 = vmul.f32 %v2799, %v2799
      %v2824 = vmul.f32 %v2800, %v2800
      %v2825 = vmul.f32 %v2801, %v2801
      %v2826 = vadd.f32 %v2810, %v2818
      %v2827 = vadd.f32 %v2811, %v2819
      %v2828 = vadd.f32 %v2812, %v2820
      %v2829 = vadd.f32 %v2813, %v2821
      %v2830 = vadd.f32 %v2814, %v2822
      %v2831 = vadd.f32 %v2815, %v2823
      %v2832 = vadd.f32 %v2816, %v2824
      %v2833 = vadd.f32 %v2817, %v2825
      %v2834 = vmul.f32 %v2802, %v2802
      %v2835 = vmul.f32 %v2803, %v2803
      %v2836 = vmul.f32 %v2804, %v2804
      %v2837 = vmul.f32 %v2805, %v2805
      %v2838 = vmul.f32 %v2806, %v2806
      %v2839 = vmul.f32 %v2807, %v2807
      %v2840 = vmul.f32 %v2808, %v2808
      %v2841 = vmul.f32 %v2809, %v2809
      %v2842 = vadd.f32 %v2826, %v2834
      %v2843 = vadd.f32 %v2827, %v2835
      %v2844 = vadd.f32 %v2828, %v2836
      %v2845 = vadd.f32 %v2829, %v2837
      %v2846 = vadd.f32 %v2830, %v2838
      %v2847 = vadd.f32 %v2831, %v2839
      %v2848 = vadd.f32 %v2832, %v2840
      %v2849 = vadd.f32 %v2833, %v2841
      %v2850 = vrsqrt.pop %v2842
      %v2851 = vmul.f32 %v2842, %v2850
      %vm2852 = vcmp.eq.f32.partialorder %v2842, inf
      %v2853 = vsel %vm2852, %v2842, %v2851
      %vm2854 = vcmp.eq.f32.partialorder %v2842, 0.0
      %v2855 = vand.u32 %v2842, 2147483648
      %v2856 = vsel %vm2854, %v2855, %v2853
      %v2857 = vrsqrt.pop %v2843
      %v2858 = vmul.f32 %v2843, %v2857
      %vm2859 = vcmp.eq.f32.partialorder %v2843, inf
      %v2860 = vsel %vm2859, %v2843, %v2858
      %vm2861 = vcmp.eq.f32.partialorder %v2843, 0.0
      %v2862 = vand.u32 %v2843, 2147483648
      %v2863 = vsel %vm2861, %v2862, %v2860
      %v2864 = vrsqrt.pop %v2844
      %v2865 = vmul.f32 %v2844, %v2864
      %vm2866 = vcmp.eq.f32.partialorder %v2844, inf
      %v2867 = vsel %vm2866, %v2844, %v2865
      %vm2868 = vcmp.eq.f32.partialorder %v2844, 0.0
      %v2869 = vand.u32 %v2844, 2147483648
      %v2870 = vsel %vm2868, %v2869, %v2867
      %v2871 = vrsqrt.pop %v2845
      %v2872 = vmul.f32 %v2845, %v2871
      %vm2873 = vcmp.eq.f32.partialorder %v2845, inf
      %v2874 = vsel %vm2873, %v2845, %v2872
      %vm2875 = vcmp.eq.f32.partialorder %v2845, 0.0
      %v2876 = vand.u32 %v2845, 2147483648
      %v2877 = vsel %vm2875, %v2876, %v2874
      %v2878 = vrsqrt.pop %v2846
      %v2879 = vmul.f32 %v2846, %v2878
      %vm2880 = vcmp.eq.f32.partialorder %v2846, inf
      %v2881 = vsel %vm2880, %v2846, %v2879
      %vm2882 = vcmp.eq.f32.partialorder %v2846, 0.0
      %v2883 = vand.u32 %v2846, 2147483648
      %v2884 = vsel %vm2882, %v2883, %v2881
      %v2885 = vrsqrt.pop %v2847
      %v2886 = vmul.f32 %v2847, %v2885
      %vm2887 = vcmp.eq.f32.partialorder %v2847, inf
      %v2888 = vsel %vm2887, %v2847, %v2886
      %vm2889 = vcmp.eq.f32.partialorder %v2847, 0.0
      %v2890 = vand.u32 %v2847, 2147483648
      %v2891 = vsel %vm2889, %v2890, %v2888
      %v2892 = vrsqrt.pop %v2848
      %v2893 = vmul.f32 %v2848, %v2892
      %vm2894 = vcmp.eq.f32.partialorder %v2848, inf
      %v2895 = vsel %vm2894, %v2848, %v2893
      %vm2896 = vcmp.eq.f32.partialorder %v2848, 0.0
      %v2897 = vand.u32 %v2848, 2147483648
      %v2898 = vsel %vm2896, %v2897, %v2895
      %v2899 = vrsqrt.pop %v2849
      %v2900 = vmul.f32 %v2849, %v2899
      %vm2901 = vcmp.eq.f32.partialorder %v2849, inf
      %v2902 = vsel %vm2901, %v2849, %v2900
      %vm2903 = vcmp.eq.f32.partialorder %v2849, 0.0
      %v2904 = vand.u32 %v2849, 2147483648
      %v2905 = vsel %vm2903, %v2904, %v2902
      %v2906 = vadd.f32 %v2856, %v2863
      %v2907 = vadd.f32 %v2906, %v2870
      %v2908 = vadd.f32 %v2907, %v2877
      %v2909 = vadd.f32 %v2908, %v2884
      %v2910 = vadd.f32 %v2909, %v2891
      %v2911 = vadd.f32 %v2910, %v2898
      %v2912 = vadd.f32 %v2911, %v2905
      %2913 = vadd.xlane.f32.xlu0 %v2912
      %v2914 = vpop.xlane.xlu0 %2913
      %v2915 = vmul.f32 %v2856, %v2856
      %v2916 = vmul.f32 %v2863, %v2863
      %v2917 = vmul.f32 %v2870, %v2870
      %v2918 = vmul.f32 %v2877, %v2877
      %v2919 = vmul.f32 %v2884, %v2884
      %v2920 = vmul.f32 %v2891, %v2891
      %v2921 = vmul.f32 %v2898, %v2898
      %v2922 = vmul.f32 %v2905, %v2905
      %v2923 = vadd.f32 %v2915, %v2916
      %v2924 = vadd.f32 %v2923, %v2917
      %v2925 = vadd.f32 %v2924, %v2918
      %v2926 = vadd.f32 %v2925, %v2919
      %v2927 = vadd.f32 %v2926, %v2920
      %v2928 = vadd.f32 %v2927, %v2921
      %v2929 = vadd.f32 %v2928, %v2922
      %2930 = vadd.xlane.f32.xlu0 %v2929
      %v2931 = vpop.xlane.xlu0 %2930
      %vm2932 = vcmask 7168
      %2933 = vst.msk [vmem:[%s313] sm:$0xff] %vm2932, %v2914
      %2934 = vst.msk [vmem:[%s313 + $0x8] sm:$0xff] %vm2932, %v2931
      %s2935 = smul.u32 8, %s22
      %p2936 = scmp.lt.s32.totalorder %s23, 1
      %s2937 = scalar_select %p2936, %s23, 1
      %p2938 = scmp.lt.s32.totalorder %s2935, 7
      %s2939 = scalar_select %p2938, %s2935, 7
      %s2940 = smul.addr %s2937, 48
      %s2941 = sadd.s32 %s2939, %s2940
      %s2942 = smul.addr %s2941, 8
      %s2943 = scalar_lea.vmem %s5, %s2942
      %p2944 = scmp.lt.s32.totalorder %s23, 1
      %s2945 = scalar_select %p2944, %s23, 1
      %p2946 = scmp.lt.s32.totalorder %s22, 0
      %s2947 = scalar_select %p2946, %s22, 0
      %s2948 = smul.addr %s2947, 2
      %s2949 = smul.addr %s2945, 2
      %s2950 = sadd.s32 %s2948, %s2949
      %s2951 = smul.addr %s2950, 8
      %s2952 = scalar_lea.vmem %s6, %s2951
      // Predicated region
      $region41: #{vn_std_feature.4} parent=39 // pred_check
        %p2953 = pneg %p162
      $region42: #{vn_std_feature.4} parent=39 // pred_check_branch
        %2955 = sbr.rel (%p2953) target = $region44
      $region43: #{vn_std_feature.4} parent=39 // pred_region
        %s2956 = smul.u32 8, %s22
      $region44: #{vn_std_feature.4} parent=39 // pred_fallthru
        _
      // Predicated region
      $region45: #{vn_std_feature.4} parent=39 // pred_check
        %p2957 = pneg %p190
      $region46: #{vn_std_feature.4} parent=39 // pred_check_branch
        %2959 = sbr.rel (%p2957) target = $region48
      $region47: #{vn_std_feature.4} parent=39 // pred_region
        _
      $region48: #{vn_std_feature.4} parent=39 // pred_fallthru
        _
    $region40: #{vn_std_feature.4} parent=5 // pred_fallthru
      _
    %p2960 = scmp.le.s32.totalorder 2, %s13
    // Predicated region
    $region49: #{vn_std_feature.4} parent=5 // pred_check
      %p2961 = pneg %p2960
    $region50: #{vn_std_feature.4} parent=5 // pred_check_branch
      %2963 = sbr.rel (%p2961) target = $region52
    $region51: #{vn_std_feature.4} parent=5 // pred_region
      %s2964 = ssub.s32 %s13, 2
      // Predicated region
      $region53: #{vn_std_feature.4} parent=51 // pred_check
        %p2965 = pneg %p168
      $region54: #{vn_std_feature.4} parent=51 // pred_check_branch
        %2967 = sbr.rel (%p2965) target = $region56
      $region55: #{vn_std_feature.4} parent=51 // pred_region
        %s2968 = smul.u32 8, %s24
        %p2969 = scmp.lt.s32.totalorder %s25, 1
        %s2970 = scalar_select %p2969, %s25, 1
        %p2971 = scmp.lt.s32.totalorder %s2968, 7
        %s2972 = scalar_select %p2971, %s2968, 7
        %s2973 = smul.addr %s2970, 48
        %s2974 = sadd.s32 %s2972, %s2973
        %s2975 = smul.addr %s2974, 8
        %s2976 = scalar_lea.vmem %s5, %s2975
      $region56: #{vn_std_feature.4} parent=51 // pred_fallthru
        _
      // Predicated region
      $region57: #{vn_std_feature.4} parent=51 // pred_check
        %p2977 = pneg %p196
      $region58: #{vn_std_feature.4} parent=51 // pred_check_branch
        %2979 = sbr.rel (%p2977) target = $region60
      $region59: #{vn_std_feature.4} parent=51 // pred_region
        %p2980 = scmp.lt.s32.totalorder %s25, 1
        %s2981 = scalar_select %p2980, %s25, 1
        %p2982 = scmp.lt.s32.totalorder %s24, 0
        %s2983 = scalar_select %p2982, %s24, 0
        %s2984 = smul.addr %s2983, 2
        %s2985 = smul.addr %s2981, 2
        %s2986 = sadd.s32 %s2984, %s2985
        %s2987 = smul.addr %s2986, 8
        %s2988 = scalar_lea.vmem %s6, %s2987
      $region60: #{vn_std_feature.4} parent=51 // pred_fallthru
        _
    $region52: #{vn_std_feature.4} parent=5 // pred_fallthru
      _
  $region6: #{vn_std_feature.4} parent=0 // loop_footer
    %s17 = sadd.s32 1, %s13
  $region7: #{vn_std_feature.4} parent=0 // loop_footer_branch
    %12 = sbr.rel target = $region3
  $region8: #{vn_std_feature.4} parent=0 // loop_exit
    _

// kernel: vn_std_feature.5
$region0: #{vn_std_feature.5}
  #allocation0 [shape = 'u32[]', space=smem, size = 0x4, offset = 0x4, fixed_abs, tag = 'smem constant byte address 0x4 - core index']
  #allocation1 [shape = 'u32[144,128]{1,0:T(1,128)}', space=vmem, size = 0x12000, scoped, tag = 'internal scratch']
  %s0 = inlined_call_operand.vmem [shape: f32[2,96,1024], index: 0, kind: input, shape index: {}]
  %s1 = inlined_call_operand.vmem [shape: f32[2,48,1024], index: 1, kind: input, shape index: {}]
  %s2 = inlined_call_operand.vmem [shape: f32[48,48], index: 2, kind: input, shape index: {}]
  %s3 = inlined_call_operand.vmem [shape: f32[8,1], index: 3, kind: input, shape index: {}]
  %s4 = inlined_call_operand.vmem [shape: f32[8,1], index: 4, kind: input, shape index: {}]
  %s5 = inlined_call_operand.vmem [shape: f32[3,16,8], index: 5, kind: input, shape index: {}]
  %s6 = inlined_call_operand.vmem [shape: f32[3,96,96], index: 6, kind: input, shape index: {}]
  %s7 = inlined_call_operand.vmem [shape: f32[3,96,16], index: 7, kind: input, shape index: {}]
  %s8 = inlined_call_operand.vmem [shape: f32[2,96,1024], index: 8, kind: output, shape index: {0}]
  %s9 = inlined_call_operand.vmem [shape: f32[2,16,1024], index: 9, kind: output, shape index: {1}]
  %10 = xla_tuple %s8, %s9
  %s11 = sld [smem:[#allocation0]]
  $region73: #{vn_std_feature.5} parent=0
    _
  %s13 = ssub.s32 1, %s11
  %s14 = scalar_select 0, %s13, %s11
  loop: start=0, step=1, limit=4
  $region2: #{vn_std_feature.5} parent=0 // loop_pre_header
    _
  $region3: #{vn_std_feature.5} parent=0 // loop_header
    %s16 = sphi 0, %s20
    %p17 = scmp.ge.s32.totalorder %s16, 4
    %s23 = sphi 0, %s35
    %s24 = sphi 0, %s31
    %s25 = sphi 0, %s23
    %s26 = sphi 0, %s24
    %s27 = sphi 0, %s25
    %s28 = sphi 0, %s26
    %s40 = sphi 0, %s42
    %s43 = sphi 0, %s40
    %s44 = sphi 0, %s43
    %s60 = sphi 0, %s44
    %s68 = sphi 0, %s70
    %s71 = sphi 0, %s68
    %s72 = sphi 0, %s71
    %s88 = sphi 0, %s72
    %s92 = sphi 0, %s92
    %s94 = sphi 0, %s92
    %s95 = sphi 0, %s94
    %s109 = sphi 0, %s95
    %s113 = sphi 0, %s113
    %s115 = sphi 0, %s113
    %s116 = sphi 0, %s115
    %s130 = sphi 0, %s116
    %s134 = sphi 0, %s134
    %s136 = sphi 0, %s134
    %s137 = sphi 0, %s136
    %s151 = sphi 0, %s137
    %s155 = sphi 0, %s155
    %s157 = sphi 0, %s155
    %s158 = sphi 0, %s157
    %s172 = sphi 0, %s158
    %s176 = sphi 0, %s176
    %s178 = sphi 0, %s176
    %s179 = sphi 0, %s178
    %s193 = sphi 0, %s179
    %s197 = sphi 0, %s197
    %s199 = sphi 0, %s197
    %s200 = sphi 0, %s199
    %s214 = sphi 0, %s200
    %s222 = sphi 0, %s224
    %s225 = sphi 0, %s222
    %s226 = sphi 0, %s225
    %s242 = sphi 0, %s226
    %s250 = sphi 0, %s252
    %s253 = sphi 0, %s250
    %s254 = sphi 0, %s253
    %s270 = sphi 0, %s254
  $region4: #{vn_std_feature.5} parent=0 // loop_header_branch
    %19 = sbr.rel (%p17) target = $region8
  $region5: #{vn_std_feature.5} parent=0 // loop_body
    %s21 = ssub.s32 %s16, 1
    %s22 = ssub.s32 %s16, 2
    %s29 = sadd.s32 1, %s24
    %p30 = scmp.ge.s32.totalorder %s29, 2
    %s31 = scalar_select %p30, 0, %s29
    %s32 = sadd.s32 1, %s23
    %s33 = scalar_select %p30, %s32, %s23
    %p34 = scmp.ge.s32.totalorder %s33, 1
    %s35 = scalar_select %p34, 0, %s33
    %s36 = ssub.s32 %s24, %s31
    %s37 = ssub.s32 %s23, %s35
    %s38 = sor.u32 %s36, %s37
    %p39 = scmp.eq.s32.totalorder %s38, 0
    %s41 = sadd.s32 %s40, 1
    %s42 = scalar_select %p39, %s40, %s41
    %p45 = pneg %p39
    %p46 = scmp.eq.s32.totalorder %s16, 1
    %p47 = por %p45, %p46
    %p48 = scmp.ne.s32.totalorder %s40, %s43
    %p49 = scmp.eq.s32.totalorder %s16, 0
    %p50 = por %p48, %p49
    %p51 = scmp.ne.s32.totalorder %s40, %s43
    %p52 = scmp.eq.s32.totalorder %s21, 1
    %p53 = por %p51, %p52
    %p54 = scmp.ne.s32.totalorder %s43, %s44
    %p55 = scmp.eq.s32.totalorder %s21, 0
    %p56 = por %p54, %p55
    %p57 = scmp.ne.s32.totalorder %s43, %s44
    %p58 = scmp.eq.s32.totalorder %s22, 1
    %p59 = por %p57, %p58
    %p61 = scmp.ne.s32.totalorder %s44, %s60
    %p62 = scmp.eq.s32.totalorder %s22, 0
    %p63 = por %p61, %p62
    %s64 = ssub.s32 %s24, %s31
    %s65 = ssub.s32 %s23, %s35
    %s66 = sor.u32 %s64, %s65
    %p67 = scmp.eq.s32.totalorder %s66, 0
    %s69 = sadd.s32 %s68, 1
    %s70 = scalar_select %p67, %s68, %s69
    %p73 = pneg %p67
    %p74 = scmp.eq.s32.totalorder %s16, 1
    %p75 = por %p73, %p74
    %p76 = scmp.ne.s32.totalorder %s68, %s71
    %p77 = scmp.eq.s32.totalorder %s16, 0
    %p78 = por %p76, %p77
    %p79 = scmp.ne.s32.totalorder %s68, %s71
    %p80 = scmp.eq.s32.totalorder %s21, 1
    %p81 = por %p79, %p80
    %p82 = scmp.ne.s32.totalorder %s71, %s72
    %p83 = scmp.eq.s32.totalorder %s21, 0
    %p84 = por %p82, %p83
    %p85 = scmp.ne.s32.totalorder %s71, %s72
    %p86 = scmp.eq.s32.totalorder %s22, 1
    %p87 = por %p85, %p86
    %p89 = scmp.ne.s32.totalorder %s72, %s88
    %p90 = scmp.eq.s32.totalorder %s22, 0
    %p91 = por %p89, %p90
    %s93 = sadd.s32 %s92, 1
    %p96 = scmp.eq.s32.totalorder %s16, 1
    %p97 = scmp.ne.s32.totalorder %s92, %s94
    %p98 = scmp.eq.s32.totalorder %s16, 0
    %p99 = por %p97, %p98
    %p100 = scmp.ne.s32.totalorder %s92, %s94
    %p101 = scmp.eq.s32.totalorder %s21, 1
    %p102 = por %p100, %p101
    %p103 = scmp.ne.s32.totalorder %s94, %s95
    %p104 = scmp.eq.s32.totalorder %s21, 0
    %p105 = por %p103, %p104
    %p106 = scmp.ne.s32.totalorder %s94, %s95
    %p107 = scmp.eq.s32.totalorder %s22, 1
    %p108 = por %p106, %p107
    %p110 = scmp.ne.s32.totalorder %s95, %s109
    %p111 = scmp.eq.s32.totalorder %s22, 0
    %p112 = por %p110, %p111
    %s114 = sadd.s32 %s113, 1
    %p117 = scmp.eq.s32.totalorder %s16, 1
    %p118 = scmp.ne.s32.totalorder %s113, %s115
    %p119 = scmp.eq.s32.totalorder %s16, 0
    %p120 = por %p118, %p119
    %p121 = scmp.ne.s32.totalorder %s113, %s115
    %p122 = scmp.eq.s32.totalorder %s21, 1
    %p123 = por %p121, %p122
    %p124 = scmp.ne.s32.totalorder %s115, %s116
    %p125 = scmp.eq.s32.totalorder %s21, 0
    %p126 = por %p124, %p125
    %p127 = scmp.ne.s32.totalorder %s115, %s116
    %p128 = scmp.eq.s32.totalorder %s22, 1
    %p129 = por %p127, %p128
    %p131 = scmp.ne.s32.totalorder %s116, %s130
    %p132 = scmp.eq.s32.totalorder %s22, 0
    %p133 = por %p131, %p132
    %s135 = sadd.s32 %s134, 1
    %p138 = scmp.eq.s32.totalorder %s16, 1
    %p139 = scmp.ne.s32.totalorder %s134, %s136
    %p140 = scmp.eq.s32.totalorder %s16, 0
    %p141 = por %p139, %p140
    %p142 = scmp.ne.s32.totalorder %s134, %s136
    %p143 = scmp.eq.s32.totalorder %s21, 1
    %p144 = por %p142, %p143
    %p145 = scmp.ne.s32.totalorder %s136, %s137
    %p146 = scmp.eq.s32.totalorder %s21, 0
    %p147 = por %p145, %p146
    %p148 = scmp.ne.s32.totalorder %s136, %s137
    %p149 = scmp.eq.s32.totalorder %s22, 1
    %p150 = por %p148, %p149
    %p152 = scmp.ne.s32.totalorder %s137, %s151
    %p153 = scmp.eq.s32.totalorder %s22, 0
    %p154 = por %p152, %p153
    %s156 = sadd.s32 %s155, 1
    %p159 = scmp.eq.s32.totalorder %s16, 1
    %p160 = scmp.ne.s32.totalorder %s155, %s157
    %p161 = scmp.eq.s32.totalorder %s16, 0
    %p162 = por %p160, %p161
    %p163 = scmp.ne.s32.totalorder %s155, %s157
    %p164 = scmp.eq.s32.totalorder %s21, 1
    %p165 = por %p163, %p164
    %p166 = scmp.ne.s32.totalorder %s157, %s158
    %p167 = scmp.eq.s32.totalorder %s21, 0
    %p168 = por %p166, %p167
    %p169 = scmp.ne.s32.totalorder %s157, %s158
    %p170 = scmp.eq.s32.totalorder %s22, 1
    %p171 = por %p169, %p170
    %p173 = scmp.ne.s32.totalorder %s158, %s172
    %p174 = scmp.eq.s32.totalorder %s22, 0
    %p175 = por %p173, %p174
    %s177 = sadd.s32 %s176, 1
    %p180 = scmp.eq.s32.totalorder %s16, 1
    %p181 = scmp.ne.s32.totalorder %s176, %s178
    %p182 = scmp.eq.s32.totalorder %s16, 0
    %p183 = por %p181, %p182
    %p184 = scmp.ne.s32.totalorder %s176, %s178
    %p185 = scmp.eq.s32.totalorder %s21, 1
    %p186 = por %p184, %p185
    %p187 = scmp.ne.s32.totalorder %s178, %s179
    %p188 = scmp.eq.s32.totalorder %s21, 0
    %p189 = por %p187, %p188
    %p190 = scmp.ne.s32.totalorder %s178, %s179
    %p191 = scmp.eq.s32.totalorder %s22, 1
    %p192 = por %p190, %p191
    %p194 = scmp.ne.s32.totalorder %s179, %s193
    %p195 = scmp.eq.s32.totalorder %s22, 0
    %p196 = por %p194, %p195
    %s198 = sadd.s32 %s197, 1
    %p201 = scmp.eq.s32.totalorder %s16, 1
    %p202 = scmp.ne.s32.totalorder %s197, %s199
    %p203 = scmp.eq.s32.totalorder %s16, 0
    %p204 = por %p202, %p203
    %p205 = scmp.ne.s32.totalorder %s197, %s199
    %p206 = scmp.eq.s32.totalorder %s21, 1
    %p207 = por %p205, %p206
    %p208 = scmp.ne.s32.totalorder %s199, %s200
    %p209 = scmp.eq.s32.totalorder %s21, 0
    %p210 = por %p208, %p209
    %p211 = scmp.ne.s32.totalorder %s199, %s200
    %p212 = scmp.eq.s32.totalorder %s22, 1
    %p213 = por %p211, %p212
    %p215 = scmp.ne.s32.totalorder %s200, %s214
    %p216 = scmp.eq.s32.totalorder %s22, 0
    %p217 = por %p215, %p216
    %s218 = ssub.s32 %s24, %s31
    %s219 = ssub.s32 %s23, %s35
    %s220 = sor.u32 %s218, %s219
    %p221 = scmp.eq.s32.totalorder %s220, 0
    %s223 = sadd.s32 %s222, 1
    %s224 = scalar_select %p221, %s222, %s223
    %p227 = pneg %p221
    %p228 = scmp.eq.s32.totalorder %s16, 1
    %p229 = por %p227, %p228
    %p230 = scmp.ne.s32.totalorder %s222, %s225
    %p231 = scmp.eq.s32.totalorder %s16, 0
    %p232 = por %p230, %p231
    %p233 = scmp.ne.s32.totalorder %s222, %s225
    %p234 = scmp.eq.s32.totalorder %s21, 1
    %p235 = por %p233, %p234
    %p236 = scmp.ne.s32.totalorder %s225, %s226
    %p237 = scmp.eq.s32.totalorder %s21, 0
    %p238 = por %p236, %p237
    %p239 = scmp.ne.s32.totalorder %s225, %s226
    %p240 = scmp.eq.s32.totalorder %s22, 1
    %p241 = por %p239, %p240
    %p243 = scmp.ne.s32.totalorder %s226, %s242
    %p244 = scmp.eq.s32.totalorder %s22, 0
    %p245 = por %p243, %p244
    %s246 = ssub.s32 %s24, %s31
    %s247 = ssub.s32 %s23, %s35
    %s248 = sor.u32 %s246, %s247
    %p249 = scmp.eq.s32.totalorder %s248, 0
    %s251 = sadd.s32 %s250, 1
    %s252 = scalar_select %p249, %s250, %s251
    %p255 = pneg %p249
    %p256 = scmp.eq.s32.totalorder %s16, 1
    %p257 = por %p255, %p256
    %p258 = scmp.ne.s32.totalorder %s250, %s253
    %p259 = scmp.eq.s32.totalorder %s16, 0
    %p260 = por %p258, %p259
    %p261 = scmp.ne.s32.totalorder %s250, %s253
    %p262 = scmp.eq.s32.totalorder %s21, 1
    %p263 = por %p261, %p262
    %p264 = scmp.ne.s32.totalorder %s253, %s254
    %p265 = scmp.eq.s32.totalorder %s21, 0
    %p266 = por %p264, %p265
    %p267 = scmp.ne.s32.totalorder %s253, %s254
    %p268 = scmp.eq.s32.totalorder %s22, 1
    %p269 = por %p267, %p268
    %p271 = scmp.ne.s32.totalorder %s254, %s270
    %p272 = scmp.eq.s32.totalorder %s22, 0
    %p273 = por %p271, %p272
    %p274 = scmp.le.s32.totalorder 1, %s16
    %p275 = scmp.lt.s32.totalorder %s16, 3
    %p276 = pnand %p274, %p275
    %p277 = pneg %p276
    // Predicated region
    $region9: #{vn_std_feature.5} parent=5 // pred_check
      _
    $region10: #{vn_std_feature.5} parent=5 // pred_check_branch
      %279 = sbr.rel (%p276) target = $region12
    $region11: #{vn_std_feature.5} parent=5 // pred_region
      %s280 = ssub.s32 %s16, 1
      // Predicated region
      $region13: #{vn_std_feature.5} parent=11 // pred_check
        %p281 = pneg %p105
      $region14: #{vn_std_feature.5} parent=11 // pred_check_branch
        %283 = sbr.rel (%p281) target = $region16
      $region15: #{vn_std_feature.5} parent=11 // pred_region
        _
      $region16: #{vn_std_feature.5} parent=11 // pred_fallthru
        _
      // Predicated region
      $region17: #{vn_std_feature.5} parent=11 // pred_check
        %p284 = pneg %p126
      $region18: #{vn_std_feature.5} parent=11 // pred_check_branch
        %286 = sbr.rel (%p284) target = $region20
      $region19: #{vn_std_feature.5} parent=11 // pred_region
        _
      $region20: #{vn_std_feature.5} parent=11 // pred_fallthru
        _
      // Predicated region
      $region21: #{vn_std_feature.5} parent=11 // pred_check
        %p287 = pneg %p147
      $region22: #{vn_std_feature.5} parent=11 // pred_check_branch
        %289 = sbr.rel (%p287) target = $region24
      $region23: #{vn_std_feature.5} parent=11 // pred_region
        _
      $region24: #{vn_std_feature.5} parent=11 // pred_fallthru
        _
      // Predicated region
      $region25: #{vn_std_feature.5} parent=11 // pred_check
        %p290 = pneg %p168
      $region26: #{vn_std_feature.5} parent=11 // pred_check_branch
        %292 = sbr.rel (%p290) target = $region28
      $region27: #{vn_std_feature.5} parent=11 // pred_region
        _
      $region28: #{vn_std_feature.5} parent=11 // pred_fallthru
        _
      // Predicated region
      $region29: #{vn_std_feature.5} parent=11 // pred_check
        %p293 = pneg %p189
      $region30: #{vn_std_feature.5} parent=11 // pred_check_branch
        %295 = sbr.rel (%p293) target = $region32
      $region31: #{vn_std_feature.5} parent=11 // pred_region
        _
      $region32: #{vn_std_feature.5} parent=11 // pred_fallthru
        _
      // Predicated region
      $region33: #{vn_std_feature.5} parent=11 // pred_check
        %p296 = pneg %p210
      $region34: #{vn_std_feature.5} parent=11 // pred_check_branch
        %298 = sbr.rel (%p296) target = $region36
      $region35: #{vn_std_feature.5} parent=11 // pred_region
        _
      $region36: #{vn_std_feature.5} parent=11 // pred_fallthru
        _
    $region12: #{vn_std_feature.5} parent=5 // pred_fallthru
      _
    %p299 = scmp.lt.s32.totalorder %s16, 2
    // Predicated region
    $region37: #{vn_std_feature.5} parent=5 // pred_check
      %p300 = pneg %p299
    $region38: #{vn_std_feature.5} parent=5 // pred_check_branch
      %302 = sbr.rel (%p300) target = $region40
    $region39: #{vn_std_feature.5} parent=5 // pred_region
      // Predicated region
      $region41: #{vn_std_feature.5} parent=39 // pred_check
        %p303 = pneg %p50
      $region42: #{vn_std_feature.5} parent=39 // pred_check_branch
        %305 = sbr.rel (%p303) target = $region44
      $region43: #{vn_std_feature.5} parent=39 // pred_region
        %s306 = smul.u32 8, %s23
        %p307 = scmp.lt.s32.totalorder %s24, 1
        %s308 = scalar_select %p307, %s24, 1
        %p309 = scmp.lt.s32.totalorder %s306, 7
        %s310 = scalar_select %p309, %s306, 7
        %s311 = smul.addr %s308, 96
        %s312 = sadd.s32 %s310, %s311
        %s313 = smul.addr %s312, 8
        %s314 = scalar_lea.vmem %s0, %s313
        %s315 = smul.u32 8, %s23
      $region44: #{vn_std_feature.5} parent=39 // pred_fallthru
        _
      // Predicated region
      $region45: #{vn_std_feature.5} parent=39 // pred_check
        %p316 = pneg %p78
      $region46: #{vn_std_feature.5} parent=39 // pred_check_branch
        %318 = sbr.rel (%p316) target = $region48
      $region47: #{vn_std_feature.5} parent=39 // pred_region
        %s319 = smul.u32 8, %s23
        %p320 = scmp.lt.s32.totalorder %s24, 1
        %s321 = scalar_select %p320, %s24, 1
        %p322 = scmp.lt.s32.totalorder %s319, 7
        %s323 = scalar_select %p322, %s319, 7
        %s324 = smul.addr %s321, 48
        %s325 = sadd.s32 %s323, %s324
        %s326 = smul.addr %s325, 8
        %s327 = scalar_lea.vmem %s1, %s326
        %s328 = smul.u32 8, %s23
      $region48: #{vn_std_feature.5} parent=39 // pred_fallthru
        _
    $region40: #{vn_std_feature.5} parent=5 // pred_fallthru
      _
    %p329 = scmp.le.s32.totalorder 1, %s16
    %p330 = scmp.lt.s32.totalorder %s16, 3
    %p331 = pnand %p329, %p330
    %p332 = pneg %p331
    // Predicated region
    $region49: #{vn_std_feature.5} parent=5 // pred_check
      _
    $region50: #{vn_std_feature.5} parent=5 // pred_check_branch
      %334 = sbr.rel (%p331) target = $region52
    $region51: #{vn_std_feature.5} parent=5 // pred_region
      %s335 = ssub.s32 %s16, 1
      %s336 = smul.u32 8, %s25
      %p337 = scmp.lt.s32.totalorder %s26, 1
      %s338 = scalar_select %p337, %s26, 1
      %p339 = scmp.lt.s32.totalorder %s336, 7
      %s340 = scalar_select %p339, %s336, 7
      %s341 = smul.addr %s338, 96
      %s342 = sadd.s32 %s340, %s341
      %s343 = smul.addr %s342, 8
      %s344 = scalar_lea.vmem %s0, %s343
      %p345 = pneg %p56
      %p346 = pneg %p53
      %s347 = smul.u32 8, %s25
      %p348 = scmp.lt.s32.totalorder %s26, 1
      %s349 = scalar_select %p348, %s26, 1
      %p350 = scmp.lt.s32.totalorder %s347, 7
      %s351 = scalar_select %p350, %s347, 7
      %s352 = smul.addr %s349, 48
      %s353 = sadd.s32 %s351, %s352
      %s354 = smul.addr %s353, 8
      %s355 = scalar_lea.vmem %s1, %s354
      %p356 = pneg %p84
      %p357 = pneg %p81
      %p358 = pneg %p105
      %p359 = pneg %p102
      %p360 = pneg %p126
      %p361 = pneg %p123
      %p362 = pneg %p147
      %p363 = pneg %p144
      %p364 = pneg %p168
      %p365 = pneg %p165
      %p366 = pneg %p189
      %p367 = pneg %p186
      %p368 = pneg %p210
      %p369 = pneg %p207
      %p370 = pneg %p238
      %p371 = pneg %p235
      %s372 = smul.u32 8, %s25
      %p373 = scmp.lt.s32.totalorder %s26, 1
      %s374 = scalar_select %p373, %s26, 1
      %p375 = scmp.lt.s32.totalorder %s372, 7
      %s376 = scalar_select %p375, %s372, 7
      %s377 = smul.addr %s374, 96
      %s378 = sadd.s32 %s376, %s377
      %s379 = smul.addr %s378, 8
      %s380 = scalar_lea.vmem %s8, %s379
      %p381 = pneg %p266
      %p382 = pneg %p263
      %s383 = smul.u32 8, %s25
      %p384 = scmp.lt.s32.totalorder %s26, 1
      %s385 = scalar_select %p384, %s26, 1
      %p386 = scmp.lt.s32.totalorder %s383, 7
      %s387 = scalar_select %p386, %s383, 7
      %s388 = smul.addr %s385, 16
      %s389 = sadd.s32 %s387, %s388
      %s390 = smul.addr %s389, 8
      %s391 = scalar_lea.vmem %s9, %s390
      %s392 = smul.u32 8, %s25
      %p393 = scmp.lt.s32.totalorder %s26, 1
      %s394 = scalar_select %p393, %s26, 1
      %p395 = scmp.lt.s32.totalorder %s392, 7
      %s396 = scalar_select %p395, %s392, 7
      %s397 = smul.addr %s394, 96
      %s398 = sadd.s32 %s396, %s397
      %s399 = smul.addr %s398, 8
      %s400 = scalar_lea.vmem %s0, %s399
      %s401 = smul.u32 8, %s25
      %s402 = smul.u32 8, %s25
      %p403 = scmp.lt.s32.totalorder %s26, 1
      %s404 = scalar_select %p403, %s26, 1
      %p405 = scmp.lt.s32.totalorder %s402, 7
      %s406 = scalar_select %p405, %s402, 7
      %s407 = smul.addr %s404, 48
      %s408 = sadd.s32 %s406, %s407
      %s409 = smul.addr %s408, 8
      %s410 = scalar_lea.vmem %s1, %s409
      %s411 = smul.u32 8, %s25
      %s412 = smul.u32 8, %s25
      %p413 = scmp.lt.s32.totalorder %s26, 1
      %s414 = scalar_select %p413, %s26, 1
      %p415 = scmp.lt.s32.totalorder %s412, 7
      %s416 = scalar_select %p415, %s412, 7
      %s417 = smul.addr %s414, 96
      %s418 = sadd.s32 %s416, %s417
      %s419 = smul.addr %s418, 8
      %s420 = scalar_lea.vmem %s8, %s419
      %s421 = smul.u32 8, %s25
      %s422 = smul.u32 8, %s25
      %p423 = scmp.lt.s32.totalorder %s26, 1
      %s424 = scalar_select %p423, %s26, 1
      %p425 = scmp.lt.s32.totalorder %s422, 7
      %s426 = scalar_select %p425, %s422, 7
      %s427 = smul.addr %s424, 16
      %s428 = sadd.s32 %s426, %s427
      %s429 = smul.addr %s428, 8
      %s430 = scalar_lea.vmem %s9, %s429
      %s431 = smul.u32 8, %s25
      %v432 = vld [vmem:[%s2] sm:$0xff]
      %v433 = vld [vmem:[%s2 + $0x8] sm:$0xff]
      %v434 = vld [vmem:[%s2 + $0x10] sm:$0xff]
      %v435 = vld [vmem:[%s2 + $0x18] sm:$0xff]
      %v436 = vld [vmem:[%s2 + $0x20] sm:$0xff]
      %v437 = vld [vmem:[%s2 + $0x28] sm:$0xff]
      %v438 = vld [vmem:[%s410] sm:$0xff]
      %v439 = vld [vmem:[%s410 + $0x8] sm:$0xff]
      %v440 = vld [vmem:[%s410 + $0x10] sm:$0xff]
      %v441 = vld [vmem:[%s410 + $0x18] sm:$0xff]
      %v442 = vld [vmem:[%s410 + $0x20] sm:$0xff]
      %v443 = vld [vmem:[%s410 + $0x28] sm:$0xff]
      %v444 = vld [vmem:[%s410 + $0x30] sm:$0xff]
      %v445 = vld [vmem:[%s410 + $0x38] sm:$0xff]
      %v446 = vld [vmem:[%s410 + $0x40] sm:$0xff]
      %v447 = vld [vmem:[%s410 + $0x48] sm:$0xff]
      %v448 = vld [vmem:[%s410 + $0x50] sm:$0xff]
      %v449 = vld [vmem:[%s410 + $0x58] sm:$0xff]
      %v450 = vld [vmem:[%s410 + $0x60] sm:$0xff]
      %v451 = vld [vmem:[%s410 + $0x68] sm:$0xff]
      %v452 = vld [vmem:[%s410 + $0x70] sm:$0xff]
      %v453 = vld [vmem:[%s410 + $0x78] sm:$0xff]
      %v454 = vld [vmem:[%s410 + $0x80] sm:$0xff]
      %v455 = vld [vmem:[%s410 + $0x88] sm:$0xff]
      %v456 = vld [vmem:[%s410 + $0x90] sm:$0xff]
      %v457 = vld [vmem:[%s410 + $0x98] sm:$0xff]
      %v458 = vld [vmem:[%s410 + $0xa0] sm:$0xff]
      %v459 = vld [vmem:[%s410 + $0xa8] sm:$0xff]
      %v460 = vld [vmem:[%s410 + $0xb0] sm:$0xff]
      %v461 = vld [vmem:[%s410 + $0xb8] sm:$0xff]
      %v462 = vld [vmem:[%s410 + $0xc0] sm:$0xff]
      %v463 = vld [vmem:[%s410 + $0xc8] sm:$0xff]
      %v464 = vld [vmem:[%s410 + $0xd0] sm:$0xff]
      %v465 = vld [vmem:[%s410 + $0xd8] sm:$0xff]
      %v466 = vld [vmem:[%s410 + $0xe0] sm:$0xff]
      %v467 = vld [vmem:[%s410 + $0xe8] sm:$0xff]
      %v468 = vld [vmem:[%s410 + $0xf0] sm:$0xff]
      %v469 = vld [vmem:[%s410 + $0xf8] sm:$0xff]
      %v470 = vld [vmem:[%s410 + $0x100] sm:$0xff]
      %v471 = vld [vmem:[%s410 + $0x108] sm:$0xff]
      %v472 = vld [vmem:[%s410 + $0x110] sm:$0xff]
      %v473 = vld [vmem:[%s410 + $0x118] sm:$0xff]
      %v474 = vld [vmem:[%s410 + $0x120] sm:$0xff]
      %v475 = vld [vmem:[%s410 + $0x128] sm:$0xff]
      %v476 = vld [vmem:[%s410 + $0x130] sm:$0xff]
      %v477 = vld [vmem:[%s410 + $0x138] sm:$0xff]
      %v478 = vld [vmem:[%s410 + $0x140] sm:$0xff]
      %v479 = vld [vmem:[%s410 + $0x148] sm:$0xff]
      %v480 = vld [vmem:[%s410 + $0x150] sm:$0xff]
      %v481 = vld [vmem:[%s410 + $0x158] sm:$0xff]
      %v482 = vld [vmem:[%s410 + $0x160] sm:$0xff]
      %v483 = vld [vmem:[%s410 + $0x168] sm:$0xff]
      %v484 = vld [vmem:[%s410 + $0x170] sm:$0xff]
      %v485 = vld [vmem:[%s410 + $0x178] sm:$0xff]
      %vm486 = vcmask 392192
      %v488 = vsel %vm486, %v432, 0
      %v491 = vsel %vm486, %v433, 0
      %v494 = vsel %vm486, %v434, 0
      %v497 = vsel %vm486, %v435, 0
      %v500 = vsel %vm486, %v436, 0
      %v503 = vsel %vm486, %v437, 0
      %505 = vmatprep.subr.mxu0 %v439
      %506 = vmatpush1.msra.mxu0 %v438
      %507 = vmatprep.subr.mxu0 %v447
      %508 = vmatpush1.msra.mxu0 %v446
      %509 = vmatprep.subr.mxu0 %v455
      %510 = vmatpush1.msra.mxu0 %v454
      %511 = vmatprep.subr.mxu0 %v463
      %512 = vmatpush1.msra.mxu0 %v462
      %513 = vmatprep.subr.mxu0 %v471
      %514 = vmatpush1.msra.mxu0 %v470
      %515 = vmatprep.subr.mxu0 %v479
      %516 = vmatpush1.msra.mxu0 %v478
      %517 = vmatprep.subr.mxu0 0.0
      %518 = vmatpush1.msra.mxu0 0.0
      %519 = vmatprep.subr.mxu0 0.0
      %520 = vmatpush1.msra.mxu0 0.0
      %521 = vmatprep.subr.mxu0 0.0
      %522 = vmatpush1.msra.mxu0 0.0
      %523 = vmatprep.subr.mxu0 0.0
      %524 = vmatpush1.msra.mxu0 0.0
      %525 = vmatprep.subr.mxu0 0.0
      %526 = vmatpush1.msra.mxu0 0.0
      %527 = vmatprep.subr.mxu0 0.0
      %528 = vmatpush1.msra.mxu0 0.0
      %529 = vmatprep.subr.mxu0 0.0
      %530 = vmatpush1.msra.mxu0 0.0
      %531 = vmatprep.subr.mxu0 0.0
      %532 = vmatpush1.msra.mxu0 0.0
      %533 = vmatprep.subr.mxu0 0.0
      %534 = vmatpush1.msra.mxu0 0.0
      %535 = vmatprep.subr.mxu0 0.0
      %536 = vmatpush1.msra.mxu0 0.0
      %537 = vmatprep.subr.mxu0 0.0
      %538 = vmatpush1.msra.mxu0 0.0
      %539 = vmatprep.subr.mxu0 0.0
      %540 = vmatpush1.msra.mxu0 0.0
      %541 = vmatprep.subr.mxu0 0.0
      %542 = vmatpush1.msra.mxu0 0.0
      %543 = vmatprep.subr.mxu0 0.0
      %544 = vmatpush1.msra.mxu0 0.0
      %545 = vmatprep.subr.mxu0 0.0
      %546 = vmatpush1.msra.mxu0 0.0
      %547 = vmatprep.subr.mxu0 0.0
      %548 = vmatpush1.msra.mxu0 0.0
      %549 = vmatprep.subr.mxu0 0.0
      %550 = vmatpush1.msra.mxu0 0.0
      %551 = vmatprep.subr.mxu0 0.0
      %552 = vmatpush1.msra.mxu0 0.0
      %553 = vmatprep.subr.mxu0 0.0
      %554 = vmatpush1.msra.mxu0 0.0
      %555 = vmatprep.subr.mxu0 0.0
      %556 = vmatpush1.msra.mxu0 0.0
      %557 = vmatprep.subr.mxu0 0.0
      %558 = vmatpush1.msra.mxu0 0.0
      %559 = vmatprep.subr.mxu0 0.0
      %560 = vmatpush1.msra.mxu0 0.0
      %561 = vmatprep.subr.mxu0 0.0
      %562 = vmatpush1.msra.mxu0 0.0
      %563 = vmatprep.subr.mxu0 0.0
      %564 = vmatpush1.msra.mxu0 0.0
      %565 = vmatprep.subr.mxu0 0.0
      %566 = vmatpush1.msra.mxu0 0.0
      %567 = vmatprep.subr.mxu0 0.0
      %568 = vmatpush1.msra.mxu0 0.0
      %569 = vmatprep.mubr.f32.mxu0 0.0
      %570 = vmatmul.mubr.f32.gmra.mrb[0].mxu0 %v488
      %v571 = vpop.f32.mrb[0].mxu0
      %v572 = vadd.f32 0.0, %v571
      %v573 = vpop.f32.mrb[0].mxu0
      %v574 = vadd.f32 0.0, %v573
      %575 = vmatprep.mubr.f32.mxu0 0.0
      %576 = vmatmul.mubr.f32.gmra.mrb[0].mxu0 %v491
      %v577 = vpop.f32.mrb[0].mxu0
      %v578 = vadd.f32 0.0, %v577
      %v579 = vpop.f32.mrb[0].mxu0
      %v580 = vadd.f32 0.0, %v579
      %581 = vmatprep.mubr.f32.mxu0 0.0
      %582 = vmatmul.mubr.f32.gmra.mrb[0].mxu0 %v494
      %v583 = vpop.f32.mrb[0].mxu0
      %v584 = vadd.f32 0.0, %v583
      %v585 = vpop.f32.mrb[0].mxu0
      %v586 = vadd.f32 0.0, %v585
      %587 = vmatprep.mubr.f32.mxu0 0.0
      %588 = vmatmul.mubr.f32.gmra.mrb[0].mxu0 %v497
      %v589 = vpop.f32.mrb[0].mxu0
      %v590 = vadd.f32 0.0, %v589
      %v591 = vpop.f32.mrb[0].mxu0
      %v592 = vadd.f32 0.0, %v591
      %593 = vmatprep.mubr.f32.mxu0 0.0
      %594 = vmatmul.mubr.f32.gmra.mrb[0].mxu0 %v500
      %v595 = vpop.f32.mrb[0].mxu0
      %v596 = vadd.f32 0.0, %v595
      %v597 = vpop.f32.mrb[0].mxu0
      %v598 = vadd.f32 0.0, %v597
      %599 = vmatprep.mubr.f32.mxu0 0.0
      %600 = vmatmul.mubr.f32.gmra.mrb[0].mxu0 %v503
      %v601 = vpop.f32.mrb[0].mxu0
      %v602 = vadd.f32 0.0, %v601
      %v603 = vpop.f32.mrb[0].mxu0
      %v604 = vadd.f32 0.0, %v603
      %605 = vdwg.mxu0
      %606 = vmatprep.subr.mxu0 %v441
      %607 = vmatpush1.msra.mxu0 %v440
      %608 = vmatprep.subr.mxu0 %v449
      %609 = vmatpush1.msra.mxu0 %v448
      %610 = vmatprep.subr.mxu0 %v457
      %611 = vmatpush1.msra.mxu0 %v456
      %612 = vmatprep.subr.mxu0 %v465
      %613 = vmatpush1.msra.mxu0 %v464
      %614 = vmatprep.subr.mxu0 %v473
      %615 = vmatpush1.msra.mxu0 %v472
      %616 = vmatprep.subr.mxu0 %v481
      %617 = vmatpush1.msra.mxu0 %v480
      %618 = vmatprep.subr.mxu0 0.0
      %619 = vmatpush1.msra.mxu0 0.0
      %620 = vmatprep.subr.mxu0 0.0
      %621 = vmatpush1.msra.mxu0 0.0
      %622 = vmatprep.subr.mxu0 0.0
      %623 = vmatpush1.msra.mxu0 0.0
      %624 = vmatprep.subr.mxu0 0.0
      %625 = vmatpush1.msra.mxu0 0.0
      %626 = vmatprep.subr.mxu0 0.0
      %627 = vmatpush1.msra.mxu0 0.0
      %628 = vmatprep.subr.mxu0 0.0
      %629 = vmatpush1.msra.mxu0 0.0
      %630 = vmatprep.subr.mxu0 0.0
      %631 = vmatpush1.msra.mxu0 0.0
      %632 = vmatprep.subr.mxu0 0.0
      %633 = vmatpush1.msra.mxu0 0.0
      %634 = vmatprep.subr.mxu0 0.0
      %635 = vmatpush1.msra.mxu0 0.0
      %636 = vmatprep.subr.mxu0 0.0
      %637 = vmatpush1.msra.mxu0 0.0
      %638 = vmatprep.subr.mxu0 0.0
      %639 = vmatpush1.msra.mxu0 0.0
      %640 = vmatprep.subr.mxu0 0.0
      %641 = vmatpush1.msra.mxu0 0.0
      %642 = vmatprep.subr.mxu0 0.0
      %643 = vmatpush1.msra.mxu0 0.0
      %644 = vmatprep.subr.mxu0 0.0
      %645 = vmatpush1.msra.mxu0 0.0
      %646 = vmatprep.subr.mxu0 0.0
      %647 = vmatpush1.msra.mxu0 0.0
      %648 = vmatprep.subr.mxu0 0.0
      %649 = vmatpush1.msra.mxu0 0.0
      %650 = vmatprep.subr.mxu0 0.0
      %651 = vmatpush1.msra.mxu0 0.0
      %652 = vmatprep.subr.mxu0 0.0
      %653 = vmatpush1.msra.mxu0 0.0
      %654 = vmatprep.subr.mxu0 0.0
      %655 = vmatpush1.msra.mxu0 0.0
      %656 = vmatprep.subr.mxu0 0.0
      %657 = vmatpush1.msra.mxu0 0.0
      %658 = vmatprep.subr.mxu0 0.0
      %659 = vmatpush1.msra.mxu0 0.0
      %660 = vmatprep.subr.mxu0 0.0
      %661 = vmatpush1.msra.mxu0 0.0
      %662 = vmatprep.subr.mxu0 0.0
      %663 = vmatpush1.msra.mxu0 0.0
      %664 = vmatprep.subr.mxu0 0.0
      %665 = vmatpush1.msra.mxu0 0.0
      %666 = vmatprep.subr.mxu0 0.0
      %667 = vmatpush1.msra.mxu0 0.0
      %668 = vmatprep.subr.mxu0 0.0
      %669 = vmatpush1.msra.mxu0 0.0
      %670 = vmatprep.mubr.f32.mxu0 0.0
      %671 = vmatmul.mubr.f32.gmra.mrb[0].mxu0 %v488
      %v672 = vpop.f32.mrb[0].mxu0
      %v673 = vadd.f32 0.0, %v672
      %v674 = vpop.f32.mrb[0].mxu0
      %v675 = vadd.f32 0.0, %v674
      %676 = vmatprep.mubr.f32.mxu0 0.0
      %677 = vmatmul.mubr.f32.gmra.mrb[0].mxu0 %v491
      %v678 = vpop.f32.mrb[0].mxu0
      %v679 = vadd.f32 0.0, %v678
      %v680 = vpop.f32.mrb[0].mxu0
      %v681 = vadd.f32 0.0, %v680
      %682 = vmatprep.mubr.f32.mxu0 0.0
      %683 = vmatmul.mubr.f32.gmra.mrb[0].mxu0 %v494
      %v684 = vpop.f32.mrb[0].mxu0
      %v685 = vadd.f32 0.0, %v684
      %v686 = vpop.f32.mrb[0].mxu0
      %v687 = vadd.f32 0.0, %v686
      %688 = vmatprep.mubr.f32.mxu0 0.0
      %689 = vmatmul.mubr.f32.gmra.mrb[0].mxu0 %v497
      %v690 = vpop.f32.mrb[0].mxu0
      %v691 = vadd.f32 0.0, %v690
      %v692 = vpop.f32.mrb[0].mxu0
      %v693 = vadd.f32 0.0, %v692
      %694 = vmatprep.mubr.f32.mxu0 0.0
      %695 = vmatmul.mubr.f32.gmra.mrb[0].mxu0 %v500
      %v696 = vpop.f32.mrb[0].mxu0
      %v697 = vadd.f32 0.0, %v696
      %v698 = vpop.f32.mrb[0].mxu0
      %v699 = vadd.f32 0.0, %v698
      %700 = vmatprep.mubr.f32.mxu0 0.0
      %701 = vmatmul.mubr.f32.gmra.mrb[0].mxu0 %v503
      %v702 = vpop.f32.mrb[0].mxu0
      %v703 = vadd.f32 0.0, %v702
      %v704 = vpop.f32.mrb[0].mxu0
      %v705 = vadd.f32 0.0, %v704
      %706 = vdwg.mxu0
      %707 = vmatprep.subr.mxu0 %v443
      %708 = vmatpush1.msra.mxu0 %v442
      %709 = vmatprep.subr.mxu0 %v451
      %710 = vmatpush1.msra.mxu0 %v450
      %711 = vmatprep.subr.mxu0 %v459
      %712 = vmatpush1.msra.mxu0 %v458
      %713 = vmatprep.subr.mxu0 %v467
      %714 = vmatpush1.msra.mxu0 %v466
      %715 = vmatprep.subr.mxu0 %v475
      %716 = vmatpush1.msra.mxu0 %v474
      %717 = vmatprep.subr.mxu0 %v483
      %718 = vmatpush1.msra.mxu0 %v482
      %719 = vmatprep.subr.mxu0 0.0
      %720 = vmatpush1.msra.mxu0 0.0
      %721 = vmatprep.subr.mxu0 0.0
      %722 = vmatpush1.msra.mxu0 0.0
      %723 = vmatprep.subr.mxu0 0.0
      %724 = vmatpush1.msra.mxu0 0.0
      %725 = vmatprep.subr.mxu0 0.0
      %726 = vmatpush1.msra.mxu0 0.0
      %727 = vmatprep.subr.mxu0 0.0
      %728 = vmatpush1.msra.mxu0 0.0
      %729 = vmatprep.subr.mxu0 0.0
      %730 = vmatpush1.msra.mxu0 0.0
      %731 = vmatprep.subr.mxu0 0.0
      %732 = vmatpush1.msra.mxu0 0.0
      %733 = vmatprep.subr.mxu0 0.0
      %734 = vmatpush1.msra.mxu0 0.0
      %735 = vmatprep.subr.mxu0 0.0
      %736 = vmatpush1.msra.mxu0 0.0
      %737 = vmatprep.subr.mxu0 0.0
      %738 = vmatpush1.msra.mxu0 0.0
      %739 = vmatprep.subr.mxu0 0.0
      %740 = vmatpush1.msra.mxu0 0.0
      %741 = vmatprep.subr.mxu0 0.0
      %742 = vmatpush1.msra.mxu0 0.0
      %743 = vmatprep.subr.mxu0 0.0
      %744 = vmatpush1.msra.mxu0 0.0
      %745 = vmatprep.subr.mxu0 0.0
      %746 = vmatpush1.msra.mxu0 0.0
      %747 = vmatprep.subr.mxu0 0.0
      %748 = vmatpush1.msra.mxu0 0.0
      %749 = vmatprep.subr.mxu0 0.0
      %750 = vmatpush1.msra.mxu0 0.0
      %751 = vmatprep.subr.mxu0 0.0
      %752 = vmatpush1.msra.mxu0 0.0
      %753 = vmatprep.subr.mxu0 0.0
      %754 = vmatpush1.msra.mxu0 0.0
      %755 = vmatprep.subr.mxu0 0.0
      %756 = vmatpush1.msra.mxu0 0.0
      %757 = vmatprep.subr.mxu0 0.0
      %758 = vmatpush1.msra.mxu0 0.0
      %759 = vmatprep.subr.mxu0 0.0
      %760 = vmatpush1.msra.mxu0 0.0
      %761 = vmatprep.subr.mxu0 0.0
      %762 = vmatpush1.msra.mxu0 0.0
      %763 = vmatprep.subr.mxu0 0.0
      %764 = vmatpush1.msra.mxu0 0.0
      %765 = vmatprep.subr.mxu0 0.0
      %766 = vmatpush1.msra.mxu0 0.0
      %767 = vmatprep.subr.mxu0 0.0
      %768 = vmatpush1.msra.mxu0 0.0
      %769 = vmatprep.subr.mxu0 0.0
      %770 = vmatpush1.msra.mxu0 0.0
      %771 = vmatprep.mubr.f32.mxu0 0.0
      %772 = vmatmul.mubr.f32.gmra.mrb[0].mxu0 %v488
      %v773 = vpop.f32.mrb[0].mxu0
      %v774 = vadd.f32 0.0, %v773
      %v775 = vpop.f32.mrb[0].mxu0
      %v776 = vadd.f32 0.0, %v775
      %777 = vmatprep.mubr.f32.mxu0 0.0
      %778 = vmatmul.mubr.f32.gmra.mrb[0].mxu0 %v491
      %v779 = vpop.f32.mrb[0].mxu0
      %v780 = vadd.f32 0.0, %v779
      %v781 = vpop.f32.mrb[0].mxu0
      %v782 = vadd.f32 0.0, %v781
      %783 = vmatprep.mubr.f32.mxu0 0.0
      %784 = vmatmul.mubr.f32.gmra.mrb[0].mxu0 %v494
      %v785 = vpop.f32.mrb[0].mxu0
      %v786 = vadd.f32 0.0, %v785
      %v787 = vpop.f32.mrb[0].mxu0
      %v788 = vadd.f32 0.0, %v787
      %789 = vmatprep.mubr.f32.mxu0 0.0
      %790 = vmatmul.mubr.f32.gmra.mrb[0].mxu0 %v497
      %v791 = vpop.f32.mrb[0].mxu0
      %v792 = vadd.f32 0.0, %v791
      %v793 = vpop.f32.mrb[0].mxu0
      %v794 = vadd.f32 0.0, %v793
      %795 = vmatprep.mubr.f32.mxu0 0.0
      %796 = vmatmul.mubr.f32.gmra.mrb[0].mxu0 %v500
      %v797 = vpop.f32.mrb[0].mxu0
      %v798 = vadd.f32 0.0, %v797
      %v799 = vpop.f32.mrb[0].mxu0
      %v800 = vadd.f32 0.0, %v799
      %801 = vmatprep.mubr.f32.mxu0 0.0
      %802 = vmatmul.mubr.f32.gmra.mrb[0].mxu0 %v503
      %v803 = vpop.f32.mrb[0].mxu0
      %v804 = vadd.f32 0.0, %v803
      %v805 = vpop.f32.mrb[0].mxu0
      %v806 = vadd.f32 0.0, %v805
      %807 = vdwg.mxu0
      %808 = vmatprep.subr.mxu0 %v445
      %809 = vmatpush1.msra.mxu0 %v444
      %810 = vmatprep.subr.mxu0 %v453
      %811 = vmatpush1.msra.mxu0 %v452
      %812 = vmatprep.subr.mxu0 %v461
      %813 = vmatpush1.msra.mxu0 %v460
      %814 = vmatprep.subr.mxu0 %v469
      %815 = vmatpush1.msra.mxu0 %v468
      %816 = vmatprep.subr.mxu0 %v477
      %817 = vmatpush1.msra.mxu0 %v476
      %818 = vmatprep.subr.mxu0 %v485
      %819 = vmatpush1.msra.mxu0 %v484
      %820 = vmatprep.subr.mxu0 0.0
      %821 = vmatpush1.msra.mxu0 0.0
      %822 = vmatprep.subr.mxu0 0.0
      %823 = vmatpush1.msra.mxu0 0.0
      %824 = vmatprep.subr.mxu0 0.0
      %825 = vmatpush1.msra.mxu0 0.0
      %826 = vmatprep.subr.mxu0 0.0
      %827 = vmatpush1.msra.mxu0 0.0
      %828 = vmatprep.subr.mxu0 0.0
      %829 = vmatpush1.msra.mxu0 0.0
      %830 = vmatprep.subr.mxu0 0.0
      %831 = vmatpush1.msra.mxu0 0.0
      %832 = vmatprep.subr.mxu0 0.0
      %833 = vmatpush1.msra.mxu0 0.0
      %834 = vmatprep.subr.mxu0 0.0
      %835 = vmatpush1.msra.mxu0 0.0
      %836 = vmatprep.subr.mxu0 0.0
      %837 = vmatpush1.msra.mxu0 0.0
      %838 = vmatprep.subr.mxu0 0.0
      %839 = vmatpush1.msra.mxu0 0.0
      %840 = vmatprep.subr.mxu0 0.0
      %841 = vmatpush1.msra.mxu0 0.0
      %842 = vmatprep.subr.mxu0 0.0
      %843 = vmatpush1.msra.mxu0 0.0
      %844 = vmatprep.subr.mxu0 0.0
      %845 = vmatpush1.msra.mxu0 0.0
      %846 = vmatprep.subr.mxu0 0.0
      %847 = vmatpush1.msra.mxu0 0.0
      %848 = vmatprep.subr.mxu0 0.0
      %849 = vmatpush1.msra.mxu0 0.0
      %850 = vmatprep.subr.mxu0 0.0
      %851 = vmatpush1.msra.mxu0 0.0
      %852 = vmatprep.subr.mxu0 0.0
      %853 = vmatpush1.msra.mxu0 0.0
      %854 = vmatprep.subr.mxu0 0.0
      %855 = vmatpush1.msra.mxu0 0.0
      %856 = vmatprep.subr.mxu0 0.0
      %857 = vmatpush1.msra.mxu0 0.0
      %858 = vmatprep.subr.mxu0 0.0
      %859 = vmatpush1.msra.mxu0 0.0
      %860 = vmatprep.subr.mxu0 0.0
      %861 = vmatpush1.msra.mxu0 0.0
      %862 = vmatprep.subr.mxu0 0.0
      %863 = vmatpush1.msra.mxu0 0.0
      %864 = vmatprep.subr.mxu0 0.0
      %865 = vmatpush1.msra.mxu0 0.0
      %866 = vmatprep.subr.mxu0 0.0
      %867 = vmatpush1.msra.mxu0 0.0
      %868 = vmatprep.subr.mxu0 0.0
      %869 = vmatpush1.msra.mxu0 0.0
      %870 = vmatprep.subr.mxu0 0.0
      %871 = vmatpush1.msra.mxu0 0.0
      %872 = vmatprep.mubr.f32.mxu0 0.0
      %873 = vmatmul.mubr.f32.gmra.mrb[0].mxu0 %v488
      %v874 = vpop.f32.mrb[0].mxu0
      %v875 = vadd.f32 0.0, %v874
      %v876 = vpop.f32.mrb[0].mxu0
      %v877 = vadd.f32 0.0, %v876
      %878 = vmatprep.mubr.f32.mxu0 0.0
      %879 = vmatmul.mubr.f32.gmra.mrb[0].mxu0 %v491
      %v880 = vpop.f32.mrb[0].mxu0
      %v881 = vadd.f32 0.0, %v880
      %v882 = vpop.f32.mrb[0].mxu0
      %v883 = vadd.f32 0.0, %v882
      %884 = vmatprep.mubr.f32.mxu0 0.0
      %885 = vmatmul.mubr.f32.gmra.mrb[0].mxu0 %v494
      %v886 = vpop.f32.mrb[0].mxu0
      %v887 = vadd.f32 0.0, %v886
      %v888 = vpop.f32.mrb[0].mxu0
      %v889 = vadd.f32 0.0, %v888
      %890 = vmatprep.mubr.f32.mxu0 0.0
      %891 = vmatmul.mubr.f32.gmra.mrb[0].mxu0 %v497
      %v892 = vpop.f32.mrb[0].mxu0
      %v893 = vadd.f32 0.0, %v892
      %v894 = vpop.f32.mrb[0].mxu0
      %v895 = vadd.f32 0.0, %v894
      %896 = vmatprep.mubr.f32.mxu0 0.0
      %897 = vmatmul.mubr.f32.gmra.mrb[0].mxu0 %v500
      %v898 = vpop.f32.mrb[0].mxu0
      %v899 = vadd.f32 0.0, %v898
      %v900 = vpop.f32.mrb[0].mxu0
      %v901 = vadd.f32 0.0, %v900
      %902 = vmatprep.mubr.f32.mxu0 0.0
      %903 = vmatmul.mubr.f32.gmra.mrb[0].mxu0 %v503
      %v904 = vpop.f32.mrb[0].mxu0
      %v905 = vadd.f32 0.0, %v904
      %v906 = vpop.f32.mrb[0].mxu0
      %v907 = vadd.f32 0.0, %v906
      %908 = vdwg.mxu0
      %v909 = vld [vmem:[%s3] sm:$0xff]
      %v910 = vld [vmem:[%s4] sm:$0xff]
      %v911 = vmul.f32 %v572, %v572
      %v912 = vmul.f32 %v574, %v574
      %v913 = vmul.f32 %v673, %v673
      %v914 = vmul.f32 %v675, %v675
      %v915 = vmul.f32 %v774, %v774
      %v916 = vmul.f32 %v776, %v776
      %v917 = vmul.f32 %v875, %v875
      %v918 = vmul.f32 %v877, %v877
      %v919 = vmul.f32 %v578, %v578
      %v920 = vmul.f32 %v580, %v580
      %v921 = vmul.f32 %v679, %v679
      %v922 = vmul.f32 %v681, %v681
      %v923 = vmul.f32 %v780, %v780
      %v924 = vmul.f32 %v782, %v782
      %v925 = vmul.f32 %v881, %v881
      %v926 = vmul.f32 %v883, %v883
      %v927 = vadd.f32 %v911, %v919
      %v928 = vadd.f32 %v912, %v920
      %v929 = vadd.f32 %v913, %v921
      %v930 = vadd.f32 %v914, %v922
      %v931 = vadd.f32 %v915, %v923
      %v932 = vadd.f32 %v916, %v924
      %v933 = vadd.f32 %v917, %v925
      %v934 = vadd.f32 %v918, %v926
      %v935 = vmul.f32 %v584, %v584
      %v936 = vmul.f32 %v586, %v586
      %v937 = vmul.f32 %v685, %v685
      %v938 = vmul.f32 %v687, %v687
      %v939 = vmul.f32 %v786, %v786
      %v940 = vmul.f32 %v788, %v788
      %v941 = vmul.f32 %v887, %v887
      %v942 = vmul.f32 %v889, %v889
      %v943 = vadd.f32 %v927, %v935
      %v944 = vadd.f32 %v928, %v936
      %v945 = vadd.f32 %v929, %v937
      %v946 = vadd.f32 %v930, %v938
      %v947 = vadd.f32 %v931, %v939
      %v948 = vadd.f32 %v932, %v940
      %v949 = vadd.f32 %v933, %v941
      %v950 = vadd.f32 %v934, %v942
      %v951 = vrsqrt.pop %v943
      %v952 = vmul.f32 %v943, %v951
      %vm953 = vcmp.eq.f32.partialorder %v943, inf
      %v954 = vsel %vm953, %v943, %v952
      %vm955 = vcmp.eq.f32.partialorder %v943, 0.0
      %v956 = vand.u32 %v943, 2147483648
      %v957 = vsel %vm955, %v956, %v954
      %v958 = vrsqrt.pop %v944
      %v959 = vmul.f32 %v944, %v958
      %vm960 = vcmp.eq.f32.partialorder %v944, inf
      %v961 = vsel %vm960, %v944, %v959
      %vm962 = vcmp.eq.f32.partialorder %v944, 0.0
      %v963 = vand.u32 %v944, 2147483648
      %v964 = vsel %vm962, %v963, %v961
      %v965 = vrsqrt.pop %v945
      %v966 = vmul.f32 %v945, %v965
      %vm967 = vcmp.eq.f32.partialorder %v945, inf
      %v968 = vsel %vm967, %v945, %v966
      %vm969 = vcmp.eq.f32.partialorder %v945, 0.0
      %v970 = vand.u32 %v945, 2147483648
      %v971 = vsel %vm969, %v970, %v968
      %v972 = vrsqrt.pop %v946
      %v973 = vmul.f32 %v946, %v972
      %vm974 = vcmp.eq.f32.partialorder %v946, inf
      %v975 = vsel %vm974, %v946, %v973
      %vm976 = vcmp.eq.f32.partialorder %v946, 0.0
      %v977 = vand.u32 %v946, 2147483648
      %v978 = vsel %vm976, %v977, %v975
      %v979 = vrsqrt.pop %v947
      %v980 = vmul.f32 %v947, %v979
      %vm981 = vcmp.eq.f32.partialorder %v947, inf
      %v982 = vsel %vm981, %v947, %v980
      %vm983 = vcmp.eq.f32.partialorder %v947, 0.0
      %v984 = vand.u32 %v947, 2147483648
      %v985 = vsel %vm983, %v984, %v982
      %v986 = vrsqrt.pop %v948
      %v987 = vmul.f32 %v948, %v986
      %vm988 = vcmp.eq.f32.partialorder %v948, inf
      %v989 = vsel %vm988, %v948, %v987
      %vm990 = vcmp.eq.f32.partialorder %v948, 0.0
      %v991 = vand.u32 %v948, 2147483648
      %v992 = vsel %vm990, %v991, %v989
      %v993 = vrsqrt.pop %v949
      %v994 = vmul.f32 %v949, %v993
      %vm995 = vcmp.eq.f32.partialorder %v949, inf
      %v996 = vsel %vm995, %v949, %v994
      %vm997 = vcmp.eq.f32.partialorder %v949, 0.0
      %v998 = vand.u32 %v949, 2147483648
      %v999 = vsel %vm997, %v998, %v996
      %v1000 = vrsqrt.pop %v950
      %v1001 = vmul.f32 %v950, %v1000
      %vm1002 = vcmp.eq.f32.partialorder %v950, inf
      %v1003 = vsel %vm1002, %v950, %v1001
      %vm1004 = vcmp.eq.f32.partialorder %v950, 0.0
      %v1005 = vand.u32 %v950, 2147483648
      %v1006 = vsel %vm1004, %v1005, %v1003
      %vm1007 = vcmp.gt.f32.partialorder %v957, 0.0
      %vm1008 = vcmp.gt.f32.partialorder %v964, 0.0
      %vm1009 = vcmp.gt.f32.partialorder %v971, 0.0
      %vm1010 = vcmp.gt.f32.partialorder %v978, 0.0
      %vm1011 = vcmp.gt.f32.partialorder %v985, 0.0
      %vm1012 = vcmp.gt.f32.partialorder %v992, 0.0
      %vm1013 = vcmp.gt.f32.partialorder %v999, 0.0
      %vm1014 = vcmp.gt.f32.partialorder %v1006, 0.0
      %v1015 = vrcp.pop %v957
      %v1016 = vrcp.pop %v964
      %v1017 = vrcp.pop %v971
      %v1018 = vrcp.pop %v978
      %v1019 = vrcp.pop %v985
      %v1020 = vrcp.pop %v992
      %v1021 = vrcp.pop %v999
      %v1022 = vrcp.pop %v1006
      %v1023 = vsel %vm1007, %v1015, 0.0
      %v1024 = vsel %vm1008, %v1016, 0.0
      %v1025 = vsel %vm1009, %v1017, 0.0
      %v1026 = vsel %vm1010, %v1018, 0.0
      %v1027 = vsel %vm1011, %v1019, 0.0
      %v1028 = vsel %vm1012, %v1020, 0.0
      %v1029 = vsel %vm1013, %v1021, 0.0
      %v1030 = vsel %vm1014, %v1022, 0.0
      %1032 = vset.pattern.permute.xlu0 0
      %1033 = vperm.xlu0 %1032, %v910
      %v1034 = vpop.permute.xlu0 %1033
      %v1036 = vmul.f32 %v1034, %v1023
      %v1037 = vmul.f32 %v1034, %v1024
      %v1038 = vmul.f32 %v1034, %v1025
      %v1039 = vmul.f32 %v1034, %v1026
      %v1040 = vmul.f32 %v1034, %v1027
      %v1041 = vmul.f32 %v1034, %v1028
      %v1042 = vmul.f32 %v1034, %v1029
      %v1043 = vmul.f32 %v1034, %v1030
      %1045 = vset.pattern.permute.xlu0 0
      %1046 = vperm.xlu0 %1045, %v909
      %v1047 = vpop.permute.xlu0 %1046
      %v1049 = vadd.f32 %v1047, %v1036
      %v1050 = vadd.f32 %v1047, %v1037
      %v1051 = vadd.f32 %v1047, %v1038
      %v1052 = vadd.f32 %v1047, %v1039
      %v1053 = vadd.f32 %v1047, %v1040
      %v1054 = vadd.f32 %v1047, %v1041
      %v1055 = vadd.f32 %v1047, %v1042
      %v1056 = vadd.f32 %v1047, %v1043
      %v1057 = vmul.f32 %v572, %v1049
      %v1058 = vmul.f32 %v574, %v1050
      %v1059 = vmul.f32 %v673, %v1051
      %v1060 = vmul.f32 %v675, %v1052
      %v1061 = vmul.f32 %v774, %v1053
      %v1062 = vmul.f32 %v776, %v1054
      %v1063 = vmul.f32 %v875, %v1055
      %v1064 = vmul.f32 %v877, %v1056
      %v1065 = vmul.f32 %v578, %v1049
      %v1066 = vmul.f32 %v580, %v1050
      %v1067 = vmul.f32 %v679, %v1051
      %v1068 = vmul.f32 %v681, %v1052
      %v1069 = vmul.f32 %v780, %v1053
      %v1070 = vmul.f32 %v782, %v1054
      %v1071 = vmul.f32 %v881, %v1055
      %v1072 = vmul.f32 %v883, %v1056
      %v1073 = vmul.f32 %v584, %v1049
      %v1074 = vmul.f32 %v586, %v1050
      %v1075 = vmul.f32 %v685, %v1051
      %v1076 = vmul.f32 %v687, %v1052
      %v1077 = vmul.f32 %v786, %v1053
      %v1078 = vmul.f32 %v788, %v1054
      %v1079 = vmul.f32 %v887, %v1055
      %v1080 = vmul.f32 %v889, %v1056
      %v1081 = vmul.f32 %v1057, %v590
      %v1082 = vmul.f32 %v1058, %v592
      %v1083 = vmul.f32 %v1059, %v691
      %v1084 = vmul.f32 %v1060, %v693
      %v1085 = vmul.f32 %v1061, %v792
      %v1086 = vmul.f32 %v1062, %v794
      %v1087 = vmul.f32 %v1063, %v893
      %v1088 = vmul.f32 %v1064, %v895
      %v1089 = vmul.f32 %v1065, %v596
      %v1090 = vmul.f32 %v1066, %v598
      %v1091 = vmul.f32 %v1067, %v697
      %v1092 = vmul.f32 %v1068, %v699
      %v1093 = vmul.f32 %v1069, %v798
      %v1094 = vmul.f32 %v1070, %v800
      %v1095 = vmul.f32 %v1071, %v899
      %v1096 = vmul.f32 %v1072, %v901
      %v1097 = vadd.f32 %v1081, %v1089
      %v1098 = vadd.f32 %v1082, %v1090
      %v1099 = vadd.f32 %v1083, %v1091
      %v1100 = vadd.f32 %v1084, %v1092
      %v1101 = vadd.f32 %v1085, %v1093
      %v1102 = vadd.f32 %v1086, %v1094
      %v1103 = vadd.f32 %v1087, %v1095
      %v1104 = vadd.f32 %v1088, %v1096
      %v1105 = vmul.f32 %v1073, %v602
      %v1106 = vmul.f32 %v1074, %v604
      %v1107 = vmul.f32 %v1075, %v703
      %v1108 = vmul.f32 %v1076, %v705
      %v1109 = vmul.f32 %v1077, %v804
      %v1110 = vmul.f32 %v1078, %v806
      %v1111 = vmul.f32 %v1079, %v905
      %v1112 = vmul.f32 %v1080, %v907
      %v1113 = vadd.f32 %v1097, %v1105
      %v1114 = vadd.f32 %v1098, %v1106
      %v1115 = vadd.f32 %v1099, %v1107
      %v1116 = vadd.f32 %v1100, %v1108
      %v1117 = vadd.f32 %v1101, %v1109
      %v1118 = vadd.f32 %v1102, %v1110
      %v1119 = vadd.f32 %v1103, %v1111
      %v1120 = vadd.f32 %v1104, %v1112
      %v1121 = vmul.f32 %v590, %v590
      %v1122 = vmul.f32 %v592, %v592
      %v1123 = vmul.f32 %v691, %v691
      %v1124 = vmul.f32 %v693, %v693
      %v1125 = vmul.f32 %v792, %v792
      %v1126 = vmul.f32 %v794, %v794
      %v1127 = vmul.f32 %v893, %v893
      %v1128 = vmul.f32 %v895, %v895
      %v1129 = vmul.f32 %v596, %v596
      %v1130 = vmul.f32 %v598, %v598
      %v1131 = vmul.f32 %v697, %v697
      %v1132 = vmul.f32 %v699, %v699
      %v1133 = vmul.f32 %v798, %v798
      %v1134 = vmul.f32 %v800, %v800
      %v1135 = vmul.f32 %v899, %v899
      %v1136 = vmul.f32 %v901, %v901
      %v1137 = vadd.f32 %v1121, %v1129
      %v1138 = vadd.f32 %v1122, %v1130
      %v1139 = vadd.f32 %v1123, %v1131
      %v1140 = vadd.f32 %v1124, %v1132
      %v1141 = vadd.f32 %v1125, %v1133
      %v1142 = vadd.f32 %v1126, %v1134
      %v1143 = vadd.f32 %v1127, %v1135
      %v1144 = vadd.f32 %v1128, %v1136
      %v1145 = vmul.f32 %v602, %v602
      %v1146 = vmul.f32 %v604, %v604
      %v1147 = vmul.f32 %v703, %v703
      %v1148 = vmul.f32 %v705, %v705
      %v1149 = vmul.f32 %v804, %v804
      %v1150 = vmul.f32 %v806, %v806
      %v1151 = vmul.f32 %v905, %v905
      %v1152 = vmul.f32 %v907, %v907
      %v1153 = vadd.f32 %v1137, %v1145
      %v1154 = vadd.f32 %v1138, %v1146
      %v1155 = vadd.f32 %v1139, %v1147
      %v1156 = vadd.f32 %v1140, %v1148
      %v1157 = vadd.f32 %v1141, %v1149
      %v1158 = vadd.f32 %v1142, %v1150
      %v1159 = vadd.f32 %v1143, %v1151
      %v1160 = vadd.f32 %v1144, %v1152
      %vm1161 = vcmp.lt.f32.partialorder %v1113, 0.0
      %vm1162 = vcmp.lt.f32.partialorder %v1114, 0.0
      %vm1163 = vcmp.lt.f32.partialorder %v1115, 0.0
      %vm1164 = vcmp.lt.f32.partialorder %v1116, 0.0
      %vm1165 = vcmp.lt.f32.partialorder %v1117, 0.0
      %vm1166 = vcmp.lt.f32.partialorder %v1118, 0.0
      %vm1167 = vcmp.lt.f32.partialorder %v1119, 0.0
      %vm1168 = vcmp.lt.f32.partialorder %v1120, 0.0
      %v1169 = vadd.f32 %v1153, 1e-06
      %v1170 = vadd.f32 %v1154, 1e-06
      %v1171 = vadd.f32 %v1155, 1e-06
      %v1172 = vadd.f32 %v1156, 1e-06
      %v1173 = vadd.f32 %v1157, 1e-06
      %v1174 = vadd.f32 %v1158, 1e-06
      %v1175 = vadd.f32 %v1159, 1e-06
      %v1176 = vadd.f32 %v1160, 1e-06
      %v1177 = vrcp.pop %v1169
      %v1178 = vrcp.pop %v1170
      %v1179 = vrcp.pop %v1171
      %v1180 = vrcp.pop %v1172
      %v1181 = vrcp.pop %v1173
      %v1182 = vrcp.pop %v1174
      %v1183 = vrcp.pop %v1175
      %v1184 = vrcp.pop %v1176
      %v1185 = vmul.f32 %v1113, %v1177
      %v1186 = vmul.f32 %v1114, %v1178
      %v1187 = vmul.f32 %v1115, %v1179
      %v1188 = vmul.f32 %v1116, %v1180
      %v1189 = vmul.f32 %v1117, %v1181
      %v1190 = vmul.f32 %v1118, %v1182
      %v1191 = vmul.f32 %v1119, %v1183
      %v1192 = vmul.f32 %v1120, %v1184
      %v1193 = vsel %vm1161, %v1185, 0.0
      %v1194 = vsel %vm1162, %v1186, 0.0
      %v1195 = vsel %vm1163, %v1187, 0.0
      %v1196 = vsel %vm1164, %v1188, 0.0
      %v1197 = vsel %vm1165, %v1189, 0.0
      %v1198 = vsel %vm1166, %v1190, 0.0
      %v1199 = vsel %vm1167, %v1191, 0.0
      %v1200 = vsel %vm1168, %v1192, 0.0
      %v1201 = vmul.f32 %v1193, 0.8
      %v1202 = vmul.f32 %v1194, 0.8
      %v1203 = vmul.f32 %v1195, 0.8
      %v1204 = vmul.f32 %v1196, 0.8
      %v1205 = vmul.f32 %v1197, 0.8
      %v1206 = vmul.f32 %v1198, 0.8
      %v1207 = vmul.f32 %v1199, 0.8
      %v1208 = vmul.f32 %v1200, 0.8
      %v1209 = vmul.f32 %v1201, %v590
      %v1210 = vmul.f32 %v1202, %v592
      %v1211 = vmul.f32 %v1203, %v691
      %v1212 = vmul.f32 %v1204, %v693
      %v1213 = vmul.f32 %v1205, %v792
      %v1214 = vmul.f32 %v1206, %v794
      %v1215 = vmul.f32 %v1207, %v893
      %v1216 = vmul.f32 %v1208, %v895
      %v1217 = vsub.f32 %v1057, %v1209
      %v1218 = vsub.f32 %v1058, %v1210
      %v1219 = vsub.f32 %v1059, %v1211
      %v1220 = vsub.f32 %v1060, %v1212
      %v1221 = vsub.f32 %v1061, %v1213
      %v1222 = vsub.f32 %v1062, %v1214
      %v1223 = vsub.f32 %v1063, %v1215
      %v1224 = vsub.f32 %v1064, %v1216
      %v1225 = vmul.f32 %v1201, %v596
      %v1226 = vmul.f32 %v1202, %v598
      %v1227 = vmul.f32 %v1203, %v697
      %v1228 = vmul.f32 %v1204, %v699
      %v1229 = vmul.f32 %v1205, %v798
      %v1230 = vmul.f32 %v1206, %v800
      %v1231 = vmul.f32 %v1207, %v899
      %v1232 = vmul.f32 %v1208, %v901
      %v1233 = vsub.f32 %v1065, %v1225
      %v1234 = vsub.f32 %v1066, %v1226
      %v1235 = vsub.f32 %v1067, %v1227
      %v1236 = vsub.f32 %v1068, %v1228
      %v1237 = vsub.f32 %v1069, %v1229
      %v1238 = vsub.f32 %v1070, %v1230
      %v1239 = vsub.f32 %v1071, %v1231
      %v1240 = vsub.f32 %v1072, %v1232
      %v1241 = vmul.f32 %v1201, %v602
      %v1242 = vmul.f32 %v1202, %v604
      %v1243 = vmul.f32 %v1203, %v703
      %v1244 = vmul.f32 %v1204, %v705
      %v1245 = vmul.f32 %v1205, %v804
      %v1246 = vmul.f32 %v1206, %v806
      %v1247 = vmul.f32 %v1207, %v905
      %v1248 = vmul.f32 %v1208, %v907
      %v1249 = vsub.f32 %v1073, %v1241
      %v1250 = vsub.f32 %v1074, %v1242
      %v1251 = vsub.f32 %v1075, %v1243
      %v1252 = vsub.f32 %v1076, %v1244
      %v1253 = vsub.f32 %v1077, %v1245
      %v1254 = vsub.f32 %v1078, %v1246
      %v1255 = vsub.f32 %v1079, %v1247
      %v1256 = vsub.f32 %v1080, %v1248
      %v1257 = vld [vmem:[%s5] sm:$0xff]
      %v1258 = vld [vmem:[%s5 + $0x8] sm:$0xff]
      %s1259 = scalar_lea.vmem %s5, 16
      %v1260 = vld [vmem:[%s1259] sm:$0xff]
      %v1261 = vld [vmem:[%s1259 + $0x8] sm:$0xff]
      %vm1262 = vcmask 64512
      %v1264 = vsel %vm1262, %v1260, 0
      %v1267 = vsel %vm1262, %v1261, 0
      %1269 = vmatprep.subr.mxu0 %v1234
      %1270 = vmatpush1.msra.mxu0 %v1233
      %1271 = vmatprep.subr.mxu0 0.0
      %1272 = vmatpush1.msra.mxu0 0.0
      %1273 = vmatprep.subr.mxu0 0.0
      %1274 = vmatpush1.msra.mxu0 0.0
      %1275 = vmatprep.subr.mxu0 0.0
      %1276 = vmatpush1.msra.mxu0 0.0
      %1277 = vmatprep.subr.mxu0 0.0
      %1278 = vmatpush1.msra.mxu0 0.0
      %1279 = vmatprep.subr.mxu0 0.0
      %1280 = vmatpush1.msra.mxu0 0.0
      %1281 = vmatprep.subr.mxu0 0.0
      %1282 = vmatpush1.msra.mxu0 0.0
      %1283 = vmatprep.subr.mxu0 0.0
      %1284 = vmatpush1.msra.mxu0 0.0
      %1285 = vmatprep.subr.mxu0 0.0
      %1286 = vmatpush1.msra.mxu0 0.0
      %1287 = vmatprep.subr.mxu0 0.0
      %1288 = vmatpush1.msra.mxu0 0.0
      %1289 = vmatprep.subr.mxu0 0.0
      %1290 = vmatpush1.msra.mxu0 0.0
      %1291 = vmatprep.subr.mxu0 0.0
      %1292 = vmatpush1.msra.mxu0 0.0
      %1293 = vmatprep.subr.mxu0 0.0
      %1294 = vmatpush1.msra.mxu0 0.0
      %1295 = vmatprep.subr.mxu0 0.0
      %1296 = vmatpush1.msra.mxu0 0.0
      %1297 = vmatprep.subr.mxu0 0.0
      %1298 = vmatpush1.msra.mxu0 0.0
      %1299 = vmatprep.subr.mxu0 0.0
      %1300 = vmatpush1.msra.mxu0 0.0
      %1301 = vmatprep.subr.mxu0 0.0
      %1302 = vmatpush1.msra.mxu0 0.0
      %1303 = vmatprep.subr.mxu0 0.0
      %1304 = vmatpush1.msra.mxu0 0.0
      %1305 = vmatprep.subr.mxu0 0.0
      %1306 = vmatpush1.msra.mxu0 0.0
      %1307 = vmatprep.subr.mxu0 0.0
      %1308 = vmatpush1.msra.mxu0 0.0
      %1309 = vmatprep.subr.mxu0 0.0
      %1310 = vmatpush1.msra.mxu0 0.0
      %1311 = vmatprep.subr.mxu0 0.0
      %1312 = vmatpush1.msra.mxu0 0.0
      %1313 = vmatprep.subr.mxu0 0.0
      %1314 = vmatpush1.msra.mxu0 0.0
      %1315 = vmatprep.subr.mxu0 0.0
      %1316 = vmatpush1.msra.mxu0 0.0
      %1317 = vmatprep.subr.mxu0 0.0
      %1318 = vmatpush1.msra.mxu0 0.0
      %1319 = vmatprep.subr.mxu0 0.0
      %1320 = vmatpush1.msra.mxu0 0.0
      %1321 = vmatprep.subr.mxu0 0.0
      %1322 = vmatpush1.msra.mxu0 0.0
      %1323 = vmatprep.subr.mxu0 0.0
      %1324 = vmatpush1.msra.mxu0 0.0
      %1325 = vmatprep.subr.mxu0 0.0
      %1326 = vmatpush1.msra.mxu0 0.0
      %1327 = vmatprep.subr.mxu0 0.0
      %1328 = vmatpush1.msra.mxu0 0.0
      %1329 = vmatprep.subr.mxu0 0.0
      %1330 = vmatpush1.msra.mxu0 0.0
      %1331 = vmatprep.subr.mxu0 0.0
      %1332 = vmatpush1.msra.mxu0 0.0
      %1333 = vmatprep.mubr.f32.mxu0 0.0
      %1334 = vmatmul.mubr.f32.gmra.mrb[0].mxu0 %v1264
      %v1335 = vpop.f32.mrb[0].mxu0
      %v1336 = vadd.f32 0.0, %v1335
      %v1337 = vpop.f32.mrb[0].mxu0
      %v1338 = vadd.f32 0.0, %v1337
      %1339 = vmatprep.mubr.f32.mxu0 0.0
      %1340 = vmatmul.mubr.f32.gmra.mrb[0].mxu0 %v1267
      %v1341 = vpop.f32.mrb[0].mxu0
      %v1342 = vadd.f32 0.0, %v1341
      %v1343 = vpop.f32.mrb[0].mxu0
      %v1344 = vadd.f32 0.0, %v1343
      %1345 = vdwg.mxu0
      %1346 = vmatprep.subr.mxu0 %v1236
      %1347 = vmatpush1.msra.mxu0 %v1235
      %1348 = vmatprep.subr.mxu0 0.0
      %1349 = vmatpush1.msra.mxu0 0.0
      %1350 = vmatprep.subr.mxu0 0.0
      %1351 = vmatpush1.msra.mxu0 0.0
      %1352 = vmatprep.subr.mxu0 0.0
      %1353 = vmatpush1.msra.mxu0 0.0
      %1354 = vmatprep.subr.mxu0 0.0
      %1355 = vmatpush1.msra.mxu0 0.0
      %1356 = vmatprep.subr.mxu0 0.0
      %1357 = vmatpush1.msra.mxu0 0.0
      %1358 = vmatprep.subr.mxu0 0.0
      %1359 = vmatpush1.msra.mxu0 0.0
      %1360 = vmatprep.subr.mxu0 0.0
      %1361 = vmatpush1.msra.mxu0 0.0
      %1362 = vmatprep.subr.mxu0 0.0
      %1363 = vmatpush1.msra.mxu0 0.0
      %1364 = vmatprep.subr.mxu0 0.0
      %1365 = vmatpush1.msra.mxu0 0.0
      %1366 = vmatprep.subr.mxu0 0.0
      %1367 = vmatpush1.msra.mxu0 0.0
      %1368 = vmatprep.subr.mxu0 0.0
      %1369 = vmatpush1.msra.mxu0 0.0
      %1370 = vmatprep.subr.mxu0 0.0
      %1371 = vmatpush1.msra.mxu0 0.0
      %1372 = vmatprep.subr.mxu0 0.0
      %1373 = vmatpush1.msra.mxu0 0.0
      %1374 = vmatprep.subr.mxu0 0.0
      %1375 = vmatpush1.msra.mxu0 0.0
      %1376 = vmatprep.subr.mxu0 0.0
      %1377 = vmatpush1.msra.mxu0 0.0
      %1378 = vmatprep.subr.mxu0 0.0
      %1379 = vmatpush1.msra.mxu0 0.0
      %1380 = vmatprep.subr.mxu0 0.0
      %1381 = vmatpush1.msra.mxu0 0.0
      %1382 = vmatprep.subr.mxu0 0.0
      %1383 = vmatpush1.msra.mxu0 0.0
      %1384 = vmatprep.subr.mxu0 0.0
      %1385 = vmatpush1.msra.mxu0 0.0
      %1386 = vmatprep.subr.mxu0 0.0
      %1387 = vmatpush1.msra.mxu0 0.0
      %1388 = vmatprep.subr.mxu0 0.0
      %1389 = vmatpush1.msra.mxu0 0.0
      %1390 = vmatprep.subr.mxu0 0.0
      %1391 = vmatpush1.msra.mxu0 0.0
      %1392 = vmatprep.subr.mxu0 0.0
      %1393 = vmatpush1.msra.mxu0 0.0
      %1394 = vmatprep.subr.mxu0 0.0
      %1395 = vmatpush1.msra.mxu0 0.0
      %1396 = vmatprep.subr.mxu0 0.0
      %1397 = vmatpush1.msra.mxu0 0.0
      %1398 = vmatprep.subr.mxu0 0.0
      %1399 = vmatpush1.msra.mxu0 0.0
      %1400 = vmatprep.subr.mxu0 0.0
      %1401 = vmatpush1.msra.mxu0 0.0
      %1402 = vmatprep.subr.mxu0 0.0
      %1403 = vmatpush1.msra.mxu0 0.0
      %1404 = vmatprep.subr.mxu0 0.0
      %1405 = vmatpush1.msra.mxu0 0.0
      %1406 = vmatprep.subr.mxu0 0.0
      %1407 = vmatpush1.msra.mxu0 0.0
      %1408 = vmatprep.subr.mxu0 0.0
      %1409 = vmatpush1.msra.mxu0 0.0
      %1410 = vmatprep.mubr.f32.mxu0 0.0
      %1411 = vmatmul.mubr.f32.gmra.mrb[0].mxu0 %v1264
      %v1412 = vpop.f32.mrb[0].mxu0
      %v1413 = vadd.f32 0.0, %v1412
      %v1414 = vpop.f32.mrb[0].mxu0
      %v1415 = vadd.f32 0.0, %v1414
      %1416 = vmatprep.mubr.f32.mxu0 0.0
      %1417 = vmatmul.mubr.f32.gmra.mrb[0].mxu0 %v1267
      %v1418 = vpop.f32.mrb[0].mxu0
      %v1419 = vadd.f32 0.0, %v1418
      %v1420 = vpop.f32.mrb[0].mxu0
      %v1421 = vadd.f32 0.0, %v1420
      %1422 = vdwg.mxu0
      %1423 = vmatprep.subr.mxu0 %v1238
      %1424 = vmatpush1.msra.mxu0 %v1237
      %1425 = vmatprep.subr.mxu0 0.0
      %1426 = vmatpush1.msra.mxu0 0.0
      %1427 = vmatprep.subr.mxu0 0.0
      %1428 = vmatpush1.msra.mxu0 0.0
      %1429 = vmatprep.subr.mxu0 0.0
      %1430 = vmatpush1.msra.mxu0 0.0
      %1431 = vmatprep.subr.mxu0 0.0
      %1432 = vmatpush1.msra.mxu0 0.0
      %1433 = vmatprep.subr.mxu0 0.0
      %1434 = vmatpush1.msra.mxu0 0.0
      %1435 = vmatprep.subr.mxu0 0.0
      %1436 = vmatpush1.msra.mxu0 0.0
      %1437 = vmatprep.subr.mxu0 0.0
      %1438 = vmatpush1.msra.mxu0 0.0
      %1439 = vmatprep.subr.mxu0 0.0
      %1440 = vmatpush1.msra.mxu0 0.0
      %1441 = vmatprep.subr.mxu0 0.0
      %1442 = vmatpush1.msra.mxu0 0.0
      %1443 = vmatprep.subr.mxu0 0.0
      %1444 = vmatpush1.msra.mxu0 0.0
      %1445 = vmatprep.subr.mxu0 0.0
      %1446 = vmatpush1.msra.mxu0 0.0
      %1447 = vmatprep.subr.mxu0 0.0
      %1448 = vmatpush1.msra.mxu0 0.0
      %1449 = vmatprep.subr.mxu0 0.0
      %1450 = vmatpush1.msra.mxu0 0.0
      %1451 = vmatprep.subr.mxu0 0.0
      %1452 = vmatpush1.msra.mxu0 0.0
      %1453 = vmatprep.subr.mxu0 0.0
      %1454 = vmatpush1.msra.mxu0 0.0
      %1455 = vmatprep.subr.mxu0 0.0
      %1456 = vmatpush1.msra.mxu0 0.0
      %1457 = vmatprep.subr.mxu0 0.0
      %1458 = vmatpush1.msra.mxu0 0.0
      %1459 = vmatprep.subr.mxu0 0.0
      %1460 = vmatpush1.msra.mxu0 0.0
      %1461 = vmatprep.subr.mxu0 0.0
      %1462 = vmatpush1.msra.mxu0 0.0
      %1463 = vmatprep.subr.mxu0 0.0
      %1464 = vmatpush1.msra.mxu0 0.0
      %1465 = vmatprep.subr.mxu0 0.0
      %1466 = vmatpush1.msra.mxu0 0.0
      %1467 = vmatprep.subr.mxu0 0.0
      %1468 = vmatpush1.msra.mxu0 0.0
      %1469 = vmatprep.subr.mxu0 0.0
      %1470 = vmatpush1.msra.mxu0 0.0
      %1471 = vmatprep.subr.mxu0 0.0
      %1472 = vmatpush1.msra.mxu0 0.0
      %1473 = vmatprep.subr.mxu0 0.0
      %1474 = vmatpush1.msra.mxu0 0.0
      %1475 = vmatprep.subr.mxu0 0.0
      %1476 = vmatpush1.msra.mxu0 0.0
      %1477 = vmatprep.subr.mxu0 0.0
      %1478 = vmatpush1.msra.mxu0 0.0
      %1479 = vmatprep.subr.mxu0 0.0
      %1480 = vmatpush1.msra.mxu0 0.0
      %1481 = vmatprep.subr.mxu0 0.0
      %1482 = vmatpush1.msra.mxu0 0.0
      %1483 = vmatprep.subr.mxu0 0.0
      %1484 = vmatpush1.msra.mxu0 0.0
      %1485 = vmatprep.subr.mxu0 0.0
      %1486 = vmatpush1.msra.mxu0 0.0
      %1487 = vmatprep.mubr.f32.mxu0 0.0
      %1488 = vmatmul.mubr.f32.gmra.mrb[0].mxu0 %v1264
      %v1489 = vpop.f32.mrb[0].mxu0
      %v1490 = vadd.f32 0.0, %v1489
      %v1491 = vpop.f32.mrb[0].mxu0
      %v1492 = vadd.f32 0.0, %v1491
      %1493 = vmatprep.mubr.f32.mxu0 0.0
      %1494 = vmatmul.mubr.f32.gmra.mrb[0].mxu0 %v1267
      %v1495 = vpop.f32.mrb[0].mxu0
      %v1496 = vadd.f32 0.0, %v1495
      %v1497 = vpop.f32.mrb[0].mxu0
      %v1498 = vadd.f32 0.0, %v1497
      %1499 = vdwg.mxu0
      %1500 = vmatprep.subr.mxu0 %v1240
      %1501 = vmatpush1.msra.mxu0 %v1239
      %1502 = vmatprep.subr.mxu0 0.0
      %1503 = vmatpush1.msra.mxu0 0.0
      %1504 = vmatprep.subr.mxu0 0.0
      %1505 = vmatpush1.msra.mxu0 0.0
      %1506 = vmatprep.subr.mxu0 0.0
      %1507 = vmatpush1.msra.mxu0 0.0
      %1508 = vmatprep.subr.mxu0 0.0
      %1509 = vmatpush1.msra.mxu0 0.0
      %1510 = vmatprep.subr.mxu0 0.0
      %1511 = vmatpush1.msra.mxu0 0.0
      %1512 = vmatprep.subr.mxu0 0.0
      %1513 = vmatpush1.msra.mxu0 0.0
      %1514 = vmatprep.subr.mxu0 0.0
      %1515 = vmatpush1.msra.mxu0 0.0
      %1516 = vmatprep.subr.mxu0 0.0
      %1517 = vmatpush1.msra.mxu0 0.0
      %1518 = vmatprep.subr.mxu0 0.0
      %1519 = vmatpush1.msra.mxu0 0.0
      %1520 = vmatprep.subr.mxu0 0.0
      %1521 = vmatpush1.msra.mxu0 0.0
      %1522 = vmatprep.subr.mxu0 0.0
      %1523 = vmatpush1.msra.mxu0 0.0
      %1524 = vmatprep.subr.mxu0 0.0
      %1525 = vmatpush1.msra.mxu0 0.0
      %1526 = vmatprep.subr.mxu0 0.0
      %1527 = vmatpush1.msra.mxu0 0.0
      %1528 = vmatprep.subr.mxu0 0.0
      %1529 = vmatpush1.msra.mxu0 0.0
      %1530 = vmatprep.subr.mxu0 0.0
      %1531 = vmatpush1.msra.mxu0 0.0
      %1532 = vmatprep.subr.mxu0 0.0
      %1533 = vmatpush1.msra.mxu0 0.0
      %1534 = vmatprep.subr.mxu0 0.0
      %1535 = vmatpush1.msra.mxu0 0.0
      %1536 = vmatprep.subr.mxu0 0.0
      %1537 = vmatpush1.msra.mxu0 0.0
      %1538 = vmatprep.subr.mxu0 0.0
      %1539 = vmatpush1.msra.mxu0 0.0
      %1540 = vmatprep.subr.mxu0 0.0
      %1541 = vmatpush1.msra.mxu0 0.0
      %1542 = vmatprep.subr.mxu0 0.0
      %1543 = vmatpush1.msra.mxu0 0.0
      %1544 = vmatprep.subr.mxu0 0.0
      %1545 = vmatpush1.msra.mxu0 0.0
      %1546 = vmatprep.subr.mxu0 0.0
      %1547 = vmatpush1.msra.mxu0 0.0
      %1548 = vmatprep.subr.mxu0 0.0
      %1549 = vmatpush1.msra.mxu0 0.0
      %1550 = vmatprep.subr.mxu0 0.0
      %1551 = vmatpush1.msra.mxu0 0.0
      %1552 = vmatprep.subr.mxu0 0.0
      %1553 = vmatpush1.msra.mxu0 0.0
      %1554 = vmatprep.subr.mxu0 0.0
      %1555 = vmatpush1.msra.mxu0 0.0
      %1556 = vmatprep.subr.mxu0 0.0
      %1557 = vmatpush1.msra.mxu0 0.0
      %1558 = vmatprep.subr.mxu0 0.0
      %1559 = vmatpush1.msra.mxu0 0.0
      %1560 = vmatprep.subr.mxu0 0.0
      %1561 = vmatpush1.msra.mxu0 0.0
      %1562 = vmatprep.subr.mxu0 0.0
      %1563 = vmatpush1.msra.mxu0 0.0
      %1564 = vmatprep.mubr.f32.mxu0 0.0
      %1565 = vmatmul.mubr.f32.gmra.mrb[0].mxu0 %v1264
      %v1566 = vpop.f32.mrb[0].mxu0
      %v1567 = vadd.f32 0.0, %v1566
      %v1568 = vpop.f32.mrb[0].mxu0
      %v1569 = vadd.f32 0.0, %v1568
      %1570 = vmatprep.mubr.f32.mxu0 0.0
      %1571 = vmatmul.mubr.f32.gmra.mrb[0].mxu0 %v1267
      %v1572 = vpop.f32.mrb[0].mxu0
      %v1573 = vadd.f32 0.0, %v1572
      %v1574 = vpop.f32.mrb[0].mxu0
      %v1575 = vadd.f32 0.0, %v1574
      %1576 = vdwg.mxu0
      %v1578 = vsel %vm1262, %v1257, 0
      %v1581 = vsel %vm1262, %v1258, 0
      %1583 = vmatprep.subr.mxu0 %v1218
      %1584 = vmatpush1.msra.mxu0 %v1217
      %1585 = vmatprep.subr.mxu0 0.0
      %1586 = vmatpush1.msra.mxu0 0.0
      %1587 = vmatprep.subr.mxu0 0.0
      %1588 = vmatpush1.msra.mxu0 0.0
      %1589 = vmatprep.subr.mxu0 0.0
      %1590 = vmatpush1.msra.mxu0 0.0
      %1591 = vmatprep.subr.mxu0 0.0
      %1592 = vmatpush1.msra.mxu0 0.0
      %1593 = vmatprep.subr.mxu0 0.0
      %1594 = vmatpush1.msra.mxu0 0.0
      %1595 = vmatprep.subr.mxu0 0.0
      %1596 = vmatpush1.msra.mxu0 0.0
      %1597 = vmatprep.subr.mxu0 0.0
      %1598 = vmatpush1.msra.mxu0 0.0
      %1599 = vmatprep.subr.mxu0 0.0
      %1600 = vmatpush1.msra.mxu0 0.0
      %1601 = vmatprep.subr.mxu0 0.0
      %1602 = vmatpush1.msra.mxu0 0.0
      %1603 = vmatprep.subr.mxu0 0.0
      %1604 = vmatpush1.msra.mxu0 0.0
      %1605 = vmatprep.subr.mxu0 0.0
      %1606 = vmatpush1.msra.mxu0 0.0
      %1607 = vmatprep.subr.mxu0 0.0
      %1608 = vmatpush1.msra.mxu0 0.0
      %1609 = vmatprep.subr.mxu0 0.0
      %1610 = vmatpush1.msra.mxu0 0.0
      %1611 = vmatprep.subr.mxu0 0.0
      %1612 = vmatpush1.msra.mxu0 0.0
      %1613 = vmatprep.subr.mxu0 0.0
      %1614 = vmatpush1.msra.mxu0 0.0
      %1615 = vmatprep.subr.mxu0 0.0
      %1616 = vmatpush1.msra.mxu0 0.0
      %1617 = vmatprep.subr.mxu0 0.0
      %1618 = vmatpush1.msra.mxu0 0.0
      %1619 = vmatprep.subr.mxu0 0.0
      %1620 = vmatpush1.msra.mxu0 0.0
      %1621 = vmatprep.subr.mxu0 0.0
      %1622 = vmatpush1.msra.mxu0 0.0
      %1623 = vmatprep.subr.mxu0 0.0
      %1624 = vmatpush1.msra.mxu0 0.0
      %1625 = vmatprep.subr.mxu0 0.0
      %1626 = vmatpush1.msra.mxu0 0.0
      %1627 = vmatprep.subr.mxu0 0.0
      %1628 = vmatpush1.msra.mxu0 0.0
      %1629 = vmatprep.subr.mxu0 0.0
      %1630 = vmatpush1.msra.mxu0 0.0
      %1631 = vmatprep.subr.mxu0 0.0
      %1632 = vmatpush1.msra.mxu0 0.0
      %1633 = vmatprep.subr.mxu0 0.0
      %1634 = vmatpush1.msra.mxu0 0.0
      %1635 = vmatprep.subr.mxu0 0.0
      %1636 = vmatpush1.msra.mxu0 0.0
      %1637 = vmatprep.subr.mxu0 0.0
      %1638 = vmatpush1.msra.mxu0 0.0
      %1639 = vmatprep.subr.mxu0 0.0
      %1640 = vmatpush1.msra.mxu0 0.0
      %1641 = vmatprep.subr.mxu0 0.0
      %1642 = vmatpush1.msra.mxu0 0.0
      %1643 = vmatprep.subr.mxu0 0.0
      %1644 = vmatpush1.msra.mxu0 0.0
      %1645 = vmatprep.subr.mxu0 0.0
      %1646 = vmatpush1.msra.mxu0 0.0
      %1647 = vmatprep.mubr.f32.mxu0 0.0
      %1648 = vmatmul.mubr.f32.gmra.mrb[0].mxu0 %v1578
      %v1649 = vpop.f32.mrb[0].mxu0
      %v1650 = vadd.f32 %v1336, %v1649
      %v1651 = vpop.f32.mrb[0].mxu0
      %v1652 = vadd.f32 %v1338, %v1651
      %1653 = vmatprep.mubr.f32.mxu0 0.0
      %1654 = vmatmul.mubr.f32.gmra.mrb[0].mxu0 %v1581
      %v1655 = vpop.f32.mrb[0].mxu0
      %v1656 = vadd.f32 %v1342, %v1655
      %v1657 = vpop.f32.mrb[0].mxu0
      %v1658 = vadd.f32 %v1344, %v1657
      %1659 = vdwg.mxu0
      %1660 = vmatprep.subr.mxu0 %v1220
      %1661 = vmatpush1.msra.mxu0 %v1219
      %1662 = vmatprep.subr.mxu0 0.0
      %1663 = vmatpush1.msra.mxu0 0.0
      %1664 = vmatprep.subr.mxu0 0.0
      %1665 = vmatpush1.msra.mxu0 0.0
      %1666 = vmatprep.subr.mxu0 0.0
      %1667 = vmatpush1.msra.mxu0 0.0
      %1668 = vmatprep.subr.mxu0 0.0
      %1669 = vmatpush1.msra.mxu0 0.0
      %1670 = vmatprep.subr.mxu0 0.0
      %1671 = vmatpush1.msra.mxu0 0.0
      %1672 = vmatprep.subr.mxu0 0.0
      %1673 = vmatpush1.msra.mxu0 0.0
      %1674 = vmatprep.subr.mxu0 0.0
      %1675 = vmatpush1.msra.mxu0 0.0
      %1676 = vmatprep.subr.mxu0 0.0
      %1677 = vmatpush1.msra.mxu0 0.0
      %1678 = vmatprep.subr.mxu0 0.0
      %1679 = vmatpush1.msra.mxu0 0.0
      %1680 = vmatprep.subr.mxu0 0.0
      %1681 = vmatpush1.msra.mxu0 0.0
      %1682 = vmatprep.subr.mxu0 0.0
      %1683 = vmatpush1.msra.mxu0 0.0
      %1684 = vmatprep.subr.mxu0 0.0
      %1685 = vmatpush1.msra.mxu0 0.0
      %1686 = vmatprep.subr.mxu0 0.0
      %1687 = vmatpush1.msra.mxu0 0.0
      %1688 = vmatprep.subr.mxu0 0.0
      %1689 = vmatpush1.msra.mxu0 0.0
      %1690 = vmatprep.subr.mxu0 0.0
      %1691 = vmatpush1.msra.mxu0 0.0
      %1692 = vmatprep.subr.mxu0 0.0
      %1693 = vmatpush1.msra.mxu0 0.0
      %1694 = vmatprep.subr.mxu0 0.0
      %1695 = vmatpush1.msra.mxu0 0.0
      %1696 = vmatprep.subr.mxu0 0.0
      %1697 = vmatpush1.msra.mxu0 0.0
      %1698 = vmatprep.subr.mxu0 0.0
      %1699 = vmatpush1.msra.mxu0 0.0
      %1700 = vmatprep.subr.mxu0 0.0
      %1701 = vmatpush1.msra.mxu0 0.0
      %1702 = vmatprep.subr.mxu0 0.0
      %1703 = vmatpush1.msra.mxu0 0.0
      %1704 = vmatprep.subr.mxu0 0.0
      %1705 = vmatpush1.msra.mxu0 0.0
      %1706 = vmatprep.subr.mxu0 0.0
      %1707 = vmatpush1.msra.mxu0 0.0
      %1708 = vmatprep.subr.mxu0 0.0
      %1709 = vmatpush1.msra.mxu0 0.0
      %1710 = vmatprep.subr.mxu0 0.0
      %1711 = vmatpush1.msra.mxu0 0.0
      %1712 = vmatprep.subr.mxu0 0.0
      %1713 = vmatpush1.msra.mxu0 0.0
      %1714 = vmatprep.subr.mxu0 0.0
      %1715 = vmatpush1.msra.mxu0 0.0
      %1716 = vmatprep.subr.mxu0 0.0
      %1717 = vmatpush1.msra.mxu0 0.0
      %1718 = vmatprep.subr.mxu0 0.0
      %1719 = vmatpush1.msra.mxu0 0.0
      %1720 = vmatprep.subr.mxu0 0.0
      %1721 = vmatpush1.msra.mxu0 0.0
      %1722 = vmatprep.subr.mxu0 0.0
      %1723 = vmatpush1.msra.mxu0 0.0
      %1724 = vmatprep.mubr.f32.mxu0 0.0
      %1725 = vmatmul.mubr.f32.gmra.mrb[0].mxu0 %v1578
      %v1726 = vpop.f32.mrb[0].mxu0
      %v1727 = vadd.f32 %v1413, %v1726
      %v1728 = vpop.f32.mrb[0].mxu0
      %v1729 = vadd.f32 %v1415, %v1728
      %1730 = vmatprep.mubr.f32.mxu0 0.0
      %1731 = vmatmul.mubr.f32.gmra.mrb[0].mxu0 %v1581
      %v1732 = vpop.f32.mrb[0].mxu0
      %v1733 = vadd.f32 %v1419, %v1732
      %v1734 = vpop.f32.mrb[0].mxu0
      %v1735 = vadd.f32 %v1421, %v1734
      %1736 = vdwg.mxu0
      %1737 = vmatprep.subr.mxu0 %v1222
      %1738 = vmatpush1.msra.mxu0 %v1221
      %1739 = vmatprep.subr.mxu0 0.0
      %1740 = vmatpush1.msra.mxu0 0.0
      %1741 = vmatprep.subr.mxu0 0.0
      %1742 = vmatpush1.msra.mxu0 0.0
      %1743 = vmatprep.subr.mxu0 0.0
      %1744 = vmatpush1.msra.mxu0 0.0
      %1745 = vmatprep.subr.mxu0 0.0
      %1746 = vmatpush1.msra.mxu0 0.0
      %1747 = vmatprep.subr.mxu0 0.0
      %1748 = vmatpush1.msra.mxu0 0.0
      %1749 = vmatprep.subr.mxu0 0.0
      %1750 = vmatpush1.msra.mxu0 0.0
      %1751 = vmatprep.subr.mxu0 0.0
      %1752 = vmatpush1.msra.mxu0 0.0
      %1753 = vmatprep.subr.mxu0 0.0
      %1754 = vmatpush1.msra.mxu0 0.0
      %1755 = vmatprep.subr.mxu0 0.0
      %1756 = vmatpush1.msra.mxu0 0.0
      %1757 = vmatprep.subr.mxu0 0.0
      %1758 = vmatpush1.msra.mxu0 0.0
      %1759 = vmatprep.subr.mxu0 0.0
      %1760 = vmatpush1.msra.mxu0 0.0
      %1761 = vmatprep.subr.mxu0 0.0
      %1762 = vmatpush1.msra.mxu0 0.0
      %1763 = vmatprep.subr.mxu0 0.0
      %1764 = vmatpush1.msra.mxu0 0.0
      %1765 = vmatprep.subr.mxu0 0.0
      %1766 = vmatpush1.msra.mxu0 0.0
      %1767 = vmatprep.subr.mxu0 0.0
      %1768 = vmatpush1.msra.mxu0 0.0
      %1769 = vmatprep.subr.mxu0 0.0
      %1770 = vmatpush1.msra.mxu0 0.0
      %1771 = vmatprep.subr.mxu0 0.0
      %1772 = vmatpush1.msra.mxu0 0.0
      %1773 = vmatprep.subr.mxu0 0.0
      %1774 = vmatpush1.msra.mxu0 0.0
      %1775 = vmatprep.subr.mxu0 0.0
      %1776 = vmatpush1.msra.mxu0 0.0
      %1777 = vmatprep.subr.mxu0 0.0
      %1778 = vmatpush1.msra.mxu0 0.0
      %1779 = vmatprep.subr.mxu0 0.0
      %1780 = vmatpush1.msra.mxu0 0.0
      %1781 = vmatprep.subr.mxu0 0.0
      %1782 = vmatpush1.msra.mxu0 0.0
      %1783 = vmatprep.subr.mxu0 0.0
      %1784 = vmatpush1.msra.mxu0 0.0
      %1785 = vmatprep.subr.mxu0 0.0
      %1786 = vmatpush1.msra.mxu0 0.0
      %1787 = vmatprep.subr.mxu0 0.0
      %1788 = vmatpush1.msra.mxu0 0.0
      %1789 = vmatprep.subr.mxu0 0.0
      %1790 = vmatpush1.msra.mxu0 0.0
      %1791 = vmatprep.subr.mxu0 0.0
      %1792 = vmatpush1.msra.mxu0 0.0
      %1793 = vmatprep.subr.mxu0 0.0
      %1794 = vmatpush1.msra.mxu0 0.0
      %1795 = vmatprep.subr.mxu0 0.0
      %1796 = vmatpush1.msra.mxu0 0.0
      %1797 = vmatprep.subr.mxu0 0.0
      %1798 = vmatpush1.msra.mxu0 0.0
      %1799 = vmatprep.subr.mxu0 0.0
      %1800 = vmatpush1.msra.mxu0 0.0
      %1801 = vmatprep.mubr.f32.mxu0 0.0
      %1802 = vmatmul.mubr.f32.gmra.mrb[0].mxu0 %v1578
      %v1803 = vpop.f32.mrb[0].mxu0
      %v1804 = vadd.f32 %v1490, %v1803
      %v1805 = vpop.f32.mrb[0].mxu0
      %v1806 = vadd.f32 %v1492, %v1805
      %1807 = vmatprep.mubr.f32.mxu0 0.0
      %1808 = vmatmul.mubr.f32.gmra.mrb[0].mxu0 %v1581
      %v1809 = vpop.f32.mrb[0].mxu0
      %v1810 = vadd.f32 %v1496, %v1809
      %v1811 = vpop.f32.mrb[0].mxu0
      %v1812 = vadd.f32 %v1498, %v1811
      %1813 = vdwg.mxu0
      %1814 = vmatprep.subr.mxu0 %v1224
      %1815 = vmatpush1.msra.mxu0 %v1223
      %1816 = vmatprep.subr.mxu0 0.0
      %1817 = vmatpush1.msra.mxu0 0.0
      %1818 = vmatprep.subr.mxu0 0.0
      %1819 = vmatpush1.msra.mxu0 0.0
      %1820 = vmatprep.subr.mxu0 0.0
      %1821 = vmatpush1.msra.mxu0 0.0
      %1822 = vmatprep.subr.mxu0 0.0
      %1823 = vmatpush1.msra.mxu0 0.0
      %1824 = vmatprep.subr.mxu0 0.0
      %1825 = vmatpush1.msra.mxu0 0.0
      %1826 = vmatprep.subr.mxu0 0.0
      %1827 = vmatpush1.msra.mxu0 0.0
      %1828 = vmatprep.subr.mxu0 0.0
      %1829 = vmatpush1.msra.mxu0 0.0
      %1830 = vmatprep.subr.mxu0 0.0
      %1831 = vmatpush1.msra.mxu0 0.0
      %1832 = vmatprep.subr.mxu0 0.0
      %1833 = vmatpush1.msra.mxu0 0.0
      %1834 = vmatprep.subr.mxu0 0.0
      %1835 = vmatpush1.msra.mxu0 0.0
      %1836 = vmatprep.subr.mxu0 0.0
      %1837 = vmatpush1.msra.mxu0 0.0
      %1838 = vmatprep.subr.mxu0 0.0
      %1839 = vmatpush1.msra.mxu0 0.0
      %1840 = vmatprep.subr.mxu0 0.0
      %1841 = vmatpush1.msra.mxu0 0.0
      %1842 = vmatprep.subr.mxu0 0.0
      %1843 = vmatpush1.msra.mxu0 0.0
      %1844 = vmatprep.subr.mxu0 0.0
      %1845 = vmatpush1.msra.mxu0 0.0
      %1846 = vmatprep.subr.mxu0 0.0
      %1847 = vmatpush1.msra.mxu0 0.0
      %1848 = vmatprep.subr.mxu0 0.0
      %1849 = vmatpush1.msra.mxu0 0.0
      %1850 = vmatprep.subr.mxu0 0.0
      %1851 = vmatpush1.msra.mxu0 0.0
      %1852 = vmatprep.subr.mxu0 0.0
      %1853 = vmatpush1.msra.mxu0 0.0
      %1854 = vmatprep.subr.mxu0 0.0
      %1855 = vmatpush1.msra.mxu0 0.0
      %1856 = vmatprep.subr.mxu0 0.0
      %1857 = vmatpush1.msra.mxu0 0.0
      %1858 = vmatprep.subr.mxu0 0.0
      %1859 = vmatpush1.msra.mxu0 0.0
      %1860 = vmatprep.subr.mxu0 0.0
      %1861 = vmatpush1.msra.mxu0 0.0
      %1862 = vmatprep.subr.mxu0 0.0
      %1863 = vmatpush1.msra.mxu0 0.0
      %1864 = vmatprep.subr.mxu0 0.0
      %1865 = vmatpush1.msra.mxu0 0.0
      %1866 = vmatprep.subr.mxu0 0.0
      %1867 = vmatpush1.msra.mxu0 0.0
      %1868 = vmatprep.subr.mxu0 0.0
      %1869 = vmatpush1.msra.mxu0 0.0
      %1870 = vmatprep.subr.mxu0 0.0
      %1871 = vmatpush1.msra.mxu0 0.0
      %1872 = vmatprep.subr.mxu0 0.0
      %1873 = vmatpush1.msra.mxu0 0.0
      %1874 = vmatprep.subr.mxu0 0.0
      %1875 = vmatpush1.msra.mxu0 0.0
      %1876 = vmatprep.subr.mxu0 0.0
      %1877 = vmatpush1.msra.mxu0 0.0
      %1878 = vmatprep.mubr.f32.mxu0 0.0
      %1879 = vmatmul.mubr.f32.gmra.mrb[0].mxu0 %v1578
      %v1880 = vpop.f32.mrb[0].mxu0
      %v1881 = vadd.f32 %v1567, %v1880
      %v1882 = vpop.f32.mrb[0].mxu0
      %v1883 = vadd.f32 %v1569, %v1882
      %1884 = vmatprep.mubr.f32.mxu0 0.0
      %1885 = vmatmul.mubr.f32.gmra.mrb[0].mxu0 %v1581
      %v1886 = vpop.f32.mrb[0].mxu0
      %v1887 = vadd.f32 %v1573, %v1886
      %v1888 = vpop.f32.mrb[0].mxu0
      %v1889 = vadd.f32 %v1575, %v1888
      %1890 = vdwg.mxu0
      %s1891 = scalar_lea.vmem %s5, 32
      %v1892 = vld [vmem:[%s1891] sm:$0xff]
      %v1893 = vld [vmem:[%s1891 + $0x8] sm:$0xff]
      %v1895 = vsel %vm1262, %v1892, 0
      %v1898 = vsel %vm1262, %v1893, 0
      %1900 = vmatprep.subr.mxu0 %v1250
      %1901 = vmatpush1.msra.mxu0 %v1249
      %1902 = vmatprep.subr.mxu0 0.0
      %1903 = vmatpush1.msra.mxu0 0.0
      %1904 = vmatprep.subr.mxu0 0.0
      %1905 = vmatpush1.msra.mxu0 0.0
      %1906 = vmatprep.subr.mxu0 0.0
      %1907 = vmatpush1.msra.mxu0 0.0
      %1908 = vmatprep.subr.mxu0 0.0
      %1909 = vmatpush1.msra.mxu0 0.0
      %1910 = vmatprep.subr.mxu0 0.0
      %1911 = vmatpush1.msra.mxu0 0.0
      %1912 = vmatprep.subr.mxu0 0.0
      %1913 = vmatpush1.msra.mxu0 0.0
      %1914 = vmatprep.subr.mxu0 0.0
      %1915 = vmatpush1.msra.mxu0 0.0
      %1916 = vmatprep.subr.mxu0 0.0
      %1917 = vmatpush1.msra.mxu0 0.0
      %1918 = vmatprep.subr.mxu0 0.0
      %1919 = vmatpush1.msra.mxu0 0.0
      %1920 = vmatprep.subr.mxu0 0.0
      %1921 = vmatpush1.msra.mxu0 0.0
      %1922 = vmatprep.subr.mxu0 0.0
      %1923 = vmatpush1.msra.mxu0 0.0
      %1924 = vmatprep.subr.mxu0 0.0
      %1925 = vmatpush1.msra.mxu0 0.0
      %1926 = vmatprep.subr.mxu0 0.0
      %1927 = vmatpush1.msra.mxu0 0.0
      %1928 = vmatprep.subr.mxu0 0.0
      %1929 = vmatpush1.msra.mxu0 0.0
      %1930 = vmatprep.subr.mxu0 0.0
      %1931 = vmatpush1.msra.mxu0 0.0
      %1932 = vmatprep.subr.mxu0 0.0
      %1933 = vmatpush1.msra.mxu0 0.0
      %1934 = vmatprep.subr.mxu0 0.0
      %1935 = vmatpush1.msra.mxu0 0.0
      %1936 = vmatprep.subr.mxu0 0.0
      %1937 = vmatpush1.msra.mxu0 0.0
      %1938 = vmatprep.subr.mxu0 0.0
      %1939 = vmatpush1.msra.mxu0 0.0
      %1940 = vmatprep.subr.mxu0 0.0
      %1941 = vmatpush1.msra.mxu0 0.0
      %1942 = vmatprep.subr.mxu0 0.0
      %1943 = vmatpush1.msra.mxu0 0.0
      %1944 = vmatprep.subr.mxu0 0.0
      %1945 = vmatpush1.msra.mxu0 0.0
      %1946 = vmatprep.subr.mxu0 0.0
      %1947 = vmatpush1.msra.mxu0 0.0
      %1948 = vmatprep.subr.mxu0 0.0
      %1949 = vmatpush1.msra.mxu0 0.0
      %1950 = vmatprep.subr.mxu0 0.0
      %1951 = vmatpush1.msra.mxu0 0.0
      %1952 = vmatprep.subr.mxu0 0.0
      %1953 = vmatpush1.msra.mxu0 0.0
      %1954 = vmatprep.subr.mxu0 0.0
      %1955 = vmatpush1.msra.mxu0 0.0
      %1956 = vmatprep.subr.mxu0 0.0
      %1957 = vmatpush1.msra.mxu0 0.0
      %1958 = vmatprep.subr.mxu0 0.0
      %1959 = vmatpush1.msra.mxu0 0.0
      %1960 = vmatprep.subr.mxu0 0.0
      %1961 = vmatpush1.msra.mxu0 0.0
      %1962 = vmatprep.subr.mxu0 0.0
      %1963 = vmatpush1.msra.mxu0 0.0
      %1964 = vmatprep.mubr.f32.mxu0 0.0
      %1965 = vmatmul.mubr.f32.gmra.mrb[0].mxu0 %v1895
      %v1966 = vpop.f32.mrb[0].mxu0
      %v1967 = vadd.f32 0.0, %v1966
      %v1968 = vpop.f32.mrb[0].mxu0
      %v1969 = vadd.f32 0.0, %v1968
      %1970 = vmatprep.mubr.f32.mxu0 0.0
      %1971 = vmatmul.mubr.f32.gmra.mrb[0].mxu0 %v1898
      %v1972 = vpop.f32.mrb[0].mxu0
      %v1973 = vadd.f32 0.0, %v1972
      %v1974 = vpop.f32.mrb[0].mxu0
      %v1975 = vadd.f32 0.0, %v1974
      %1976 = vdwg.mxu0
      %1977 = vmatprep.subr.mxu0 %v1252
      %1978 = vmatpush1.msra.mxu0 %v1251
      %1979 = vmatprep.subr.mxu0 0.0
      %1980 = vmatpush1.msra.mxu0 0.0
      %1981 = vmatprep.subr.mxu0 0.0
      %1982 = vmatpush1.msra.mxu0 0.0
      %1983 = vmatprep.subr.mxu0 0.0
      %1984 = vmatpush1.msra.mxu0 0.0
      %1985 = vmatprep.subr.mxu0 0.0
      %1986 = vmatpush1.msra.mxu0 0.0
      %1987 = vmatprep.subr.mxu0 0.0
      %1988 = vmatpush1.msra.mxu0 0.0
      %1989 = vmatprep.subr.mxu0 0.0
      %1990 = vmatpush1.msra.mxu0 0.0
      %1991 = vmatprep.subr.mxu0 0.0
      %1992 = vmatpush1.msra.mxu0 0.0
      %1993 = vmatprep.subr.mxu0 0.0
      %1994 = vmatpush1.msra.mxu0 0.0
      %1995 = vmatprep.subr.mxu0 0.0
      %1996 = vmatpush1.msra.mxu0 0.0
      %1997 = vmatprep.subr.mxu0 0.0
      %1998 = vmatpush1.msra.mxu0 0.0
      %1999 = vmatprep.subr.mxu0 0.0
      %2000 = vmatpush1.msra.mxu0 0.0
      %2001 = vmatprep.subr.mxu0 0.0
      %2002 = vmatpush1.msra.mxu0 0.0
      %2003 = vmatprep.subr.mxu0 0.0
      %2004 = vmatpush1.msra.mxu0 0.0
      %2005 = vmatprep.subr.mxu0 0.0
      %2006 = vmatpush1.msra.mxu0 0.0
      %2007 = vmatprep.subr.mxu0 0.0
      %2008 = vmatpush1.msra.mxu0 0.0
      %2009 = vmatprep.subr.mxu0 0.0
      %2010 = vmatpush1.msra.mxu0 0.0
      %2011 = vmatprep.subr.mxu0 0.0
      %2012 = vmatpush1.msra.mxu0 0.0
      %2013 = vmatprep.subr.mxu0 0.0
      %2014 = vmatpush1.msra.mxu0 0.0
      %2015 = vmatprep.subr.mxu0 0.0
      %2016 = vmatpush1.msra.mxu0 0.0
      %2017 = vmatprep.subr.mxu0 0.0
      %2018 = vmatpush1.msra.mxu0 0.0
      %2019 = vmatprep.subr.mxu0 0.0
      %2020 = vmatpush1.msra.mxu0 0.0
      %2021 = vmatprep.subr.mxu0 0.0
      %2022 = vmatpush1.msra.mxu0 0.0
      %2023 = vmatprep.subr.mxu0 0.0
      %2024 = vmatpush1.msra.mxu0 0.0
      %2025 = vmatprep.subr.mxu0 0.0
      %2026 = vmatpush1.msra.mxu0 0.0
      %2027 = vmatprep.subr.mxu0 0.0
      %2028 = vmatpush1.msra.mxu0 0.0
      %2029 = vmatprep.subr.mxu0 0.0
      %2030 = vmatpush1.msra.mxu0 0.0
      %2031 = vmatprep.subr.mxu0 0.0
      %2032 = vmatpush1.msra.mxu0 0.0
      %2033 = vmatprep.subr.mxu0 0.0
      %2034 = vmatpush1.msra.mxu0 0.0
      %2035 = vmatprep.subr.mxu0 0.0
      %2036 = vmatpush1.msra.mxu0 0.0
      %2037 = vmatprep.subr.mxu0 0.0
      %2038 = vmatpush1.msra.mxu0 0.0
      %2039 = vmatprep.subr.mxu0 0.0
      %2040 = vmatpush1.msra.mxu0 0.0
      %2041 = vmatprep.mubr.f32.mxu0 0.0
      %2042 = vmatmul.mubr.f32.gmra.mrb[0].mxu0 %v1895
      %v2043 = vpop.f32.mrb[0].mxu0
      %v2044 = vadd.f32 0.0, %v2043
      %v2045 = vpop.f32.mrb[0].mxu0
      %v2046 = vadd.f32 0.0, %v2045
      %2047 = vmatprep.mubr.f32.mxu0 0.0
      %2048 = vmatmul.mubr.f32.gmra.mrb[0].mxu0 %v1898
      %v2049 = vpop.f32.mrb[0].mxu0
      %v2050 = vadd.f32 0.0, %v2049
      %v2051 = vpop.f32.mrb[0].mxu0
      %v2052 = vadd.f32 0.0, %v2051
      %2053 = vdwg.mxu0
      %2054 = vmatprep.subr.mxu0 %v1254
      %2055 = vmatpush1.msra.mxu0 %v1253
      %2056 = vmatprep.subr.mxu0 0.0
      %2057 = vmatpush1.msra.mxu0 0.0
      %2058 = vmatprep.subr.mxu0 0.0
      %2059 = vmatpush1.msra.mxu0 0.0
      %2060 = vmatprep.subr.mxu0 0.0
      %2061 = vmatpush1.msra.mxu0 0.0
      %2062 = vmatprep.subr.mxu0 0.0
      %2063 = vmatpush1.msra.mxu0 0.0
      %2064 = vmatprep.subr.mxu0 0.0
      %2065 = vmatpush1.msra.mxu0 0.0
      %2066 = vmatprep.subr.mxu0 0.0
      %2067 = vmatpush1.msra.mxu0 0.0
      %2068 = vmatprep.subr.mxu0 0.0
      %2069 = vmatpush1.msra.mxu0 0.0
      %2070 = vmatprep.subr.mxu0 0.0
      %2071 = vmatpush1.msra.mxu0 0.0
      %2072 = vmatprep.subr.mxu0 0.0
      %2073 = vmatpush1.msra.mxu0 0.0
      %2074 = vmatprep.subr.mxu0 0.0
      %2075 = vmatpush1.msra.mxu0 0.0
      %2076 = vmatprep.subr.mxu0 0.0
      %2077 = vmatpush1.msra.mxu0 0.0
      %2078 = vmatprep.subr.mxu0 0.0
      %2079 = vmatpush1.msra.mxu0 0.0
      %2080 = vmatprep.subr.mxu0 0.0
      %2081 = vmatpush1.msra.mxu0 0.0
      %2082 = vmatprep.subr.mxu0 0.0
      %2083 = vmatpush1.msra.mxu0 0.0
      %2084 = vmatprep.subr.mxu0 0.0
      %2085 = vmatpush1.msra.mxu0 0.0
      %2086 = vmatprep.subr.mxu0 0.0
      %2087 = vmatpush1.msra.mxu0 0.0
      %2088 = vmatprep.subr.mxu0 0.0
      %2089 = vmatpush1.msra.mxu0 0.0
      %2090 = vmatprep.subr.mxu0 0.0
      %2091 = vmatpush1.msra.mxu0 0.0
      %2092 = vmatprep.subr.mxu0 0.0
      %2093 = vmatpush1.msra.mxu0 0.0
      %2094 = vmatprep.subr.mxu0 0.0
      %2095 = vmatpush1.msra.mxu0 0.0
      %2096 = vmatprep.subr.mxu0 0.0
      %2097 = vmatpush1.msra.mxu0 0.0
      %2098 = vmatprep.subr.mxu0 0.0
      %2099 = vmatpush1.msra.mxu0 0.0
      %2100 = vmatprep.subr.mxu0 0.0
      %2101 = vmatpush1.msra.mxu0 0.0
      %2102 = vmatprep.subr.mxu0 0.0
      %2103 = vmatpush1.msra.mxu0 0.0
      %2104 = vmatprep.subr.mxu0 0.0
      %2105 = vmatpush1.msra.mxu0 0.0
      %2106 = vmatprep.subr.mxu0 0.0
      %2107 = vmatpush1.msra.mxu0 0.0
      %2108 = vmatprep.subr.mxu0 0.0
      %2109 = vmatpush1.msra.mxu0 0.0
      %2110 = vmatprep.subr.mxu0 0.0
      %2111 = vmatpush1.msra.mxu0 0.0
      %2112 = vmatprep.subr.mxu0 0.0
      %2113 = vmatpush1.msra.mxu0 0.0
      %2114 = vmatprep.subr.mxu0 0.0
      %2115 = vmatpush1.msra.mxu0 0.0
      %2116 = vmatprep.subr.mxu0 0.0
      %2117 = vmatpush1.msra.mxu0 0.0
      %2118 = vmatprep.mubr.f32.mxu0 0.0
      %2119 = vmatmul.mubr.f32.gmra.mrb[0].mxu0 %v1895
      %v2120 = vpop.f32.mrb[0].mxu0
      %v2121 = vadd.f32 0.0, %v2120
      %v2122 = vpop.f32.mrb[0].mxu0
      %v2123 = vadd.f32 0.0, %v2122
      %2124 = vmatprep.mubr.f32.mxu0 0.0
      %2125 = vmatmul.mubr.f32.gmra.mrb[0].mxu0 %v1898
      %v2126 = vpop.f32.mrb[0].mxu0
      %v2127 = vadd.f32 0.0, %v2126
      %v2128 = vpop.f32.mrb[0].mxu0
      %v2129 = vadd.f32 0.0, %v2128
      %2130 = vdwg.mxu0
      %2131 = vmatprep.subr.mxu0 %v1256
      %2132 = vmatpush1.msra.mxu0 %v1255
      %2133 = vmatprep.subr.mxu0 0.0
      %2134 = vmatpush1.msra.mxu0 0.0
      %2135 = vmatprep.subr.mxu0 0.0
      %2136 = vmatpush1.msra.mxu0 0.0
      %2137 = vmatprep.subr.mxu0 0.0
      %2138 = vmatpush1.msra.mxu0 0.0
      %2139 = vmatprep.subr.mxu0 0.0
      %2140 = vmatpush1.msra.mxu0 0.0
      %2141 = vmatprep.subr.mxu0 0.0
      %2142 = vmatpush1.msra.mxu0 0.0
      %2143 = vmatprep.subr.mxu0 0.0
      %2144 = vmatpush1.msra.mxu0 0.0
      %2145 = vmatprep.subr.mxu0 0.0
      %2146 = vmatpush1.msra.mxu0 0.0
      %2147 = vmatprep.subr.mxu0 0.0
      %2148 = vmatpush1.msra.mxu0 0.0
      %2149 = vmatprep.subr.mxu0 0.0
      %2150 = vmatpush1.msra.mxu0 0.0
      %2151 = vmatprep.subr.mxu0 0.0
      %2152 = vmatpush1.msra.mxu0 0.0
      %2153 = vmatprep.subr.mxu0 0.0
      %2154 = vmatpush1.msra.mxu0 0.0
      %2155 = vmatprep.subr.mxu0 0.0
      %2156 = vmatpush1.msra.mxu0 0.0
      %2157 = vmatprep.subr.mxu0 0.0
      %2158 = vmatpush1.msra.mxu0 0.0
      %2159 = vmatprep.subr.mxu0 0.0
      %2160 = vmatpush1.msra.mxu0 0.0
      %2161 = vmatprep.subr.mxu0 0.0
      %2162 = vmatpush1.msra.mxu0 0.0
      %2163 = vmatprep.subr.mxu0 0.0
      %2164 = vmatpush1.msra.mxu0 0.0
      %2165 = vmatprep.subr.mxu0 0.0
      %2166 = vmatpush1.msra.mxu0 0.0
      %2167 = vmatprep.subr.mxu0 0.0
      %2168 = vmatpush1.msra.mxu0 0.0
      %2169 = vmatprep.subr.mxu0 0.0
      %2170 = vmatpush1.msra.mxu0 0.0
      %2171 = vmatprep.subr.mxu0 0.0
      %2172 = vmatpush1.msra.mxu0 0.0
      %2173 = vmatprep.subr.mxu0 0.0
      %2174 = vmatpush1.msra.mxu0 0.0
      %2175 = vmatprep.subr.mxu0 0.0
      %2176 = vmatpush1.msra.mxu0 0.0
      %2177 = vmatprep.subr.mxu0 0.0
      %2178 = vmatpush1.msra.mxu0 0.0
      %2179 = vmatprep.subr.mxu0 0.0
      %2180 = vmatpush1.msra.mxu0 0.0
      %2181 = vmatprep.subr.mxu0 0.0
      %2182 = vmatpush1.msra.mxu0 0.0
      %2183 = vmatprep.subr.mxu0 0.0
      %2184 = vmatpush1.msra.mxu0 0.0
      %2185 = vmatprep.subr.mxu0 0.0
      %2186 = vmatpush1.msra.mxu0 0.0
      %2187 = vmatprep.subr.mxu0 0.0
      %2188 = vmatpush1.msra.mxu0 0.0
      %2189 = vmatprep.subr.mxu0 0.0
      %2190 = vmatpush1.msra.mxu0 0.0
      %2191 = vmatprep.subr.mxu0 0.0
      %2192 = vmatpush1.msra.mxu0 0.0
      %2193 = vmatprep.subr.mxu0 0.0
      %2194 = vmatpush1.msra.mxu0 0.0
      %2195 = vmatprep.mubr.f32.mxu0 0.0
      %2196 = vmatmul.mubr.f32.gmra.mrb[0].mxu0 %v1895
      %v2197 = vpop.f32.mrb[0].mxu0
      %v2198 = vadd.f32 0.0, %v2197
      %v2199 = vpop.f32.mrb[0].mxu0
      %v2200 = vadd.f32 0.0, %v2199
      %2201 = vmatprep.mubr.f32.mxu0 0.0
      %2202 = vmatmul.mubr.f32.gmra.mrb[0].mxu0 %v1898
      %v2203 = vpop.f32.mrb[0].mxu0
      %v2204 = vadd.f32 0.0, %v2203
      %v2205 = vpop.f32.mrb[0].mxu0
      %v2206 = vadd.f32 0.0, %v2205
      %2207 = vdwg.mxu0
      %v2208 = vadd.f32 %v1650, %v1967
      %v2209 = vadd.f32 %v1652, %v1969
      %v2210 = vadd.f32 %v1727, %v2044
      %v2211 = vadd.f32 %v1729, %v2046
      %v2212 = vadd.f32 %v1804, %v2121
      %v2213 = vadd.f32 %v1806, %v2123
      %v2214 = vadd.f32 %v1881, %v2198
      %v2215 = vadd.f32 %v1883, %v2200
      %v2216 = vadd.f32 %v1656, %v1973
      %v2217 = vadd.f32 %v1658, %v1975
      %v2218 = vadd.f32 %v1733, %v2050
      %v2219 = vadd.f32 %v1735, %v2052
      %v2220 = vadd.f32 %v1810, %v2127
      %v2221 = vadd.f32 %v1812, %v2129
      %v2222 = vadd.f32 %v1887, %v2204
      %v2223 = vadd.f32 %v1889, %v2206
      %2224 = vst [vmem:[%s430] sm:$0xff] %v2208
      %2225 = vst [vmem:[%s430 + $0x8] sm:$0xff] %v2209
      %2226 = vst [vmem:[%s430 + $0x10] sm:$0xff] %v2210
      %2227 = vst [vmem:[%s430 + $0x18] sm:$0xff] %v2211
      %2228 = vst [vmem:[%s430 + $0x20] sm:$0xff] %v2212
      %2229 = vst [vmem:[%s430 + $0x28] sm:$0xff] %v2213
      %2230 = vst [vmem:[%s430 + $0x30] sm:$0xff] %v2214
      %2231 = vst [vmem:[%s430 + $0x38] sm:$0xff] %v2215
      %2232 = vst [vmem:[%s430 + $0x40] sm:$0xff] %v2216
      %2233 = vst [vmem:[%s430 + $0x48] sm:$0xff] %v2217
      %2234 = vst [vmem:[%s430 + $0x50] sm:$0xff] %v2218
      %2235 = vst [vmem:[%s430 + $0x58] sm:$0xff] %v2219
      %2236 = vst [vmem:[%s430 + $0x60] sm:$0xff] %v2220
      %2237 = vst [vmem:[%s430 + $0x68] sm:$0xff] %v2221
      %2238 = vst [vmem:[%s430 + $0x70] sm:$0xff] %v2222
      %2239 = vst [vmem:[%s430 + $0x78] sm:$0xff] %v2223
      %v2240 = vld [vmem:[%s400] sm:$0xff]
      %v2241 = vld [vmem:[%s400 + $0x8] sm:$0xff]
      %v2242 = vld [vmem:[%s400 + $0x10] sm:$0xff]
      %v2243 = vld [vmem:[%s400 + $0x18] sm:$0xff]
      %v2244 = vld [vmem:[%s400 + $0x20] sm:$0xff]
      %v2245 = vld [vmem:[%s400 + $0x28] sm:$0xff]
      %v2246 = vld [vmem:[%s400 + $0x30] sm:$0xff]
      %v2247 = vld [vmem:[%s400 + $0x38] sm:$0xff]
      %v2248 = vld [vmem:[%s400 + $0x40] sm:$0xff]
      %v2249 = vld [vmem:[%s400 + $0x48] sm:$0xff]
      %v2250 = vld [vmem:[%s400 + $0x50] sm:$0xff]
      %v2251 = vld [vmem:[%s400 + $0x58] sm:$0xff]
      %v2252 = vld [vmem:[%s400 + $0x60] sm:$0xff]
      %v2253 = vld [vmem:[%s400 + $0x68] sm:$0xff]
      %v2254 = vld [vmem:[%s400 + $0x70] sm:$0xff]
      %v2255 = vld [vmem:[%s400 + $0x78] sm:$0xff]
      %v2256 = vld [vmem:[%s400 + $0x80] sm:$0xff]
      %v2257 = vld [vmem:[%s400 + $0x88] sm:$0xff]
      %v2258 = vld [vmem:[%s400 + $0x90] sm:$0xff]
      %v2259 = vld [vmem:[%s400 + $0x98] sm:$0xff]
      %v2260 = vld [vmem:[%s400 + $0xa0] sm:$0xff]
      %v2261 = vld [vmem:[%s400 + $0xa8] sm:$0xff]
      %v2262 = vld [vmem:[%s400 + $0xb0] sm:$0xff]
      %v2263 = vld [vmem:[%s400 + $0xb8] sm:$0xff]
      %v2264 = vld [vmem:[%s400 + $0xc0] sm:$0xff]
      %v2265 = vld [vmem:[%s400 + $0xc8] sm:$0xff]
      %v2266 = vld [vmem:[%s400 + $0xd0] sm:$0xff]
      %v2267 = vld [vmem:[%s400 + $0xd8] sm:$0xff]
      %v2268 = vld [vmem:[%s400 + $0xe0] sm:$0xff]
      %v2269 = vld [vmem:[%s400 + $0xe8] sm:$0xff]
      %v2270 = vld [vmem:[%s400 + $0xf0] sm:$0xff]
      %v2271 = vld [vmem:[%s400 + $0xf8] sm:$0xff]
      %v2272 = vld [vmem:[%s400 + $0x100] sm:$0xff]
      %v2273 = vld [vmem:[%s400 + $0x108] sm:$0xff]
      %v2274 = vld [vmem:[%s400 + $0x110] sm:$0xff]
      %v2275 = vld [vmem:[%s400 + $0x118] sm:$0xff]
      %v2276 = vld [vmem:[%s400 + $0x120] sm:$0xff]
      %v2277 = vld [vmem:[%s400 + $0x128] sm:$0xff]
      %v2278 = vld [vmem:[%s400 + $0x130] sm:$0xff]
      %v2279 = vld [vmem:[%s400 + $0x138] sm:$0xff]
      %v2280 = vld [vmem:[%s400 + $0x140] sm:$0xff]
      %v2281 = vld [vmem:[%s400 + $0x148] sm:$0xff]
      %v2282 = vld [vmem:[%s400 + $0x150] sm:$0xff]
      %v2283 = vld [vmem:[%s400 + $0x158] sm:$0xff]
      %v2284 = vld [vmem:[%s400 + $0x160] sm:$0xff]
      %v2285 = vld [vmem:[%s400 + $0x168] sm:$0xff]
      %v2286 = vld [vmem:[%s400 + $0x170] sm:$0xff]
      %v2287 = vld [vmem:[%s400 + $0x178] sm:$0xff]
      %v2288 = vld [vmem:[%s400 + $0x180] sm:$0xff]
      %v2289 = vld [vmem:[%s400 + $0x188] sm:$0xff]
      %v2290 = vld [vmem:[%s400 + $0x190] sm:$0xff]
      %v2291 = vld [vmem:[%s400 + $0x198] sm:$0xff]
      %v2292 = vld [vmem:[%s400 + $0x1a0] sm:$0xff]
      %v2293 = vld [vmem:[%s400 + $0x1a8] sm:$0xff]
      %v2294 = vld [vmem:[%s400 + $0x1b0] sm:$0xff]
      %v2295 = vld [vmem:[%s400 + $0x1b8] sm:$0xff]
      %v2296 = vld [vmem:[%s400 + $0x1c0] sm:$0xff]
      %v2297 = vld [vmem:[%s400 + $0x1c8] sm:$0xff]
      %v2298 = vld [vmem:[%s400 + $0x1d0] sm:$0xff]
      %v2299 = vld [vmem:[%s400 + $0x1d8] sm:$0xff]
      %v2300 = vld [vmem:[%s400 + $0x1e0] sm:$0xff]
      %v2301 = vld [vmem:[%s400 + $0x1e8] sm:$0xff]
      %v2302 = vld [vmem:[%s400 + $0x1f0] sm:$0xff]
      %v2303 = vld [vmem:[%s400 + $0x1f8] sm:$0xff]
      %v2304 = vld [vmem:[%s400 + $0x200] sm:$0xff]
      %v2305 = vld [vmem:[%s400 + $0x208] sm:$0xff]
      %v2306 = vld [vmem:[%s400 + $0x210] sm:$0xff]
      %v2307 = vld [vmem:[%s400 + $0x218] sm:$0xff]
      %v2308 = vld [vmem:[%s400 + $0x220] sm:$0xff]
      %v2309 = vld [vmem:[%s400 + $0x228] sm:$0xff]
      %v2310 = vld [vmem:[%s400 + $0x230] sm:$0xff]
      %v2311 = vld [vmem:[%s400 + $0x238] sm:$0xff]
      %v2312 = vld [vmem:[%s400 + $0x240] sm:$0xff]
      %v2313 = vld [vmem:[%s400 + $0x248] sm:$0xff]
      %v2314 = vld [vmem:[%s400 + $0x250] sm:$0xff]
      %v2315 = vld [vmem:[%s400 + $0x258] sm:$0xff]
      %v2316 = vld [vmem:[%s400 + $0x260] sm:$0xff]
      %v2317 = vld [vmem:[%s400 + $0x268] sm:$0xff]
      %v2318 = vld [vmem:[%s400 + $0x270] sm:$0xff]
      %v2319 = vld [vmem:[%s400 + $0x278] sm:$0xff]
      %v2320 = vld [vmem:[%s400 + $0x280] sm:$0xff]
      %v2321 = vld [vmem:[%s400 + $0x288] sm:$0xff]
      %v2322 = vld [vmem:[%s400 + $0x290] sm:$0xff]
      %v2323 = vld [vmem:[%s400 + $0x298] sm:$0xff]
      %v2324 = vld [vmem:[%s400 + $0x2a0] sm:$0xff]
      %v2325 = vld [vmem:[%s400 + $0x2a8] sm:$0xff]
      %v2326 = vld [vmem:[%s400 + $0x2b0] sm:$0xff]
      %v2327 = vld [vmem:[%s400 + $0x2b8] sm:$0xff]
      %v2328 = vld [vmem:[%s400 + $0x2c0] sm:$0xff]
      %v2329 = vld [vmem:[%s400 + $0x2c8] sm:$0xff]
      %v2330 = vld [vmem:[%s400 + $0x2d0] sm:$0xff]
      %v2331 = vld [vmem:[%s400 + $0x2d8] sm:$0xff]
      %v2332 = vld [vmem:[%s400 + $0x2e0] sm:$0xff]
      %v2333 = vld [vmem:[%s400 + $0x2e8] sm:$0xff]
      %v2334 = vld [vmem:[%s400 + $0x2f0] sm:$0xff]
      %v2335 = vld [vmem:[%s400 + $0x2f8] sm:$0xff]
      %v2336 = vld [vmem:[%s6] sm:$0xff]
      %v2337 = vld [vmem:[%s6 + $0x8] sm:$0xff]
      %v2338 = vld [vmem:[%s6 + $0x10] sm:$0xff]
      %v2339 = vld [vmem:[%s6 + $0x18] sm:$0xff]
      %v2340 = vld [vmem:[%s6 + $0x20] sm:$0xff]
      %v2341 = vld [vmem:[%s6 + $0x28] sm:$0xff]
      %v2342 = vld [vmem:[%s6 + $0x30] sm:$0xff]
      %v2343 = vld [vmem:[%s6 + $0x38] sm:$0xff]
      %v2344 = vld [vmem:[%s6 + $0x40] sm:$0xff]
      %v2345 = vld [vmem:[%s6 + $0x48] sm:$0xff]
      %v2346 = vld [vmem:[%s6 + $0x50] sm:$0xff]
      %v2347 = vld [vmem:[%s6 + $0x58] sm:$0xff]
      %vm2348 = vcmask 785408
      %v2350 = vsel %vm2348, %v2336, 0
      %v2353 = vsel %vm2348, %v2337, 0
      %v2356 = vsel %vm2348, %v2338, 0
      %v2359 = vsel %vm2348, %v2339, 0
      %v2362 = vsel %vm2348, %v2340, 0
      %v2365 = vsel %vm2348, %v2341, 0
      %v2368 = vsel %vm2348, %v2342, 0
      %v2371 = vsel %vm2348, %v2343, 0
      %v2374 = vsel %vm2348, %v2344, 0
      %v2377 = vsel %vm2348, %v2345, 0
      %v2380 = vsel %vm2348, %v2346, 0
      %v2383 = vsel %vm2348, %v2347, 0
      %2385 = vmatprep.subr.mxu0 %v2241
      %2386 = vmatpush1.msra.mxu0 %v2240
      %2387 = vmatprep.subr.mxu0 %v2249
      %2388 = vmatpush1.msra.mxu0 %v2248
      %2389 = vmatprep.subr.mxu0 %v2257
      %2390 = vmatpush1.msra.mxu0 %v2256
      %2391 = vmatprep.subr.mxu0 %v2265
      %2392 = vmatpush1.msra.mxu0 %v2264
      %2393 = vmatprep.subr.mxu0 %v2273
      %2394 = vmatpush1.msra.mxu0 %v2272
      %2395 = vmatprep.subr.mxu0 %v2281
      %2396 = vmatpush1.msra.mxu0 %v2280
      %2397 = vmatprep.subr.mxu0 %v2289
      %2398 = vmatpush1.msra.mxu0 %v2288
      %2399 = vmatprep.subr.mxu0 %v2297
      %2400 = vmatpush1.msra.mxu0 %v2296
      %2401 = vmatprep.subr.mxu0 %v2305
      %2402 = vmatpush1.msra.mxu0 %v2304
      %2403 = vmatprep.subr.mxu0 %v2313
      %2404 = vmatpush1.msra.mxu0 %v2312
      %2405 = vmatprep.subr.mxu0 %v2321
      %2406 = vmatpush1.msra.mxu0 %v2320
      %2407 = vmatprep.subr.mxu0 %v2329
      %2408 = vmatpush1.msra.mxu0 %v2328
      %2409 = vmatprep.subr.mxu0 0.0
      %2410 = vmatpush1.msra.mxu0 0.0
      %2411 = vmatprep.subr.mxu0 0.0
      %2412 = vmatpush1.msra.mxu0 0.0
      %2413 = vmatprep.subr.mxu0 0.0
      %2414 = vmatpush1.msra.mxu0 0.0
      %2415 = vmatprep.subr.mxu0 0.0
      %2416 = vmatpush1.msra.mxu0 0.0
      %2417 = vmatprep.subr.mxu0 0.0
      %2418 = vmatpush1.msra.mxu0 0.0
      %2419 = vmatprep.subr.mxu0 0.0
      %2420 = vmatpush1.msra.mxu0 0.0
      %2421 = vmatprep.subr.mxu0 0.0
      %2422 = vmatpush1.msra.mxu0 0.0
      %2423 = vmatprep.subr.mxu0 0.0
      %2424 = vmatpush1.msra.mxu0 0.0
      %2425 = vmatprep.subr.mxu0 0.0
      %2426 = vmatpush1.msra.mxu0 0.0
      %2427 = vmatprep.subr.mxu0 0.0
      %2428 = vmatpush1.msra.mxu0 0.0
      %2429 = vmatprep.subr.mxu0 0.0
      %2430 = vmatpush1.msra.mxu0 0.0
      %2431 = vmatprep.subr.mxu0 0.0
      %2432 = vmatpush1.msra.mxu0 0.0
      %2433 = vmatprep.subr.mxu0 0.0
      %2434 = vmatpush1.msra.mxu0 0.0
      %2435 = vmatprep.subr.mxu0 0.0
      %2436 = vmatpush1.msra.mxu0 0.0
      %2437 = vmatprep.subr.mxu0 0.0
      %2438 = vmatpush1.msra.mxu0 0.0
      %2439 = vmatprep.subr.mxu0 0.0
      %2440 = vmatpush1.msra.mxu0 0.0
      %2441 = vmatprep.subr.mxu0 0.0
      %2442 = vmatpush1.msra.mxu0 0.0
      %2443 = vmatprep.subr.mxu0 0.0
      %2444 = vmatpush1.msra.mxu0 0.0
      %2445 = vmatprep.subr.mxu0 0.0
      %2446 = vmatpush1.msra.mxu0 0.0
      %2447 = vmatprep.subr.mxu0 0.0
      %2448 = vmatpush1.msra.mxu0 0.0
      %2449 = vmatprep.mubr.f32.mxu0 0.0
      %2450 = vmatmul.mubr.f32.gmra.mrb[0].mxu0 %v2350
      %v2451 = vpop.f32.mrb[0].mxu0
      %v2452 = vadd.f32 0.0, %v2451
      %v2453 = vpop.f32.mrb[0].mxu0
      %v2454 = vadd.f32 0.0, %v2453
      %2455 = vmatprep.mubr.f32.mxu0 0.0
      %2456 = vmatmul.mubr.f32.gmra.mrb[0].mxu0 %v2353
      %v2457 = vpop.f32.mrb[0].mxu0
      %v2458 = vadd.f32 0.0, %v2457
      %v2459 = vpop.f32.mrb[0].mxu0
      %v2460 = vadd.f32 0.0, %v2459
      %2461 = vmatprep.mubr.f32.mxu0 0.0
      %2462 = vmatmul.mubr.f32.gmra.mrb[0].mxu0 %v2356
      %v2463 = vpop.f32.mrb[0].mxu0
      %v2464 = vadd.f32 0.0, %v2463
      %v2465 = vpop.f32.mrb[0].mxu0
      %v2466 = vadd.f32 0.0, %v2465
      %2467 = vmatprep.mubr.f32.mxu0 0.0
      %2468 = vmatmul.mubr.f32.gmra.mrb[0].mxu0 %v2359
      %v2469 = vpop.f32.mrb[0].mxu0
      %v2470 = vadd.f32 0.0, %v2469
      %v2471 = vpop.f32.mrb[0].mxu0
      %v2472 = vadd.f32 0.0, %v2471
      %2473 = vmatprep.mubr.f32.mxu0 0.0
      %2474 = vmatmul.mubr.f32.gmra.mrb[0].mxu0 %v2362
      %v2475 = vpop.f32.mrb[0].mxu0
      %v2476 = vadd.f32 0.0, %v2475
      %v2477 = vpop.f32.mrb[0].mxu0
      %v2478 = vadd.f32 0.0, %v2477
      %2479 = vmatprep.mubr.f32.mxu0 0.0
      %2480 = vmatmul.mubr.f32.gmra.mrb[0].mxu0 %v2365
      %v2481 = vpop.f32.mrb[0].mxu0
      %v2482 = vadd.f32 0.0, %v2481
      %v2483 = vpop.f32.mrb[0].mxu0
      %v2484 = vadd.f32 0.0, %v2483
      %2485 = vmatprep.mubr.f32.mxu0 0.0
      %2486 = vmatmul.mubr.f32.gmra.mrb[0].mxu0 %v2368
      %v2487 = vpop.f32.mrb[0].mxu0
      %v2488 = vadd.f32 0.0, %v2487
      %v2489 = vpop.f32.mrb[0].mxu0
      %v2490 = vadd.f32 0.0, %v2489
      %2491 = vmatprep.mubr.f32.mxu0 0.0
      %2492 = vmatmul.mubr.f32.gmra.mrb[0].mxu0 %v2371
      %v2493 = vpop.f32.mrb[0].mxu0
      %v2494 = vadd.f32 0.0, %v2493
      %v2495 = vpop.f32.mrb[0].mxu0
      %v2496 = vadd.f32 0.0, %v2495
      %2497 = vmatprep.mubr.f32.mxu0 0.0
      %2498 = vmatmul.mubr.f32.gmra.mrb[0].mxu0 %v2374
      %v2499 = vpop.f32.mrb[0].mxu0
      %v2500 = vadd.f32 0.0, %v2499
      %v2501 = vpop.f32.mrb[0].mxu0
      %v2502 = vadd.f32 0.0, %v2501
      %2503 = vmatprep.mubr.f32.mxu0 0.0
      %2504 = vmatmul.mubr.f32.gmra.mrb[0].mxu0 %v2377
      %v2505 = vpop.f32.mrb[0].mxu0
      %v2506 = vadd.f32 0.0, %v2505
      %v2507 = vpop.f32.mrb[0].mxu0
      %v2508 = vadd.f32 0.0, %v2507
      %2509 = vmatprep.mubr.f32.mxu0 0.0
      %2510 = vmatmul.mubr.f32.gmra.mrb[0].mxu0 %v2380
      %v2511 = vpop.f32.mrb[0].mxu0
      %v2512 = vadd.f32 0.0, %v2511
      %v2513 = vpop.f32.mrb[0].mxu0
      %v2514 = vadd.f32 0.0, %v2513
      %2515 = vmatprep.mubr.f32.mxu0 0.0
      %2516 = vmatmul.mubr.f32.gmra.mrb[0].mxu0 %v2383
      %v2517 = vpop.f32.mrb[0].mxu0
      %v2518 = vadd.f32 0.0, %v2517
      %v2519 = vpop.f32.mrb[0].mxu0
      %v2520 = vadd.f32 0.0, %v2519
      %2521 = vdwg.mxu0
      %2522 = vmatprep.subr.mxu0 %v2243
      %2523 = vmatpush1.msra.mxu0 %v2242
      %2524 = vmatprep.subr.mxu0 %v2251
      %2525 = vmatpush1.msra.mxu0 %v2250
      %2526 = vmatprep.subr.mxu0 %v2259
      %2527 = vmatpush1.msra.mxu0 %v2258
      %2528 = vmatprep.subr.mxu0 %v2267
      %2529 = vmatpush1.msra.mxu0 %v2266
      %2530 = vmatprep.subr.mxu0 %v2275
      %2531 = vmatpush1.msra.mxu0 %v2274
      %2532 = vmatprep.subr.mxu0 %v2283
      %2533 = vmatpush1.msra.mxu0 %v2282
      %2534 = vmatprep.subr.mxu0 %v2291
      %2535 = vmatpush1.msra.mxu0 %v2290
      %2536 = vmatprep.subr.mxu0 %v2299
      %2537 = vmatpush1.msra.mxu0 %v2298
      %2538 = vmatprep.subr.mxu0 %v2307
      %2539 = vmatpush1.msra.mxu0 %v2306
      %2540 = vmatprep.subr.mxu0 %v2315
      %2541 = vmatpush1.msra.mxu0 %v2314
      %2542 = vmatprep.subr.mxu0 %v2323
      %2543 = vmatpush1.msra.mxu0 %v2322
      %2544 = vmatprep.subr.mxu0 %v2331
      %2545 = vmatpush1.msra.mxu0 %v2330
      %2546 = vmatprep.subr.mxu0 0.0
      %2547 = vmatpush1.msra.mxu0 0.0
      %2548 = vmatprep.subr.mxu0 0.0
      %2549 = vmatpush1.msra.mxu0 0.0
      %2550 = vmatprep.subr.mxu0 0.0
      %2551 = vmatpush1.msra.mxu0 0.0
      %2552 = vmatprep.subr.mxu0 0.0
      %2553 = vmatpush1.msra.mxu0 0.0
      %2554 = vmatprep.subr.mxu0 0.0
      %2555 = vmatpush1.msra.mxu0 0.0
      %2556 = vmatprep.subr.mxu0 0.0
      %2557 = vmatpush1.msra.mxu0 0.0
      %2558 = vmatprep.subr.mxu0 0.0
      %2559 = vmatpush1.msra.mxu0 0.0
      %2560 = vmatprep.subr.mxu0 0.0
      %2561 = vmatpush1.msra.mxu0 0.0
      %2562 = vmatprep.subr.mxu0 0.0
      %2563 = vmatpush1.msra.mxu0 0.0
      %2564 = vmatprep.subr.mxu0 0.0
      %2565 = vmatpush1.msra.mxu0 0.0
      %2566 = vmatprep.subr.mxu0 0.0
      %2567 = vmatpush1.msra.mxu0 0.0
      %2568 = vmatprep.subr.mxu0 0.0
      %2569 = vmatpush1.msra.mxu0 0.0
      %2570 = vmatprep.subr.mxu0 0.0
      %2571 = vmatpush1.msra.mxu0 0.0
      %2572 = vmatprep.subr.mxu0 0.0
      %2573 = vmatpush1.msra.mxu0 0.0
      %2574 = vmatprep.subr.mxu0 0.0
      %2575 = vmatpush1.msra.mxu0 0.0
      %2576 = vmatprep.subr.mxu0 0.0
      %2577 = vmatpush1.msra.mxu0 0.0
      %2578 = vmatprep.subr.mxu0 0.0
      %2579 = vmatpush1.msra.mxu0 0.0
      %2580 = vmatprep.subr.mxu0 0.0
      %2581 = vmatpush1.msra.mxu0 0.0
      %2582 = vmatprep.subr.mxu0 0.0
      %2583 = vmatpush1.msra.mxu0 0.0
      %2584 = vmatprep.subr.mxu0 0.0
      %2585 = vmatpush1.msra.mxu0 0.0
      %2586 = vmatprep.mubr.f32.mxu0 0.0
      %2587 = vmatmul.mubr.f32.gmra.mrb[0].mxu0 %v2350
      %v2588 = vpop.f32.mrb[0].mxu0
      %v2589 = vadd.f32 0.0, %v2588
      %v2590 = vpop.f32.mrb[0].mxu0
      %v2591 = vadd.f32 0.0, %v2590
      %2592 = vmatprep.mubr.f32.mxu0 0.0
      %2593 = vmatmul.mubr.f32.gmra.mrb[0].mxu0 %v2353
      %v2594 = vpop.f32.mrb[0].mxu0
      %v2595 = vadd.f32 0.0, %v2594
      %v2596 = vpop.f32.mrb[0].mxu0
      %v2597 = vadd.f32 0.0, %v2596
      %2598 = vmatprep.mubr.f32.mxu0 0.0
      %2599 = vmatmul.mubr.f32.gmra.mrb[0].mxu0 %v2356
      %v2600 = vpop.f32.mrb[0].mxu0
      %v2601 = vadd.f32 0.0, %v2600
      %v2602 = vpop.f32.mrb[0].mxu0
      %v2603 = vadd.f32 0.0, %v2602
      %2604 = vmatprep.mubr.f32.mxu0 0.0
      %2605 = vmatmul.mubr.f32.gmra.mrb[0].mxu0 %v2359
      %v2606 = vpop.f32.mrb[0].mxu0
      %v2607 = vadd.f32 0.0, %v2606
      %v2608 = vpop.f32.mrb[0].mxu0
      %v2609 = vadd.f32 0.0, %v2608
      %2610 = vmatprep.mubr.f32.mxu0 0.0
      %2611 = vmatmul.mubr.f32.gmra.mrb[0].mxu0 %v2362
      %v2612 = vpop.f32.mrb[0].mxu0
      %v2613 = vadd.f32 0.0, %v2612
      %v2614 = vpop.f32.mrb[0].mxu0
      %v2615 = vadd.f32 0.0, %v2614
      %2616 = vmatprep.mubr.f32.mxu0 0.0
      %2617 = vmatmul.mubr.f32.gmra.mrb[0].mxu0 %v2365
      %v2618 = vpop.f32.mrb[0].mxu0
      %v2619 = vadd.f32 0.0, %v2618
      %v2620 = vpop.f32.mrb[0].mxu0
      %v2621 = vadd.f32 0.0, %v2620
      %2622 = vmatprep.mubr.f32.mxu0 0.0
      %2623 = vmatmul.mubr.f32.gmra.mrb[0].mxu0 %v2368
      %v2624 = vpop.f32.mrb[0].mxu0
      %v2625 = vadd.f32 0.0, %v2624
      %v2626 = vpop.f32.mrb[0].mxu0
      %v2627 = vadd.f32 0.0, %v2626
      %2628 = vmatprep.mubr.f32.mxu0 0.0
      %2629 = vmatmul.mubr.f32.gmra.mrb[0].mxu0 %v2371
      %v2630 = vpop.f32.mrb[0].mxu0
      %v2631 = vadd.f32 0.0, %v2630
      %v2632 = vpop.f32.mrb[0].mxu0
      %v2633 = vadd.f32 0.0, %v2632
      %2634 = vmatprep.mubr.f32.mxu0 0.0
      %2635 = vmatmul.mubr.f32.gmra.mrb[0].mxu0 %v2374
      %v2636 = vpop.f32.mrb[0].mxu0
      %v2637 = vadd.f32 0.0, %v2636
      %v2638 = vpop.f32.mrb[0].mxu0
      %v2639 = vadd.f32 0.0, %v2638
      %2640 = vmatprep.mubr.f32.mxu0 0.0
      %2641 = vmatmul.mubr.f32.gmra.mrb[0].mxu0 %v2377
      %v2642 = vpop.f32.mrb[0].mxu0
      %v2643 = vadd.f32 0.0, %v2642
      %v2644 = vpop.f32.mrb[0].mxu0
      %v2645 = vadd.f32 0.0, %v2644
      %2646 = vmatprep.mubr.f32.mxu0 0.0
      %2647 = vmatmul.mubr.f32.gmra.mrb[0].mxu0 %v2380
      %v2648 = vpop.f32.mrb[0].mxu0
      %v2649 = vadd.f32 0.0, %v2648
      %v2650 = vpop.f32.mrb[0].mxu0
      %v2651 = vadd.f32 0.0, %v2650
      %2652 = vmatprep.mubr.f32.mxu0 0.0
      %2653 = vmatmul.mubr.f32.gmra.mrb[0].mxu0 %v2383
      %v2654 = vpop.f32.mrb[0].mxu0
      %v2655 = vadd.f32 0.0, %v2654
      %v2656 = vpop.f32.mrb[0].mxu0
      %v2657 = vadd.f32 0.0, %v2656
      %2658 = vdwg.mxu0
      %2659 = vmatprep.subr.mxu0 %v2245
      %2660 = vmatpush1.msra.mxu0 %v2244
      %2661 = vmatprep.subr.mxu0 %v2253
      %2662 = vmatpush1.msra.mxu0 %v2252
      %2663 = vmatprep.subr.mxu0 %v2261
      %2664 = vmatpush1.msra.mxu0 %v2260
      %2665 = vmatprep.subr.mxu0 %v2269
      %2666 = vmatpush1.msra.mxu0 %v2268
      %2667 = vmatprep.subr.mxu0 %v2277
      %2668 = vmatpush1.msra.mxu0 %v2276
      %2669 = vmatprep.subr.mxu0 %v2285
      %2670 = vmatpush1.msra.mxu0 %v2284
      %2671 = vmatprep.subr.mxu0 %v2293
      %2672 = vmatpush1.msra.mxu0 %v2292
      %2673 = vmatprep.subr.mxu0 %v2301
      %2674 = vmatpush1.msra.mxu0 %v2300
      %2675 = vmatprep.subr.mxu0 %v2309
      %2676 = vmatpush1.msra.mxu0 %v2308
      %2677 = vmatprep.subr.mxu0 %v2317
      %2678 = vmatpush1.msra.mxu0 %v2316
      %2679 = vmatprep.subr.mxu0 %v2325
      %2680 = vmatpush1.msra.mxu0 %v2324
      %2681 = vmatprep.subr.mxu0 %v2333
      %2682 = vmatpush1.msra.mxu0 %v2332
      %2683 = vmatprep.subr.mxu0 0.0
      %2684 = vmatpush1.msra.mxu0 0.0
      %2685 = vmatprep.subr.mxu0 0.0
      %2686 = vmatpush1.msra.mxu0 0.0
      %2687 = vmatprep.subr.mxu0 0.0
      %2688 = vmatpush1.msra.mxu0 0.0
      %2689 = vmatprep.subr.mxu0 0.0
      %2690 = vmatpush1.msra.mxu0 0.0
      %2691 = vmatprep.subr.mxu0 0.0
      %2692 = vmatpush1.msra.mxu0 0.0
      %2693 = vmatprep.subr.mxu0 0.0
      %2694 = vmatpush1.msra.mxu0 0.0
      %2695 = vmatprep.subr.mxu0 0.0
      %2696 = vmatpush1.msra.mxu0 0.0
      %2697 = vmatprep.subr.mxu0 0.0
      %2698 = vmatpush1.msra.mxu0 0.0
      %2699 = vmatprep.subr.mxu0 0.0
      %2700 = vmatpush1.msra.mxu0 0.0
      %2701 = vmatprep.subr.mxu0 0.0
      %2702 = vmatpush1.msra.mxu0 0.0
      %2703 = vmatprep.subr.mxu0 0.0
      %2704 = vmatpush1.msra.mxu0 0.0
      %2705 = vmatprep.subr.mxu0 0.0
      %2706 = vmatpush1.msra.mxu0 0.0
      %2707 = vmatprep.subr.mxu0 0.0
      %2708 = vmatpush1.msra.mxu0 0.0
      %2709 = vmatprep.subr.mxu0 0.0
      %2710 = vmatpush1.msra.mxu0 0.0
      %2711 = vmatprep.subr.mxu0 0.0
      %2712 = vmatpush1.msra.mxu0 0.0
      %2713 = vmatprep.subr.mxu0 0.0
      %2714 = vmatpush1.msra.mxu0 0.0
      %2715 = vmatprep.subr.mxu0 0.0
      %2716 = vmatpush1.msra.mxu0 0.0
      %2717 = vmatprep.subr.mxu0 0.0
      %2718 = vmatpush1.msra.mxu0 0.0
      %2719 = vmatprep.subr.mxu0 0.0
      %2720 = vmatpush1.msra.mxu0 0.0
      %2721 = vmatprep.subr.mxu0 0.0
      %2722 = vmatpush1.msra.mxu0 0.0
      %2723 = vmatprep.mubr.f32.mxu0 0.0
      %2724 = vmatmul.mubr.f32.gmra.mrb[0].mxu0 %v2350
      %v2725 = vpop.f32.mrb[0].mxu0
      %v2726 = vadd.f32 0.0, %v2725
      %v2727 = vpop.f32.mrb[0].mxu0
      %v2728 = vadd.f32 0.0, %v2727
      %2729 = vmatprep.mubr.f32.mxu0 0.0
      %2730 = vmatmul.mubr.f32.gmra.mrb[0].mxu0 %v2353
      %v2731 = vpop.f32.mrb[0].mxu0
      %v2732 = vadd.f32 0.0, %v2731
      %v2733 = vpop.f32.mrb[0].mxu0
      %v2734 = vadd.f32 0.0, %v2733
      %2735 = vmatprep.mubr.f32.mxu0 0.0
      %2736 = vmatmul.mubr.f32.gmra.mrb[0].mxu0 %v2356
      %v2737 = vpop.f32.mrb[0].mxu0
      %v2738 = vadd.f32 0.0, %v2737
      %v2739 = vpop.f32.mrb[0].mxu0
      %v2740 = vadd.f32 0.0, %v2739
      %2741 = vmatprep.mubr.f32.mxu0 0.0
      %2742 = vmatmul.mubr.f32.gmra.mrb[0].mxu0 %v2359
      %v2743 = vpop.f32.mrb[0].mxu0
      %v2744 = vadd.f32 0.0, %v2743
      %v2745 = vpop.f32.mrb[0].mxu0
      %v2746 = vadd.f32 0.0, %v2745
      %2747 = vmatprep.mubr.f32.mxu0 0.0
      %2748 = vmatmul.mubr.f32.gmra.mrb[0].mxu0 %v2362
      %v2749 = vpop.f32.mrb[0].mxu0
      %v2750 = vadd.f32 0.0, %v2749
      %v2751 = vpop.f32.mrb[0].mxu0
      %v2752 = vadd.f32 0.0, %v2751
      %2753 = vmatprep.mubr.f32.mxu0 0.0
      %2754 = vmatmul.mubr.f32.gmra.mrb[0].mxu0 %v2365
      %v2755 = vpop.f32.mrb[0].mxu0
      %v2756 = vadd.f32 0.0, %v2755
      %v2757 = vpop.f32.mrb[0].mxu0
      %v2758 = vadd.f32 0.0, %v2757
      %2759 = vmatprep.mubr.f32.mxu0 0.0
      %2760 = vmatmul.mubr.f32.gmra.mrb[0].mxu0 %v2368
      %v2761 = vpop.f32.mrb[0].mxu0
      %v2762 = vadd.f32 0.0, %v2761
      %v2763 = vpop.f32.mrb[0].mxu0
      %v2764 = vadd.f32 0.0, %v2763
      %2765 = vmatprep.mubr.f32.mxu0 0.0
      %2766 = vmatmul.mubr.f32.gmra.mrb[0].mxu0 %v2371
      %v2767 = vpop.f32.mrb[0].mxu0
      %v2768 = vadd.f32 0.0, %v2767
      %v2769 = vpop.f32.mrb[0].mxu0
      %v2770 = vadd.f32 0.0, %v2769
      %2771 = vmatprep.mubr.f32.mxu0 0.0
      %2772 = vmatmul.mubr.f32.gmra.mrb[0].mxu0 %v2374
      %v2773 = vpop.f32.mrb[0].mxu0
      %v2774 = vadd.f32 0.0, %v2773
      %v2775 = vpop.f32.mrb[0].mxu0
      %v2776 = vadd.f32 0.0, %v2775
      %2777 = vmatprep.mubr.f32.mxu0 0.0
      %2778 = vmatmul.mubr.f32.gmra.mrb[0].mxu0 %v2377
      %v2779 = vpop.f32.mrb[0].mxu0
      %v2780 = vadd.f32 0.0, %v2779
      %v2781 = vpop.f32.mrb[0].mxu0
      %v2782 = vadd.f32 0.0, %v2781
      %2783 = vmatprep.mubr.f32.mxu0 0.0
      %2784 = vmatmul.mubr.f32.gmra.mrb[0].mxu0 %v2380
      %v2785 = vpop.f32.mrb[0].mxu0
      %v2786 = vadd.f32 0.0, %v2785
      %v2787 = vpop.f32.mrb[0].mxu0
      %v2788 = vadd.f32 0.0, %v2787
      %2789 = vmatprep.mubr.f32.mxu0 0.0
      %2790 = vmatmul.mubr.f32.gmra.mrb[0].mxu0 %v2383
      %v2791 = vpop.f32.mrb[0].mxu0
      %v2792 = vadd.f32 0.0, %v2791
      %v2793 = vpop.f32.mrb[0].mxu0
      %v2794 = vadd.f32 0.0, %v2793
      %2795 = vdwg.mxu0
      %2796 = vmatprep.subr.mxu0 %v2247
      %2797 = vmatpush1.msra.mxu0 %v2246
      %2798 = vmatprep.subr.mxu0 %v2255
      %2799 = vmatpush1.msra.mxu0 %v2254
      %2800 = vmatprep.subr.mxu0 %v2263
      %2801 = vmatpush1.msra.mxu0 %v2262
      %2802 = vmatprep.subr.mxu0 %v2271
      %2803 = vmatpush1.msra.mxu0 %v2270
      %2804 = vmatprep.subr.mxu0 %v2279
      %2805 = vmatpush1.msra.mxu0 %v2278
      %2806 = vmatprep.subr.mxu0 %v2287
      %2807 = vmatpush1.msra.mxu0 %v2286
      %2808 = vmatprep.subr.mxu0 %v2295
      %2809 = vmatpush1.msra.mxu0 %v2294
      %2810 = vmatprep.subr.mxu0 %v2303
      %2811 = vmatpush1.msra.mxu0 %v2302
      %2812 = vmatprep.subr.mxu0 %v2311
      %2813 = vmatpush1.msra.mxu0 %v2310
      %2814 = vmatprep.subr.mxu0 %v2319
      %2815 = vmatpush1.msra.mxu0 %v2318
      %2816 = vmatprep.subr.mxu0 %v2327
      %2817 = vmatpush1.msra.mxu0 %v2326
      %2818 = vmatprep.subr.mxu0 %v2335
      %2819 = vmatpush1.msra.mxu0 %v2334
      %2820 = vmatprep.subr.mxu0 0.0
      %2821 = vmatpush1.msra.mxu0 0.0
      %2822 = vmatprep.subr.mxu0 0.0
      %2823 = vmatpush1.msra.mxu0 0.0
      %2824 = vmatprep.subr.mxu0 0.0
      %2825 = vmatpush1.msra.mxu0 0.0
      %2826 = vmatprep.subr.mxu0 0.0
      %2827 = vmatpush1.msra.mxu0 0.0
      %2828 = vmatprep.subr.mxu0 0.0
      %2829 = vmatpush1.msra.mxu0 0.0
      %2830 = vmatprep.subr.mxu0 0.0
      %2831 = vmatpush1.msra.mxu0 0.0
      %2832 = vmatprep.subr.mxu0 0.0
      %2833 = vmatpush1.msra.mxu0 0.0
      %2834 = vmatprep.subr.mxu0 0.0
      %2835 = vmatpush1.msra.mxu0 0.0
      %2836 = vmatprep.subr.mxu0 0.0
      %2837 = vmatpush1.msra.mxu0 0.0
      %2838 = vmatprep.subr.mxu0 0.0
      %2839 = vmatpush1.msra.mxu0 0.0
      %2840 = vmatprep.subr.mxu0 0.0
      %2841 = vmatpush1.msra.mxu0 0.0
      %2842 = vmatprep.subr.mxu0 0.0
      %2843 = vmatpush1.msra.mxu0 0.0
      %2844 = vmatprep.subr.mxu0 0.0
      %2845 = vmatpush1.msra.mxu0 0.0
      %2846 = vmatprep.subr.mxu0 0.0
      %2847 = vmatpush1.msra.mxu0 0.0
      %2848 = vmatprep.subr.mxu0 0.0
      %2849 = vmatpush1.msra.mxu0 0.0
      %2850 = vmatprep.subr.mxu0 0.0
      %2851 = vmatpush1.msra.mxu0 0.0
      %2852 = vmatprep.subr.mxu0 0.0
      %2853 = vmatpush1.msra.mxu0 0.0
      %2854 = vmatprep.subr.mxu0 0.0
      %2855 = vmatpush1.msra.mxu0 0.0
      %2856 = vmatprep.subr.mxu0 0.0
      %2857 = vmatpush1.msra.mxu0 0.0
      %2858 = vmatprep.subr.mxu0 0.0
      %2859 = vmatpush1.msra.mxu0 0.0
      %2860 = vmatprep.mubr.f32.mxu0 0.0
      %2861 = vmatmul.mubr.f32.gmra.mrb[0].mxu0 %v2350
      %v2862 = vpop.f32.mrb[0].mxu0
      %v2863 = vadd.f32 0.0, %v2862
      %v2864 = vpop.f32.mrb[0].mxu0
      %v2865 = vadd.f32 0.0, %v2864
      %2866 = vmatprep.mubr.f32.mxu0 0.0
      %2867 = vmatmul.mubr.f32.gmra.mrb[0].mxu0 %v2353
      %v2868 = vpop.f32.mrb[0].mxu0
      %v2869 = vadd.f32 0.0, %v2868
      %v2870 = vpop.f32.mrb[0].mxu0
      %v2871 = vadd.f32 0.0, %v2870
      %2872 = vmatprep.mubr.f32.mxu0 0.0
      %2873 = vmatmul.mubr.f32.gmra.mrb[0].mxu0 %v2356
      %v2874 = vpop.f32.mrb[0].mxu0
      %v2875 = vadd.f32 0.0, %v2874
      %v2876 = vpop.f32.mrb[0].mxu0
      %v2877 = vadd.f32 0.0, %v2876
      %2878 = vmatprep.mubr.f32.mxu0 0.0
      %2879 = vmatmul.mubr.f32.gmra.mrb[0].mxu0 %v2359
      %v2880 = vpop.f32.mrb[0].mxu0
      %v2881 = vadd.f32 0.0, %v2880
      %v2882 = vpop.f32.mrb[0].mxu0
      %v2883 = vadd.f32 0.0, %v2882
      %2884 = vmatprep.mubr.f32.mxu0 0.0
      %2885 = vmatmul.mubr.f32.gmra.mrb[0].mxu0 %v2362
      %v2886 = vpop.f32.mrb[0].mxu0
      %v2887 = vadd.f32 0.0, %v2886
      %v2888 = vpop.f32.mrb[0].mxu0
      %v2889 = vadd.f32 0.0, %v2888
      %2890 = vmatprep.mubr.f32.mxu0 0.0
      %2891 = vmatmul.mubr.f32.gmra.mrb[0].mxu0 %v2365
      %v2892 = vpop.f32.mrb[0].mxu0
      %v2893 = vadd.f32 0.0, %v2892
      %v2894 = vpop.f32.mrb[0].mxu0
      %v2895 = vadd.f32 0.0, %v2894
      %2896 = vmatprep.mubr.f32.mxu0 0.0
      %2897 = vmatmul.mubr.f32.gmra.mrb[0].mxu0 %v2368
      %v2898 = vpop.f32.mrb[0].mxu0
      %v2899 = vadd.f32 0.0, %v2898
      %v2900 = vpop.f32.mrb[0].mxu0
      %v2901 = vadd.f32 0.0, %v2900
      %2902 = vmatprep.mubr.f32.mxu0 0.0
      %2903 = vmatmul.mubr.f32.gmra.mrb[0].mxu0 %v2371
      %v2904 = vpop.f32.mrb[0].mxu0
      %v2905 = vadd.f32 0.0, %v2904
      %v2906 = vpop.f32.mrb[0].mxu0
      %v2907 = vadd.f32 0.0, %v2906
      %2908 = vmatprep.mubr.f32.mxu0 0.0
      %2909 = vmatmul.mubr.f32.gmra.mrb[0].mxu0 %v2374
      %v2910 = vpop.f32.mrb[0].mxu0
      %v2911 = vadd.f32 0.0, %v2910
      %v2912 = vpop.f32.mrb[0].mxu0
      %v2913 = vadd.f32 0.0, %v2912
      %2914 = vmatprep.mubr.f32.mxu0 0.0
      %2915 = vmatmul.mubr.f32.gmra.mrb[0].mxu0 %v2377
      %v2916 = vpop.f32.mrb[0].mxu0
      %v2917 = vadd.f32 0.0, %v2916
      %v2918 = vpop.f32.mrb[0].mxu0
      %v2919 = vadd.f32 0.0, %v2918
      %2920 = vmatprep.mubr.f32.mxu0 0.0
      %2921 = vmatmul.mubr.f32.gmra.mrb[0].mxu0 %v2380
      %v2922 = vpop.f32.mrb[0].mxu0
      %v2923 = vadd.f32 0.0, %v2922
      %v2924 = vpop.f32.mrb[0].mxu0
      %v2925 = vadd.f32 0.0, %v2924
      %2926 = vmatprep.mubr.f32.mxu0 0.0
      %2927 = vmatmul.mubr.f32.gmra.mrb[0].mxu0 %v2383
      %v2928 = vpop.f32.mrb[0].mxu0
      %v2929 = vadd.f32 0.0, %v2928
      %v2930 = vpop.f32.mrb[0].mxu0
      %v2931 = vadd.f32 0.0, %v2930
      %2932 = vdwg.mxu0
      %v2933 = vld [vmem:[%s7] sm:$0xff]
      %v2934 = vld [vmem:[%s7 + $0x8] sm:$0xff]
      %v2935 = vld [vmem:[%s7 + $0x10] sm:$0xff]
      %v2936 = vld [vmem:[%s7 + $0x18] sm:$0xff]
      %v2937 = vld [vmem:[%s7 + $0x20] sm:$0xff]
      %v2938 = vld [vmem:[%s7 + $0x28] sm:$0xff]
      %v2939 = vld [vmem:[%s7 + $0x30] sm:$0xff]
      %v2940 = vld [vmem:[%s7 + $0x38] sm:$0xff]
      %v2941 = vld [vmem:[%s7 + $0x40] sm:$0xff]
      %v2942 = vld [vmem:[%s7 + $0x48] sm:$0xff]
      %v2943 = vld [vmem:[%s7 + $0x50] sm:$0xff]
      %v2944 = vld [vmem:[%s7 + $0x58] sm:$0xff]
      %vm2945 = vcmask 130048
      %v2947 = vsel %vm2945, %v2933, 0
      %v2950 = vsel %vm2945, %v2934, 0
      %v2953 = vsel %vm2945, %v2935, 0
      %v2956 = vsel %vm2945, %v2936, 0
      %v2959 = vsel %vm2945, %v2937, 0
      %v2962 = vsel %vm2945, %v2938, 0
      %v2965 = vsel %vm2945, %v2939, 0
      %v2968 = vsel %vm2945, %v2940, 0
      %v2971 = vsel %vm2945, %v2941, 0
      %v2974 = vsel %vm2945, %v2942, 0
      %v2977 = vsel %vm2945, %v2943, 0
      %v2980 = vsel %vm2945, %v2944, 0
      %2982 = vmatprep.subr.mxu0 %v2209
      %2983 = vmatpush1.msra.mxu0 %v2208
      %2984 = vmatprep.subr.mxu0 %v2217
      %2985 = vmatpush1.msra.mxu0 %v2216
      %2986 = vmatprep.subr.mxu0 0.0
      %2987 = vmatpush1.msra.mxu0 0.0
      %2988 = vmatprep.subr.mxu0 0.0
      %2989 = vmatpush1.msra.mxu0 0.0
      %2990 = vmatprep.subr.mxu0 0.0
      %2991 = vmatpush1.msra.mxu0 0.0
      %2992 = vmatprep.subr.mxu0 0.0
      %2993 = vmatpush1.msra.mxu0 0.0
      %2994 = vmatprep.subr.mxu0 0.0
      %2995 = vmatpush1.msra.mxu0 0.0
      %2996 = vmatprep.subr.mxu0 0.0
      %2997 = vmatpush1.msra.mxu0 0.0
      %2998 = vmatprep.subr.mxu0 0.0
      %2999 = vmatpush1.msra.mxu0 0.0
      %3000 = vmatprep.subr.mxu0 0.0
      %3001 = vmatpush1.msra.mxu0 0.0
      %3002 = vmatprep.subr.mxu0 0.0
      %3003 = vmatpush1.msra.mxu0 0.0
      %3004 = vmatprep.subr.mxu0 0.0
      %3005 = vmatpush1.msra.mxu0 0.0
      %3006 = vmatprep.subr.mxu0 0.0
      %3007 = vmatpush1.msra.mxu0 0.0
      %3008 = vmatprep.subr.mxu0 0.0
      %3009 = vmatpush1.msra.mxu0 0.0
      %3010 = vmatprep.subr.mxu0 0.0
      %3011 = vmatpush1.msra.mxu0 0.0
      %3012 = vmatprep.subr.mxu0 0.0
      %3013 = vmatpush1.msra.mxu0 0.0
      %3014 = vmatprep.subr.mxu0 0.0
      %3015 = vmatpush1.msra.mxu0 0.0
      %3016 = vmatprep.subr.mxu0 0.0
      %3017 = vmatpush1.msra.mxu0 0.0
      %3018 = vmatprep.subr.mxu0 0.0
      %3019 = vmatpush1.msra.mxu0 0.0
      %3020 = vmatprep.subr.mxu0 0.0
      %3021 = vmatpush1.msra.mxu0 0.0
      %3022 = vmatprep.subr.mxu0 0.0
      %3023 = vmatpush1.msra.mxu0 0.0
      %3024 = vmatprep.subr.mxu0 0.0
      %3025 = vmatpush1.msra.mxu0 0.0
      %3026 = vmatprep.subr.mxu0 0.0
      %3027 = vmatpush1.msra.mxu0 0.0
      %3028 = vmatprep.subr.mxu0 0.0
      %3029 = vmatpush1.msra.mxu0 0.0
      %3030 = vmatprep.subr.mxu0 0.0
      %3031 = vmatpush1.msra.mxu0 0.0
      %3032 = vmatprep.subr.mxu0 0.0
      %3033 = vmatpush1.msra.mxu0 0.0
      %3034 = vmatprep.subr.mxu0 0.0
      %3035 = vmatpush1.msra.mxu0 0.0
      %3036 = vmatprep.subr.mxu0 0.0
      %3037 = vmatpush1.msra.mxu0 0.0
      %3038 = vmatprep.subr.mxu0 0.0
      %3039 = vmatpush1.msra.mxu0 0.0
      %3040 = vmatprep.subr.mxu0 0.0
      %3041 = vmatpush1.msra.mxu0 0.0
      %3042 = vmatprep.subr.mxu0 0.0
      %3043 = vmatpush1.msra.mxu0 0.0
      %3044 = vmatprep.subr.mxu0 0.0
      %3045 = vmatpush1.msra.mxu0 0.0
      %3046 = vmatprep.mubr.f32.mxu0 0.0
      %3047 = vmatmul.mubr.f32.gmra.mrb[0].mxu0 %v2947
      %v3048 = vpop.f32.mrb[0].mxu0
      %v3049 = vadd.f32 0.0, %v3048
      %v3050 = vpop.f32.mrb[0].mxu0
      %v3051 = vadd.f32 0.0, %v3050
      %3052 = vmatprep.mubr.f32.mxu0 0.0
      %3053 = vmatmul.mubr.f32.gmra.mrb[0].mxu0 %v2950
      %v3054 = vpop.f32.mrb[0].mxu0
      %v3055 = vadd.f32 0.0, %v3054
      %v3056 = vpop.f32.mrb[0].mxu0
      %v3057 = vadd.f32 0.0, %v3056
      %3058 = vmatprep.mubr.f32.mxu0 0.0
      %3059 = vmatmul.mubr.f32.gmra.mrb[0].mxu0 %v2953
      %v3060 = vpop.f32.mrb[0].mxu0
      %v3061 = vadd.f32 0.0, %v3060
      %v3062 = vpop.f32.mrb[0].mxu0
      %v3063 = vadd.f32 0.0, %v3062
      %3064 = vmatprep.mubr.f32.mxu0 0.0
      %3065 = vmatmul.mubr.f32.gmra.mrb[0].mxu0 %v2956
      %v3066 = vpop.f32.mrb[0].mxu0
      %v3067 = vadd.f32 0.0, %v3066
      %v3068 = vpop.f32.mrb[0].mxu0
      %v3069 = vadd.f32 0.0, %v3068
      %3070 = vmatprep.mubr.f32.mxu0 0.0
      %3071 = vmatmul.mubr.f32.gmra.mrb[0].mxu0 %v2959
      %v3072 = vpop.f32.mrb[0].mxu0
      %v3073 = vadd.f32 0.0, %v3072
      %v3074 = vpop.f32.mrb[0].mxu0
      %v3075 = vadd.f32 0.0, %v3074
      %3076 = vmatprep.mubr.f32.mxu0 0.0
      %3077 = vmatmul.mubr.f32.gmra.mrb[0].mxu0 %v2962
      %v3078 = vpop.f32.mrb[0].mxu0
      %v3079 = vadd.f32 0.0, %v3078
      %v3080 = vpop.f32.mrb[0].mxu0
      %v3081 = vadd.f32 0.0, %v3080
      %3082 = vmatprep.mubr.f32.mxu0 0.0
      %3083 = vmatmul.mubr.f32.gmra.mrb[0].mxu0 %v2965
      %v3084 = vpop.f32.mrb[0].mxu0
      %v3085 = vadd.f32 0.0, %v3084
      %v3086 = vpop.f32.mrb[0].mxu0
      %v3087 = vadd.f32 0.0, %v3086
      %3088 = vmatprep.mubr.f32.mxu0 0.0
      %3089 = vmatmul.mubr.f32.gmra.mrb[0].mxu0 %v2968
      %v3090 = vpop.f32.mrb[0].mxu0
      %v3091 = vadd.f32 0.0, %v3090
      %v3092 = vpop.f32.mrb[0].mxu0
      %v3093 = vadd.f32 0.0, %v3092
      %3094 = vmatprep.mubr.f32.mxu0 0.0
      %3095 = vmatmul.mubr.f32.gmra.mrb[0].mxu0 %v2971
      %v3096 = vpop.f32.mrb[0].mxu0
      %v3097 = vadd.f32 0.0, %v3096
      %v3098 = vpop.f32.mrb[0].mxu0
      %v3099 = vadd.f32 0.0, %v3098
      %3100 = vmatprep.mubr.f32.mxu0 0.0
      %3101 = vmatmul.mubr.f32.gmra.mrb[0].mxu0 %v2974
      %v3102 = vpop.f32.mrb[0].mxu0
      %v3103 = vadd.f32 0.0, %v3102
      %v3104 = vpop.f32.mrb[0].mxu0
      %v3105 = vadd.f32 0.0, %v3104
      %3106 = vmatprep.mubr.f32.mxu0 0.0
      %3107 = vmatmul.mubr.f32.gmra.mrb[0].mxu0 %v2977
      %v3108 = vpop.f32.mrb[0].mxu0
      %v3109 = vadd.f32 0.0, %v3108
      %v3110 = vpop.f32.mrb[0].mxu0
      %v3111 = vadd.f32 0.0, %v3110
      %3112 = vmatprep.mubr.f32.mxu0 0.0
      %3113 = vmatmul.mubr.f32.gmra.mrb[0].mxu0 %v2980
      %v3114 = vpop.f32.mrb[0].mxu0
      %v3115 = vadd.f32 0.0, %v3114
      %v3116 = vpop.f32.mrb[0].mxu0
      %v3117 = vadd.f32 0.0, %v3116
      %3118 = vdwg.mxu0
      %3119 = vmatprep.subr.mxu0 %v2211
      %3120 = vmatpush1.msra.mxu0 %v2210
      %3121 = vmatprep.subr.mxu0 %v2219
      %3122 = vmatpush1.msra.mxu0 %v2218
      %3123 = vmatprep.subr.mxu0 0.0
      %3124 = vmatpush1.msra.mxu0 0.0
      %3125 = vmatprep.subr.mxu0 0.0
      %3126 = vmatpush1.msra.mxu0 0.0
      %3127 = vmatprep.subr.mxu0 0.0
      %3128 = vmatpush1.msra.mxu0 0.0
      %3129 = vmatprep.subr.mxu0 0.0
      %3130 = vmatpush1.msra.mxu0 0.0
      %3131 = vmatprep.subr.mxu0 0.0
      %3132 = vmatpush1.msra.mxu0 0.0
      %3133 = vmatprep.subr.mxu0 0.0
      %3134 = vmatpush1.msra.mxu0 0.0
      %3135 = vmatprep.subr.mxu0 0.0
      %3136 = vmatpush1.msra.mxu0 0.0
      %3137 = vmatprep.subr.mxu0 0.0
      %3138 = vmatpush1.msra.mxu0 0.0
      %3139 = vmatprep.subr.mxu0 0.0
      %3140 = vmatpush1.msra.mxu0 0.0
      %3141 = vmatprep.subr.mxu0 0.0
      %3142 = vmatpush1.msra.mxu0 0.0
      %3143 = vmatprep.subr.mxu0 0.0
      %3144 = vmatpush1.msra.mxu0 0.0
      %3145 = vmatprep.subr.mxu0 0.0
      %3146 = vmatpush1.msra.mxu0 0.0
      %3147 = vmatprep.subr.mxu0 0.0
      %3148 = vmatpush1.msra.mxu0 0.0
      %3149 = vmatprep.subr.mxu0 0.0
      %3150 = vmatpush1.msra.mxu0 0.0
      %3151 = vmatprep.subr.mxu0 0.0
      %3152 = vmatpush1.msra.mxu0 0.0
      %3153 = vmatprep.subr.mxu0 0.0
      %3154 = vmatpush1.msra.mxu0 0.0
      %3155 = vmatprep.subr.mxu0 0.0
      %3156 = vmatpush1.msra.mxu0 0.0
      %3157 = vmatprep.subr.mxu0 0.0
      %3158 = vmatpush1.msra.mxu0 0.0
      %3159 = vmatprep.subr.mxu0 0.0
      %3160 = vmatpush1.msra.mxu0 0.0
      %3161 = vmatprep.subr.mxu0 0.0
      %3162 = vmatpush1.msra.mxu0 0.0
      %3163 = vmatprep.subr.mxu0 0.0
      %3164 = vmatpush1.msra.mxu0 0.0
      %3165 = vmatprep.subr.mxu0 0.0
      %3166 = vmatpush1.msra.mxu0 0.0
      %3167 = vmatprep.subr.mxu0 0.0
      %3168 = vmatpush1.msra.mxu0 0.0
      %3169 = vmatprep.subr.mxu0 0.0
      %3170 = vmatpush1.msra.mxu0 0.0
      %3171 = vmatprep.subr.mxu0 0.0
      %3172 = vmatpush1.msra.mxu0 0.0
      %3173 = vmatprep.subr.mxu0 0.0
      %3174 = vmatpush1.msra.mxu0 0.0
      %3175 = vmatprep.subr.mxu0 0.0
      %3176 = vmatpush1.msra.mxu0 0.0
      %3177 = vmatprep.subr.mxu0 0.0
      %3178 = vmatpush1.msra.mxu0 0.0
      %3179 = vmatprep.subr.mxu0 0.0
      %3180 = vmatpush1.msra.mxu0 0.0
      %3181 = vmatprep.subr.mxu0 0.0
      %3182 = vmatpush1.msra.mxu0 0.0
      %3183 = vmatprep.mubr.f32.mxu0 0.0
      %3184 = vmatmul.mubr.f32.gmra.mrb[0].mxu0 %v2947
      %v3185 = vpop.f32.mrb[0].mxu0
      %v3186 = vadd.f32 0.0, %v3185
      %v3187 = vpop.f32.mrb[0].mxu0
      %v3188 = vadd.f32 0.0, %v3187
      %3189 = vmatprep.mubr.f32.mxu0 0.0
      %3190 = vmatmul.mubr.f32.gmra.mrb[0].mxu0 %v2950
      %v3191 = vpop.f32.mrb[0].mxu0
      %v3192 = vadd.f32 0.0, %v3191
      %v3193 = vpop.f32.mrb[0].mxu0
      %v3194 = vadd.f32 0.0, %v3193
      %3195 = vmatprep.mubr.f32.mxu0 0.0
      %3196 = vmatmul.mubr.f32.gmra.mrb[0].mxu0 %v2953
      %v3197 = vpop.f32.mrb[0].mxu0
      %v3198 = vadd.f32 0.0, %v3197
      %v3199 = vpop.f32.mrb[0].mxu0
      %v3200 = vadd.f32 0.0, %v3199
      %3201 = vmatprep.mubr.f32.mxu0 0.0
      %3202 = vmatmul.mubr.f32.gmra.mrb[0].mxu0 %v2956
      %v3203 = vpop.f32.mrb[0].mxu0
      %v3204 = vadd.f32 0.0, %v3203
      %v3205 = vpop.f32.mrb[0].mxu0
      %v3206 = vadd.f32 0.0, %v3205
      %3207 = vmatprep.mubr.f32.mxu0 0.0
      %3208 = vmatmul.mubr.f32.gmra.mrb[0].mxu0 %v2959
      %v3209 = vpop.f32.mrb[0].mxu0
      %v3210 = vadd.f32 0.0, %v3209
      %v3211 = vpop.f32.mrb[0].mxu0
      %v3212 = vadd.f32 0.0, %v3211
      %3213 = vmatprep.mubr.f32.mxu0 0.0
      %3214 = vmatmul.mubr.f32.gmra.mrb[0].mxu0 %v2962
      %v3215 = vpop.f32.mrb[0].mxu0
      %v3216 = vadd.f32 0.0, %v3215
      %v3217 = vpop.f32.mrb[0].mxu0
      %v3218 = vadd.f32 0.0, %v3217
      %3219 = vmatprep.mubr.f32.mxu0 0.0
      %3220 = vmatmul.mubr.f32.gmra.mrb[0].mxu0 %v2965
      %v3221 = vpop.f32.mrb[0].mxu0
      %v3222 = vadd.f32 0.0, %v3221
      %v3223 = vpop.f32.mrb[0].mxu0
      %v3224 = vadd.f32 0.0, %v3223
      %3225 = vmatprep.mubr.f32.mxu0 0.0
      %3226 = vmatmul.mubr.f32.gmra.mrb[0].mxu0 %v2968
      %v3227 = vpop.f32.mrb[0].mxu0
      %v3228 = vadd.f32 0.0, %v3227
      %v3229 = vpop.f32.mrb[0].mxu0
      %v3230 = vadd.f32 0.0, %v3229
      %3231 = vmatprep.mubr.f32.mxu0 0.0
      %3232 = vmatmul.mubr.f32.gmra.mrb[0].mxu0 %v2971
      %v3233 = vpop.f32.mrb[0].mxu0
      %v3234 = vadd.f32 0.0, %v3233
      %v3235 = vpop.f32.mrb[0].mxu0
      %v3236 = vadd.f32 0.0, %v3235
      %3237 = vmatprep.mubr.f32.mxu0 0.0
      %3238 = vmatmul.mubr.f32.gmra.mrb[0].mxu0 %v2974
      %v3239 = vpop.f32.mrb[0].mxu0
      %v3240 = vadd.f32 0.0, %v3239
      %v3241 = vpop.f32.mrb[0].mxu0
      %v3242 = vadd.f32 0.0, %v3241
      %3243 = vmatprep.mubr.f32.mxu0 0.0
      %3244 = vmatmul.mubr.f32.gmra.mrb[0].mxu0 %v2977
      %v3245 = vpop.f32.mrb[0].mxu0
      %v3246 = vadd.f32 0.0, %v3245
      %v3247 = vpop.f32.mrb[0].mxu0
      %v3248 = vadd.f32 0.0, %v3247
      %3249 = vmatprep.mubr.f32.mxu0 0.0
      %3250 = vmatmul.mubr.f32.gmra.mrb[0].mxu0 %v2980
      %v3251 = vpop.f32.mrb[0].mxu0
      %v3252 = vadd.f32 0.0, %v3251
      %v3253 = vpop.f32.mrb[0].mxu0
      %v3254 = vadd.f32 0.0, %v3253
      %3255 = vdwg.mxu0
      %3256 = vmatprep.subr.mxu0 %v2213
      %3257 = vmatpush1.msra.mxu0 %v2212
      %3258 = vmatprep.subr.mxu0 %v2221
      %3259 = vmatpush1.msra.mxu0 %v2220
      %3260 = vmatprep.subr.mxu0 0.0
      %3261 = vmatpush1.msra.mxu0 0.0
      %3262 = vmatprep.subr.mxu0 0.0
      %3263 = vmatpush1.msra.mxu0 0.0
      %3264 = vmatprep.subr.mxu0 0.0
      %3265 = vmatpush1.msra.mxu0 0.0
      %3266 = vmatprep.subr.mxu0 0.0
      %3267 = vmatpush1.msra.mxu0 0.0
      %3268 = vmatprep.subr.mxu0 0.0
      %3269 = vmatpush1.msra.mxu0 0.0
      %3270 = vmatprep.subr.mxu0 0.0
      %3271 = vmatpush1.msra.mxu0 0.0
      %3272 = vmatprep.subr.mxu0 0.0
      %3273 = vmatpush1.msra.mxu0 0.0
      %3274 = vmatprep.subr.mxu0 0.0
      %3275 = vmatpush1.msra.mxu0 0.0
      %3276 = vmatprep.subr.mxu0 0.0
      %3277 = vmatpush1.msra.mxu0 0.0
      %3278 = vmatprep.subr.mxu0 0.0
      %3279 = vmatpush1.msra.mxu0 0.0
      %3280 = vmatprep.subr.mxu0 0.0
      %3281 = vmatpush1.msra.mxu0 0.0
      %3282 = vmatprep.subr.mxu0 0.0
      %3283 = vmatpush1.msra.mxu0 0.0
      %3284 = vmatprep.subr.mxu0 0.0
      %3285 = vmatpush1.msra.mxu0 0.0
      %3286 = vmatprep.subr.mxu0 0.0
      %3287 = vmatpush1.msra.mxu0 0.0
      %3288 = vmatprep.subr.mxu0 0.0
      %3289 = vmatpush1.msra.mxu0 0.0
      %3290 = vmatprep.subr.mxu0 0.0
      %3291 = vmatpush1.msra.mxu0 0.0
      %3292 = vmatprep.subr.mxu0 0.0
      %3293 = vmatpush1.msra.mxu0 0.0
      %3294 = vmatprep.subr.mxu0 0.0
      %3295 = vmatpush1.msra.mxu0 0.0
      %3296 = vmatprep.subr.mxu0 0.0
      %3297 = vmatpush1.msra.mxu0 0.0
      %3298 = vmatprep.subr.mxu0 0.0
      %3299 = vmatpush1.msra.mxu0 0.0
      %3300 = vmatprep.subr.mxu0 0.0
      %3301 = vmatpush1.msra.mxu0 0.0
      %3302 = vmatprep.subr.mxu0 0.0
      %3303 = vmatpush1.msra.mxu0 0.0
      %3304 = vmatprep.subr.mxu0 0.0
      %3305 = vmatpush1.msra.mxu0 0.0
      %3306 = vmatprep.subr.mxu0 0.0
      %3307 = vmatpush1.msra.mxu0 0.0
      %3308 = vmatprep.subr.mxu0 0.0
      %3309 = vmatpush1.msra.mxu0 0.0
      %3310 = vmatprep.subr.mxu0 0.0
      %3311 = vmatpush1.msra.mxu0 0.0
      %3312 = vmatprep.subr.mxu0 0.0
      %3313 = vmatpush1.msra.mxu0 0.0
      %3314 = vmatprep.subr.mxu0 0.0
      %3315 = vmatpush1.msra.mxu0 0.0
      %3316 = vmatprep.subr.mxu0 0.0
      %3317 = vmatpush1.msra.mxu0 0.0
      %3318 = vmatprep.subr.mxu0 0.0
      %3319 = vmatpush1.msra.mxu0 0.0
      %3320 = vmatprep.mubr.f32.mxu0 0.0
      %3321 = vmatmul.mubr.f32.gmra.mrb[0].mxu0 %v2947
      %v3322 = vpop.f32.mrb[0].mxu0
      %v3323 = vadd.f32 0.0, %v3322
      %v3324 = vpop.f32.mrb[0].mxu0
      %v3325 = vadd.f32 0.0, %v3324
      %3326 = vmatprep.mubr.f32.mxu0 0.0
      %3327 = vmatmul.mubr.f32.gmra.mrb[0].mxu0 %v2950
      %v3328 = vpop.f32.mrb[0].mxu0
      %v3329 = vadd.f32 0.0, %v3328
      %v3330 = vpop.f32.mrb[0].mxu0
      %v3331 = vadd.f32 0.0, %v3330
      %3332 = vmatprep.mubr.f32.mxu0 0.0
      %3333 = vmatmul.mubr.f32.gmra.mrb[0].mxu0 %v2953
      %v3334 = vpop.f32.mrb[0].mxu0
      %v3335 = vadd.f32 0.0, %v3334
      %v3336 = vpop.f32.mrb[0].mxu0
      %v3337 = vadd.f32 0.0, %v3336
      %3338 = vmatprep.mubr.f32.mxu0 0.0
      %3339 = vmatmul.mubr.f32.gmra.mrb[0].mxu0 %v2956
      %v3340 = vpop.f32.mrb[0].mxu0
      %v3341 = vadd.f32 0.0, %v3340
      %v3342 = vpop.f32.mrb[0].mxu0
      %v3343 = vadd.f32 0.0, %v3342
      %3344 = vmatprep.mubr.f32.mxu0 0.0
      %3345 = vmatmul.mubr.f32.gmra.mrb[0].mxu0 %v2959
      %v3346 = vpop.f32.mrb[0].mxu0
      %v3347 = vadd.f32 0.0, %v3346
      %v3348 = vpop.f32.mrb[0].mxu0
      %v3349 = vadd.f32 0.0, %v3348
      %3350 = vmatprep.mubr.f32.mxu0 0.0
      %3351 = vmatmul.mubr.f32.gmra.mrb[0].mxu0 %v2962
      %v3352 = vpop.f32.mrb[0].mxu0
      %v3353 = vadd.f32 0.0, %v3352
      %v3354 = vpop.f32.mrb[0].mxu0
      %v3355 = vadd.f32 0.0, %v3354
      %3356 = vmatprep.mubr.f32.mxu0 0.0
      %3357 = vmatmul.mubr.f32.gmra.mrb[0].mxu0 %v2965
      %v3358 = vpop.f32.mrb[0].mxu0
      %v3359 = vadd.f32 0.0, %v3358
      %v3360 = vpop.f32.mrb[0].mxu0
      %v3361 = vadd.f32 0.0, %v3360
      %3362 = vmatprep.mubr.f32.mxu0 0.0
      %3363 = vmatmul.mubr.f32.gmra.mrb[0].mxu0 %v2968
      %v3364 = vpop.f32.mrb[0].mxu0
      %v3365 = vadd.f32 0.0, %v3364
      %v3366 = vpop.f32.mrb[0].mxu0
      %v3367 = vadd.f32 0.0, %v3366
      %3368 = vmatprep.mubr.f32.mxu0 0.0
      %3369 = vmatmul.mubr.f32.gmra.mrb[0].mxu0 %v2971
      %v3370 = vpop.f32.mrb[0].mxu0
      %v3371 = vadd.f32 0.0, %v3370
      %v3372 = vpop.f32.mrb[0].mxu0
      %v3373 = vadd.f32 0.0, %v3372
      %3374 = vmatprep.mubr.f32.mxu0 0.0
      %3375 = vmatmul.mubr.f32.gmra.mrb[0].mxu0 %v2974
      %v3376 = vpop.f32.mrb[0].mxu0
      %v3377 = vadd.f32 0.0, %v3376
      %v3378 = vpop.f32.mrb[0].mxu0
      %v3379 = vadd.f32 0.0, %v3378
      %3380 = vmatprep.mubr.f32.mxu0 0.0
      %3381 = vmatmul.mubr.f32.gmra.mrb[0].mxu0 %v2977
      %v3382 = vpop.f32.mrb[0].mxu0
      %v3383 = vadd.f32 0.0, %v3382
      %v3384 = vpop.f32.mrb[0].mxu0
      %v3385 = vadd.f32 0.0, %v3384
      %3386 = vmatprep.mubr.f32.mxu0 0.0
      %3387 = vmatmul.mubr.f32.gmra.mrb[0].mxu0 %v2980
      %v3388 = vpop.f32.mrb[0].mxu0
      %v3389 = vadd.f32 0.0, %v3388
      %v3390 = vpop.f32.mrb[0].mxu0
      %v3391 = vadd.f32 0.0, %v3390
      %3392 = vdwg.mxu0
      %3393 = vmatprep.subr.mxu0 %v2215
      %3394 = vmatpush1.msra.mxu0 %v2214
      %3395 = vmatprep.subr.mxu0 %v2223
      %3396 = vmatpush1.msra.mxu0 %v2222
      %3397 = vmatprep.subr.mxu0 0.0
      %3398 = vmatpush1.msra.mxu0 0.0
      %3399 = vmatprep.subr.mxu0 0.0
      %3400 = vmatpush1.msra.mxu0 0.0
      %3401 = vmatprep.subr.mxu0 0.0
      %3402 = vmatpush1.msra.mxu0 0.0
      %3403 = vmatprep.subr.mxu0 0.0
      %3404 = vmatpush1.msra.mxu0 0.0
      %3405 = vmatprep.subr.mxu0 0.0
      %3406 = vmatpush1.msra.mxu0 0.0
      %3407 = vmatprep.subr.mxu0 0.0
      %3408 = vmatpush1.msra.mxu0 0.0
      %3409 = vmatprep.subr.mxu0 0.0
      %3410 = vmatpush1.msra.mxu0 0.0
      %3411 = vmatprep.subr.mxu0 0.0
      %3412 = vmatpush1.msra.mxu0 0.0
      %3413 = vmatprep.subr.mxu0 0.0
      %3414 = vmatpush1.msra.mxu0 0.0
      %3415 = vmatprep.subr.mxu0 0.0
      %3416 = vmatpush1.msra.mxu0 0.0
      %3417 = vmatprep.subr.mxu0 0.0
      %3418 = vmatpush1.msra.mxu0 0.0
      %3419 = vmatprep.subr.mxu0 0.0
      %3420 = vmatpush1.msra.mxu0 0.0
      %3421 = vmatprep.subr.mxu0 0.0
      %3422 = vmatpush1.msra.mxu0 0.0
      %3423 = vmatprep.subr.mxu0 0.0
      %3424 = vmatpush1.msra.mxu0 0.0
      %3425 = vmatprep.subr.mxu0 0.0
      %3426 = vmatpush1.msra.mxu0 0.0
      %3427 = vmatprep.subr.mxu0 0.0
      %3428 = vmatpush1.msra.mxu0 0.0
      %3429 = vmatprep.subr.mxu0 0.0
      %3430 = vmatpush1.msra.mxu0 0.0
      %3431 = vmatprep.subr.mxu0 0.0
      %3432 = vmatpush1.msra.mxu0 0.0
      %3433 = vmatprep.subr.mxu0 0.0
      %3434 = vmatpush1.msra.mxu0 0.0
      %3435 = vmatprep.subr.mxu0 0.0
      %3436 = vmatpush1.msra.mxu0 0.0
      %3437 = vmatprep.subr.mxu0 0.0
      %3438 = vmatpush1.msra.mxu0 0.0
      %3439 = vmatprep.subr.mxu0 0.0
      %3440 = vmatpush1.msra.mxu0 0.0
      %3441 = vmatprep.subr.mxu0 0.0
      %3442 = vmatpush1.msra.mxu0 0.0
      %3443 = vmatprep.subr.mxu0 0.0
      %3444 = vmatpush1.msra.mxu0 0.0
      %3445 = vmatprep.subr.mxu0 0.0
      %3446 = vmatpush1.msra.mxu0 0.0
      %3447 = vmatprep.subr.mxu0 0.0
      %3448 = vmatpush1.msra.mxu0 0.0
      %3449 = vmatprep.subr.mxu0 0.0
      %3450 = vmatpush1.msra.mxu0 0.0
      %3451 = vmatprep.subr.mxu0 0.0
      %3452 = vmatpush1.msra.mxu0 0.0
      %3453 = vmatprep.subr.mxu0 0.0
      %3454 = vmatpush1.msra.mxu0 0.0
      %3455 = vmatprep.subr.mxu0 0.0
      %3456 = vmatpush1.msra.mxu0 0.0
      %3457 = vmatprep.mubr.f32.mxu0 0.0
      %3458 = vmatmul.mubr.f32.gmra.mrb[0].mxu0 %v2947
      %v3459 = vpop.f32.mrb[0].mxu0
      %v3460 = vadd.f32 0.0, %v3459
      %v3461 = vpop.f32.mrb[0].mxu0
      %v3462 = vadd.f32 0.0, %v3461
      %3463 = vmatprep.mubr.f32.mxu0 0.0
      %3464 = vmatmul.mubr.f32.gmra.mrb[0].mxu0 %v2950
      %v3465 = vpop.f32.mrb[0].mxu0
      %v3466 = vadd.f32 0.0, %v3465
      %v3467 = vpop.f32.mrb[0].mxu0
      %v3468 = vadd.f32 0.0, %v3467
      %3469 = vmatprep.mubr.f32.mxu0 0.0
      %3470 = vmatmul.mubr.f32.gmra.mrb[0].mxu0 %v2953
      %v3471 = vpop.f32.mrb[0].mxu0
      %v3472 = vadd.f32 0.0, %v3471
      %v3473 = vpop.f32.mrb[0].mxu0
      %v3474 = vadd.f32 0.0, %v3473
      %3475 = vmatprep.mubr.f32.mxu0 0.0
      %3476 = vmatmul.mubr.f32.gmra.mrb[0].mxu0 %v2956
      %v3477 = vpop.f32.mrb[0].mxu0
      %v3478 = vadd.f32 0.0, %v3477
      %v3479 = vpop.f32.mrb[0].mxu0
      %v3480 = vadd.f32 0.0, %v3479
      %3481 = vmatprep.mubr.f32.mxu0 0.0
      %3482 = vmatmul.mubr.f32.gmra.mrb[0].mxu0 %v2959
      %v3483 = vpop.f32.mrb[0].mxu0
      %v3484 = vadd.f32 0.0, %v3483
      %v3485 = vpop.f32.mrb[0].mxu0
      %v3486 = vadd.f32 0.0, %v3485
      %3487 = vmatprep.mubr.f32.mxu0 0.0
      %3488 = vmatmul.mubr.f32.gmra.mrb[0].mxu0 %v2962
      %v3489 = vpop.f32.mrb[0].mxu0
      %v3490 = vadd.f32 0.0, %v3489
      %v3491 = vpop.f32.mrb[0].mxu0
      %v3492 = vadd.f32 0.0, %v3491
      %3493 = vmatprep.mubr.f32.mxu0 0.0
      %3494 = vmatmul.mubr.f32.gmra.mrb[0].mxu0 %v2965
      %v3495 = vpop.f32.mrb[0].mxu0
      %v3496 = vadd.f32 0.0, %v3495
      %v3497 = vpop.f32.mrb[0].mxu0
      %v3498 = vadd.f32 0.0, %v3497
      %3499 = vmatprep.mubr.f32.mxu0 0.0
      %3500 = vmatmul.mubr.f32.gmra.mrb[0].mxu0 %v2968
      %v3501 = vpop.f32.mrb[0].mxu0
      %v3502 = vadd.f32 0.0, %v3501
      %v3503 = vpop.f32.mrb[0].mxu0
      %v3504 = vadd.f32 0.0, %v3503
      %3505 = vmatprep.mubr.f32.mxu0 0.0
      %3506 = vmatmul.mubr.f32.gmra.mrb[0].mxu0 %v2971
      %v3507 = vpop.f32.mrb[0].mxu0
      %v3508 = vadd.f32 0.0, %v3507
      %v3509 = vpop.f32.mrb[0].mxu0
      %v3510 = vadd.f32 0.0, %v3509
      %3511 = vmatprep.mubr.f32.mxu0 0.0
      %3512 = vmatmul.mubr.f32.gmra.mrb[0].mxu0 %v2974
      %v3513 = vpop.f32.mrb[0].mxu0
      %v3514 = vadd.f32 0.0, %v3513
      %v3515 = vpop.f32.mrb[0].mxu0
      %v3516 = vadd.f32 0.0, %v3515
      %3517 = vmatprep.mubr.f32.mxu0 0.0
      %3518 = vmatmul.mubr.f32.gmra.mrb[0].mxu0 %v2977
      %v3519 = vpop.f32.mrb[0].mxu0
      %v3520 = vadd.f32 0.0, %v3519
      %v3521 = vpop.f32.mrb[0].mxu0
      %v3522 = vadd.f32 0.0, %v3521
      %3523 = vmatprep.mubr.f32.mxu0 0.0
      %3524 = vmatmul.mubr.f32.gmra.mrb[0].mxu0 %v2980
      %v3525 = vpop.f32.mrb[0].mxu0
      %v3526 = vadd.f32 0.0, %v3525
      %v3527 = vpop.f32.mrb[0].mxu0
      %v3528 = vadd.f32 0.0, %v3527
      %3529 = vdwg.mxu0
      %v3530 = vmul.f32 %v2452, %v3049
      %v3531 = vmul.f32 %v2454, %v3051
      %v3532 = vmul.f32 %v2589, %v3186
      %v3533 = vmul.f32 %v2591, %v3188
      %v3534 = vmul.f32 %v2726, %v3323
      %v3535 = vmul.f32 %v2728, %v3325
      %v3536 = vmul.f32 %v2863, %v3460
      %v3537 = vmul.f32 %v2865, %v3462
      %v3538 = vmul.f32 %v2458, %v3055
      %v3539 = vmul.f32 %v2460, %v3057
      %v3540 = vmul.f32 %v2595, %v3192
      %v3541 = vmul.f32 %v2597, %v3194
      %v3542 = vmul.f32 %v2732, %v3329
      %v3543 = vmul.f32 %v2734, %v3331
      %v3544 = vmul.f32 %v2869, %v3466
      %v3545 = vmul.f32 %v2871, %v3468
      %v3546 = vmul.f32 %v2464, %v3061
      %v3547 = vmul.f32 %v2466, %v3063
      %v3548 = vmul.f32 %v2601, %v3198
      %v3549 = vmul.f32 %v2603, %v3200
      %v3550 = vmul.f32 %v2738, %v3335
      %v3551 = vmul.f32 %v2740, %v3337
      %v3552 = vmul.f32 %v2875, %v3472
      %v3553 = vmul.f32 %v2877, %v3474
      %v3554 = vmul.f32 %v2470, %v3067
      %v3555 = vmul.f32 %v2472, %v3069
      %v3556 = vmul.f32 %v2607, %v3204
      %v3557 = vmul.f32 %v2609, %v3206
      %v3558 = vmul.f32 %v2744, %v3341
      %v3559 = vmul.f32 %v2746, %v3343
      %v3560 = vmul.f32 %v2881, %v3478
      %v3561 = vmul.f32 %v2883, %v3480
      %v3562 = vmul.f32 %v2476, %v3073
      %v3563 = vmul.f32 %v2478, %v3075
      %v3564 = vmul.f32 %v2613, %v3210
      %v3565 = vmul.f32 %v2615, %v3212
      %v3566 = vmul.f32 %v2750, %v3347
      %v3567 = vmul.f32 %v2752, %v3349
      %v3568 = vmul.f32 %v2887, %v3484
      %v3569 = vmul.f32 %v2889, %v3486
      %v3570 = vmul.f32 %v2482, %v3079
      %v3571 = vmul.f32 %v2484, %v3081
      %v3572 = vmul.f32 %v2619, %v3216
      %v3573 = vmul.f32 %v2621, %v3218
      %v3574 = vmul.f32 %v2756, %v3353
      %v3575 = vmul.f32 %v2758, %v3355
      %v3576 = vmul.f32 %v2893, %v3490
      %v3577 = vmul.f32 %v2895, %v3492
      %v3578 = vmul.f32 %v2488, %v3085
      %v3579 = vmul.f32 %v2490, %v3087
      %v3580 = vmul.f32 %v2625, %v3222
      %v3581 = vmul.f32 %v2627, %v3224
      %v3582 = vmul.f32 %v2762, %v3359
      %v3583 = vmul.f32 %v2764, %v3361
      %v3584 = vmul.f32 %v2899, %v3496
      %v3585 = vmul.f32 %v2901, %v3498
      %v3586 = vmul.f32 %v2494, %v3091
      %v3587 = vmul.f32 %v2496, %v3093
      %v3588 = vmul.f32 %v2631, %v3228
      %v3589 = vmul.f32 %v2633, %v3230
      %v3590 = vmul.f32 %v2768, %v3365
      %v3591 = vmul.f32 %v2770, %v3367
      %v3592 = vmul.f32 %v2905, %v3502
      %v3593 = vmul.f32 %v2907, %v3504
      %v3594 = vmul.f32 %v2500, %v3097
      %v3595 = vmul.f32 %v2502, %v3099
      %v3596 = vmul.f32 %v2637, %v3234
      %v3597 = vmul.f32 %v2639, %v3236
      %v3598 = vmul.f32 %v2774, %v3371
      %v3599 = vmul.f32 %v2776, %v3373
      %v3600 = vmul.f32 %v2911, %v3508
      %v3601 = vmul.f32 %v2913, %v3510
      %v3602 = vmul.f32 %v2506, %v3103
      %v3603 = vmul.f32 %v2508, %v3105
      %v3604 = vmul.f32 %v2643, %v3240
      %v3605 = vmul.f32 %v2645, %v3242
      %v3606 = vmul.f32 %v2780, %v3377
      %v3607 = vmul.f32 %v2782, %v3379
      %v3608 = vmul.f32 %v2917, %v3514
      %v3609 = vmul.f32 %v2919, %v3516
      %v3610 = vmul.f32 %v2512, %v3109
      %v3611 = vmul.f32 %v2514, %v3111
      %v3612 = vmul.f32 %v2649, %v3246
      %v3613 = vmul.f32 %v2651, %v3248
      %v3614 = vmul.f32 %v2786, %v3383
      %v3615 = vmul.f32 %v2788, %v3385
      %v3616 = vmul.f32 %v2923, %v3520
      %v3617 = vmul.f32 %v2925, %v3522
      %v3618 = vmul.f32 %v2518, %v3115
      %v3619 = vmul.f32 %v2520, %v3117
      %v3620 = vmul.f32 %v2655, %v3252
      %v3621 = vmul.f32 %v2657, %v3254
      %v3622 = vmul.f32 %v2792, %v3389
      %v3623 = vmul.f32 %v2794, %v3391
      %v3624 = vmul.f32 %v2929, %v3526
      %v3625 = vmul.f32 %v2931, %v3528
      %s3626 = scalar_lea.vmem %s6, 96
      %v3627 = vld [vmem:[%s3626] sm:$0xff]
      %v3628 = vld [vmem:[%s3626 + $0x8] sm:$0xff]
      %v3629 = vld [vmem:[%s3626 + $0x10] sm:$0xff]
      %v3630 = vld [vmem:[%s3626 + $0x18] sm:$0xff]
      %v3631 = vld [vmem:[%s3626 + $0x20] sm:$0xff]
      %v3632 = vld [vmem:[%s3626 + $0x28] sm:$0xff]
      %v3633 = vld [vmem:[%s3626 + $0x30] sm:$0xff]
      %v3634 = vld [vmem:[%s3626 + $0x38] sm:$0xff]
      %v3635 = vld [vmem:[%s3626 + $0x40] sm:$0xff]
      %v3636 = vld [vmem:[%s3626 + $0x48] sm:$0xff]
      %v3637 = vld [vmem:[%s3626 + $0x50] sm:$0xff]
      %v3638 = vld [vmem:[%s3626 + $0x58] sm:$0xff]
      %v3640 = vsel %vm2348, %v3627, 0
      %v3643 = vsel %vm2348, %v3628, 0
      %v3646 = vsel %vm2348, %v3629, 0
      %v3649 = vsel %vm2348, %v3630, 0
      %v3652 = vsel %vm2348, %v3631, 0
      %v3655 = vsel %vm2348, %v3632, 0
      %v3658 = vsel %vm2348, %v3633, 0
      %v3661 = vsel %vm2348, %v3634, 0
      %v3664 = vsel %vm2348, %v3635, 0
      %v3667 = vsel %vm2348, %v3636, 0
      %v3670 = vsel %vm2348, %v3637, 0
      %v3673 = vsel %vm2348, %v3638, 0
      %3675 = vmatprep.subr.mxu0 %v2241
      %3676 = vmatpush1.msra.mxu0 %v2240
      %3677 = vmatprep.subr.mxu0 %v2249
      %3678 = vmatpush1.msra.mxu0 %v2248
      %3679 = vmatprep.subr.mxu0 %v2257
      %3680 = vmatpush1.msra.mxu0 %v2256
      %3681 = vmatprep.subr.mxu0 %v2265
      %3682 = vmatpush1.msra.mxu0 %v2264
      %3683 = vmatprep.subr.mxu0 %v2273
      %3684 = vmatpush1.msra.mxu0 %v2272
      %3685 = vmatprep.subr.mxu0 %v2281
      %3686 = vmatpush1.msra.mxu0 %v2280
      %3687 = vmatprep.subr.mxu0 %v2289
      %3688 = vmatpush1.msra.mxu0 %v2288
      %3689 = vmatprep.subr.mxu0 %v2297
      %3690 = vmatpush1.msra.mxu0 %v2296
      %3691 = vmatprep.subr.mxu0 %v2305
      %3692 = vmatpush1.msra.mxu0 %v2304
      %3693 = vmatprep.subr.mxu0 %v2313
      %3694 = vmatpush1.msra.mxu0 %v2312
      %3695 = vmatprep.subr.mxu0 %v2321
      %3696 = vmatpush1.msra.mxu0 %v2320
      %3697 = vmatprep.subr.mxu0 %v2329
      %3698 = vmatpush1.msra.mxu0 %v2328
      %3699 = vmatprep.subr.mxu0 0.0
      %3700 = vmatpush1.msra.mxu0 0.0
      %3701 = vmatprep.subr.mxu0 0.0
      %3702 = vmatpush1.msra.mxu0 0.0
      %3703 = vmatprep.subr.mxu0 0.0
      %3704 = vmatpush1.msra.mxu0 0.0
      %3705 = vmatprep.subr.mxu0 0.0
      %3706 = vmatpush1.msra.mxu0 0.0
      %3707 = vmatprep.subr.mxu0 0.0
      %3708 = vmatpush1.msra.mxu0 0.0
      %3709 = vmatprep.subr.mxu0 0.0
      %3710 = vmatpush1.msra.mxu0 0.0
      %3711 = vmatprep.subr.mxu0 0.0
      %3712 = vmatpush1.msra.mxu0 0.0
      %3713 = vmatprep.subr.mxu0 0.0
      %3714 = vmatpush1.msra.mxu0 0.0
      %3715 = vmatprep.subr.mxu0 0.0
      %3716 = vmatpush1.msra.mxu0 0.0
      %3717 = vmatprep.subr.mxu0 0.0
      %3718 = vmatpush1.msra.mxu0 0.0
      %3719 = vmatprep.subr.mxu0 0.0
      %3720 = vmatpush1.msra.mxu0 0.0
      %3721 = vmatprep.subr.mxu0 0.0
      %3722 = vmatpush1.msra.mxu0 0.0
      %3723 = vmatprep.subr.mxu0 0.0
      %3724 = vmatpush1.msra.mxu0 0.0
      %3725 = vmatprep.subr.mxu0 0.0
      %3726 = vmatpush1.msra.mxu0 0.0
      %3727 = vmatprep.subr.mxu0 0.0
      %3728 = vmatpush1.msra.mxu0 0.0
      %3729 = vmatprep.subr.mxu0 0.0
      %3730 = vmatpush1.msra.mxu0 0.0
      %3731 = vmatprep.subr.mxu0 0.0
      %3732 = vmatpush1.msra.mxu0 0.0
      %3733 = vmatprep.subr.mxu0 0.0
      %3734 = vmatpush1.msra.mxu0 0.0
      %3735 = vmatprep.subr.mxu0 0.0
      %3736 = vmatpush1.msra.mxu0 0.0
      %3737 = vmatprep.subr.mxu0 0.0
      %3738 = vmatpush1.msra.mxu0 0.0
      %3739 = vmatprep.mubr.f32.mxu0 0.0
      %3740 = vmatmul.mubr.f32.gmra.mrb[0].mxu0 %v3640
      %v3741 = vpop.f32.mrb[0].mxu0
      %v3742 = vadd.f32 0.0, %v3741
      %v3743 = vpop.f32.mrb[0].mxu0
      %v3744 = vadd.f32 0.0, %v3743
      %3745 = vmatprep.mubr.f32.mxu0 0.0
      %3746 = vmatmul.mubr.f32.gmra.mrb[0].mxu0 %v3643
      %v3747 = vpop.f32.mrb[0].mxu0
      %v3748 = vadd.f32 0.0, %v3747
      %v3749 = vpop.f32.mrb[0].mxu0
      %v3750 = vadd.f32 0.0, %v3749
      %3751 = vmatprep.mubr.f32.mxu0 0.0
      %3752 = vmatmul.mubr.f32.gmra.mrb[0].mxu0 %v3646
      %v3753 = vpop.f32.mrb[0].mxu0
      %v3754 = vadd.f32 0.0, %v3753
      %v3755 = vpop.f32.mrb[0].mxu0
      %v3756 = vadd.f32 0.0, %v3755
      %3757 = vmatprep.mubr.f32.mxu0 0.0
      %3758 = vmatmul.mubr.f32.gmra.mrb[0].mxu0 %v3649
      %v3759 = vpop.f32.mrb[0].mxu0
      %v3760 = vadd.f32 0.0, %v3759
      %v3761 = vpop.f32.mrb[0].mxu0
      %v3762 = vadd.f32 0.0, %v3761
      %3763 = vmatprep.mubr.f32.mxu0 0.0
      %3764 = vmatmul.mubr.f32.gmra.mrb[0].mxu0 %v3652
      %v3765 = vpop.f32.mrb[0].mxu0
      %v3766 = vadd.f32 0.0, %v3765
      %v3767 = vpop.f32.mrb[0].mxu0
      %v3768 = vadd.f32 0.0, %v3767
      %3769 = vmatprep.mubr.f32.mxu0 0.0
      %3770 = vmatmul.mubr.f32.gmra.mrb[0].mxu0 %v3655
      %v3771 = vpop.f32.mrb[0].mxu0
      %v3772 = vadd.f32 0.0, %v3771
      %v3773 = vpop.f32.mrb[0].mxu0
      %v3774 = vadd.f32 0.0, %v3773
      %3775 = vmatprep.mubr.f32.mxu0 0.0
      %3776 = vmatmul.mubr.f32.gmra.mrb[0].mxu0 %v3658
      %v3777 = vpop.f32.mrb[0].mxu0
      %v3778 = vadd.f32 0.0, %v3777
      %v3779 = vpop.f32.mrb[0].mxu0
      %v3780 = vadd.f32 0.0, %v3779
      %3781 = vmatprep.mubr.f32.mxu0 0.0
      %3782 = vmatmul.mubr.f32.gmra.mrb[0].mxu0 %v3661
      %v3783 = vpop.f32.mrb[0].mxu0
      %v3784 = vadd.f32 0.0, %v3783
      %v3785 = vpop.f32.mrb[0].mxu0
      %v3786 = vadd.f32 0.0, %v3785
      %3787 = vmatprep.mubr.f32.mxu0 0.0
      %3788 = vmatmul.mubr.f32.gmra.mrb[0].mxu0 %v3664
      %v3789 = vpop.f32.mrb[0].mxu0
      %v3790 = vadd.f32 0.0, %v3789
      %v3791 = vpop.f32.mrb[0].mxu0
      %v3792 = vadd.f32 0.0, %v3791
      %3793 = vmatprep.mubr.f32.mxu0 0.0
      %3794 = vmatmul.mubr.f32.gmra.mrb[0].mxu0 %v3667
      %v3795 = vpop.f32.mrb[0].mxu0
      %v3796 = vadd.f32 0.0, %v3795
      %v3797 = vpop.f32.mrb[0].mxu0
      %v3798 = vadd.f32 0.0, %v3797
      %3799 = vmatprep.mubr.f32.mxu0 0.0
      %3800 = vmatmul.mubr.f32.gmra.mrb[0].mxu0 %v3670
      %v3801 = vpop.f32.mrb[0].mxu0
      %v3802 = vadd.f32 0.0, %v3801
      %v3803 = vpop.f32.mrb[0].mxu0
      %v3804 = vadd.f32 0.0, %v3803
      %3805 = vmatprep.mubr.f32.mxu0 0.0
      %3806 = vmatmul.mubr.f32.gmra.mrb[0].mxu0 %v3673
      %v3807 = vpop.f32.mrb[0].mxu0
      %v3808 = vadd.f32 0.0, %v3807
      %v3809 = vpop.f32.mrb[0].mxu0
      %v3810 = vadd.f32 0.0, %v3809
      %3811 = vdwg.mxu0
      %3812 = vmatprep.subr.mxu0 %v2243
      %3813 = vmatpush1.msra.mxu0 %v2242
      %3814 = vmatprep.subr.mxu0 %v2251
      %3815 = vmatpush1.msra.mxu0 %v2250
      %3816 = vmatprep.subr.mxu0 %v2259
      %3817 = vmatpush1.msra.mxu0 %v2258
      %3818 = vmatprep.subr.mxu0 %v2267
      %3819 = vmatpush1.msra.mxu0 %v2266
      %3820 = vmatprep.subr.mxu0 %v2275
      %3821 = vmatpush1.msra.mxu0 %v2274
      %3822 = vmatprep.subr.mxu0 %v2283
      %3823 = vmatpush1.msra.mxu0 %v2282
      %3824 = vmatprep.subr.mxu0 %v2291
      %3825 = vmatpush1.msra.mxu0 %v2290
      %3826 = vmatprep.subr.mxu0 %v2299
      %3827 = vmatpush1.msra.mxu0 %v2298
      %3828 = vmatprep.subr.mxu0 %v2307
      %3829 = vmatpush1.msra.mxu0 %v2306
      %3830 = vmatprep.subr.mxu0 %v2315
      %3831 = vmatpush1.msra.mxu0 %v2314
      %3832 = vmatprep.subr.mxu0 %v2323
      %3833 = vmatpush1.msra.mxu0 %v2322
      %3834 = vmatprep.subr.mxu0 %v2331
      %3835 = vmatpush1.msra.mxu0 %v2330
      %3836 = vmatprep.subr.mxu0 0.0
      %3837 = vmatpush1.msra.mxu0 0.0
      %3838 = vmatprep.subr.mxu0 0.0
      %3839 = vmatpush1.msra.mxu0 0.0
      %3840 = vmatprep.subr.mxu0 0.0
      %3841 = vmatpush1.msra.mxu0 0.0
      %3842 = vmatprep.subr.mxu0 0.0
      %3843 = vmatpush1.msra.mxu0 0.0
      %3844 = vmatprep.subr.mxu0 0.0
      %3845 = vmatpush1.msra.mxu0 0.0
      %3846 = vmatprep.subr.mxu0 0.0
      %3847 = vmatpush1.msra.mxu0 0.0
      %3848 = vmatprep.subr.mxu0 0.0
      %3849 = vmatpush1.msra.mxu0 0.0
      %3850 = vmatprep.subr.mxu0 0.0
      %3851 = vmatpush1.msra.mxu0 0.0
      %3852 = vmatprep.subr.mxu0 0.0
      %3853 = vmatpush1.msra.mxu0 0.0
      %3854 = vmatprep.subr.mxu0 0.0
      %3855 = vmatpush1.msra.mxu0 0.0
      %3856 = vmatprep.subr.mxu0 0.0
      %3857 = vmatpush1.msra.mxu0 0.0
      %3858 = vmatprep.subr.mxu0 0.0
      %3859 = vmatpush1.msra.mxu0 0.0
      %3860 = vmatprep.subr.mxu0 0.0
      %3861 = vmatpush1.msra.mxu0 0.0
      %3862 = vmatprep.subr.mxu0 0.0
      %3863 = vmatpush1.msra.mxu0 0.0
      %3864 = vmatprep.subr.mxu0 0.0
      %3865 = vmatpush1.msra.mxu0 0.0
      %3866 = vmatprep.subr.mxu0 0.0
      %3867 = vmatpush1.msra.mxu0 0.0
      %3868 = vmatprep.subr.mxu0 0.0
      %3869 = vmatpush1.msra.mxu0 0.0
      %3870 = vmatprep.subr.mxu0 0.0
      %3871 = vmatpush1.msra.mxu0 0.0
      %3872 = vmatprep.subr.mxu0 0.0
      %3873 = vmatpush1.msra.mxu0 0.0
      %3874 = vmatprep.subr.mxu0 0.0
      %3875 = vmatpush1.msra.mxu0 0.0
      %3876 = vmatprep.mubr.f32.mxu0 0.0
      %3877 = vmatmul.mubr.f32.gmra.mrb[0].mxu0 %v3640
      %v3878 = vpop.f32.mrb[0].mxu0
      %v3879 = vadd.f32 0.0, %v3878
      %v3880 = vpop.f32.mrb[0].mxu0
      %v3881 = vadd.f32 0.0, %v3880
      %3882 = vmatprep.mubr.f32.mxu0 0.0
      %3883 = vmatmul.mubr.f32.gmra.mrb[0].mxu0 %v3643
      %v3884 = vpop.f32.mrb[0].mxu0
      %v3885 = vadd.f32 0.0, %v3884
      %v3886 = vpop.f32.mrb[0].mxu0
      %v3887 = vadd.f32 0.0, %v3886
      %3888 = vmatprep.mubr.f32.mxu0 0.0
      %3889 = vmatmul.mubr.f32.gmra.mrb[0].mxu0 %v3646
      %v3890 = vpop.f32.mrb[0].mxu0
      %v3891 = vadd.f32 0.0, %v3890
      %v3892 = vpop.f32.mrb[0].mxu0
      %v3893 = vadd.f32 0.0, %v3892
      %3894 = vmatprep.mubr.f32.mxu0 0.0
      %3895 = vmatmul.mubr.f32.gmra.mrb[0].mxu0 %v3649
      %v3896 = vpop.f32.mrb[0].mxu0
      %v3897 = vadd.f32 0.0, %v3896
      %v3898 = vpop.f32.mrb[0].mxu0
      %v3899 = vadd.f32 0.0, %v3898
      %3900 = vmatprep.mubr.f32.mxu0 0.0
      %3901 = vmatmul.mubr.f32.gmra.mrb[0].mxu0 %v3652
      %v3902 = vpop.f32.mrb[0].mxu0
      %v3903 = vadd.f32 0.0, %v3902
      %v3904 = vpop.f32.mrb[0].mxu0
      %v3905 = vadd.f32 0.0, %v3904
      %3906 = vmatprep.mubr.f32.mxu0 0.0
      %3907 = vmatmul.mubr.f32.gmra.mrb[0].mxu0 %v3655
      %v3908 = vpop.f32.mrb[0].mxu0
      %v3909 = vadd.f32 0.0, %v3908
      %v3910 = vpop.f32.mrb[0].mxu0
      %v3911 = vadd.f32 0.0, %v3910
      %3912 = vmatprep.mubr.f32.mxu0 0.0
      %3913 = vmatmul.mubr.f32.gmra.mrb[0].mxu0 %v3658
      %v3914 = vpop.f32.mrb[0].mxu0
      %v3915 = vadd.f32 0.0, %v3914
      %v3916 = vpop.f32.mrb[0].mxu0
      %v3917 = vadd.f32 0.0, %v3916
      %3918 = vmatprep.mubr.f32.mxu0 0.0
      %3919 = vmatmul.mubr.f32.gmra.mrb[0].mxu0 %v3661
      %v3920 = vpop.f32.mrb[0].mxu0
      %v3921 = vadd.f32 0.0, %v3920
      %v3922 = vpop.f32.mrb[0].mxu0
      %v3923 = vadd.f32 0.0, %v3922
      %3924 = vmatprep.mubr.f32.mxu0 0.0
      %3925 = vmatmul.mubr.f32.gmra.mrb[0].mxu0 %v3664
      %v3926 = vpop.f32.mrb[0].mxu0
      %v3927 = vadd.f32 0.0, %v3926
      %v3928 = vpop.f32.mrb[0].mxu0
      %v3929 = vadd.f32 0.0, %v3928
      %3930 = vmatprep.mubr.f32.mxu0 0.0
      %3931 = vmatmul.mubr.f32.gmra.mrb[0].mxu0 %v3667
      %v3932 = vpop.f32.mrb[0].mxu0
      %v3933 = vadd.f32 0.0, %v3932
      %v3934 = vpop.f32.mrb[0].mxu0
      %v3935 = vadd.f32 0.0, %v3934
      %3936 = vmatprep.mubr.f32.mxu0 0.0
      %3937 = vmatmul.mubr.f32.gmra.mrb[0].mxu0 %v3670
      %v3938 = vpop.f32.mrb[0].mxu0
      %v3939 = vadd.f32 0.0, %v3938
      %v3940 = vpop.f32.mrb[0].mxu0
      %v3941 = vadd.f32 0.0, %v3940
      %3942 = vmatprep.mubr.f32.mxu0 0.0
      %3943 = vmatmul.mubr.f32.gmra.mrb[0].mxu0 %v3673
      %v3944 = vpop.f32.mrb[0].mxu0
      %v3945 = vadd.f32 0.0, %v3944
      %v3946 = vpop.f32.mrb[0].mxu0
      %v3947 = vadd.f32 0.0, %v3946
      %3948 = vdwg.mxu0
      %3949 = vmatprep.subr.mxu0 %v2245
      %3950 = vmatpush1.msra.mxu0 %v2244
      %3951 = vmatprep.subr.mxu0 %v2253
      %3952 = vmatpush1.msra.mxu0 %v2252
      %3953 = vmatprep.subr.mxu0 %v2261
      %3954 = vmatpush1.msra.mxu0 %v2260
      %3955 = vmatprep.subr.mxu0 %v2269
      %3956 = vmatpush1.msra.mxu0 %v2268
      %3957 = vmatprep.subr.mxu0 %v2277
      %3958 = vmatpush1.msra.mxu0 %v2276
      %3959 = vmatprep.subr.mxu0 %v2285
      %3960 = vmatpush1.msra.mxu0 %v2284
      %3961 = vmatprep.subr.mxu0 %v2293
      %3962 = vmatpush1.msra.mxu0 %v2292
      %3963 = vmatprep.subr.mxu0 %v2301
      %3964 = vmatpush1.msra.mxu0 %v2300
      %3965 = vmatprep.subr.mxu0 %v2309
      %3966 = vmatpush1.msra.mxu0 %v2308
      %3967 = vmatprep.subr.mxu0 %v2317
      %3968 = vmatpush1.msra.mxu0 %v2316
      %3969 = vmatprep.subr.mxu0 %v2325
      %3970 = vmatpush1.msra.mxu0 %v2324
      %3971 = vmatprep.subr.mxu0 %v2333
      %3972 = vmatpush1.msra.mxu0 %v2332
      %3973 = vmatprep.subr.mxu0 0.0
      %3974 = vmatpush1.msra.mxu0 0.0
      %3975 = vmatprep.subr.mxu0 0.0
      %3976 = vmatpush1.msra.mxu0 0.0
      %3977 = vmatprep.subr.mxu0 0.0
      %3978 = vmatpush1.msra.mxu0 0.0
      %3979 = vmatprep.subr.mxu0 0.0
      %3980 = vmatpush1.msra.mxu0 0.0
      %3981 = vmatprep.subr.mxu0 0.0
      %3982 = vmatpush1.msra.mxu0 0.0
      %3983 = vmatprep.subr.mxu0 0.0
      %3984 = vmatpush1.msra.mxu0 0.0
      %3985 = vmatprep.subr.mxu0 0.0
      %3986 = vmatpush1.msra.mxu0 0.0
      %3987 = vmatprep.subr.mxu0 0.0
      %3988 = vmatpush1.msra.mxu0 0.0
      %3989 = vmatprep.subr.mxu0 0.0
      %3990 = vmatpush1.msra.mxu0 0.0
      %3991 = vmatprep.subr.mxu0 0.0
      %3992 = vmatpush1.msra.mxu0 0.0
      %3993 = vmatprep.subr.mxu0 0.0
      %3994 = vmatpush1.msra.mxu0 0.0
      %3995 = vmatprep.subr.mxu0 0.0
      %3996 = vmatpush1.msra.mxu0 0.0
      %3997 = vmatprep.subr.mxu0 0.0
      %3998 = vmatpush1.msra.mxu0 0.0
      %3999 = vmatprep.subr.mxu0 0.0
      %4000 = vmatpush1.msra.mxu0 0.0
      %4001 = vmatprep.subr.mxu0 0.0
      %4002 = vmatpush1.msra.mxu0 0.0
      %4003 = vmatprep.subr.mxu0 0.0
      %4004 = vmatpush1.msra.mxu0 0.0
      %4005 = vmatprep.subr.mxu0 0.0
      %4006 = vmatpush1.msra.mxu0 0.0
      %4007 = vmatprep.subr.mxu0 0.0
      %4008 = vmatpush1.msra.mxu0 0.0
      %4009 = vmatprep.subr.mxu0 0.0
      %4010 = vmatpush1.msra.mxu0 0.0
      %4011 = vmatprep.subr.mxu0 0.0
      %4012 = vmatpush1.msra.mxu0 0.0
      %4013 = vmatprep.mubr.f32.mxu0 0.0
      %4014 = vmatmul.mubr.f32.gmra.mrb[0].mxu0 %v3640
      %v4015 = vpop.f32.mrb[0].mxu0
      %v4016 = vadd.f32 0.0, %v4015
      %v4017 = vpop.f32.mrb[0].mxu0
      %v4018 = vadd.f32 0.0, %v4017
      %4019 = vmatprep.mubr.f32.mxu0 0.0
      %4020 = vmatmul.mubr.f32.gmra.mrb[0].mxu0 %v3643
      %v4021 = vpop.f32.mrb[0].mxu0
      %v4022 = vadd.f32 0.0, %v4021
      %v4023 = vpop.f32.mrb[0].mxu0
      %v4024 = vadd.f32 0.0, %v4023
      %4025 = vmatprep.mubr.f32.mxu0 0.0
      %4026 = vmatmul.mubr.f32.gmra.mrb[0].mxu0 %v3646
      %v4027 = vpop.f32.mrb[0].mxu0
      %v4028 = vadd.f32 0.0, %v4027
      %v4029 = vpop.f32.mrb[0].mxu0
      %v4030 = vadd.f32 0.0, %v4029
      %4031 = vmatprep.mubr.f32.mxu0 0.0
      %4032 = vmatmul.mubr.f32.gmra.mrb[0].mxu0 %v3649
      %v4033 = vpop.f32.mrb[0].mxu0
      %v4034 = vadd.f32 0.0, %v4033
      %v4035 = vpop.f32.mrb[0].mxu0
      %v4036 = vadd.f32 0.0, %v4035
      %4037 = vmatprep.mubr.f32.mxu0 0.0
      %4038 = vmatmul.mubr.f32.gmra.mrb[0].mxu0 %v3652
      %v4039 = vpop.f32.mrb[0].mxu0
      %v4040 = vadd.f32 0.0, %v4039
      %v4041 = vpop.f32.mrb[0].mxu0
      %v4042 = vadd.f32 0.0, %v4041
      %4043 = vmatprep.mubr.f32.mxu0 0.0
      %4044 = vmatmul.mubr.f32.gmra.mrb[0].mxu0 %v3655
      %v4045 = vpop.f32.mrb[0].mxu0
      %v4046 = vadd.f32 0.0, %v4045
      %v4047 = vpop.f32.mrb[0].mxu0
      %v4048 = vadd.f32 0.0, %v4047
      %4049 = vmatprep.mubr.f32.mxu0 0.0
      %4050 = vmatmul.mubr.f32.gmra.mrb[0].mxu0 %v3658
      %v4051 = vpop.f32.mrb[0].mxu0
      %v4052 = vadd.f32 0.0, %v4051
      %v4053 = vpop.f32.mrb[0].mxu0
      %v4054 = vadd.f32 0.0, %v4053
      %4055 = vmatprep.mubr.f32.mxu0 0.0
      %4056 = vmatmul.mubr.f32.gmra.mrb[0].mxu0 %v3661
      %v4057 = vpop.f32.mrb[0].mxu0
      %v4058 = vadd.f32 0.0, %v4057
      %v4059 = vpop.f32.mrb[0].mxu0
      %v4060 = vadd.f32 0.0, %v4059
      %4061 = vmatprep.mubr.f32.mxu0 0.0
      %4062 = vmatmul.mubr.f32.gmra.mrb[0].mxu0 %v3664
      %v4063 = vpop.f32.mrb[0].mxu0
      %v4064 = vadd.f32 0.0, %v4063
      %v4065 = vpop.f32.mrb[0].mxu0
      %v4066 = vadd.f32 0.0, %v4065
      %4067 = vmatprep.mubr.f32.mxu0 0.0
      %4068 = vmatmul.mubr.f32.gmra.mrb[0].mxu0 %v3667
      %v4069 = vpop.f32.mrb[0].mxu0
      %v4070 = vadd.f32 0.0, %v4069
      %v4071 = vpop.f32.mrb[0].mxu0
      %v4072 = vadd.f32 0.0, %v4071
      %4073 = vmatprep.mubr.f32.mxu0 0.0
      %4074 = vmatmul.mubr.f32.gmra.mrb[0].mxu0 %v3670
      %v4075 = vpop.f32.mrb[0].mxu0
      %v4076 = vadd.f32 0.0, %v4075
      %v4077 = vpop.f32.mrb[0].mxu0
      %v4078 = vadd.f32 0.0, %v4077
      %4079 = vmatprep.mubr.f32.mxu0 0.0
      %4080 = vmatmul.mubr.f32.gmra.mrb[0].mxu0 %v3673
      %v4081 = vpop.f32.mrb[0].mxu0
      %v4082 = vadd.f32 0.0, %v4081
      %v4083 = vpop.f32.mrb[0].mxu0
      %v4084 = vadd.f32 0.0, %v4083
      %4085 = vdwg.mxu0
      %4086 = vmatprep.subr.mxu0 %v2247
      %4087 = vmatpush1.msra.mxu0 %v2246
      %4088 = vmatprep.subr.mxu0 %v2255
      %4089 = vmatpush1.msra.mxu0 %v2254
      %4090 = vmatprep.subr.mxu0 %v2263
      %4091 = vmatpush1.msra.mxu0 %v2262
      %4092 = vmatprep.subr.mxu0 %v2271
      %4093 = vmatpush1.msra.mxu0 %v2270
      %4094 = vmatprep.subr.mxu0 %v2279
      %4095 = vmatpush1.msra.mxu0 %v2278
      %4096 = vmatprep.subr.mxu0 %v2287
      %4097 = vmatpush1.msra.mxu0 %v2286
      %4098 = vmatprep.subr.mxu0 %v2295
      %4099 = vmatpush1.msra.mxu0 %v2294
      %4100 = vmatprep.subr.mxu0 %v2303
      %4101 = vmatpush1.msra.mxu0 %v2302
      %4102 = vmatprep.subr.mxu0 %v2311
      %4103 = vmatpush1.msra.mxu0 %v2310
      %4104 = vmatprep.subr.mxu0 %v2319
      %4105 = vmatpush1.msra.mxu0 %v2318
      %4106 = vmatprep.subr.mxu0 %v2327
      %4107 = vmatpush1.msra.mxu0 %v2326
      %4108 = vmatprep.subr.mxu0 %v2335
      %4109 = vmatpush1.msra.mxu0 %v2334
      %4110 = vmatprep.subr.mxu0 0.0
      %4111 = vmatpush1.msra.mxu0 0.0
      %4112 = vmatprep.subr.mxu0 0.0
      %4113 = vmatpush1.msra.mxu0 0.0
      %4114 = vmatprep.subr.mxu0 0.0
      %4115 = vmatpush1.msra.mxu0 0.0
      %4116 = vmatprep.subr.mxu0 0.0
      %4117 = vmatpush1.msra.mxu0 0.0
      %4118 = vmatprep.subr.mxu0 0.0
      %4119 = vmatpush1.msra.mxu0 0.0
      %4120 = vmatprep.subr.mxu0 0.0
      %4121 = vmatpush1.msra.mxu0 0.0
      %4122 = vmatprep.subr.mxu0 0.0
      %4123 = vmatpush1.msra.mxu0 0.0
      %4124 = vmatprep.subr.mxu0 0.0
      %4125 = vmatpush1.msra.mxu0 0.0
      %4126 = vmatprep.subr.mxu0 0.0
      %4127 = vmatpush1.msra.mxu0 0.0
      %4128 = vmatprep.subr.mxu0 0.0
      %4129 = vmatpush1.msra.mxu0 0.0
      %4130 = vmatprep.subr.mxu0 0.0
      %4131 = vmatpush1.msra.mxu0 0.0
      %4132 = vmatprep.subr.mxu0 0.0
      %4133 = vmatpush1.msra.mxu0 0.0
      %4134 = vmatprep.subr.mxu0 0.0
      %4135 = vmatpush1.msra.mxu0 0.0
      %4136 = vmatprep.subr.mxu0 0.0
      %4137 = vmatpush1.msra.mxu0 0.0
      %4138 = vmatprep.subr.mxu0 0.0
      %4139 = vmatpush1.msra.mxu0 0.0
      %4140 = vmatprep.subr.mxu0 0.0
      %4141 = vmatpush1.msra.mxu0 0.0
      %4142 = vmatprep.subr.mxu0 0.0
      %4143 = vmatpush1.msra.mxu0 0.0
      %4144 = vmatprep.subr.mxu0 0.0
      %4145 = vmatpush1.msra.mxu0 0.0
      %4146 = vmatprep.subr.mxu0 0.0
      %4147 = vmatpush1.msra.mxu0 0.0
      %4148 = vmatprep.subr.mxu0 0.0
      %4149 = vmatpush1.msra.mxu0 0.0
      %4150 = vmatprep.mubr.f32.mxu0 0.0
      %4151 = vmatmul.mubr.f32.gmra.mrb[0].mxu0 %v3640
      %v4152 = vpop.f32.mrb[0].mxu0
      %v4153 = vadd.f32 0.0, %v4152
      %v4154 = vpop.f32.mrb[0].mxu0
      %v4155 = vadd.f32 0.0, %v4154
      %4156 = vmatprep.mubr.f32.mxu0 0.0
      %4157 = vmatmul.mubr.f32.gmra.mrb[0].mxu0 %v3643
      %v4158 = vpop.f32.mrb[0].mxu0
      %v4159 = vadd.f32 0.0, %v4158
      %v4160 = vpop.f32.mrb[0].mxu0
      %v4161 = vadd.f32 0.0, %v4160
      %4162 = vmatprep.mubr.f32.mxu0 0.0
      %4163 = vmatmul.mubr.f32.gmra.mrb[0].mxu0 %v3646
      %v4164 = vpop.f32.mrb[0].mxu0
      %v4165 = vadd.f32 0.0, %v4164
      %v4166 = vpop.f32.mrb[0].mxu0
      %v4167 = vadd.f32 0.0, %v4166
      %4168 = vmatprep.mubr.f32.mxu0 0.0
      %4169 = vmatmul.mubr.f32.gmra.mrb[0].mxu0 %v3649
      %v4170 = vpop.f32.mrb[0].mxu0
      %v4171 = vadd.f32 0.0, %v4170
      %v4172 = vpop.f32.mrb[0].mxu0
      %v4173 = vadd.f32 0.0, %v4172
      %4174 = vmatprep.mubr.f32.mxu0 0.0
      %4175 = vmatmul.mubr.f32.gmra.mrb[0].mxu0 %v3652
      %v4176 = vpop.f32.mrb[0].mxu0
      %v4177 = vadd.f32 0.0, %v4176
      %v4178 = vpop.f32.mrb[0].mxu0
      %v4179 = vadd.f32 0.0, %v4178
      %4180 = vmatprep.mubr.f32.mxu0 0.0
      %4181 = vmatmul.mubr.f32.gmra.mrb[0].mxu0 %v3655
      %v4182 = vpop.f32.mrb[0].mxu0
      %v4183 = vadd.f32 0.0, %v4182
      %v4184 = vpop.f32.mrb[0].mxu0
      %v4185 = vadd.f32 0.0, %v4184
      %4186 = vmatprep.mubr.f32.mxu0 0.0
      %4187 = vmatmul.mubr.f32.gmra.mrb[0].mxu0 %v3658
      %v4188 = vpop.f32.mrb[0].mxu0
      %v4189 = vadd.f32 0.0, %v4188
      %v4190 = vpop.f32.mrb[0].mxu0
      %v4191 = vadd.f32 0.0, %v4190
      %4192 = vmatprep.mubr.f32.mxu0 0.0
      %4193 = vmatmul.mubr.f32.gmra.mrb[0].mxu0 %v3661
      %v4194 = vpop.f32.mrb[0].mxu0
      %v4195 = vadd.f32 0.0, %v4194
      %v4196 = vpop.f32.mrb[0].mxu0
      %v4197 = vadd.f32 0.0, %v4196
      %4198 = vmatprep.mubr.f32.mxu0 0.0
      %4199 = vmatmul.mubr.f32.gmra.mrb[0].mxu0 %v3664
      %v4200 = vpop.f32.mrb[0].mxu0
      %v4201 = vadd.f32 0.0, %v4200
      %v4202 = vpop.f32.mrb[0].mxu0
      %v4203 = vadd.f32 0.0, %v4202
      %4204 = vmatprep.mubr.f32.mxu0 0.0
      %4205 = vmatmul.mubr.f32.gmra.mrb[0].mxu0 %v3667
      %v4206 = vpop.f32.mrb[0].mxu0
      %v4207 = vadd.f32 0.0, %v4206
      %v4208 = vpop.f32.mrb[0].mxu0
      %v4209 = vadd.f32 0.0, %v4208
      %4210 = vmatprep.mubr.f32.mxu0 0.0
      %4211 = vmatmul.mubr.f32.gmra.mrb[0].mxu0 %v3670
      %v4212 = vpop.f32.mrb[0].mxu0
      %v4213 = vadd.f32 0.0, %v4212
      %v4214 = vpop.f32.mrb[0].mxu0
      %v4215 = vadd.f32 0.0, %v4214
      %4216 = vmatprep.mubr.f32.mxu0 0.0
      %4217 = vmatmul.mubr.f32.gmra.mrb[0].mxu0 %v3673
      %v4218 = vpop.f32.mrb[0].mxu0
      %v4219 = vadd.f32 0.0, %v4218
      %v4220 = vpop.f32.mrb[0].mxu0
      %v4221 = vadd.f32 0.0, %v4220
      %4222 = vdwg.mxu0
      %s4223 = scalar_lea.vmem %s7, 96
      %v4224 = vld [vmem:[%s4223] sm:$0xff]
      %v4225 = vld [vmem:[%s4223 + $0x8] sm:$0xff]
      %v4226 = vld [vmem:[%s4223 + $0x10] sm:$0xff]
      %v4227 = vld [vmem:[%s4223 + $0x18] sm:$0xff]
      %v4228 = vld [vmem:[%s4223 + $0x20] sm:$0xff]
      %v4229 = vld [vmem:[%s4223 + $0x28] sm:$0xff]
      %v4230 = vld [vmem:[%s4223 + $0x30] sm:$0xff]
      %v4231 = vld [vmem:[%s4223 + $0x38] sm:$0xff]
      %v4232 = vld [vmem:[%s4223 + $0x40] sm:$0xff]
      %v4233 = vld [vmem:[%s4223 + $0x48] sm:$0xff]
      %v4234 = vld [vmem:[%s4223 + $0x50] sm:$0xff]
      %v4235 = vld [vmem:[%s4223 + $0x58] sm:$0xff]
      %v4237 = vsel %vm2945, %v4224, 0
      %v4240 = vsel %vm2945, %v4225, 0
      %v4243 = vsel %vm2945, %v4226, 0
      %v4246 = vsel %vm2945, %v4227, 0
      %v4249 = vsel %vm2945, %v4228, 0
      %v4252 = vsel %vm2945, %v4229, 0
      %v4255 = vsel %vm2945, %v4230, 0
      %v4258 = vsel %vm2945, %v4231, 0
      %v4261 = vsel %vm2945, %v4232, 0
      %v4264 = vsel %vm2945, %v4233, 0
      %v4267 = vsel %vm2945, %v4234, 0
      %v4270 = vsel %vm2945, %v4235, 0
      %4272 = vmatprep.subr.mxu0 %v2209
      %4273 = vmatpush1.msra.mxu0 %v2208
      %4274 = vmatprep.subr.mxu0 %v2217
      %4275 = vmatpush1.msra.mxu0 %v2216
      %4276 = vmatprep.subr.mxu0 0.0
      %4277 = vmatpush1.msra.mxu0 0.0
      %4278 = vmatprep.subr.mxu0 0.0
      %4279 = vmatpush1.msra.mxu0 0.0
      %4280 = vmatprep.subr.mxu0 0.0
      %4281 = vmatpush1.msra.mxu0 0.0
      %4282 = vmatprep.subr.mxu0 0.0
      %4283 = vmatpush1.msra.mxu0 0.0
      %4284 = vmatprep.subr.mxu0 0.0
      %4285 = vmatpush1.msra.mxu0 0.0
      %4286 = vmatprep.subr.mxu0 0.0
      %4287 = vmatpush1.msra.mxu0 0.0
      %4288 = vmatprep.subr.mxu0 0.0
      %4289 = vmatpush1.msra.mxu0 0.0
      %4290 = vmatprep.subr.mxu0 0.0
      %4291 = vmatpush1.msra.mxu0 0.0
      %4292 = vmatprep.subr.mxu0 0.0
      %4293 = vmatpush1.msra.mxu0 0.0
      %4294 = vmatprep.subr.mxu0 0.0
      %4295 = vmatpush1.msra.mxu0 0.0
      %4296 = vmatprep.subr.mxu0 0.0
      %4297 = vmatpush1.msra.mxu0 0.0
      %4298 = vmatprep.subr.mxu0 0.0
      %4299 = vmatpush1.msra.mxu0 0.0
      %4300 = vmatprep.subr.mxu0 0.0
      %4301 = vmatpush1.msra.mxu0 0.0
      %4302 = vmatprep.subr.mxu0 0.0
      %4303 = vmatpush1.msra.mxu0 0.0
      %4304 = vmatprep.subr.mxu0 0.0
      %4305 = vmatpush1.msra.mxu0 0.0
      %4306 = vmatprep.subr.mxu0 0.0
      %4307 = vmatpush1.msra.mxu0 0.0
      %4308 = vmatprep.subr.mxu0 0.0
      %4309 = vmatpush1.msra.mxu0 0.0
      %4310 = vmatprep.subr.mxu0 0.0
      %4311 = vmatpush1.msra.mxu0 0.0
      %4312 = vmatprep.subr.mxu0 0.0
      %4313 = vmatpush1.msra.mxu0 0.0
      %4314 = vmatprep.subr.mxu0 0.0
      %4315 = vmatpush1.msra.mxu0 0.0
      %4316 = vmatprep.subr.mxu0 0.0
      %4317 = vmatpush1.msra.mxu0 0.0
      %4318 = vmatprep.subr.mxu0 0.0
      %4319 = vmatpush1.msra.mxu0 0.0
      %4320 = vmatprep.subr.mxu0 0.0
      %4321 = vmatpush1.msra.mxu0 0.0
      %4322 = vmatprep.subr.mxu0 0.0
      %4323 = vmatpush1.msra.mxu0 0.0
      %4324 = vmatprep.subr.mxu0 0.0
      %4325 = vmatpush1.msra.mxu0 0.0
      %4326 = vmatprep.subr.mxu0 0.0
      %4327 = vmatpush1.msra.mxu0 0.0
      %4328 = vmatprep.subr.mxu0 0.0
      %4329 = vmatpush1.msra.mxu0 0.0
      %4330 = vmatprep.subr.mxu0 0.0
      %4331 = vmatpush1.msra.mxu0 0.0
      %4332 = vmatprep.subr.mxu0 0.0
      %4333 = vmatpush1.msra.mxu0 0.0
      %4334 = vmatprep.subr.mxu0 0.0
      %4335 = vmatpush1.msra.mxu0 0.0
      %4336 = vmatprep.mubr.f32.mxu0 0.0
      %4337 = vmatmul.mubr.f32.gmra.mrb[0].mxu0 %v4237
      %v4338 = vpop.f32.mrb[0].mxu0
      %v4339 = vadd.f32 0.0, %v4338
      %v4340 = vpop.f32.mrb[0].mxu0
      %v4341 = vadd.f32 0.0, %v4340
      %4342 = vmatprep.mubr.f32.mxu0 0.0
      %4343 = vmatmul.mubr.f32.gmra.mrb[0].mxu0 %v4240
      %v4344 = vpop.f32.mrb[0].mxu0
      %v4345 = vadd.f32 0.0, %v4344
      %v4346 = vpop.f32.mrb[0].mxu0
      %v4347 = vadd.f32 0.0, %v4346
      %4348 = vmatprep.mubr.f32.mxu0 0.0
      %4349 = vmatmul.mubr.f32.gmra.mrb[0].mxu0 %v4243
      %v4350 = vpop.f32.mrb[0].mxu0
      %v4351 = vadd.f32 0.0, %v4350
      %v4352 = vpop.f32.mrb[0].mxu0
      %v4353 = vadd.f32 0.0, %v4352
      %4354 = vmatprep.mubr.f32.mxu0 0.0
      %4355 = vmatmul.mubr.f32.gmra.mrb[0].mxu0 %v4246
      %v4356 = vpop.f32.mrb[0].mxu0
      %v4357 = vadd.f32 0.0, %v4356
      %v4358 = vpop.f32.mrb[0].mxu0
      %v4359 = vadd.f32 0.0, %v4358
      %4360 = vmatprep.mubr.f32.mxu0 0.0
      %4361 = vmatmul.mubr.f32.gmra.mrb[0].mxu0 %v4249
      %v4362 = vpop.f32.mrb[0].mxu0
      %v4363 = vadd.f32 0.0, %v4362
      %v4364 = vpop.f32.mrb[0].mxu0
      %v4365 = vadd.f32 0.0, %v4364
      %4366 = vmatprep.mubr.f32.mxu0 0.0
      %4367 = vmatmul.mubr.f32.gmra.mrb[0].mxu0 %v4252
      %v4368 = vpop.f32.mrb[0].mxu0
      %v4369 = vadd.f32 0.0, %v4368
      %v4370 = vpop.f32.mrb[0].mxu0
      %v4371 = vadd.f32 0.0, %v4370
      %4372 = vmatprep.mubr.f32.mxu0 0.0
      %4373 = vmatmul.mubr.f32.gmra.mrb[0].mxu0 %v4255
      %v4374 = vpop.f32.mrb[0].mxu0
      %v4375 = vadd.f32 0.0, %v4374
      %v4376 = vpop.f32.mrb[0].mxu0
      %v4377 = vadd.f32 0.0, %v4376
      %4378 = vmatprep.mubr.f32.mxu0 0.0
      %4379 = vmatmul.mubr.f32.gmra.mrb[0].mxu0 %v4258
      %v4380 = vpop.f32.mrb[0].mxu0
      %v4381 = vadd.f32 0.0, %v4380
      %v4382 = vpop.f32.mrb[0].mxu0
      %v4383 = vadd.f32 0.0, %v4382
      %4384 = vmatprep.mubr.f32.mxu0 0.0
      %4385 = vmatmul.mubr.f32.gmra.mrb[0].mxu0 %v4261
      %v4386 = vpop.f32.mrb[0].mxu0
      %v4387 = vadd.f32 0.0, %v4386
      %v4388 = vpop.f32.mrb[0].mxu0
      %v4389 = vadd.f32 0.0, %v4388
      %4390 = vmatprep.mubr.f32.mxu0 0.0
      %4391 = vmatmul.mubr.f32.gmra.mrb[0].mxu0 %v4264
      %v4392 = vpop.f32.mrb[0].mxu0
      %v4393 = vadd.f32 0.0, %v4392
      %v4394 = vpop.f32.mrb[0].mxu0
      %v4395 = vadd.f32 0.0, %v4394
      %4396 = vmatprep.mubr.f32.mxu0 0.0
      %4397 = vmatmul.mubr.f32.gmra.mrb[0].mxu0 %v4267
      %v4398 = vpop.f32.mrb[0].mxu0
      %v4399 = vadd.f32 0.0, %v4398
      %v4400 = vpop.f32.mrb[0].mxu0
      %v4401 = vadd.f32 0.0, %v4400
      %4402 = vmatprep.mubr.f32.mxu0 0.0
      %4403 = vmatmul.mubr.f32.gmra.mrb[0].mxu0 %v4270
      %v4404 = vpop.f32.mrb[0].mxu0
      %v4405 = vadd.f32 0.0, %v4404
      %v4406 = vpop.f32.mrb[0].mxu0
      %v4407 = vadd.f32 0.0, %v4406
      %4408 = vdwg.mxu0
      %4409 = vmatprep.subr.mxu0 %v2211
      %4410 = vmatpush1.msra.mxu0 %v2210
      %4411 = vmatprep.subr.mxu0 %v2219
      %4412 = vmatpush1.msra.mxu0 %v2218
      %4413 = vmatprep.subr.mxu0 0.0
      %4414 = vmatpush1.msra.mxu0 0.0
      %4415 = vmatprep.subr.mxu0 0.0
      %4416 = vmatpush1.msra.mxu0 0.0
      %4417 = vmatprep.subr.mxu0 0.0
      %4418 = vmatpush1.msra.mxu0 0.0
      %4419 = vmatprep.subr.mxu0 0.0
      %4420 = vmatpush1.msra.mxu0 0.0
      %4421 = vmatprep.subr.mxu0 0.0
      %4422 = vmatpush1.msra.mxu0 0.0
      %4423 = vmatprep.subr.mxu0 0.0
      %4424 = vmatpush1.msra.mxu0 0.0
      %4425 = vmatprep.subr.mxu0 0.0
      %4426 = vmatpush1.msra.mxu0 0.0
      %4427 = vmatprep.subr.mxu0 0.0
      %4428 = vmatpush1.msra.mxu0 0.0
      %4429 = vmatprep.subr.mxu0 0.0
      %4430 = vmatpush1.msra.mxu0 0.0
      %4431 = vmatprep.subr.mxu0 0.0
      %4432 = vmatpush1.msra.mxu0 0.0
      %4433 = vmatprep.subr.mxu0 0.0
      %4434 = vmatpush1.msra.mxu0 0.0
      %4435 = vmatprep.subr.mxu0 0.0
      %4436 = vmatpush1.msra.mxu0 0.0
      %4437 = vmatprep.subr.mxu0 0.0
      %4438 = vmatpush1.msra.mxu0 0.0
      %4439 = vmatprep.subr.mxu0 0.0
      %4440 = vmatpush1.msra.mxu0 0.0
      %4441 = vmatprep.subr.mxu0 0.0
      %4442 = vmatpush1.msra.mxu0 0.0
      %4443 = vmatprep.subr.mxu0 0.0
      %4444 = vmatpush1.msra.mxu0 0.0
      %4445 = vmatprep.subr.mxu0 0.0
      %4446 = vmatpush1.msra.mxu0 0.0
      %4447 = vmatprep.subr.mxu0 0.0
      %4448 = vmatpush1.msra.mxu0 0.0
      %4449 = vmatprep.subr.mxu0 0.0
      %4450 = vmatpush1.msra.mxu0 0.0
      %4451 = vmatprep.subr.mxu0 0.0
      %4452 = vmatpush1.msra.mxu0 0.0
      %4453 = vmatprep.subr.mxu0 0.0
      %4454 = vmatpush1.msra.mxu0 0.0
      %4455 = vmatprep.subr.mxu0 0.0
      %4456 = vmatpush1.msra.mxu0 0.0
      %4457 = vmatprep.subr.mxu0 0.0
      %4458 = vmatpush1.msra.mxu0 0.0
      %4459 = vmatprep.subr.mxu0 0.0
      %4460 = vmatpush1.msra.mxu0 0.0
      %4461 = vmatprep.subr.mxu0 0.0
      %4462 = vmatpush1.msra.mxu0 0.0
      %4463 = vmatprep.subr.mxu0 0.0
      %4464 = vmatpush1.msra.mxu0 0.0
      %4465 = vmatprep.subr.mxu0 0.0
      %4466 = vmatpush1.msra.mxu0 0.0
      %4467 = vmatprep.subr.mxu0 0.0
      %4468 = vmatpush1.msra.mxu0 0.0
      %4469 = vmatprep.subr.mxu0 0.0
      %4470 = vmatpush1.msra.mxu0 0.0
      %4471 = vmatprep.subr.mxu0 0.0
      %4472 = vmatpush1.msra.mxu0 0.0
      %4473 = vmatprep.mubr.f32.mxu0 0.0
      %4474 = vmatmul.mubr.f32.gmra.mrb[0].mxu0 %v4237
      %v4475 = vpop.f32.mrb[0].mxu0
      %v4476 = vadd.f32 0.0, %v4475
      %v4477 = vpop.f32.mrb[0].mxu0
      %v4478 = vadd.f32 0.0, %v4477
      %4479 = vmatprep.mubr.f32.mxu0 0.0
      %4480 = vmatmul.mubr.f32.gmra.mrb[0].mxu0 %v4240
      %v4481 = vpop.f32.mrb[0].mxu0
      %v4482 = vadd.f32 0.0, %v4481
      %v4483 = vpop.f32.mrb[0].mxu0
      %v4484 = vadd.f32 0.0, %v4483
      %4485 = vmatprep.mubr.f32.mxu0 0.0
      %4486 = vmatmul.mubr.f32.gmra.mrb[0].mxu0 %v4243
      %v4487 = vpop.f32.mrb[0].mxu0
      %v4488 = vadd.f32 0.0, %v4487
      %v4489 = vpop.f32.mrb[0].mxu0
      %v4490 = vadd.f32 0.0, %v4489
      %4491 = vmatprep.mubr.f32.mxu0 0.0
      %4492 = vmatmul.mubr.f32.gmra.mrb[0].mxu0 %v4246
      %v4493 = vpop.f32.mrb[0].mxu0
      %v4494 = vadd.f32 0.0, %v4493
      %v4495 = vpop.f32.mrb[0].mxu0
      %v4496 = vadd.f32 0.0, %v4495
      %4497 = vmatprep.mubr.f32.mxu0 0.0
      %4498 = vmatmul.mubr.f32.gmra.mrb[0].mxu0 %v4249
      %v4499 = vpop.f32.mrb[0].mxu0
      %v4500 = vadd.f32 0.0, %v4499
      %v4501 = vpop.f32.mrb[0].mxu0
      %v4502 = vadd.f32 0.0, %v4501
      %4503 = vmatprep.mubr.f32.mxu0 0.0
      %4504 = vmatmul.mubr.f32.gmra.mrb[0].mxu0 %v4252
      %v4505 = vpop.f32.mrb[0].mxu0
      %v4506 = vadd.f32 0.0, %v4505
      %v4507 = vpop.f32.mrb[0].mxu0
      %v4508 = vadd.f32 0.0, %v4507
      %4509 = vmatprep.mubr.f32.mxu0 0.0
      %4510 = vmatmul.mubr.f32.gmra.mrb[0].mxu0 %v4255
      %v4511 = vpop.f32.mrb[0].mxu0
      %v4512 = vadd.f32 0.0, %v4511
      %v4513 = vpop.f32.mrb[0].mxu0
      %v4514 = vadd.f32 0.0, %v4513
      %4515 = vmatprep.mubr.f32.mxu0 0.0
      %4516 = vmatmul.mubr.f32.gmra.mrb[0].mxu0 %v4258
      %v4517 = vpop.f32.mrb[0].mxu0
      %v4518 = vadd.f32 0.0, %v4517
      %v4519 = vpop.f32.mrb[0].mxu0
      %v4520 = vadd.f32 0.0, %v4519
      %4521 = vmatprep.mubr.f32.mxu0 0.0
      %4522 = vmatmul.mubr.f32.gmra.mrb[0].mxu0 %v4261
      %v4523 = vpop.f32.mrb[0].mxu0
      %v4524 = vadd.f32 0.0, %v4523
      %v4525 = vpop.f32.mrb[0].mxu0
      %v4526 = vadd.f32 0.0, %v4525
      %4527 = vmatprep.mubr.f32.mxu0 0.0
      %4528 = vmatmul.mubr.f32.gmra.mrb[0].mxu0 %v4264
      %v4529 = vpop.f32.mrb[0].mxu0
      %v4530 = vadd.f32 0.0, %v4529
      %v4531 = vpop.f32.mrb[0].mxu0
      %v4532 = vadd.f32 0.0, %v4531
      %4533 = vmatprep.mubr.f32.mxu0 0.0
      %4534 = vmatmul.mubr.f32.gmra.mrb[0].mxu0 %v4267
      %v4535 = vpop.f32.mrb[0].mxu0
      %v4536 = vadd.f32 0.0, %v4535
      %v4537 = vpop.f32.mrb[0].mxu0
      %v4538 = vadd.f32 0.0, %v4537
      %4539 = vmatprep.mubr.f32.mxu0 0.0
      %4540 = vmatmul.mubr.f32.gmra.mrb[0].mxu0 %v4270
      %v4541 = vpop.f32.mrb[0].mxu0
      %v4542 = vadd.f32 0.0, %v4541
      %v4543 = vpop.f32.mrb[0].mxu0
      %v4544 = vadd.f32 0.0, %v4543
      %4545 = vdwg.mxu0
      %4546 = vmatprep.subr.mxu0 %v2213
      %4547 = vmatpush1.msra.mxu0 %v2212
      %4548 = vmatprep.subr.mxu0 %v2221
      %4549 = vmatpush1.msra.mxu0 %v2220
      %4550 = vmatprep.subr.mxu0 0.0
      %4551 = vmatpush1.msra.mxu0 0.0
      %4552 = vmatprep.subr.mxu0 0.0
      %4553 = vmatpush1.msra.mxu0 0.0
      %4554 = vmatprep.subr.mxu0 0.0
      %4555 = vmatpush1.msra.mxu0 0.0
      %4556 = vmatprep.subr.mxu0 0.0
      %4557 = vmatpush1.msra.mxu0 0.0
      %4558 = vmatprep.subr.mxu0 0.0
      %4559 = vmatpush1.msra.mxu0 0.0
      %4560 = vmatprep.subr.mxu0 0.0
      %4561 = vmatpush1.msra.mxu0 0.0
      %4562 = vmatprep.subr.mxu0 0.0
      %4563 = vmatpush1.msra.mxu0 0.0
      %4564 = vmatprep.subr.mxu0 0.0
      %4565 = vmatpush1.msra.mxu0 0.0
      %4566 = vmatprep.subr.mxu0 0.0
      %4567 = vmatpush1.msra.mxu0 0.0
      %4568 = vmatprep.subr.mxu0 0.0
      %4569 = vmatpush1.msra.mxu0 0.0
      %4570 = vmatprep.subr.mxu0 0.0
      %4571 = vmatpush1.msra.mxu0 0.0
      %4572 = vmatprep.subr.mxu0 0.0
      %4573 = vmatpush1.msra.mxu0 0.0
      %4574 = vmatprep.subr.mxu0 0.0
      %4575 = vmatpush1.msra.mxu0 0.0
      %4576 = vmatprep.subr.mxu0 0.0
      %4577 = vmatpush1.msra.mxu0 0.0
      %4578 = vmatprep.subr.mxu0 0.0
      %4579 = vmatpush1.msra.mxu0 0.0
      %4580 = vmatprep.subr.mxu0 0.0
      %4581 = vmatpush1.msra.mxu0 0.0
      %4582 = vmatprep.subr.mxu0 0.0
      %4583 = vmatpush1.msra.mxu0 0.0
      %4584 = vmatprep.subr.mxu0 0.0
      %4585 = vmatpush1.msra.mxu0 0.0
      %4586 = vmatprep.subr.mxu0 0.0
      %4587 = vmatpush1.msra.mxu0 0.0
      %4588 = vmatprep.subr.mxu0 0.0
      %4589 = vmatpush1.msra.mxu0 0.0
      %4590 = vmatprep.subr.mxu0 0.0
      %4591 = vmatpush1.msra.mxu0 0.0
      %4592 = vmatprep.subr.mxu0 0.0
      %4593 = vmatpush1.msra.mxu0 0.0
      %4594 = vmatprep.subr.mxu0 0.0
      %4595 = vmatpush1.msra.mxu0 0.0
      %4596 = vmatprep.subr.mxu0 0.0
      %4597 = vmatpush1.msra.mxu0 0.0
      %4598 = vmatprep.subr.mxu0 0.0
      %4599 = vmatpush1.msra.mxu0 0.0
      %4600 = vmatprep.subr.mxu0 0.0
      %4601 = vmatpush1.msra.mxu0 0.0
      %4602 = vmatprep.subr.mxu0 0.0
      %4603 = vmatpush1.msra.mxu0 0.0
      %4604 = vmatprep.subr.mxu0 0.0
      %4605 = vmatpush1.msra.mxu0 0.0
      %4606 = vmatprep.subr.mxu0 0.0
      %4607 = vmatpush1.msra.mxu0 0.0
      %4608 = vmatprep.subr.mxu0 0.0
      %4609 = vmatpush1.msra.mxu0 0.0
      %4610 = vmatprep.mubr.f32.mxu0 0.0
      %4611 = vmatmul.mubr.f32.gmra.mrb[0].mxu0 %v4237
      %v4612 = vpop.f32.mrb[0].mxu0
      %v4613 = vadd.f32 0.0, %v4612
      %v4614 = vpop.f32.mrb[0].mxu0
      %v4615 = vadd.f32 0.0, %v4614
      %4616 = vmatprep.mubr.f32.mxu0 0.0
      %4617 = vmatmul.mubr.f32.gmra.mrb[0].mxu0 %v4240
      %v4618 = vpop.f32.mrb[0].mxu0
      %v4619 = vadd.f32 0.0, %v4618
      %v4620 = vpop.f32.mrb[0].mxu0
      %v4621 = vadd.f32 0.0, %v4620
      %4622 = vmatprep.mubr.f32.mxu0 0.0
      %4623 = vmatmul.mubr.f32.gmra.mrb[0].mxu0 %v4243
      %v4624 = vpop.f32.mrb[0].mxu0
      %v4625 = vadd.f32 0.0, %v4624
      %v4626 = vpop.f32.mrb[0].mxu0
      %v4627 = vadd.f32 0.0, %v4626
      %4628 = vmatprep.mubr.f32.mxu0 0.0
      %4629 = vmatmul.mubr.f32.gmra.mrb[0].mxu0 %v4246
      %v4630 = vpop.f32.mrb[0].mxu0
      %v4631 = vadd.f32 0.0, %v4630
      %v4632 = vpop.f32.mrb[0].mxu0
      %v4633 = vadd.f32 0.0, %v4632
      %4634 = vmatprep.mubr.f32.mxu0 0.0
      %4635 = vmatmul.mubr.f32.gmra.mrb[0].mxu0 %v4249
      %v4636 = vpop.f32.mrb[0].mxu0
      %v4637 = vadd.f32 0.0, %v4636
      %v4638 = vpop.f32.mrb[0].mxu0
      %v4639 = vadd.f32 0.0, %v4638
      %4640 = vmatprep.mubr.f32.mxu0 0.0
      %4641 = vmatmul.mubr.f32.gmra.mrb[0].mxu0 %v4252
      %v4642 = vpop.f32.mrb[0].mxu0
      %v4643 = vadd.f32 0.0, %v4642
      %v4644 = vpop.f32.mrb[0].mxu0
      %v4645 = vadd.f32 0.0, %v4644
      %4646 = vmatprep.mubr.f32.mxu0 0.0
      %4647 = vmatmul.mubr.f32.gmra.mrb[0].mxu0 %v4255
      %v4648 = vpop.f32.mrb[0].mxu0
      %v4649 = vadd.f32 0.0, %v4648
      %v4650 = vpop.f32.mrb[0].mxu0
      %v4651 = vadd.f32 0.0, %v4650
      %4652 = vmatprep.mubr.f32.mxu0 0.0
      %4653 = vmatmul.mubr.f32.gmra.mrb[0].mxu0 %v4258
      %v4654 = vpop.f32.mrb[0].mxu0
      %v4655 = vadd.f32 0.0, %v4654
      %v4656 = vpop.f32.mrb[0].mxu0
      %v4657 = vadd.f32 0.0, %v4656
      %4658 = vmatprep.mubr.f32.mxu0 0.0
      %4659 = vmatmul.mubr.f32.gmra.mrb[0].mxu0 %v4261
      %v4660 = vpop.f32.mrb[0].mxu0
      %v4661 = vadd.f32 0.0, %v4660
      %v4662 = vpop.f32.mrb[0].mxu0
      %v4663 = vadd.f32 0.0, %v4662
      %4664 = vmatprep.mubr.f32.mxu0 0.0
      %4665 = vmatmul.mubr.f32.gmra.mrb[0].mxu0 %v4264
      %v4666 = vpop.f32.mrb[0].mxu0
      %v4667 = vadd.f32 0.0, %v4666
      %v4668 = vpop.f32.mrb[0].mxu0
      %v4669 = vadd.f32 0.0, %v4668
      %4670 = vmatprep.mubr.f32.mxu0 0.0
      %4671 = vmatmul.mubr.f32.gmra.mrb[0].mxu0 %v4267
      %v4672 = vpop.f32.mrb[0].mxu0
      %v4673 = vadd.f32 0.0, %v4672
      %v4674 = vpop.f32.mrb[0].mxu0
      %v4675 = vadd.f32 0.0, %v4674
      %4676 = vmatprep.mubr.f32.mxu0 0.0
      %4677 = vmatmul.mubr.f32.gmra.mrb[0].mxu0 %v4270
      %v4678 = vpop.f32.mrb[0].mxu0
      %v4679 = vadd.f32 0.0, %v4678
      %v4680 = vpop.f32.mrb[0].mxu0
      %v4681 = vadd.f32 0.0, %v4680
      %4682 = vdwg.mxu0
      %4683 = vmatprep.subr.mxu0 %v2215
      %4684 = vmatpush1.msra.mxu0 %v2214
      %4685 = vmatprep.subr.mxu0 %v2223
      %4686 = vmatpush1.msra.mxu0 %v2222
      %4687 = vmatprep.subr.mxu0 0.0
      %4688 = vmatpush1.msra.mxu0 0.0
      %4689 = vmatprep.subr.mxu0 0.0
      %4690 = vmatpush1.msra.mxu0 0.0
      %4691 = vmatprep.subr.mxu0 0.0
      %4692 = vmatpush1.msra.mxu0 0.0
      %4693 = vmatprep.subr.mxu0 0.0
      %4694 = vmatpush1.msra.mxu0 0.0
      %4695 = vmatprep.subr.mxu0 0.0
      %4696 = vmatpush1.msra.mxu0 0.0
      %4697 = vmatprep.subr.mxu0 0.0
      %4698 = vmatpush1.msra.mxu0 0.0
      %4699 = vmatprep.subr.mxu0 0.0
      %4700 = vmatpush1.msra.mxu0 0.0
      %4701 = vmatprep.subr.mxu0 0.0
      %4702 = vmatpush1.msra.mxu0 0.0
      %4703 = vmatprep.subr.mxu0 0.0
      %4704 = vmatpush1.msra.mxu0 0.0
      %4705 = vmatprep.subr.mxu0 0.0
      %4706 = vmatpush1.msra.mxu0 0.0
      %4707 = vmatprep.subr.mxu0 0.0
      %4708 = vmatpush1.msra.mxu0 0.0
      %4709 = vmatprep.subr.mxu0 0.0
      %4710 = vmatpush1.msra.mxu0 0.0
      %4711 = vmatprep.subr.mxu0 0.0
      %4712 = vmatpush1.msra.mxu0 0.0
      %4713 = vmatprep.subr.mxu0 0.0
      %4714 = vmatpush1.msra.mxu0 0.0
      %4715 = vmatprep.subr.mxu0 0.0
      %4716 = vmatpush1.msra.mxu0 0.0
      %4717 = vmatprep.subr.mxu0 0.0
      %4718 = vmatpush1.msra.mxu0 0.0
      %4719 = vmatprep.subr.mxu0 0.0
      %4720 = vmatpush1.msra.mxu0 0.0
      %4721 = vmatprep.subr.mxu0 0.0
      %4722 = vmatpush1.msra.mxu0 0.0
      %4723 = vmatprep.subr.mxu0 0.0
      %4724 = vmatpush1.msra.mxu0 0.0
      %4725 = vmatprep.subr.mxu0 0.0
      %4726 = vmatpush1.msra.mxu0 0.0
      %4727 = vmatprep.subr.mxu0 0.0
      %4728 = vmatpush1.msra.mxu0 0.0
      %4729 = vmatprep.subr.mxu0 0.0
      %4730 = vmatpush1.msra.mxu0 0.0
      %4731 = vmatprep.subr.mxu0 0.0
      %4732 = vmatpush1.msra.mxu0 0.0
      %4733 = vmatprep.subr.mxu0 0.0
      %4734 = vmatpush1.msra.mxu0 0.0
      %4735 = vmatprep.subr.mxu0 0.0
      %4736 = vmatpush1.msra.mxu0 0.0
      %4737 = vmatprep.subr.mxu0 0.0
      %4738 = vmatpush1.msra.mxu0 0.0
      %4739 = vmatprep.subr.mxu0 0.0
      %4740 = vmatpush1.msra.mxu0 0.0
      %4741 = vmatprep.subr.mxu0 0.0
      %4742 = vmatpush1.msra.mxu0 0.0
      %4743 = vmatprep.subr.mxu0 0.0
      %4744 = vmatpush1.msra.mxu0 0.0
      %4745 = vmatprep.subr.mxu0 0.0
      %4746 = vmatpush1.msra.mxu0 0.0
      %4747 = vmatprep.mubr.f32.mxu0 0.0
      %4748 = vmatmul.mubr.f32.gmra.mrb[0].mxu0 %v4237
      %v4749 = vpop.f32.mrb[0].mxu0
      %v4750 = vadd.f32 0.0, %v4749
      %v4751 = vpop.f32.mrb[0].mxu0
      %v4752 = vadd.f32 0.0, %v4751
      %4753 = vmatprep.mubr.f32.mxu0 0.0
      %4754 = vmatmul.mubr.f32.gmra.mrb[0].mxu0 %v4240
      %v4755 = vpop.f32.mrb[0].mxu0
      %v4756 = vadd.f32 0.0, %v4755
      %v4757 = vpop.f32.mrb[0].mxu0
      %v4758 = vadd.f32 0.0, %v4757
      %4759 = vmatprep.mubr.f32.mxu0 0.0
      %4760 = vmatmul.mubr.f32.gmra.mrb[0].mxu0 %v4243
      %v4761 = vpop.f32.mrb[0].mxu0
      %v4762 = vadd.f32 0.0, %v4761
      %v4763 = vpop.f32.mrb[0].mxu0
      %v4764 = vadd.f32 0.0, %v4763
      %4765 = vmatprep.mubr.f32.mxu0 0.0
      %4766 = vmatmul.mubr.f32.gmra.mrb[0].mxu0 %v4246
      %v4767 = vpop.f32.mrb[0].mxu0
      %v4768 = vadd.f32 0.0, %v4767
      %v4769 = vpop.f32.mrb[0].mxu0
      %v4770 = vadd.f32 0.0, %v4769
      %4771 = vmatprep.mubr.f32.mxu0 0.0
      %4772 = vmatmul.mubr.f32.gmra.mrb[0].mxu0 %v4249
      %v4773 = vpop.f32.mrb[0].mxu0
      %v4774 = vadd.f32 0.0, %v4773
      %v4775 = vpop.f32.mrb[0].mxu0
      %v4776 = vadd.f32 0.0, %v4775
      %4777 = vmatprep.mubr.f32.mxu0 0.0
      %4778 = vmatmul.mubr.f32.gmra.mrb[0].mxu0 %v4252
      %v4779 = vpop.f32.mrb[0].mxu0
      %v4780 = vadd.f32 0.0, %v4779
      %v4781 = vpop.f32.mrb[0].mxu0
      %v4782 = vadd.f32 0.0, %v4781
      %4783 = vmatprep.mubr.f32.mxu0 0.0
      %4784 = vmatmul.mubr.f32.gmra.mrb[0].mxu0 %v4255
      %v4785 = vpop.f32.mrb[0].mxu0
      %v4786 = vadd.f32 0.0, %v4785
      %v4787 = vpop.f32.mrb[0].mxu0
      %v4788 = vadd.f32 0.0, %v4787
      %4789 = vmatprep.mubr.f32.mxu0 0.0
      %4790 = vmatmul.mubr.f32.gmra.mrb[0].mxu0 %v4258
      %v4791 = vpop.f32.mrb[0].mxu0
      %v4792 = vadd.f32 0.0, %v4791
      %v4793 = vpop.f32.mrb[0].mxu0
      %v4794 = vadd.f32 0.0, %v4793
      %4795 = vmatprep.mubr.f32.mxu0 0.0
      %4796 = vmatmul.mubr.f32.gmra.mrb[0].mxu0 %v4261
      %v4797 = vpop.f32.mrb[0].mxu0
      %v4798 = vadd.f32 0.0, %v4797
      %v4799 = vpop.f32.mrb[0].mxu0
      %v4800 = vadd.f32 0.0, %v4799
      %4801 = vmatprep.mubr.f32.mxu0 0.0
      %4802 = vmatmul.mubr.f32.gmra.mrb[0].mxu0 %v4264
      %v4803 = vpop.f32.mrb[0].mxu0
      %v4804 = vadd.f32 0.0, %v4803
      %v4805 = vpop.f32.mrb[0].mxu0
      %v4806 = vadd.f32 0.0, %v4805
      %4807 = vmatprep.mubr.f32.mxu0 0.0
      %4808 = vmatmul.mubr.f32.gmra.mrb[0].mxu0 %v4267
      %v4809 = vpop.f32.mrb[0].mxu0
      %v4810 = vadd.f32 0.0, %v4809
      %v4811 = vpop.f32.mrb[0].mxu0
      %v4812 = vadd.f32 0.0, %v4811
      %4813 = vmatprep.mubr.f32.mxu0 0.0
      %4814 = vmatmul.mubr.f32.gmra.mrb[0].mxu0 %v4270
      %v4815 = vpop.f32.mrb[0].mxu0
      %v4816 = vadd.f32 0.0, %v4815
      %v4817 = vpop.f32.mrb[0].mxu0
      %v4818 = vadd.f32 0.0, %v4817
      %4819 = vdwg.mxu0
      %v4820 = vmul.f32 %v3742, %v4339
      %v4821 = vmul.f32 %v3744, %v4341
      %v4822 = vmul.f32 %v3879, %v4476
      %v4823 = vmul.f32 %v3881, %v4478
      %v4824 = vmul.f32 %v4016, %v4613
      %v4825 = vmul.f32 %v4018, %v4615
      %v4826 = vmul.f32 %v4153, %v4750
      %v4827 = vmul.f32 %v4155, %v4752
      %v4828 = vmul.f32 %v3748, %v4345
      %v4829 = vmul.f32 %v3750, %v4347
      %v4830 = vmul.f32 %v3885, %v4482
      %v4831 = vmul.f32 %v3887, %v4484
      %v4832 = vmul.f32 %v4022, %v4619
      %v4833 = vmul.f32 %v4024, %v4621
      %v4834 = vmul.f32 %v4159, %v4756
      %v4835 = vmul.f32 %v4161, %v4758
      %v4836 = vmul.f32 %v3754, %v4351
      %v4837 = vmul.f32 %v3756, %v4353
      %v4838 = vmul.f32 %v3891, %v4488
      %v4839 = vmul.f32 %v3893, %v4490
      %v4840 = vmul.f32 %v4028, %v4625
      %v4841 = vmul.f32 %v4030, %v4627
      %v4842 = vmul.f32 %v4165, %v4762
      %v4843 = vmul.f32 %v4167, %v4764
      %v4844 = vmul.f32 %v3760, %v4357
      %v4845 = vmul.f32 %v3762, %v4359
      %v4846 = vmul.f32 %v3897, %v4494
      %v4847 = vmul.f32 %v3899, %v4496
      %v4848 = vmul.f32 %v4034, %v4631
      %v4849 = vmul.f32 %v4036, %v4633
      %v4850 = vmul.f32 %v4171, %v4768
      %v4851 = vmul.f32 %v4173, %v4770
      %v4852 = vmul.f32 %v3766, %v4363
      %v4853 = vmul.f32 %v3768, %v4365
      %v4854 = vmul.f32 %v3903, %v4500
      %v4855 = vmul.f32 %v3905, %v4502
      %v4856 = vmul.f32 %v4040, %v4637
      %v4857 = vmul.f32 %v4042, %v4639
      %v4858 = vmul.f32 %v4177, %v4774
      %v4859 = vmul.f32 %v4179, %v4776
      %v4860 = vmul.f32 %v3772, %v4369
      %v4861 = vmul.f32 %v3774, %v4371
      %v4862 = vmul.f32 %v3909, %v4506
      %v4863 = vmul.f32 %v3911, %v4508
      %v4864 = vmul.f32 %v4046, %v4643
      %v4865 = vmul.f32 %v4048, %v4645
      %v4866 = vmul.f32 %v4183, %v4780
      %v4867 = vmul.f32 %v4185, %v4782
      %v4868 = vmul.f32 %v3778, %v4375
      %v4869 = vmul.f32 %v3780, %v4377
      %v4870 = vmul.f32 %v3915, %v4512
      %v4871 = vmul.f32 %v3917, %v4514
      %v4872 = vmul.f32 %v4052, %v4649
      %v4873 = vmul.f32 %v4054, %v4651
      %v4874 = vmul.f32 %v4189, %v4786
      %v4875 = vmul.f32 %v4191, %v4788
      %v4876 = vmul.f32 %v3784, %v4381
      %v4877 = vmul.f32 %v3786, %v4383
      %v4878 = vmul.f32 %v3921, %v4518
      %v4879 = vmul.f32 %v3923, %v4520
      %v4880 = vmul.f32 %v4058, %v4655
      %v4881 = vmul.f32 %v4060, %v4657
      %v4882 = vmul.f32 %v4195, %v4792
      %v4883 = vmul.f32 %v4197, %v4794
      %v4884 = vmul.f32 %v3790, %v4387
      %v4885 = vmul.f32 %v3792, %v4389
      %v4886 = vmul.f32 %v3927, %v4524
      %v4887 = vmul.f32 %v3929, %v4526
      %v4888 = vmul.f32 %v4064, %v4661
      %v4889 = vmul.f32 %v4066, %v4663
      %v4890 = vmul.f32 %v4201, %v4798
      %v4891 = vmul.f32 %v4203, %v4800
      %v4892 = vmul.f32 %v3796, %v4393
      %v4893 = vmul.f32 %v3798, %v4395
      %v4894 = vmul.f32 %v3933, %v4530
      %v4895 = vmul.f32 %v3935, %v4532
      %v4896 = vmul.f32 %v4070, %v4667
      %v4897 = vmul.f32 %v4072, %v4669
      %v4898 = vmul.f32 %v4207, %v4804
      %v4899 = vmul.f32 %v4209, %v4806
      %v4900 = vmul.f32 %v3802, %v4399
      %v4901 = vmul.f32 %v3804, %v4401
      %v4902 = vmul.f32 %v3939, %v4536
      %v4903 = vmul.f32 %v3941, %v4538
      %v4904 = vmul.f32 %v4076, %v4673
      %v4905 = vmul.f32 %v4078, %v4675
      %v4906 = vmul.f32 %v4213, %v4810
      %v4907 = vmul.f32 %v4215, %v4812
      %v4908 = vmul.f32 %v3808, %v4405
      %v4909 = vmul.f32 %v3810, %v4407
      %v4910 = vmul.f32 %v3945, %v4542
      %v4911 = vmul.f32 %v3947, %v4544
      %v4912 = vmul.f32 %v4082, %v4679
      %v4913 = vmul.f32 %v4084, %v4681
      %v4914 = vmul.f32 %v4219, %v4816
      %v4915 = vmul.f32 %v4221, %v4818
      %v4916 = vadd.f32 %v3530, %v4820
      %v4917 = vadd.f32 %v3531, %v4821
      %v4918 = vadd.f32 %v3532, %v4822
      %v4919 = vadd.f32 %v3533, %v4823
      %v4920 = vadd.f32 %v3534, %v4824
      %v4921 = vadd.f32 %v3535, %v4825
      %v4922 = vadd.f32 %v3536, %v4826
      %v4923 = vadd.f32 %v3537, %v4827
      %v4924 = vadd.f32 %v3538, %v4828
      %v4925 = vadd.f32 %v3539, %v4829
      %v4926 = vadd.f32 %v3540, %v4830
      %v4927 = vadd.f32 %v3541, %v4831
      %v4928 = vadd.f32 %v3542, %v4832
      %v4929 = vadd.f32 %v3543, %v4833
      %v4930 = vadd.f32 %v3544, %v4834
      %v4931 = vadd.f32 %v3545, %v4835
      %v4932 = vadd.f32 %v3546, %v4836
      %v4933 = vadd.f32 %v3547, %v4837
      %v4934 = vadd.f32 %v3548, %v4838
      %v4935 = vadd.f32 %v3549, %v4839
      %v4936 = vadd.f32 %v3550, %v4840
      %v4937 = vadd.f32 %v3551, %v4841
      %v4938 = vadd.f32 %v3552, %v4842
      %v4939 = vadd.f32 %v3553, %v4843
      %v4940 = vadd.f32 %v3554, %v4844
      %v4941 = vadd.f32 %v3555, %v4845
      %v4942 = vadd.f32 %v3556, %v4846
      %v4943 = vadd.f32 %v3557, %v4847
      %v4944 = vadd.f32 %v3558, %v4848
      %v4945 = vadd.f32 %v3559, %v4849
      %v4946 = vadd.f32 %v3560, %v4850
      %v4947 = vadd.f32 %v3561, %v4851
      %v4948 = vadd.f32 %v3562, %v4852
      %v4949 = vadd.f32 %v3563, %v4853
      %v4950 = vadd.f32 %v3564, %v4854
      %v4951 = vadd.f32 %v3565, %v4855
      %v4952 = vadd.f32 %v3566, %v4856
      %v4953 = vadd.f32 %v3567, %v4857
      %v4954 = vadd.f32 %v3568, %v4858
      %v4955 = vadd.f32 %v3569, %v4859
      %v4956 = vadd.f32 %v3570, %v4860
      %v4957 = vadd.f32 %v3571, %v4861
      %v4958 = vadd.f32 %v3572, %v4862
      %v4959 = vadd.f32 %v3573, %v4863
      %v4960 = vadd.f32 %v3574, %v4864
      %v4961 = vadd.f32 %v3575, %v4865
      %v4962 = vadd.f32 %v3576, %v4866
      %v4963 = vadd.f32 %v3577, %v4867
      %v4964 = vadd.f32 %v3578, %v4868
      %v4965 = vadd.f32 %v3579, %v4869
      %v4966 = vadd.f32 %v3580, %v4870
      %v4967 = vadd.f32 %v3581, %v4871
      %v4968 = vadd.f32 %v3582, %v4872
      %v4969 = vadd.f32 %v3583, %v4873
      %v4970 = vadd.f32 %v3584, %v4874
      %v4971 = vadd.f32 %v3585, %v4875
      %v4972 = vadd.f32 %v3586, %v4876
      %v4973 = vadd.f32 %v3587, %v4877
      %v4974 = vadd.f32 %v3588, %v4878
      %v4975 = vadd.f32 %v3589, %v4879
      %v4976 = vadd.f32 %v3590, %v4880
      %v4977 = vadd.f32 %v3591, %v4881
      %v4978 = vadd.f32 %v3592, %v4882
      %v4979 = vadd.f32 %v3593, %v4883
      %v4980 = vadd.f32 %v3594, %v4884
      %v4981 = vadd.f32 %v3595, %v4885
      %v4982 = vadd.f32 %v3596, %v4886
      %v4983 = vadd.f32 %v3597, %v4887
      %v4984 = vadd.f32 %v3598, %v4888
      %v4985 = vadd.f32 %v3599, %v4889
      %v4986 = vadd.f32 %v3600, %v4890
      %v4987 = vadd.f32 %v3601, %v4891
      %v4988 = vadd.f32 %v3602, %v4892
      %v4989 = vadd.f32 %v3603, %v4893
      %v4990 = vadd.f32 %v3604, %v4894
      %v4991 = vadd.f32 %v3605, %v4895
      %v4992 = vadd.f32 %v3606, %v4896
      %v4993 = vadd.f32 %v3607, %v4897
      %v4994 = vadd.f32 %v3608, %v4898
      %v4995 = vadd.f32 %v3609, %v4899
      %v4996 = vadd.f32 %v3610, %v4900
      %v4997 = vadd.f32 %v3611, %v4901
      %v4998 = vadd.f32 %v3612, %v4902
      %v4999 = vadd.f32 %v3613, %v4903
      %v5000 = vadd.f32 %v3614, %v4904
      %v5001 = vadd.f32 %v3615, %v4905
      %v5002 = vadd.f32 %v3616, %v4906
      %v5003 = vadd.f32 %v3617, %v4907
      %v5004 = vadd.f32 %v3618, %v4908
      %v5005 = vadd.f32 %v3619, %v4909
      %v5006 = vadd.f32 %v3620, %v4910
      %v5007 = vadd.f32 %v3621, %v4911
      %v5008 = vadd.f32 %v3622, %v4912
      %v5009 = vadd.f32 %v3623, %v4913
      %v5010 = vadd.f32 %v3624, %v4914
      %v5011 = vadd.f32 %v3625, %v4915
      %s5012 = scalar_lea.vmem %s6, 192
      %v5013 = vld [vmem:[%s5012] sm:$0xff]
      %v5014 = vld [vmem:[%s5012 + $0x8] sm:$0xff]
      %v5015 = vld [vmem:[%s5012 + $0x10] sm:$0xff]
      %v5016 = vld [vmem:[%s5012 + $0x18] sm:$0xff]
      %v5017 = vld [vmem:[%s5012 + $0x20] sm:$0xff]
      %v5018 = vld [vmem:[%s5012 + $0x28] sm:$0xff]
      %v5019 = vld [vmem:[%s5012 + $0x30] sm:$0xff]
      %v5020 = vld [vmem:[%s5012 + $0x38] sm:$0xff]
      %v5021 = vld [vmem:[%s5012 + $0x40] sm:$0xff]
      %v5022 = vld [vmem:[%s5012 + $0x48] sm:$0xff]
      %v5023 = vld [vmem:[%s5012 + $0x50] sm:$0xff]
      %v5024 = vld [vmem:[%s5012 + $0x58] sm:$0xff]
      %v5026 = vsel %vm2348, %v5013, 0
      %v5029 = vsel %vm2348, %v5014, 0
      %v5032 = vsel %vm2348, %v5015, 0
      %v5035 = vsel %vm2348, %v5016, 0
      %v5038 = vsel %vm2348, %v5017, 0
      %v5041 = vsel %vm2348, %v5018, 0
      %v5044 = vsel %vm2348, %v5019, 0
      %v5047 = vsel %vm2348, %v5020, 0
      %v5050 = vsel %vm2348, %v5021, 0
      %v5053 = vsel %vm2348, %v5022, 0
      %v5056 = vsel %vm2348, %v5023, 0
      %v5059 = vsel %vm2348, %v5024, 0
      %5061 = vmatprep.subr.mxu0 %v2241
      %5062 = vmatpush1.msra.mxu0 %v2240
      %5063 = vmatprep.subr.mxu0 %v2249
      %5064 = vmatpush1.msra.mxu0 %v2248
      %5065 = vmatprep.subr.mxu0 %v2257
      %5066 = vmatpush1.msra.mxu0 %v2256
      %5067 = vmatprep.subr.mxu0 %v2265
      %5068 = vmatpush1.msra.mxu0 %v2264
      %5069 = vmatprep.subr.mxu0 %v2273
      %5070 = vmatpush1.msra.mxu0 %v2272
      %5071 = vmatprep.subr.mxu0 %v2281
      %5072 = vmatpush1.msra.mxu0 %v2280
      %5073 = vmatprep.subr.mxu0 %v2289
      %5074 = vmatpush1.msra.mxu0 %v2288
      %5075 = vmatprep.subr.mxu0 %v2297
      %5076 = vmatpush1.msra.mxu0 %v2296
      %5077 = vmatprep.subr.mxu0 %v2305
      %5078 = vmatpush1.msra.mxu0 %v2304
      %5079 = vmatprep.subr.mxu0 %v2313
      %5080 = vmatpush1.msra.mxu0 %v2312
      %5081 = vmatprep.subr.mxu0 %v2321
      %5082 = vmatpush1.msra.mxu0 %v2320
      %5083 = vmatprep.subr.mxu0 %v2329
      %5084 = vmatpush1.msra.mxu0 %v2328
      %5085 = vmatprep.subr.mxu0 0.0
      %5086 = vmatpush1.msra.mxu0 0.0
      %5087 = vmatprep.subr.mxu0 0.0
      %5088 = vmatpush1.msra.mxu0 0.0
      %5089 = vmatprep.subr.mxu0 0.0
      %5090 = vmatpush1.msra.mxu0 0.0
      %5091 = vmatprep.subr.mxu0 0.0
      %5092 = vmatpush1.msra.mxu0 0.0
      %5093 = vmatprep.subr.mxu0 0.0
      %5094 = vmatpush1.msra.mxu0 0.0
      %5095 = vmatprep.subr.mxu0 0.0
      %5096 = vmatpush1.msra.mxu0 0.0
      %5097 = vmatprep.subr.mxu0 0.0
      %5098 = vmatpush1.msra.mxu0 0.0
      %5099 = vmatprep.subr.mxu0 0.0
      %5100 = vmatpush1.msra.mxu0 0.0
      %5101 = vmatprep.subr.mxu0 0.0
      %5102 = vmatpush1.msra.mxu0 0.0
      %5103 = vmatprep.subr.mxu0 0.0
      %5104 = vmatpush1.msra.mxu0 0.0
      %5105 = vmatprep.subr.mxu0 0.0
      %5106 = vmatpush1.msra.mxu0 0.0
      %5107 = vmatprep.subr.mxu0 0.0
      %5108 = vmatpush1.msra.mxu0 0.0
      %5109 = vmatprep.subr.mxu0 0.0
      %5110 = vmatpush1.msra.mxu0 0.0
      %5111 = vmatprep.subr.mxu0 0.0
      %5112 = vmatpush1.msra.mxu0 0.0
      %5113 = vmatprep.subr.mxu0 0.0
      %5114 = vmatpush1.msra.mxu0 0.0
      %5115 = vmatprep.subr.mxu0 0.0
      %5116 = vmatpush1.msra.mxu0 0.0
      %5117 = vmatprep.subr.mxu0 0.0
      %5118 = vmatpush1.msra.mxu0 0.0
      %5119 = vmatprep.subr.mxu0 0.0
      %5120 = vmatpush1.msra.mxu0 0.0
      %5121 = vmatprep.subr.mxu0 0.0
      %5122 = vmatpush1.msra.mxu0 0.0
      %5123 = vmatprep.subr.mxu0 0.0
      %5124 = vmatpush1.msra.mxu0 0.0
      %5125 = vmatprep.mubr.f32.mxu0 0.0
      %5126 = vmatmul.mubr.f32.gmra.mrb[0].mxu0 %v5026
      %v5127 = vpop.f32.mrb[0].mxu0
      %v5128 = vadd.f32 0.0, %v5127
      %v5129 = vpop.f32.mrb[0].mxu0
      %v5130 = vadd.f32 0.0, %v5129
      %5131 = vmatprep.mubr.f32.mxu0 0.0
      %5132 = vmatmul.mubr.f32.gmra.mrb[0].mxu0 %v5029
      %v5133 = vpop.f32.mrb[0].mxu0
      %v5134 = vadd.f32 0.0, %v5133
      %v5135 = vpop.f32.mrb[0].mxu0
      %v5136 = vadd.f32 0.0, %v5135
      %5137 = vmatprep.mubr.f32.mxu0 0.0
      %5138 = vmatmul.mubr.f32.gmra.mrb[0].mxu0 %v5032
      %v5139 = vpop.f32.mrb[0].mxu0
      %v5140 = vadd.f32 0.0, %v5139
      %v5141 = vpop.f32.mrb[0].mxu0
      %v5142 = vadd.f32 0.0, %v5141
      %5143 = vmatprep.mubr.f32.mxu0 0.0
      %5144 = vmatmul.mubr.f32.gmra.mrb[0].mxu0 %v5035
      %v5145 = vpop.f32.mrb[0].mxu0
      %v5146 = vadd.f32 0.0, %v5145
      %v5147 = vpop.f32.mrb[0].mxu0
      %v5148 = vadd.f32 0.0, %v5147
      %5149 = vmatprep.mubr.f32.mxu0 0.0
      %5150 = vmatmul.mubr.f32.gmra.mrb[0].mxu0 %v5038
      %v5151 = vpop.f32.mrb[0].mxu0
      %v5152 = vadd.f32 0.0, %v5151
      %v5153 = vpop.f32.mrb[0].mxu0
      %v5154 = vadd.f32 0.0, %v5153
      %5155 = vmatprep.mubr.f32.mxu0 0.0
      %5156 = vmatmul.mubr.f32.gmra.mrb[0].mxu0 %v5041
      %v5157 = vpop.f32.mrb[0].mxu0
      %v5158 = vadd.f32 0.0, %v5157
      %v5159 = vpop.f32.mrb[0].mxu0
      %v5160 = vadd.f32 0.0, %v5159
      %5161 = vmatprep.mubr.f32.mxu0 0.0
      %5162 = vmatmul.mubr.f32.gmra.mrb[0].mxu0 %v5044
      %v5163 = vpop.f32.mrb[0].mxu0
      %v5164 = vadd.f32 0.0, %v5163
      %v5165 = vpop.f32.mrb[0].mxu0
      %v5166 = vadd.f32 0.0, %v5165
      %5167 = vmatprep.mubr.f32.mxu0 0.0
      %5168 = vmatmul.mubr.f32.gmra.mrb[0].mxu0 %v5047
      %v5169 = vpop.f32.mrb[0].mxu0
      %v5170 = vadd.f32 0.0, %v5169
      %v5171 = vpop.f32.mrb[0].mxu0
      %v5172 = vadd.f32 0.0, %v5171
      %5173 = vmatprep.mubr.f32.mxu0 0.0
      %5174 = vmatmul.mubr.f32.gmra.mrb[0].mxu0 %v5050
      %v5175 = vpop.f32.mrb[0].mxu0
      %v5176 = vadd.f32 0.0, %v5175
      %v5177 = vpop.f32.mrb[0].mxu0
      %v5178 = vadd.f32 0.0, %v5177
      %5179 = vmatprep.mubr.f32.mxu0 0.0
      %5180 = vmatmul.mubr.f32.gmra.mrb[0].mxu0 %v5053
      %v5181 = vpop.f32.mrb[0].mxu0
      %v5182 = vadd.f32 0.0, %v5181
      %v5183 = vpop.f32.mrb[0].mxu0
      %v5184 = vadd.f32 0.0, %v5183
      %5185 = vmatprep.mubr.f32.mxu0 0.0
      %5186 = vmatmul.mubr.f32.gmra.mrb[0].mxu0 %v5056
      %v5187 = vpop.f32.mrb[0].mxu0
      %v5188 = vadd.f32 0.0, %v5187
      %v5189 = vpop.f32.mrb[0].mxu0
      %v5190 = vadd.f32 0.0, %v5189
      %5191 = vmatprep.mubr.f32.mxu0 0.0
      %5192 = vmatmul.mubr.f32.gmra.mrb[0].mxu0 %v5059
      %v5193 = vpop.f32.mrb[0].mxu0
      %v5194 = vadd.f32 0.0, %v5193
      %v5195 = vpop.f32.mrb[0].mxu0
      %v5196 = vadd.f32 0.0, %v5195
      %5197 = vdwg.mxu0
      %5198 = vmatprep.subr.mxu0 %v2243
      %5199 = vmatpush1.msra.mxu0 %v2242
      %5200 = vmatprep.subr.mxu0 %v2251
      %5201 = vmatpush1.msra.mxu0 %v2250
      %5202 = vmatprep.subr.mxu0 %v2259
      %5203 = vmatpush1.msra.mxu0 %v2258
      %5204 = vmatprep.subr.mxu0 %v2267
      %5205 = vmatpush1.msra.mxu0 %v2266
      %5206 = vmatprep.subr.mxu0 %v2275
      %5207 = vmatpush1.msra.mxu0 %v2274
      %5208 = vmatprep.subr.mxu0 %v2283
      %5209 = vmatpush1.msra.mxu0 %v2282
      %5210 = vmatprep.subr.mxu0 %v2291
      %5211 = vmatpush1.msra.mxu0 %v2290
      %5212 = vmatprep.subr.mxu0 %v2299
      %5213 = vmatpush1.msra.mxu0 %v2298
      %5214 = vmatprep.subr.mxu0 %v2307
      %5215 = vmatpush1.msra.mxu0 %v2306
      %5216 = vmatprep.subr.mxu0 %v2315
      %5217 = vmatpush1.msra.mxu0 %v2314
      %5218 = vmatprep.subr.mxu0 %v2323
      %5219 = vmatpush1.msra.mxu0 %v2322
      %5220 = vmatprep.subr.mxu0 %v2331
      %5221 = vmatpush1.msra.mxu0 %v2330
      %5222 = vmatprep.subr.mxu0 0.0
      %5223 = vmatpush1.msra.mxu0 0.0
      %5224 = vmatprep.subr.mxu0 0.0
      %5225 = vmatpush1.msra.mxu0 0.0
      %5226 = vmatprep.subr.mxu0 0.0
      %5227 = vmatpush1.msra.mxu0 0.0
      %5228 = vmatprep.subr.mxu0 0.0
      %5229 = vmatpush1.msra.mxu0 0.0
      %5230 = vmatprep.subr.mxu0 0.0
      %5231 = vmatpush1.msra.mxu0 0.0
      %5232 = vmatprep.subr.mxu0 0.0
      %5233 = vmatpush1.msra.mxu0 0.0
      %5234 = vmatprep.subr.mxu0 0.0
      %5235 = vmatpush1.msra.mxu0 0.0
      %5236 = vmatprep.subr.mxu0 0.0
      %5237 = vmatpush1.msra.mxu0 0.0
      %5238 = vmatprep.subr.mxu0 0.0
      %5239 = vmatpush1.msra.mxu0 0.0
      %5240 = vmatprep.subr.mxu0 0.0
      %5241 = vmatpush1.msra.mxu0 0.0
      %5242 = vmatprep.subr.mxu0 0.0
      %5243 = vmatpush1.msra.mxu0 0.0
      %5244 = vmatprep.subr.mxu0 0.0
      %5245 = vmatpush1.msra.mxu0 0.0
      %5246 = vmatprep.subr.mxu0 0.0
      %5247 = vmatpush1.msra.mxu0 0.0
      %5248 = vmatprep.subr.mxu0 0.0
      %5249 = vmatpush1.msra.mxu0 0.0
      %5250 = vmatprep.subr.mxu0 0.0
      %5251 = vmatpush1.msra.mxu0 0.0
      %5252 = vmatprep.subr.mxu0 0.0
      %5253 = vmatpush1.msra.mxu0 0.0
      %5254 = vmatprep.subr.mxu0 0.0
      %5255 = vmatpush1.msra.mxu0 0.0
      %5256 = vmatprep.subr.mxu0 0.0
      %5257 = vmatpush1.msra.mxu0 0.0
      %5258 = vmatprep.subr.mxu0 0.0
      %5259 = vmatpush1.msra.mxu0 0.0
      %5260 = vmatprep.subr.mxu0 0.0
      %5261 = vmatpush1.msra.mxu0 0.0
      %5262 = vmatprep.mubr.f32.mxu0 0.0
      %5263 = vmatmul.mubr.f32.gmra.mrb[0].mxu0 %v5026
      %v5264 = vpop.f32.mrb[0].mxu0
      %v5265 = vadd.f32 0.0, %v5264
      %v5266 = vpop.f32.mrb[0].mxu0
      %v5267 = vadd.f32 0.0, %v5266
      %5268 = vmatprep.mubr.f32.mxu0 0.0
      %5269 = vmatmul.mubr.f32.gmra.mrb[0].mxu0 %v5029
      %v5270 = vpop.f32.mrb[0].mxu0
      %v5271 = vadd.f32 0.0, %v5270
      %v5272 = vpop.f32.mrb[0].mxu0
      %v5273 = vadd.f32 0.0, %v5272
      %5274 = vmatprep.mubr.f32.mxu0 0.0
      %5275 = vmatmul.mubr.f32.gmra.mrb[0].mxu0 %v5032
      %v5276 = vpop.f32.mrb[0].mxu0
      %v5277 = vadd.f32 0.0, %v5276
      %v5278 = vpop.f32.mrb[0].mxu0
      %v5279 = vadd.f32 0.0, %v5278
      %5280 = vmatprep.mubr.f32.mxu0 0.0
      %5281 = vmatmul.mubr.f32.gmra.mrb[0].mxu0 %v5035
      %v5282 = vpop.f32.mrb[0].mxu0
      %v5283 = vadd.f32 0.0, %v5282
      %v5284 = vpop.f32.mrb[0].mxu0
      %v5285 = vadd.f32 0.0, %v5284
      %5286 = vmatprep.mubr.f32.mxu0 0.0
      %5287 = vmatmul.mubr.f32.gmra.mrb[0].mxu0 %v5038
      %v5288 = vpop.f32.mrb[0].mxu0
      %v5289 = vadd.f32 0.0, %v5288
      %v5290 = vpop.f32.mrb[0].mxu0
      %v5291 = vadd.f32 0.0, %v5290
      %5292 = vmatprep.mubr.f32.mxu0 0.0
      %5293 = vmatmul.mubr.f32.gmra.mrb[0].mxu0 %v5041
      %v5294 = vpop.f32.mrb[0].mxu0
      %v5295 = vadd.f32 0.0, %v5294
      %v5296 = vpop.f32.mrb[0].mxu0
      %v5297 = vadd.f32 0.0, %v5296
      %5298 = vmatprep.mubr.f32.mxu0 0.0
      %5299 = vmatmul.mubr.f32.gmra.mrb[0].mxu0 %v5044
      %v5300 = vpop.f32.mrb[0].mxu0
      %v5301 = vadd.f32 0.0, %v5300
      %v5302 = vpop.f32.mrb[0].mxu0
      %v5303 = vadd.f32 0.0, %v5302
      %5304 = vmatprep.mubr.f32.mxu0 0.0
      %5305 = vmatmul.mubr.f32.gmra.mrb[0].mxu0 %v5047
      %v5306 = vpop.f32.mrb[0].mxu0
      %v5307 = vadd.f32 0.0, %v5306
      %v5308 = vpop.f32.mrb[0].mxu0
      %v5309 = vadd.f32 0.0, %v5308
      %5310 = vmatprep.mubr.f32.mxu0 0.0
      %5311 = vmatmul.mubr.f32.gmra.mrb[0].mxu0 %v5050
      %v5312 = vpop.f32.mrb[0].mxu0
      %v5313 = vadd.f32 0.0, %v5312
      %v5314 = vpop.f32.mrb[0].mxu0
      %v5315 = vadd.f32 0.0, %v5314
      %5316 = vmatprep.mubr.f32.mxu0 0.0
      %5317 = vmatmul.mubr.f32.gmra.mrb[0].mxu0 %v5053
      %v5318 = vpop.f32.mrb[0].mxu0
      %v5319 = vadd.f32 0.0, %v5318
      %v5320 = vpop.f32.mrb[0].mxu0
      %v5321 = vadd.f32 0.0, %v5320
      %5322 = vmatprep.mubr.f32.mxu0 0.0
      %5323 = vmatmul.mubr.f32.gmra.mrb[0].mxu0 %v5056
      %v5324 = vpop.f32.mrb[0].mxu0
      %v5325 = vadd.f32 0.0, %v5324
      %v5326 = vpop.f32.mrb[0].mxu0
      %v5327 = vadd.f32 0.0, %v5326
      %5328 = vmatprep.mubr.f32.mxu0 0.0
      %5329 = vmatmul.mubr.f32.gmra.mrb[0].mxu0 %v5059
      %v5330 = vpop.f32.mrb[0].mxu0
      %v5331 = vadd.f32 0.0, %v5330
      %v5332 = vpop.f32.mrb[0].mxu0
      %v5333 = vadd.f32 0.0, %v5332
      %5334 = vdwg.mxu0
      %5335 = vmatprep.subr.mxu0 %v2245
      %5336 = vmatpush1.msra.mxu0 %v2244
      %5337 = vmatprep.subr.mxu0 %v2253
      %5338 = vmatpush1.msra.mxu0 %v2252
      %5339 = vmatprep.subr.mxu0 %v2261
      %5340 = vmatpush1.msra.mxu0 %v2260
      %5341 = vmatprep.subr.mxu0 %v2269
      %5342 = vmatpush1.msra.mxu0 %v2268
      %5343 = vmatprep.subr.mxu0 %v2277
      %5344 = vmatpush1.msra.mxu0 %v2276
      %5345 = vmatprep.subr.mxu0 %v2285
      %5346 = vmatpush1.msra.mxu0 %v2284
      %5347 = vmatprep.subr.mxu0 %v2293
      %5348 = vmatpush1.msra.mxu0 %v2292
      %5349 = vmatprep.subr.mxu0 %v2301
      %5350 = vmatpush1.msra.mxu0 %v2300
      %5351 = vmatprep.subr.mxu0 %v2309
      %5352 = vmatpush1.msra.mxu0 %v2308
      %5353 = vmatprep.subr.mxu0 %v2317
      %5354 = vmatpush1.msra.mxu0 %v2316
      %5355 = vmatprep.subr.mxu0 %v2325
      %5356 = vmatpush1.msra.mxu0 %v2324
      %5357 = vmatprep.subr.mxu0 %v2333
      %5358 = vmatpush1.msra.mxu0 %v2332
      %5359 = vmatprep.subr.mxu0 0.0
      %5360 = vmatpush1.msra.mxu0 0.0
      %5361 = vmatprep.subr.mxu0 0.0
      %5362 = vmatpush1.msra.mxu0 0.0
      %5363 = vmatprep.subr.mxu0 0.0
      %5364 = vmatpush1.msra.mxu0 0.0
      %5365 = vmatprep.subr.mxu0 0.0
      %5366 = vmatpush1.msra.mxu0 0.0
      %5367 = vmatprep.subr.mxu0 0.0
      %5368 = vmatpush1.msra.mxu0 0.0
      %5369 = vmatprep.subr.mxu0 0.0
      %5370 = vmatpush1.msra.mxu0 0.0
      %5371 = vmatprep.subr.mxu0 0.0
      %5372 = vmatpush1.msra.mxu0 0.0
      %5373 = vmatprep.subr.mxu0 0.0
      %5374 = vmatpush1.msra.mxu0 0.0
      %5375 = vmatprep.subr.mxu0 0.0
      %5376 = vmatpush1.msra.mxu0 0.0
      %5377 = vmatprep.subr.mxu0 0.0
      %5378 = vmatpush1.msra.mxu0 0.0
      %5379 = vmatprep.subr.mxu0 0.0
      %5380 = vmatpush1.msra.mxu0 0.0
      %5381 = vmatprep.subr.mxu0 0.0
      %5382 = vmatpush1.msra.mxu0 0.0
      %5383 = vmatprep.subr.mxu0 0.0
      %5384 = vmatpush1.msra.mxu0 0.0
      %5385 = vmatprep.subr.mxu0 0.0
      %5386 = vmatpush1.msra.mxu0 0.0
      %5387 = vmatprep.subr.mxu0 0.0
      %5388 = vmatpush1.msra.mxu0 0.0
      %5389 = vmatprep.subr.mxu0 0.0
      %5390 = vmatpush1.msra.mxu0 0.0
      %5391 = vmatprep.subr.mxu0 0.0
      %5392 = vmatpush1.msra.mxu0 0.0
      %5393 = vmatprep.subr.mxu0 0.0
      %5394 = vmatpush1.msra.mxu0 0.0
      %5395 = vmatprep.subr.mxu0 0.0
      %5396 = vmatpush1.msra.mxu0 0.0
      %5397 = vmatprep.subr.mxu0 0.0
      %5398 = vmatpush1.msra.mxu0 0.0
      %5399 = vmatprep.mubr.f32.mxu0 0.0
      %5400 = vmatmul.mubr.f32.gmra.mrb[0].mxu0 %v5026
      %v5401 = vpop.f32.mrb[0].mxu0
      %v5402 = vadd.f32 0.0, %v5401
      %v5403 = vpop.f32.mrb[0].mxu0
      %v5404 = vadd.f32 0.0, %v5403
      %5405 = vmatprep.mubr.f32.mxu0 0.0
      %5406 = vmatmul.mubr.f32.gmra.mrb[0].mxu0 %v5029
      %v5407 = vpop.f32.mrb[0].mxu0
      %v5408 = vadd.f32 0.0, %v5407
      %v5409 = vpop.f32.mrb[0].mxu0
      %v5410 = vadd.f32 0.0, %v5409
      %5411 = vmatprep.mubr.f32.mxu0 0.0
      %5412 = vmatmul.mubr.f32.gmra.mrb[0].mxu0 %v5032
      %v5413 = vpop.f32.mrb[0].mxu0
      %v5414 = vadd.f32 0.0, %v5413
      %v5415 = vpop.f32.mrb[0].mxu0
      %v5416 = vadd.f32 0.0, %v5415
      %5417 = vmatprep.mubr.f32.mxu0 0.0
      %5418 = vmatmul.mubr.f32.gmra.mrb[0].mxu0 %v5035
      %v5419 = vpop.f32.mrb[0].mxu0
      %v5420 = vadd.f32 0.0, %v5419
      %v5421 = vpop.f32.mrb[0].mxu0
      %v5422 = vadd.f32 0.0, %v5421
      %5423 = vmatprep.mubr.f32.mxu0 0.0
      %5424 = vmatmul.mubr.f32.gmra.mrb[0].mxu0 %v5038
      %v5425 = vpop.f32.mrb[0].mxu0
      %v5426 = vadd.f32 0.0, %v5425
      %v5427 = vpop.f32.mrb[0].mxu0
      %v5428 = vadd.f32 0.0, %v5427
      %5429 = vmatprep.mubr.f32.mxu0 0.0
      %5430 = vmatmul.mubr.f32.gmra.mrb[0].mxu0 %v5041
      %v5431 = vpop.f32.mrb[0].mxu0
      %v5432 = vadd.f32 0.0, %v5431
      %v5433 = vpop.f32.mrb[0].mxu0
      %v5434 = vadd.f32 0.0, %v5433
      %5435 = vmatprep.mubr.f32.mxu0 0.0
      %5436 = vmatmul.mubr.f32.gmra.mrb[0].mxu0 %v5044
      %v5437 = vpop.f32.mrb[0].mxu0
      %v5438 = vadd.f32 0.0, %v5437
      %v5439 = vpop.f32.mrb[0].mxu0
      %v5440 = vadd.f32 0.0, %v5439
      %5441 = vmatprep.mubr.f32.mxu0 0.0
      %5442 = vmatmul.mubr.f32.gmra.mrb[0].mxu0 %v5047
      %v5443 = vpop.f32.mrb[0].mxu0
      %v5444 = vadd.f32 0.0, %v5443
      %v5445 = vpop.f32.mrb[0].mxu0
      %v5446 = vadd.f32 0.0, %v5445
      %5447 = vmatprep.mubr.f32.mxu0 0.0
      %5448 = vmatmul.mubr.f32.gmra.mrb[0].mxu0 %v5050
      %v5449 = vpop.f32.mrb[0].mxu0
      %v5450 = vadd.f32 0.0, %v5449
      %v5451 = vpop.f32.mrb[0].mxu0
      %v5452 = vadd.f32 0.0, %v5451
      %5453 = vmatprep.mubr.f32.mxu0 0.0
      %5454 = vmatmul.mubr.f32.gmra.mrb[0].mxu0 %v5053
      %v5455 = vpop.f32.mrb[0].mxu0
      %v5456 = vadd.f32 0.0, %v5455
      %v5457 = vpop.f32.mrb[0].mxu0
      %v5458 = vadd.f32 0.0, %v5457
      %5459 = vmatprep.mubr.f32.mxu0 0.0
      %5460 = vmatmul.mubr.f32.gmra.mrb[0].mxu0 %v5056
      %v5461 = vpop.f32.mrb[0].mxu0
      %v5462 = vadd.f32 0.0, %v5461
      %v5463 = vpop.f32.mrb[0].mxu0
      %v5464 = vadd.f32 0.0, %v5463
      %5465 = vmatprep.mubr.f32.mxu0 0.0
      %5466 = vmatmul.mubr.f32.gmra.mrb[0].mxu0 %v5059
      %v5467 = vpop.f32.mrb[0].mxu0
      %v5468 = vadd.f32 0.0, %v5467
      %v5469 = vpop.f32.mrb[0].mxu0
      %v5470 = vadd.f32 0.0, %v5469
      %5471 = vdwg.mxu0
      %5472 = vmatprep.subr.mxu0 %v2247
      %5473 = vmatpush1.msra.mxu0 %v2246
      %5474 = vmatprep.subr.mxu0 %v2255
      %5475 = vmatpush1.msra.mxu0 %v2254
      %5476 = vmatprep.subr.mxu0 %v2263
      %5477 = vmatpush1.msra.mxu0 %v2262
      %5478 = vmatprep.subr.mxu0 %v2271
      %5479 = vmatpush1.msra.mxu0 %v2270
      %5480 = vmatprep.subr.mxu0 %v2279
      %5481 = vmatpush1.msra.mxu0 %v2278
      %5482 = vmatprep.subr.mxu0 %v2287
      %5483 = vmatpush1.msra.mxu0 %v2286
      %5484 = vmatprep.subr.mxu0 %v2295
      %5485 = vmatpush1.msra.mxu0 %v2294
      %5486 = vmatprep.subr.mxu0 %v2303
      %5487 = vmatpush1.msra.mxu0 %v2302
      %5488 = vmatprep.subr.mxu0 %v2311
      %5489 = vmatpush1.msra.mxu0 %v2310
      %5490 = vmatprep.subr.mxu0 %v2319
      %5491 = vmatpush1.msra.mxu0 %v2318
      %5492 = vmatprep.subr.mxu0 %v2327
      %5493 = vmatpush1.msra.mxu0 %v2326
      %5494 = vmatprep.subr.mxu0 %v2335
      %5495 = vmatpush1.msra.mxu0 %v2334
      %5496 = vmatprep.subr.mxu0 0.0
      %5497 = vmatpush1.msra.mxu0 0.0
      %5498 = vmatprep.subr.mxu0 0.0
      %5499 = vmatpush1.msra.mxu0 0.0
      %5500 = vmatprep.subr.mxu0 0.0
      %5501 = vmatpush1.msra.mxu0 0.0
      %5502 = vmatprep.subr.mxu0 0.0
      %5503 = vmatpush1.msra.mxu0 0.0
      %5504 = vmatprep.subr.mxu0 0.0
      %5505 = vmatpush1.msra.mxu0 0.0
      %5506 = vmatprep.subr.mxu0 0.0
      %5507 = vmatpush1.msra.mxu0 0.0
      %5508 = vmatprep.subr.mxu0 0.0
      %5509 = vmatpush1.msra.mxu0 0.0
      %5510 = vmatprep.subr.mxu0 0.0
      %5511 = vmatpush1.msra.mxu0 0.0
      %5512 = vmatprep.subr.mxu0 0.0
      %5513 = vmatpush1.msra.mxu0 0.0
      %5514 = vmatprep.subr.mxu0 0.0
      %5515 = vmatpush1.msra.mxu0 0.0
      %5516 = vmatprep.subr.mxu0 0.0
      %5517 = vmatpush1.msra.mxu0 0.0
      %5518 = vmatprep.subr.mxu0 0.0
      %5519 = vmatpush1.msra.mxu0 0.0
      %5520 = vmatprep.subr.mxu0 0.0
      %5521 = vmatpush1.msra.mxu0 0.0
      %5522 = vmatprep.subr.mxu0 0.0
      %5523 = vmatpush1.msra.mxu0 0.0
      %5524 = vmatprep.subr.mxu0 0.0
      %5525 = vmatpush1.msra.mxu0 0.0
      %5526 = vmatprep.subr.mxu0 0.0
      %5527 = vmatpush1.msra.mxu0 0.0
      %5528 = vmatprep.subr.mxu0 0.0
      %5529 = vmatpush1.msra.mxu0 0.0
      %5530 = vmatprep.subr.mxu0 0.0
      %5531 = vmatpush1.msra.mxu0 0.0
      %5532 = vmatprep.subr.mxu0 0.0
      %5533 = vmatpush1.msra.mxu0 0.0
      %5534 = vmatprep.subr.mxu0 0.0
      %5535 = vmatpush1.msra.mxu0 0.0
      %5536 = vmatprep.mubr.f32.mxu0 0.0
      %5537 = vmatmul.mubr.f32.gmra.mrb[0].mxu0 %v5026
      %v5538 = vpop.f32.mrb[0].mxu0
      %v5539 = vadd.f32 0.0, %v5538
      %v5540 = vpop.f32.mrb[0].mxu0
      %v5541 = vadd.f32 0.0, %v5540
      %5542 = vmatprep.mubr.f32.mxu0 0.0
      %5543 = vmatmul.mubr.f32.gmra.mrb[0].mxu0 %v5029
      %v5544 = vpop.f32.mrb[0].mxu0
      %v5545 = vadd.f32 0.0, %v5544
      %v5546 = vpop.f32.mrb[0].mxu0
      %v5547 = vadd.f32 0.0, %v5546
      %5548 = vmatprep.mubr.f32.mxu0 0.0
      %5549 = vmatmul.mubr.f32.gmra.mrb[0].mxu0 %v5032
      %v5550 = vpop.f32.mrb[0].mxu0
      %v5551 = vadd.f32 0.0, %v5550
      %v5552 = vpop.f32.mrb[0].mxu0
      %v5553 = vadd.f32 0.0, %v5552
      %5554 = vmatprep.mubr.f32.mxu0 0.0
      %5555 = vmatmul.mubr.f32.gmra.mrb[0].mxu0 %v5035
      %v5556 = vpop.f32.mrb[0].mxu0
      %v5557 = vadd.f32 0.0, %v5556
      %v5558 = vpop.f32.mrb[0].mxu0
      %v5559 = vadd.f32 0.0, %v5558
      %5560 = vmatprep.mubr.f32.mxu0 0.0
      %5561 = vmatmul.mubr.f32.gmra.mrb[0].mxu0 %v5038
      %v5562 = vpop.f32.mrb[0].mxu0
      %v5563 = vadd.f32 0.0, %v5562
      %v5564 = vpop.f32.mrb[0].mxu0
      %v5565 = vadd.f32 0.0, %v5564
      %5566 = vmatprep.mubr.f32.mxu0 0.0
      %5567 = vmatmul.mubr.f32.gmra.mrb[0].mxu0 %v5041
      %v5568 = vpop.f32.mrb[0].mxu0
      %v5569 = vadd.f32 0.0, %v5568
      %v5570 = vpop.f32.mrb[0].mxu0
      %v5571 = vadd.f32 0.0, %v5570
      %5572 = vmatprep.mubr.f32.mxu0 0.0
      %5573 = vmatmul.mubr.f32.gmra.mrb[0].mxu0 %v5044
      %v5574 = vpop.f32.mrb[0].mxu0
      %v5575 = vadd.f32 0.0, %v5574
      %v5576 = vpop.f32.mrb[0].mxu0
      %v5577 = vadd.f32 0.0, %v5576
      %5578 = vmatprep.mubr.f32.mxu0 0.0
      %5579 = vmatmul.mubr.f32.gmra.mrb[0].mxu0 %v5047
      %v5580 = vpop.f32.mrb[0].mxu0
      %v5581 = vadd.f32 0.0, %v5580
      %v5582 = vpop.f32.mrb[0].mxu0
      %v5583 = vadd.f32 0.0, %v5582
      %5584 = vmatprep.mubr.f32.mxu0 0.0
      %5585 = vmatmul.mubr.f32.gmra.mrb[0].mxu0 %v5050
      %v5586 = vpop.f32.mrb[0].mxu0
      %v5587 = vadd.f32 0.0, %v5586
      %v5588 = vpop.f32.mrb[0].mxu0
      %v5589 = vadd.f32 0.0, %v5588
      %5590 = vmatprep.mubr.f32.mxu0 0.0
      %5591 = vmatmul.mubr.f32.gmra.mrb[0].mxu0 %v5053
      %v5592 = vpop.f32.mrb[0].mxu0
      %v5593 = vadd.f32 0.0, %v5592
      %v5594 = vpop.f32.mrb[0].mxu0
      %v5595 = vadd.f32 0.0, %v5594
      %5596 = vmatprep.mubr.f32.mxu0 0.0
      %5597 = vmatmul.mubr.f32.gmra.mrb[0].mxu0 %v5056
      %v5598 = vpop.f32.mrb[0].mxu0
      %v5599 = vadd.f32 0.0, %v5598
      %v5600 = vpop.f32.mrb[0].mxu0
      %v5601 = vadd.f32 0.0, %v5600
      %5602 = vmatprep.mubr.f32.mxu0 0.0
      %5603 = vmatmul.mubr.f32.gmra.mrb[0].mxu0 %v5059
      %v5604 = vpop.f32.mrb[0].mxu0
      %v5605 = vadd.f32 0.0, %v5604
      %v5606 = vpop.f32.mrb[0].mxu0
      %v5607 = vadd.f32 0.0, %v5606
      %5608 = vdwg.mxu0
      %s5609 = scalar_lea.vmem %s7, 192
      %v5610 = vld [vmem:[%s5609] sm:$0xff]
      %v5611 = vld [vmem:[%s5609 + $0x8] sm:$0xff]
      %v5612 = vld [vmem:[%s5609 + $0x10] sm:$0xff]
      %v5613 = vld [vmem:[%s5609 + $0x18] sm:$0xff]
      %v5614 = vld [vmem:[%s5609 + $0x20] sm:$0xff]
      %v5615 = vld [vmem:[%s5609 + $0x28] sm:$0xff]
      %v5616 = vld [vmem:[%s5609 + $0x30] sm:$0xff]
      %v5617 = vld [vmem:[%s5609 + $0x38] sm:$0xff]
      %v5618 = vld [vmem:[%s5609 + $0x40] sm:$0xff]
      %v5619 = vld [vmem:[%s5609 + $0x48] sm:$0xff]
      %v5620 = vld [vmem:[%s5609 + $0x50] sm:$0xff]
      %v5621 = vld [vmem:[%s5609 + $0x58] sm:$0xff]
      %v5623 = vsel %vm2945, %v5610, 0
      %v5626 = vsel %vm2945, %v5611, 0
      %v5629 = vsel %vm2945, %v5612, 0
      %v5632 = vsel %vm2945, %v5613, 0
      %v5635 = vsel %vm2945, %v5614, 0
      %v5638 = vsel %vm2945, %v5615, 0
      %v5641 = vsel %vm2945, %v5616, 0
      %v5644 = vsel %vm2945, %v5617, 0
      %v5647 = vsel %vm2945, %v5618, 0
      %v5650 = vsel %vm2945, %v5619, 0
      %v5653 = vsel %vm2945, %v5620, 0
      %v5656 = vsel %vm2945, %v5621, 0
      %5658 = vmatprep.subr.mxu0 %v2209
      %5659 = vmatpush1.msra.mxu0 %v2208
      %5660 = vmatprep.subr.mxu0 %v2217
      %5661 = vmatpush1.msra.mxu0 %v2216
      %5662 = vmatprep.subr.mxu0 0.0
      %5663 = vmatpush1.msra.mxu0 0.0
      %5664 = vmatprep.subr.mxu0 0.0
      %5665 = vmatpush1.msra.mxu0 0.0
      %5666 = vmatprep.subr.mxu0 0.0
      %5667 = vmatpush1.msra.mxu0 0.0
      %5668 = vmatprep.subr.mxu0 0.0
      %5669 = vmatpush1.msra.mxu0 0.0
      %5670 = vmatprep.subr.mxu0 0.0
      %5671 = vmatpush1.msra.mxu0 0.0
      %5672 = vmatprep.subr.mxu0 0.0
      %5673 = vmatpush1.msra.mxu0 0.0
      %5674 = vmatprep.subr.mxu0 0.0
      %5675 = vmatpush1.msra.mxu0 0.0
      %5676 = vmatprep.subr.mxu0 0.0
      %5677 = vmatpush1.msra.mxu0 0.0
      %5678 = vmatprep.subr.mxu0 0.0
      %5679 = vmatpush1.msra.mxu0 0.0
      %5680 = vmatprep.subr.mxu0 0.0
      %5681 = vmatpush1.msra.mxu0 0.0
      %5682 = vmatprep.subr.mxu0 0.0
      %5683 = vmatpush1.msra.mxu0 0.0
      %5684 = vmatprep.subr.mxu0 0.0
      %5685 = vmatpush1.msra.mxu0 0.0
      %5686 = vmatprep.subr.mxu0 0.0
      %5687 = vmatpush1.msra.mxu0 0.0
      %5688 = vmatprep.subr.mxu0 0.0
      %5689 = vmatpush1.msra.mxu0 0.0
      %5690 = vmatprep.subr.mxu0 0.0
      %5691 = vmatpush1.msra.mxu0 0.0
      %5692 = vmatprep.subr.mxu0 0.0
      %5693 = vmatpush1.msra.mxu0 0.0
      %5694 = vmatprep.subr.mxu0 0.0
      %5695 = vmatpush1.msra.mxu0 0.0
      %5696 = vmatprep.subr.mxu0 0.0
      %5697 = vmatpush1.msra.mxu0 0.0
      %5698 = vmatprep.subr.mxu0 0.0
      %5699 = vmatpush1.msra.mxu0 0.0
      %5700 = vmatprep.subr.mxu0 0.0
      %5701 = vmatpush1.msra.mxu0 0.0
      %5702 = vmatprep.subr.mxu0 0.0
      %5703 = vmatpush1.msra.mxu0 0.0
      %5704 = vmatprep.subr.mxu0 0.0
      %5705 = vmatpush1.msra.mxu0 0.0
      %5706 = vmatprep.subr.mxu0 0.0
      %5707 = vmatpush1.msra.mxu0 0.0
      %5708 = vmatprep.subr.mxu0 0.0
      %5709 = vmatpush1.msra.mxu0 0.0
      %5710 = vmatprep.subr.mxu0 0.0
      %5711 = vmatpush1.msra.mxu0 0.0
      %5712 = vmatprep.subr.mxu0 0.0
      %5713 = vmatpush1.msra.mxu0 0.0
      %5714 = vmatprep.subr.mxu0 0.0
      %5715 = vmatpush1.msra.mxu0 0.0
      %5716 = vmatprep.subr.mxu0 0.0
      %5717 = vmatpush1.msra.mxu0 0.0
      %5718 = vmatprep.subr.mxu0 0.0
      %5719 = vmatpush1.msra.mxu0 0.0
      %5720 = vmatprep.subr.mxu0 0.0
      %5721 = vmatpush1.msra.mxu0 0.0
      %5722 = vmatprep.mubr.f32.mxu0 0.0
      %5723 = vmatmul.mubr.f32.gmra.mrb[0].mxu0 %v5623
      %v5724 = vpop.f32.mrb[0].mxu0
      %v5725 = vadd.f32 0.0, %v5724
      %v5726 = vpop.f32.mrb[0].mxu0
      %v5727 = vadd.f32 0.0, %v5726
      %5728 = vmatprep.mubr.f32.mxu0 0.0
      %5729 = vmatmul.mubr.f32.gmra.mrb[0].mxu0 %v5626
      %v5730 = vpop.f32.mrb[0].mxu0
      %v5731 = vadd.f32 0.0, %v5730
      %v5732 = vpop.f32.mrb[0].mxu0
      %v5733 = vadd.f32 0.0, %v5732
      %5734 = vmatprep.mubr.f32.mxu0 0.0
      %5735 = vmatmul.mubr.f32.gmra.mrb[0].mxu0 %v5629
      %v5736 = vpop.f32.mrb[0].mxu0
      %v5737 = vadd.f32 0.0, %v5736
      %v5738 = vpop.f32.mrb[0].mxu0
      %v5739 = vadd.f32 0.0, %v5738
      %5740 = vmatprep.mubr.f32.mxu0 0.0
      %5741 = vmatmul.mubr.f32.gmra.mrb[0].mxu0 %v5632
      %v5742 = vpop.f32.mrb[0].mxu0
      %v5743 = vadd.f32 0.0, %v5742
      %v5744 = vpop.f32.mrb[0].mxu0
      %v5745 = vadd.f32 0.0, %v5744
      %5746 = vmatprep.mubr.f32.mxu0 0.0
      %5747 = vmatmul.mubr.f32.gmra.mrb[0].mxu0 %v5635
      %v5748 = vpop.f32.mrb[0].mxu0
      %v5749 = vadd.f32 0.0, %v5748
      %v5750 = vpop.f32.mrb[0].mxu0
      %v5751 = vadd.f32 0.0, %v5750
      %5752 = vmatprep.mubr.f32.mxu0 0.0
      %5753 = vmatmul.mubr.f32.gmra.mrb[0].mxu0 %v5638
      %v5754 = vpop.f32.mrb[0].mxu0
      %v5755 = vadd.f32 0.0, %v5754
      %v5756 = vpop.f32.mrb[0].mxu0
      %v5757 = vadd.f32 0.0, %v5756
      %5758 = vmatprep.mubr.f32.mxu0 0.0
      %5759 = vmatmul.mubr.f32.gmra.mrb[0].mxu0 %v5641
      %v5760 = vpop.f32.mrb[0].mxu0
      %v5761 = vadd.f32 0.0, %v5760
      %v5762 = vpop.f32.mrb[0].mxu0
      %v5763 = vadd.f32 0.0, %v5762
      %5764 = vmatprep.mubr.f32.mxu0 0.0
      %5765 = vmatmul.mubr.f32.gmra.mrb[0].mxu0 %v5644
      %v5766 = vpop.f32.mrb[0].mxu0
      %v5767 = vadd.f32 0.0, %v5766
      %v5768 = vpop.f32.mrb[0].mxu0
      %v5769 = vadd.f32 0.0, %v5768
      %5770 = vmatprep.mubr.f32.mxu0 0.0
      %5771 = vmatmul.mubr.f32.gmra.mrb[0].mxu0 %v5647
      %v5772 = vpop.f32.mrb[0].mxu0
      %v5773 = vadd.f32 0.0, %v5772
      %v5774 = vpop.f32.mrb[0].mxu0
      %v5775 = vadd.f32 0.0, %v5774
      %5776 = vmatprep.mubr.f32.mxu0 0.0
      %5777 = vmatmul.mubr.f32.gmra.mrb[0].mxu0 %v5650
      %v5778 = vpop.f32.mrb[0].mxu0
      %v5779 = vadd.f32 0.0, %v5778
      %v5780 = vpop.f32.mrb[0].mxu0
      %v5781 = vadd.f32 0.0, %v5780
      %5782 = vmatprep.mubr.f32.mxu0 0.0
      %5783 = vmatmul.mubr.f32.gmra.mrb[0].mxu0 %v5653
      %v5784 = vpop.f32.mrb[0].mxu0
      %v5785 = vadd.f32 0.0, %v5784
      %v5786 = vpop.f32.mrb[0].mxu0
      %v5787 = vadd.f32 0.0, %v5786
      %5788 = vmatprep.mubr.f32.mxu0 0.0
      %5789 = vmatmul.mubr.f32.gmra.mrb[0].mxu0 %v5656
      %v5790 = vpop.f32.mrb[0].mxu0
      %v5791 = vadd.f32 0.0, %v5790
      %v5792 = vpop.f32.mrb[0].mxu0
      %v5793 = vadd.f32 0.0, %v5792
      %5794 = vdwg.mxu0
      %5795 = vmatprep.subr.mxu0 %v2211
      %5796 = vmatpush1.msra.mxu0 %v2210
      %5797 = vmatprep.subr.mxu0 %v2219
      %5798 = vmatpush1.msra.mxu0 %v2218
      %5799 = vmatprep.subr.mxu0 0.0
      %5800 = vmatpush1.msra.mxu0 0.0
      %5801 = vmatprep.subr.mxu0 0.0
      %5802 = vmatpush1.msra.mxu0 0.0
      %5803 = vmatprep.subr.mxu0 0.0
      %5804 = vmatpush1.msra.mxu0 0.0
      %5805 = vmatprep.subr.mxu0 0.0
      %5806 = vmatpush1.msra.mxu0 0.0
      %5807 = vmatprep.subr.mxu0 0.0
      %5808 = vmatpush1.msra.mxu0 0.0
      %5809 = vmatprep.subr.mxu0 0.0
      %5810 = vmatpush1.msra.mxu0 0.0
      %5811 = vmatprep.subr.mxu0 0.0
      %5812 = vmatpush1.msra.mxu0 0.0
      %5813 = vmatprep.subr.mxu0 0.0
      %5814 = vmatpush1.msra.mxu0 0.0
      %5815 = vmatprep.subr.mxu0 0.0
      %5816 = vmatpush1.msra.mxu0 0.0
      %5817 = vmatprep.subr.mxu0 0.0
      %5818 = vmatpush1.msra.mxu0 0.0
      %5819 = vmatprep.subr.mxu0 0.0
      %5820 = vmatpush1.msra.mxu0 0.0
      %5821 = vmatprep.subr.mxu0 0.0
      %5822 = vmatpush1.msra.mxu0 0.0
      %5823 = vmatprep.subr.mxu0 0.0
      %5824 = vmatpush1.msra.mxu0 0.0
      %5825 = vmatprep.subr.mxu0 0.0
      %5826 = vmatpush1.msra.mxu0 0.0
      %5827 = vmatprep.subr.mxu0 0.0
      %5828 = vmatpush1.msra.mxu0 0.0
      %5829 = vmatprep.subr.mxu0 0.0
      %5830 = vmatpush1.msra.mxu0 0.0
      %5831 = vmatprep.subr.mxu0 0.0
      %5832 = vmatpush1.msra.mxu0 0.0
      %5833 = vmatprep.subr.mxu0 0.0
      %5834 = vmatpush1.msra.mxu0 0.0
      %5835 = vmatprep.subr.mxu0 0.0
      %5836 = vmatpush1.msra.mxu0 0.0
      %5837 = vmatprep.subr.mxu0 0.0
      %5838 = vmatpush1.msra.mxu0 0.0
      %5839 = vmatprep.subr.mxu0 0.0
      %5840 = vmatpush1.msra.mxu0 0.0
      %5841 = vmatprep.subr.mxu0 0.0
      %5842 = vmatpush1.msra.mxu0 0.0
      %5843 = vmatprep.subr.mxu0 0.0
      %5844 = vmatpush1.msra.mxu0 0.0
      %5845 = vmatprep.subr.mxu0 0.0
      %5846 = vmatpush1.msra.mxu0 0.0
      %5847 = vmatprep.subr.mxu0 0.0
      %5848 = vmatpush1.msra.mxu0 0.0
      %5849 = vmatprep.subr.mxu0 0.0
      %5850 = vmatpush1.msra.mxu0 0.0
      %5851 = vmatprep.subr.mxu0 0.0
      %5852 = vmatpush1.msra.mxu0 0.0
      %5853 = vmatprep.subr.mxu0 0.0
      %5854 = vmatpush1.msra.mxu0 0.0
      %5855 = vmatprep.subr.mxu0 0.0
      %5856 = vmatpush1.msra.mxu0 0.0
      %5857 = vmatprep.subr.mxu0 0.0
      %5858 = vmatpush1.msra.mxu0 0.0
      %5859 = vmatprep.mubr.f32.mxu0 0.0
      %5860 = vmatmul.mubr.f32.gmra.mrb[0].mxu0 %v5623
      %v5861 = vpop.f32.mrb[0].mxu0
      %v5862 = vadd.f32 0.0, %v5861
      %v5863 = vpop.f32.mrb[0].mxu0
      %v5864 = vadd.f32 0.0, %v5863
      %5865 = vmatprep.mubr.f32.mxu0 0.0
      %5866 = vmatmul.mubr.f32.gmra.mrb[0].mxu0 %v5626
      %v5867 = vpop.f32.mrb[0].mxu0
      %v5868 = vadd.f32 0.0, %v5867
      %v5869 = vpop.f32.mrb[0].mxu0
      %v5870 = vadd.f32 0.0, %v5869
      %5871 = vmatprep.mubr.f32.mxu0 0.0
      %5872 = vmatmul.mubr.f32.gmra.mrb[0].mxu0 %v5629
      %v5873 = vpop.f32.mrb[0].mxu0
      %v5874 = vadd.f32 0.0, %v5873
      %v5875 = vpop.f32.mrb[0].mxu0
      %v5876 = vadd.f32 0.0, %v5875
      %5877 = vmatprep.mubr.f32.mxu0 0.0
      %5878 = vmatmul.mubr.f32.gmra.mrb[0].mxu0 %v5632
      %v5879 = vpop.f32.mrb[0].mxu0
      %v5880 = vadd.f32 0.0, %v5879
      %v5881 = vpop.f32.mrb[0].mxu0
      %v5882 = vadd.f32 0.0, %v5881
      %5883 = vmatprep.mubr.f32.mxu0 0.0
      %5884 = vmatmul.mubr.f32.gmra.mrb[0].mxu0 %v5635
      %v5885 = vpop.f32.mrb[0].mxu0
      %v5886 = vadd.f32 0.0, %v5885
      %v5887 = vpop.f32.mrb[0].mxu0
      %v5888 = vadd.f32 0.0, %v5887
      %5889 = vmatprep.mubr.f32.mxu0 0.0
      %5890 = vmatmul.mubr.f32.gmra.mrb[0].mxu0 %v5638
      %v5891 = vpop.f32.mrb[0].mxu0
      %v5892 = vadd.f32 0.0, %v5891
      %v5893 = vpop.f32.mrb[0].mxu0
      %v5894 = vadd.f32 0.0, %v5893
      %5895 = vmatprep.mubr.f32.mxu0 0.0
      %5896 = vmatmul.mubr.f32.gmra.mrb[0].mxu0 %v5641
      %v5897 = vpop.f32.mrb[0].mxu0
      %v5898 = vadd.f32 0.0, %v5897
      %v5899 = vpop.f32.mrb[0].mxu0
      %v5900 = vadd.f32 0.0, %v5899
      %5901 = vmatprep.mubr.f32.mxu0 0.0
      %5902 = vmatmul.mubr.f32.gmra.mrb[0].mxu0 %v5644
      %v5903 = vpop.f32.mrb[0].mxu0
      %v5904 = vadd.f32 0.0, %v5903
      %v5905 = vpop.f32.mrb[0].mxu0
      %v5906 = vadd.f32 0.0, %v5905
      %5907 = vmatprep.mubr.f32.mxu0 0.0
      %5908 = vmatmul.mubr.f32.gmra.mrb[0].mxu0 %v5647
      %v5909 = vpop.f32.mrb[0].mxu0
      %v5910 = vadd.f32 0.0, %v5909
      %v5911 = vpop.f32.mrb[0].mxu0
      %v5912 = vadd.f32 0.0, %v5911
      %5913 = vmatprep.mubr.f32.mxu0 0.0
      %5914 = vmatmul.mubr.f32.gmra.mrb[0].mxu0 %v5650
      %v5915 = vpop.f32.mrb[0].mxu0
      %v5916 = vadd.f32 0.0, %v5915
      %v5917 = vpop.f32.mrb[0].mxu0
      %v5918 = vadd.f32 0.0, %v5917
      %5919 = vmatprep.mubr.f32.mxu0 0.0
      %5920 = vmatmul.mubr.f32.gmra.mrb[0].mxu0 %v5653
      %v5921 = vpop.f32.mrb[0].mxu0
      %v5922 = vadd.f32 0.0, %v5921
      %v5923 = vpop.f32.mrb[0].mxu0
      %v5924 = vadd.f32 0.0, %v5923
      %5925 = vmatprep.mubr.f32.mxu0 0.0
      %5926 = vmatmul.mubr.f32.gmra.mrb[0].mxu0 %v5656
      %v5927 = vpop.f32.mrb[0].mxu0
      %v5928 = vadd.f32 0.0, %v5927
      %v5929 = vpop.f32.mrb[0].mxu0
      %v5930 = vadd.f32 0.0, %v5929
      %5931 = vdwg.mxu0
      %5932 = vmatprep.subr.mxu0 %v2213
      %5933 = vmatpush1.msra.mxu0 %v2212
      %5934 = vmatprep.subr.mxu0 %v2221
      %5935 = vmatpush1.msra.mxu0 %v2220
      %5936 = vmatprep.subr.mxu0 0.0
      %5937 = vmatpush1.msra.mxu0 0.0
      %5938 = vmatprep.subr.mxu0 0.0
      %5939 = vmatpush1.msra.mxu0 0.0
      %5940 = vmatprep.subr.mxu0 0.0
      %5941 = vmatpush1.msra.mxu0 0.0
      %5942 = vmatprep.subr.mxu0 0.0
      %5943 = vmatpush1.msra.mxu0 0.0
      %5944 = vmatprep.subr.mxu0 0.0
      %5945 = vmatpush1.msra.mxu0 0.0
      %5946 = vmatprep.subr.mxu0 0.0
      %5947 = vmatpush1.msra.mxu0 0.0
      %5948 = vmatprep.subr.mxu0 0.0
      %5949 = vmatpush1.msra.mxu0 0.0
      %5950 = vmatprep.subr.mxu0 0.0
      %5951 = vmatpush1.msra.mxu0 0.0
      %5952 = vmatprep.subr.mxu0 0.0
      %5953 = vmatpush1.msra.mxu0 0.0
      %5954 = vmatprep.subr.mxu0 0.0
      %5955 = vmatpush1.msra.mxu0 0.0
      %5956 = vmatprep.subr.mxu0 0.0
      %5957 = vmatpush1.msra.mxu0 0.0
      %5958 = vmatprep.subr.mxu0 0.0
      %5959 = vmatpush1.msra.mxu0 0.0
      %5960 = vmatprep.subr.mxu0 0.0
      %5961 = vmatpush1.msra.mxu0 0.0
      %5962 = vmatprep.subr.mxu0 0.0
      %5963 = vmatpush1.msra.mxu0 0.0
      %5964 = vmatprep.subr.mxu0 0.0
      %5965 = vmatpush1.msra.mxu0 0.0
      %5966 = vmatprep.subr.mxu0 0.0
      %5967 = vmatpush1.msra.mxu0 0.0
      %5968 = vmatprep.subr.mxu0 0.0
      %5969 = vmatpush1.msra.mxu0 0.0
      %5970 = vmatprep.subr.mxu0 0.0
      %5971 = vmatpush1.msra.mxu0 0.0
      %5972 = vmatprep.subr.mxu0 0.0
      %5973 = vmatpush1.msra.mxu0 0.0
      %5974 = vmatprep.subr.mxu0 0.0
      %5975 = vmatpush1.msra.mxu0 0.0
      %5976 = vmatprep.subr.mxu0 0.0
      %5977 = vmatpush1.msra.mxu0 0.0
      %5978 = vmatprep.subr.mxu0 0.0
      %5979 = vmatpush1.msra.mxu0 0.0
      %5980 = vmatprep.subr.mxu0 0.0
      %5981 = vmatpush1.msra.mxu0 0.0
      %5982 = vmatprep.subr.mxu0 0.0
      %5983 = vmatpush1.msra.mxu0 0.0
      %5984 = vmatprep.subr.mxu0 0.0
      %5985 = vmatpush1.msra.mxu0 0.0
      %5986 = vmatprep.subr.mxu0 0.0
      %5987 = vmatpush1.msra.mxu0 0.0
      %5988 = vmatprep.subr.mxu0 0.0
      %5989 = vmatpush1.msra.mxu0 0.0
      %5990 = vmatprep.subr.mxu0 0.0
      %5991 = vmatpush1.msra.mxu0 0.0
      %5992 = vmatprep.subr.mxu0 0.0
      %5993 = vmatpush1.msra.mxu0 0.0
      %5994 = vmatprep.subr.mxu0 0.0
      %5995 = vmatpush1.msra.mxu0 0.0
      %5996 = vmatprep.mubr.f32.mxu0 0.0
      %5997 = vmatmul.mubr.f32.gmra.mrb[0].mxu0 %v5623
      %v5998 = vpop.f32.mrb[0].mxu0
      %v5999 = vadd.f32 0.0, %v5998
      %v6000 = vpop.f32.mrb[0].mxu0
      %v6001 = vadd.f32 0.0, %v6000
      %6002 = vmatprep.mubr.f32.mxu0 0.0
      %6003 = vmatmul.mubr.f32.gmra.mrb[0].mxu0 %v5626
      %v6004 = vpop.f32.mrb[0].mxu0
      %v6005 = vadd.f32 0.0, %v6004
      %v6006 = vpop.f32.mrb[0].mxu0
      %v6007 = vadd.f32 0.0, %v6006
      %6008 = vmatprep.mubr.f32.mxu0 0.0
      %6009 = vmatmul.mubr.f32.gmra.mrb[0].mxu0 %v5629
      %v6010 = vpop.f32.mrb[0].mxu0
      %v6011 = vadd.f32 0.0, %v6010
      %v6012 = vpop.f32.mrb[0].mxu0
      %v6013 = vadd.f32 0.0, %v6012
      %6014 = vmatprep.mubr.f32.mxu0 0.0
      %6015 = vmatmul.mubr.f32.gmra.mrb[0].mxu0 %v5632
      %v6016 = vpop.f32.mrb[0].mxu0
      %v6017 = vadd.f32 0.0, %v6016
      %v6018 = vpop.f32.mrb[0].mxu0
      %v6019 = vadd.f32 0.0, %v6018
      %6020 = vmatprep.mubr.f32.mxu0 0.0
      %6021 = vmatmul.mubr.f32.gmra.mrb[0].mxu0 %v5635
      %v6022 = vpop.f32.mrb[0].mxu0
      %v6023 = vadd.f32 0.0, %v6022
      %v6024 = vpop.f32.mrb[0].mxu0
      %v6025 = vadd.f32 0.0, %v6024
      %6026 = vmatprep.mubr.f32.mxu0 0.0
      %6027 = vmatmul.mubr.f32.gmra.mrb[0].mxu0 %v5638
      %v6028 = vpop.f32.mrb[0].mxu0
      %v6029 = vadd.f32 0.0, %v6028
      %v6030 = vpop.f32.mrb[0].mxu0
      %v6031 = vadd.f32 0.0, %v6030
      %6032 = vmatprep.mubr.f32.mxu0 0.0
      %6033 = vmatmul.mubr.f32.gmra.mrb[0].mxu0 %v5641
      %v6034 = vpop.f32.mrb[0].mxu0
      %v6035 = vadd.f32 0.0, %v6034
      %v6036 = vpop.f32.mrb[0].mxu0
      %v6037 = vadd.f32 0.0, %v6036
      %6038 = vmatprep.mubr.f32.mxu0 0.0
      %6039 = vmatmul.mubr.f32.gmra.mrb[0].mxu0 %v5644
      %v6040 = vpop.f32.mrb[0].mxu0
      %v6041 = vadd.f32 0.0, %v6040
      %v6042 = vpop.f32.mrb[0].mxu0
      %v6043 = vadd.f32 0.0, %v6042
      %6044 = vmatprep.mubr.f32.mxu0 0.0
      %6045 = vmatmul.mubr.f32.gmra.mrb[0].mxu0 %v5647
      %v6046 = vpop.f32.mrb[0].mxu0
      %v6047 = vadd.f32 0.0, %v6046
      %v6048 = vpop.f32.mrb[0].mxu0
      %v6049 = vadd.f32 0.0, %v6048
      %6050 = vmatprep.mubr.f32.mxu0 0.0
      %6051 = vmatmul.mubr.f32.gmra.mrb[0].mxu0 %v5650
      %v6052 = vpop.f32.mrb[0].mxu0
      %v6053 = vadd.f32 0.0, %v6052
      %v6054 = vpop.f32.mrb[0].mxu0
      %v6055 = vadd.f32 0.0, %v6054
      %6056 = vmatprep.mubr.f32.mxu0 0.0
      %6057 = vmatmul.mubr.f32.gmra.mrb[0].mxu0 %v5653
      %v6058 = vpop.f32.mrb[0].mxu0
      %v6059 = vadd.f32 0.0, %v6058
      %v6060 = vpop.f32.mrb[0].mxu0
      %v6061 = vadd.f32 0.0, %v6060
      %6062 = vmatprep.mubr.f32.mxu0 0.0
      %6063 = vmatmul.mubr.f32.gmra.mrb[0].mxu0 %v5656
      %v6064 = vpop.f32.mrb[0].mxu0
      %v6065 = vadd.f32 0.0, %v6064
      %v6066 = vpop.f32.mrb[0].mxu0
      %v6067 = vadd.f32 0.0, %v6066
      %6068 = vdwg.mxu0
      %6069 = vmatprep.subr.mxu0 %v2215
      %6070 = vmatpush1.msra.mxu0 %v2214
      %6071 = vmatprep.subr.mxu0 %v2223
      %6072 = vmatpush1.msra.mxu0 %v2222
      %6073 = vmatprep.subr.mxu0 0.0
      %6074 = vmatpush1.msra.mxu0 0.0
      %6075 = vmatprep.subr.mxu0 0.0
      %6076 = vmatpush1.msra.mxu0 0.0
      %6077 = vmatprep.subr.mxu0 0.0
      %6078 = vmatpush1.msra.mxu0 0.0
      %6079 = vmatprep.subr.mxu0 0.0
      %6080 = vmatpush1.msra.mxu0 0.0
      %6081 = vmatprep.subr.mxu0 0.0
      %6082 = vmatpush1.msra.mxu0 0.0
      %6083 = vmatprep.subr.mxu0 0.0
      %6084 = vmatpush1.msra.mxu0 0.0
      %6085 = vmatprep.subr.mxu0 0.0
      %6086 = vmatpush1.msra.mxu0 0.0
      %6087 = vmatprep.subr.mxu0 0.0
      %6088 = vmatpush1.msra.mxu0 0.0
      %6089 = vmatprep.subr.mxu0 0.0
      %6090 = vmatpush1.msra.mxu0 0.0
      %6091 = vmatprep.subr.mxu0 0.0
      %6092 = vmatpush1.msra.mxu0 0.0
      %6093 = vmatprep.subr.mxu0 0.0
      %6094 = vmatpush1.msra.mxu0 0.0
      %6095 = vmatprep.subr.mxu0 0.0
      %6096 = vmatpush1.msra.mxu0 0.0
      %6097 = vmatprep.subr.mxu0 0.0
      %6098 = vmatpush1.msra.mxu0 0.0
      %6099 = vmatprep.subr.mxu0 0.0
      %6100 = vmatpush1.msra.mxu0 0.0
      %6101 = vmatprep.subr.mxu0 0.0
      %6102 = vmatpush1.msra.mxu0 0.0
      %6103 = vmatprep.subr.mxu0 0.0
      %6104 = vmatpush1.msra.mxu0 0.0
      %6105 = vmatprep.subr.mxu0 0.0
      %6106 = vmatpush1.msra.mxu0 0.0
      %6107 = vmatprep.subr.mxu0 0.0
      %6108 = vmatpush1.msra.mxu0 0.0
      %6109 = vmatprep.subr.mxu0 0.0
      %6110 = vmatpush1.msra.mxu0 0.0
      %6111 = vmatprep.subr.mxu0 0.0
      %6112 = vmatpush1.msra.mxu0 0.0
      %6113 = vmatprep.subr.mxu0 0.0
      %6114 = vmatpush1.msra.mxu0 0.0
      %6115 = vmatprep.subr.mxu0 0.0
      %6116 = vmatpush1.msra.mxu0 0.0
      %6117 = vmatprep.subr.mxu0 0.0
      %6118 = vmatpush1.msra.mxu0 0.0
      %6119 = vmatprep.subr.mxu0 0.0
      %6120 = vmatpush1.msra.mxu0 0.0
      %6121 = vmatprep.subr.mxu0 0.0
      %6122 = vmatpush1.msra.mxu0 0.0
      %6123 = vmatprep.subr.mxu0 0.0
      %6124 = vmatpush1.msra.mxu0 0.0
      %6125 = vmatprep.subr.mxu0 0.0
      %6126 = vmatpush1.msra.mxu0 0.0
      %6127 = vmatprep.subr.mxu0 0.0
      %6128 = vmatpush1.msra.mxu0 0.0
      %6129 = vmatprep.subr.mxu0 0.0
      %6130 = vmatpush1.msra.mxu0 0.0
      %6131 = vmatprep.subr.mxu0 0.0
      %6132 = vmatpush1.msra.mxu0 0.0
      %6133 = vmatprep.mubr.f32.mxu0 0.0
      %6134 = vmatmul.mubr.f32.gmra.mrb[0].mxu0 %v5623
      %v6135 = vpop.f32.mrb[0].mxu0
      %v6136 = vadd.f32 0.0, %v6135
      %v6137 = vpop.f32.mrb[0].mxu0
      %v6138 = vadd.f32 0.0, %v6137
      %6139 = vmatprep.mubr.f32.mxu0 0.0
      %6140 = vmatmul.mubr.f32.gmra.mrb[0].mxu0 %v5626
      %v6141 = vpop.f32.mrb[0].mxu0
      %v6142 = vadd.f32 0.0, %v6141
      %v6143 = vpop.f32.mrb[0].mxu0
      %v6144 = vadd.f32 0.0, %v6143
      %6145 = vmatprep.mubr.f32.mxu0 0.0
      %6146 = vmatmul.mubr.f32.gmra.mrb[0].mxu0 %v5629
      %v6147 = vpop.f32.mrb[0].mxu0
      %v6148 = vadd.f32 0.0, %v6147
      %v6149 = vpop.f32.mrb[0].mxu0
      %v6150 = vadd.f32 0.0, %v6149
      %6151 = vmatprep.mubr.f32.mxu0 0.0
      %6152 = vmatmul.mubr.f32.gmra.mrb[0].mxu0 %v5632
      %v6153 = vpop.f32.mrb[0].mxu0
      %v6154 = vadd.f32 0.0, %v6153
      %v6155 = vpop.f32.mrb[0].mxu0
      %v6156 = vadd.f32 0.0, %v6155
      %6157 = vmatprep.mubr.f32.mxu0 0.0
      %6158 = vmatmul.mubr.f32.gmra.mrb[0].mxu0 %v5635
      %v6159 = vpop.f32.mrb[0].mxu0
      %v6160 = vadd.f32 0.0, %v6159
      %v6161 = vpop.f32.mrb[0].mxu0
      %v6162 = vadd.f32 0.0, %v6161
      %6163 = vmatprep.mubr.f32.mxu0 0.0
      %6164 = vmatmul.mubr.f32.gmra.mrb[0].mxu0 %v5638
      %v6165 = vpop.f32.mrb[0].mxu0
      %v6166 = vadd.f32 0.0, %v6165
      %v6167 = vpop.f32.mrb[0].mxu0
      %v6168 = vadd.f32 0.0, %v6167
      %6169 = vmatprep.mubr.f32.mxu0 0.0
      %6170 = vmatmul.mubr.f32.gmra.mrb[0].mxu0 %v5641
      %v6171 = vpop.f32.mrb[0].mxu0
      %v6172 = vadd.f32 0.0, %v6171
      %v6173 = vpop.f32.mrb[0].mxu0
      %v6174 = vadd.f32 0.0, %v6173
      %6175 = vmatprep.mubr.f32.mxu0 0.0
      %6176 = vmatmul.mubr.f32.gmra.mrb[0].mxu0 %v5644
      %v6177 = vpop.f32.mrb[0].mxu0
      %v6178 = vadd.f32 0.0, %v6177
      %v6179 = vpop.f32.mrb[0].mxu0
      %v6180 = vadd.f32 0.0, %v6179
      %6181 = vmatprep.mubr.f32.mxu0 0.0
      %6182 = vmatmul.mubr.f32.gmra.mrb[0].mxu0 %v5647
      %v6183 = vpop.f32.mrb[0].mxu0
      %v6184 = vadd.f32 0.0, %v6183
      %v6185 = vpop.f32.mrb[0].mxu0
      %v6186 = vadd.f32 0.0, %v6185
      %6187 = vmatprep.mubr.f32.mxu0 0.0
      %6188 = vmatmul.mubr.f32.gmra.mrb[0].mxu0 %v5650
      %v6189 = vpop.f32.mrb[0].mxu0
      %v6190 = vadd.f32 0.0, %v6189
      %v6191 = vpop.f32.mrb[0].mxu0
      %v6192 = vadd.f32 0.0, %v6191
      %6193 = vmatprep.mubr.f32.mxu0 0.0
      %6194 = vmatmul.mubr.f32.gmra.mrb[0].mxu0 %v5653
      %v6195 = vpop.f32.mrb[0].mxu0
      %v6196 = vadd.f32 0.0, %v6195
      %v6197 = vpop.f32.mrb[0].mxu0
      %v6198 = vadd.f32 0.0, %v6197
      %6199 = vmatprep.mubr.f32.mxu0 0.0
      %6200 = vmatmul.mubr.f32.gmra.mrb[0].mxu0 %v5656
      %v6201 = vpop.f32.mrb[0].mxu0
      %v6202 = vadd.f32 0.0, %v6201
      %v6203 = vpop.f32.mrb[0].mxu0
      %v6204 = vadd.f32 0.0, %v6203
      %6205 = vdwg.mxu0
      %v6206 = vmul.f32 %v5128, %v5725
      %v6207 = vmul.f32 %v5130, %v5727
      %v6208 = vmul.f32 %v5265, %v5862
      %v6209 = vmul.f32 %v5267, %v5864
      %v6210 = vmul.f32 %v5402, %v5999
      %v6211 = vmul.f32 %v5404, %v6001
      %v6212 = vmul.f32 %v5539, %v6136
      %v6213 = vmul.f32 %v5541, %v6138
      %v6214 = vmul.f32 %v5134, %v5731
      %v6215 = vmul.f32 %v5136, %v5733
      %v6216 = vmul.f32 %v5271, %v5868
      %v6217 = vmul.f32 %v5273, %v5870
      %v6218 = vmul.f32 %v5408, %v6005
      %v6219 = vmul.f32 %v5410, %v6007
      %v6220 = vmul.f32 %v5545, %v6142
      %v6221 = vmul.f32 %v5547, %v6144
      %v6222 = vmul.f32 %v5140, %v5737
      %v6223 = vmul.f32 %v5142, %v5739
      %v6224 = vmul.f32 %v5277, %v5874
      %v6225 = vmul.f32 %v5279, %v5876
      %v6226 = vmul.f32 %v5414, %v6011
      %v6227 = vmul.f32 %v5416, %v6013
      %v6228 = vmul.f32 %v5551, %v6148
      %v6229 = vmul.f32 %v5553, %v6150
      %v6230 = vmul.f32 %v5146, %v5743
      %v6231 = vmul.f32 %v5148, %v5745
      %v6232 = vmul.f32 %v5283, %v5880
      %v6233 = vmul.f32 %v5285, %v5882
      %v6234 = vmul.f32 %v5420, %v6017
      %v6235 = vmul.f32 %v5422, %v6019
      %v6236 = vmul.f32 %v5557, %v6154
      %v6237 = vmul.f32 %v5559, %v6156
      %v6238 = vmul.f32 %v5152, %v5749
      %v6239 = vmul.f32 %v5154, %v5751
      %v6240 = vmul.f32 %v5289, %v5886
      %v6241 = vmul.f32 %v5291, %v5888
      %v6242 = vmul.f32 %v5426, %v6023
      %v6243 = vmul.f32 %v5428, %v6025
      %v6244 = vmul.f32 %v5563, %v6160
      %v6245 = vmul.f32 %v5565, %v6162
      %v6246 = vmul.f32 %v5158, %v5755
      %v6247 = vmul.f32 %v5160, %v5757
      %v6248 = vmul.f32 %v5295, %v5892
      %v6249 = vmul.f32 %v5297, %v5894
      %v6250 = vmul.f32 %v5432, %v6029
      %v6251 = vmul.f32 %v5434, %v6031
      %v6252 = vmul.f32 %v5569, %v6166
      %v6253 = vmul.f32 %v5571, %v6168
      %v6254 = vmul.f32 %v5164, %v5761
      %v6255 = vmul.f32 %v5166, %v5763
      %v6256 = vmul.f32 %v5301, %v5898
      %v6257 = vmul.f32 %v5303, %v5900
      %v6258 = vmul.f32 %v5438, %v6035
      %v6259 = vmul.f32 %v5440, %v6037
      %v6260 = vmul.f32 %v5575, %v6172
      %v6261 = vmul.f32 %v5577, %v6174
      %v6262 = vmul.f32 %v5170, %v5767
      %v6263 = vmul.f32 %v5172, %v5769
      %v6264 = vmul.f32 %v5307, %v5904
      %v6265 = vmul.f32 %v5309, %v5906
      %v6266 = vmul.f32 %v5444, %v6041
      %v6267 = vmul.f32 %v5446, %v6043
      %v6268 = vmul.f32 %v5581, %v6178
      %v6269 = vmul.f32 %v5583, %v6180
      %v6270 = vmul.f32 %v5176, %v5773
      %v6271 = vmul.f32 %v5178, %v5775
      %v6272 = vmul.f32 %v5313, %v5910
      %v6273 = vmul.f32 %v5315, %v5912
      %v6274 = vmul.f32 %v5450, %v6047
      %v6275 = vmul.f32 %v5452, %v6049
      %v6276 = vmul.f32 %v5587, %v6184
      %v6277 = vmul.f32 %v5589, %v6186
      %v6278 = vmul.f32 %v5182, %v5779
      %v6279 = vmul.f32 %v5184, %v5781
      %v6280 = vmul.f32 %v5319, %v5916
      %v6281 = vmul.f32 %v5321, %v5918
      %v6282 = vmul.f32 %v5456, %v6053
      %v6283 = vmul.f32 %v5458, %v6055
      %v6284 = vmul.f32 %v5593, %v6190
      %v6285 = vmul.f32 %v5595, %v6192
      %v6286 = vmul.f32 %v5188, %v5785
      %v6287 = vmul.f32 %v5190, %v5787
      %v6288 = vmul.f32 %v5325, %v5922
      %v6289 = vmul.f32 %v5327, %v5924
      %v6290 = vmul.f32 %v5462, %v6059
      %v6291 = vmul.f32 %v5464, %v6061
      %v6292 = vmul.f32 %v5599, %v6196
      %v6293 = vmul.f32 %v5601, %v6198
      %v6294 = vmul.f32 %v5194, %v5791
      %v6295 = vmul.f32 %v5196, %v5793
      %v6296 = vmul.f32 %v5331, %v5928
      %v6297 = vmul.f32 %v5333, %v5930
      %v6298 = vmul.f32 %v5468, %v6065
      %v6299 = vmul.f32 %v5470, %v6067
      %v6300 = vmul.f32 %v5605, %v6202
      %v6301 = vmul.f32 %v5607, %v6204
      %v6302 = vadd.f32 %v4916, %v6206
      %v6303 = vadd.f32 %v4917, %v6207
      %v6304 = vadd.f32 %v4918, %v6208
      %v6305 = vadd.f32 %v4919, %v6209
      %v6306 = vadd.f32 %v4920, %v6210
      %v6307 = vadd.f32 %v4921, %v6211
      %v6308 = vadd.f32 %v4922, %v6212
      %v6309 = vadd.f32 %v4923, %v6213
      %v6310 = vadd.f32 %v4924, %v6214
      %v6311 = vadd.f32 %v4925, %v6215
      %v6312 = vadd.f32 %v4926, %v6216
      %v6313 = vadd.f32 %v4927, %v6217
      %v6314 = vadd.f32 %v4928, %v6218
      %v6315 = vadd.f32 %v4929, %v6219
      %v6316 = vadd.f32 %v4930, %v6220
      %v6317 = vadd.f32 %v4931, %v6221
      %v6318 = vadd.f32 %v4932, %v6222
      %v6319 = vadd.f32 %v4933, %v6223
      %v6320 = vadd.f32 %v4934, %v6224
      %v6321 = vadd.f32 %v4935, %v6225
      %v6322 = vadd.f32 %v4936, %v6226
      %v6323 = vadd.f32 %v4937, %v6227
      %v6324 = vadd.f32 %v4938, %v6228
      %v6325 = vadd.f32 %v4939, %v6229
      %v6326 = vadd.f32 %v4940, %v6230
      %v6327 = vadd.f32 %v4941, %v6231
      %v6328 = vadd.f32 %v4942, %v6232
      %v6329 = vadd.f32 %v4943, %v6233
      %v6330 = vadd.f32 %v4944, %v6234
      %v6331 = vadd.f32 %v4945, %v6235
      %v6332 = vadd.f32 %v4946, %v6236
      %v6333 = vadd.f32 %v4947, %v6237
      %v6334 = vadd.f32 %v4948, %v6238
      %v6335 = vadd.f32 %v4949, %v6239
      %v6336 = vadd.f32 %v4950, %v6240
      %v6337 = vadd.f32 %v4951, %v6241
      %v6338 = vadd.f32 %v4952, %v6242
      %v6339 = vadd.f32 %v4953, %v6243
      %v6340 = vadd.f32 %v4954, %v6244
      %v6341 = vadd.f32 %v4955, %v6245
      %v6342 = vadd.f32 %v4956, %v6246
      %v6343 = vadd.f32 %v4957, %v6247
      %v6344 = vadd.f32 %v4958, %v6248
      %v6345 = vadd.f32 %v4959, %v6249
      %v6346 = vadd.f32 %v4960, %v6250
      %v6347 = vadd.f32 %v4961, %v6251
      %v6348 = vadd.f32 %v4962, %v6252
      %v6349 = vadd.f32 %v4963, %v6253
      %v6350 = vadd.f32 %v4964, %v6254
      %v6351 = vadd.f32 %v4965, %v6255
      %v6352 = vadd.f32 %v4966, %v6256
      %v6353 = vadd.f32 %v4967, %v6257
      %v6354 = vadd.f32 %v4968, %v6258
      %v6355 = vadd.f32 %v4969, %v6259
      %v6356 = vadd.f32 %v4970, %v6260
      %v6357 = vadd.f32 %v4971, %v6261
      %v6358 = vadd.f32 %v4972, %v6262
      %v6359 = vadd.f32 %v4973, %v6263
      %v6360 = vadd.f32 %v4974, %v6264
      %v6361 = vadd.f32 %v4975, %v6265
      %v6362 = vadd.f32 %v4976, %v6266
      %v6363 = vadd.f32 %v4977, %v6267
      %v6364 = vadd.f32 %v4978, %v6268
      %v6365 = vadd.f32 %v4979, %v6269
      %v6366 = vadd.f32 %v4980, %v6270
      %v6367 = vadd.f32 %v4981, %v6271
      %v6368 = vadd.f32 %v4982, %v6272
      %v6369 = vadd.f32 %v4983, %v6273
      %v6370 = vadd.f32 %v4984, %v6274
      %v6371 = vadd.f32 %v4985, %v6275
      %v6372 = vadd.f32 %v4986, %v6276
      %v6373 = vadd.f32 %v4987, %v6277
      %v6374 = vadd.f32 %v4988, %v6278
      %v6375 = vadd.f32 %v4989, %v6279
      %v6376 = vadd.f32 %v4990, %v6280
      %v6377 = vadd.f32 %v4991, %v6281
      %v6378 = vadd.f32 %v4992, %v6282
      %v6379 = vadd.f32 %v4993, %v6283
      %v6380 = vadd.f32 %v4994, %v6284
      %v6381 = vadd.f32 %v4995, %v6285
      %v6382 = vadd.f32 %v4996, %v6286
      %v6383 = vadd.f32 %v4997, %v6287
      %v6384 = vadd.f32 %v4998, %v6288
      %v6385 = vadd.f32 %v4999, %v6289
      %v6386 = vadd.f32 %v5000, %v6290
      %v6387 = vadd.f32 %v5001, %v6291
      %v6388 = vadd.f32 %v5002, %v6292
      %v6389 = vadd.f32 %v5003, %v6293
      %v6390 = vadd.f32 %v5004, %v6294
      %v6391 = vadd.f32 %v5005, %v6295
      %v6392 = vadd.f32 %v5006, %v6296
      %v6393 = vadd.f32 %v5007, %v6297
      %v6394 = vadd.f32 %v5008, %v6298
      %v6395 = vadd.f32 %v5009, %v6299
      %v6396 = vadd.f32 %v5010, %v6300
      %v6397 = vadd.f32 %v5011, %v6301
      %6398 = vst [vmem:[%s420] sm:$0xff] %v6302
      %6399 = vst [vmem:[%s420 + $0x8] sm:$0xff] %v6303
      %6400 = vst [vmem:[%s420 + $0x10] sm:$0xff] %v6304
      %6401 = vst [vmem:[%s420 + $0x18] sm:$0xff] %v6305
      %6402 = vst [vmem:[%s420 + $0x20] sm:$0xff] %v6306
      %6403 = vst [vmem:[%s420 + $0x28] sm:$0xff] %v6307
      %6404 = vst [vmem:[%s420 + $0x30] sm:$0xff] %v6308
      %6405 = vst [vmem:[%s420 + $0x38] sm:$0xff] %v6309
      %6406 = vst [vmem:[%s420 + $0x40] sm:$0xff] %v6310
      %6407 = vst [vmem:[%s420 + $0x48] sm:$0xff] %v6311
      %6408 = vst [vmem:[%s420 + $0x50] sm:$0xff] %v6312
      %6409 = vst [vmem:[%s420 + $0x58] sm:$0xff] %v6313
      %6410 = vst [vmem:[%s420 + $0x60] sm:$0xff] %v6314
      %6411 = vst [vmem:[%s420 + $0x68] sm:$0xff] %v6315
      %6412 = vst [vmem:[%s420 + $0x70] sm:$0xff] %v6316
      %6413 = vst [vmem:[%s420 + $0x78] sm:$0xff] %v6317
      %6414 = vst [vmem:[%s420 + $0x80] sm:$0xff] %v6318
      %6415 = vst [vmem:[%s420 + $0x88] sm:$0xff] %v6319
      %6416 = vst [vmem:[%s420 + $0x90] sm:$0xff] %v6320
      %6417 = vst [vmem:[%s420 + $0x98] sm:$0xff] %v6321
      %6418 = vst [vmem:[%s420 + $0xa0] sm:$0xff] %v6322
      %6419 = vst [vmem:[%s420 + $0xa8] sm:$0xff] %v6323
      %6420 = vst [vmem:[%s420 + $0xb0] sm:$0xff] %v6324
      %6421 = vst [vmem:[%s420 + $0xb8] sm:$0xff] %v6325
      %6422 = vst [vmem:[%s420 + $0xc0] sm:$0xff] %v6326
      %6423 = vst [vmem:[%s420 + $0xc8] sm:$0xff] %v6327
      %6424 = vst [vmem:[%s420 + $0xd0] sm:$0xff] %v6328
      %6425 = vst [vmem:[%s420 + $0xd8] sm:$0xff] %v6329
      %6426 = vst [vmem:[%s420 + $0xe0] sm:$0xff] %v6330
      %6427 = vst [vmem:[%s420 + $0xe8] sm:$0xff] %v6331
      %6428 = vst [vmem:[%s420 + $0xf0] sm:$0xff] %v6332
      %6429 = vst [vmem:[%s420 + $0xf8] sm:$0xff] %v6333
      %6430 = vst [vmem:[%s420 + $0x100] sm:$0xff] %v6334
      %6431 = vst [vmem:[%s420 + $0x108] sm:$0xff] %v6335
      %6432 = vst [vmem:[%s420 + $0x110] sm:$0xff] %v6336
      %6433 = vst [vmem:[%s420 + $0x118] sm:$0xff] %v6337
      %6434 = vst [vmem:[%s420 + $0x120] sm:$0xff] %v6338
      %6435 = vst [vmem:[%s420 + $0x128] sm:$0xff] %v6339
      %6436 = vst [vmem:[%s420 + $0x130] sm:$0xff] %v6340
      %6437 = vst [vmem:[%s420 + $0x138] sm:$0xff] %v6341
      %6438 = vst [vmem:[%s420 + $0x140] sm:$0xff] %v6342
      %6439 = vst [vmem:[%s420 + $0x148] sm:$0xff] %v6343
      %6440 = vst [vmem:[%s420 + $0x150] sm:$0xff] %v6344
      %6441 = vst [vmem:[%s420 + $0x158] sm:$0xff] %v6345
      %6442 = vst [vmem:[%s420 + $0x160] sm:$0xff] %v6346
      %6443 = vst [vmem:[%s420 + $0x168] sm:$0xff] %v6347
      %6444 = vst [vmem:[%s420 + $0x170] sm:$0xff] %v6348
      %6445 = vst [vmem:[%s420 + $0x178] sm:$0xff] %v6349
      %6446 = vst [vmem:[%s420 + $0x180] sm:$0xff] %v6350
      %6447 = vst [vmem:[%s420 + $0x188] sm:$0xff] %v6351
      %6448 = vst [vmem:[%s420 + $0x190] sm:$0xff] %v6352
      %6449 = vst [vmem:[%s420 + $0x198] sm:$0xff] %v6353
      %6450 = vst [vmem:[%s420 + $0x1a0] sm:$0xff] %v6354
      %6451 = vst [vmem:[%s420 + $0x1a8] sm:$0xff] %v6355
      %6452 = vst [vmem:[%s420 + $0x1b0] sm:$0xff] %v6356
      %6453 = vst [vmem:[%s420 + $0x1b8] sm:$0xff] %v6357
      %6454 = vst [vmem:[%s420 + $0x1c0] sm:$0xff] %v6358
      %6455 = vst [vmem:[%s420 + $0x1c8] sm:$0xff] %v6359
      %6456 = vst [vmem:[%s420 + $0x1d0] sm:$0xff] %v6360
      %6457 = vst [vmem:[%s420 + $0x1d8] sm:$0xff] %v6361
      %6458 = vst [vmem:[%s420 + $0x1e0] sm:$0xff] %v6362
      %6459 = vst [vmem:[%s420 + $0x1e8] sm:$0xff] %v6363
      %6460 = vst [vmem:[%s420 + $0x1f0] sm:$0xff] %v6364
      %6461 = vst [vmem:[%s420 + $0x1f8] sm:$0xff] %v6365
      %6462 = vst [vmem:[%s420 + $0x200] sm:$0xff] %v6366
      %6463 = vst [vmem:[%s420 + $0x208] sm:$0xff] %v6367
      %6464 = vst [vmem:[%s420 + $0x210] sm:$0xff] %v6368
      %6465 = vst [vmem:[%s420 + $0x218] sm:$0xff] %v6369
      %6466 = vst [vmem:[%s420 + $0x220] sm:$0xff] %v6370
      %6467 = vst [vmem:[%s420 + $0x228] sm:$0xff] %v6371
      %6468 = vst [vmem:[%s420 + $0x230] sm:$0xff] %v6372
      %6469 = vst [vmem:[%s420 + $0x238] sm:$0xff] %v6373
      %6470 = vst [vmem:[%s420 + $0x240] sm:$0xff] %v6374
      %6471 = vst [vmem:[%s420 + $0x248] sm:$0xff] %v6375
      %6472 = vst [vmem:[%s420 + $0x250] sm:$0xff] %v6376
      %6473 = vst [vmem:[%s420 + $0x258] sm:$0xff] %v6377
      %6474 = vst [vmem:[%s420 + $0x260] sm:$0xff] %v6378
      %6475 = vst [vmem:[%s420 + $0x268] sm:$0xff] %v6379
      %6476 = vst [vmem:[%s420 + $0x270] sm:$0xff] %v6380
      %6477 = vst [vmem:[%s420 + $0x278] sm:$0xff] %v6381
      %6478 = vst [vmem:[%s420 + $0x280] sm:$0xff] %v6382
      %6479 = vst [vmem:[%s420 + $0x288] sm:$0xff] %v6383
      %6480 = vst [vmem:[%s420 + $0x290] sm:$0xff] %v6384
      %6481 = vst [vmem:[%s420 + $0x298] sm:$0xff] %v6385
      %6482 = vst [vmem:[%s420 + $0x2a0] sm:$0xff] %v6386
      %6483 = vst [vmem:[%s420 + $0x2a8] sm:$0xff] %v6387
      %6484 = vst [vmem:[%s420 + $0x2b0] sm:$0xff] %v6388
      %6485 = vst [vmem:[%s420 + $0x2b8] sm:$0xff] %v6389
      %6486 = vst [vmem:[%s420 + $0x2c0] sm:$0xff] %v6390
      %6487 = vst [vmem:[%s420 + $0x2c8] sm:$0xff] %v6391
      %6488 = vst [vmem:[%s420 + $0x2d0] sm:$0xff] %v6392
      %6489 = vst [vmem:[%s420 + $0x2d8] sm:$0xff] %v6393
      %6490 = vst [vmem:[%s420 + $0x2e0] sm:$0xff] %v6394
      %6491 = vst [vmem:[%s420 + $0x2e8] sm:$0xff] %v6395
      %6492 = vst [vmem:[%s420 + $0x2f0] sm:$0xff] %v6396
      %6493 = vst [vmem:[%s420 + $0x2f8] sm:$0xff] %v6397
      %s6494 = smul.u32 8, %s25
      %p6495 = scmp.lt.s32.totalorder %s26, 1
      %s6496 = scalar_select %p6495, %s26, 1
      %p6497 = scmp.lt.s32.totalorder %s6494, 7
      %s6498 = scalar_select %p6497, %s6494, 7
      %s6499 = smul.addr %s6496, 96
      %s6500 = sadd.s32 %s6498, %s6499
      %s6501 = smul.addr %s6500, 8
      %s6502 = scalar_lea.vmem %s8, %s6501
      %s6503 = smul.u32 8, %s25
      %p6504 = scmp.lt.s32.totalorder %s26, 1
      %s6505 = scalar_select %p6504, %s26, 1
      %p6506 = scmp.lt.s32.totalorder %s6503, 7
      %s6507 = scalar_select %p6506, %s6503, 7
      %s6508 = smul.addr %s6505, 16
      %s6509 = sadd.s32 %s6507, %s6508
      %s6510 = smul.addr %s6509, 8
      %s6511 = scalar_lea.vmem %s9, %s6510
      // Predicated region
      $region53: #{vn_std_feature.5} parent=51 // pred_check
        %p6512 = pneg %p235
      $region54: #{vn_std_feature.5} parent=51 // pred_check_branch
        %6514 = sbr.rel (%p6512) target = $region56
      $region55: #{vn_std_feature.5} parent=51 // pred_region
        %s6515 = smul.u32 8, %s25
      $region56: #{vn_std_feature.5} parent=51 // pred_fallthru
        _
      // Predicated region
      $region57: #{vn_std_feature.5} parent=51 // pred_check
        %p6516 = pneg %p263
      $region58: #{vn_std_feature.5} parent=51 // pred_check_branch
        %6518 = sbr.rel (%p6516) target = $region60
      $region59: #{vn_std_feature.5} parent=51 // pred_region
        %s6519 = smul.u32 8, %s25
      $region60: #{vn_std_feature.5} parent=51 // pred_fallthru
        _
    $region52: #{vn_std_feature.5} parent=5 // pred_fallthru
      _
    %p6520 = scmp.le.s32.totalorder 2, %s16
    // Predicated region
    $region61: #{vn_std_feature.5} parent=5 // pred_check
      %p6521 = pneg %p6520
    $region62: #{vn_std_feature.5} parent=5 // pred_check_branch
      %6523 = sbr.rel (%p6521) target = $region64
    $region63: #{vn_std_feature.5} parent=5 // pred_region
      %s6524 = ssub.s32 %s16, 2
      // Predicated region
      $region65: #{vn_std_feature.5} parent=63 // pred_check
        %p6525 = pneg %p241
      $region66: #{vn_std_feature.5} parent=63 // pred_check_branch
        %6527 = sbr.rel (%p6525) target = $region68
      $region67: #{vn_std_feature.5} parent=63 // pred_region
        %s6528 = smul.u32 8, %s27
        %p6529 = scmp.lt.s32.totalorder %s28, 1
        %s6530 = scalar_select %p6529, %s28, 1
        %p6531 = scmp.lt.s32.totalorder %s6528, 7
        %s6532 = scalar_select %p6531, %s6528, 7
        %s6533 = smul.addr %s6530, 96
        %s6534 = sadd.s32 %s6532, %s6533
        %s6535 = smul.addr %s6534, 8
        %s6536 = scalar_lea.vmem %s8, %s6535
      $region68: #{vn_std_feature.5} parent=63 // pred_fallthru
        _
      // Predicated region
      $region69: #{vn_std_feature.5} parent=63 // pred_check
        %p6537 = pneg %p269
      $region70: #{vn_std_feature.5} parent=63 // pred_check_branch
        %6539 = sbr.rel (%p6537) target = $region72
      $region71: #{vn_std_feature.5} parent=63 // pred_region
        %s6540 = smul.u32 8, %s27
        %p6541 = scmp.lt.s32.totalorder %s28, 1
        %s6542 = scalar_select %p6541, %s28, 1
        %p6543 = scmp.lt.s32.totalorder %s6540, 7
        %s6544 = scalar_select %p6543, %s6540, 7
        %s6545 = smul.addr %s6542, 16
        %s6546 = sadd.s32 %s6544, %s6545
        %s6547 = smul.addr %s6546, 8
        %s6548 = scalar_lea.vmem %s9, %s6547
      $region72: #{vn_std_feature.5} parent=63 // pred_fallthru
        _
    $region64: #{vn_std_feature.5} parent=5 // pred_fallthru
      _
  $region6: #{vn_std_feature.5} parent=0 // loop_footer
    %s20 = sadd.s32 1, %s16
  $region7: #{vn_std_feature.5} parent=0 // loop_footer_branch
    %15 = sbr.rel target = $region3
  $region8: #{vn_std_feature.5} parent=0 // loop_exit
    _

</llo_original>
